<compile_context>
chip_gen: v7x
topology: tpu7x:2x2x1
jax: 0.10.0
libtpu: 0.0.40
codegen_flags: <defaults>
</compile_context>

<pallas_src>
import functools

import jax
import jax.numpy as jnp
from jax import lax
from jax.experimental import pallas as pl
from jax.experimental.pallas import tpu as pltpu
import numpy as np


B_TILE = 8                    # samples per grid step (stacked into MXU M dim)
M_ROWS = B_TILE * 32          # stacked slab rows per grid step


# ----------------------------- Pallas kernel --------------------------------
#
# Per-sample layouts inside a stacked slab (rows = 32*s + image height,
# lanes = width*channels):
#   x      : rows s*32+h,        lanes w*4  + c   (3 real channels + 1 zero pad)
#   conv1  : rows s*32+oh (0..27) valid, lanes ow*8 + o   (6 real + 2 pad + tail)
#   pool1  : valid at rows s*32+2i,      lanes 16*j  + o  (14x14x6)
#   conv2  : valid at rows s*32+2*oh2,   lanes 16*ow + o2 (10x10x16)
#   pool2  : valid at rows s*32+4*i2,    lanes 32*j2 + o2 (5x5x16)
# Invalid rows/lanes carry finite pooling by-products; they are killed by zero
# rows in the banded/fc weights and by the 0/1 selection matrices.

def _lenet_kernel(x_ref, w1_ref, b1_ref, w2_ref, b2_ref, sel_ref,
                  fc1w_ref, fc1b_ref, fc2w_ref, fc2b_ref, fc3w_ref, fc3b_ref,
                  o_ref, z1_ref, p1_ref, z2_ref):
    f32 = jnp.float32
    bf16 = jnp.bfloat16
    M = M_ROWS

    # ---- conv1 (3->6, k=5): 5 banded matmuls over the stacked (M,128) slab --
    acc1 = jnp.dot(x_ref[0:M, :], w1_ref[0], preferred_element_type=f32)
    for ki in range(1, 5):
        acc1 = acc1 + jnp.dot(x_ref[ki:ki + M, :], w1_ref[ki],
                              preferred_element_type=f32)
    z1_ref[0:M, :] = acc1 + b1_ref[...]
    z1_ref[M:M + 8, :] = jnp.zeros((8, 232), f32)   # keep shifted reads finite

    # ---- maxpool 2x2 + ReLU (valid at per-sample even rows, 16j+o lanes) ----
    m1 = jnp.maximum(
        jnp.maximum(z1_ref[0:M, 0:224], z1_ref[0:M, 8:232]),
        jnp.maximum(z1_ref[1:1 + M, 0:224], z1_ref[1:1 + M, 8:232]))
    p1_ref[0:M, :] = jnp.maximum(m1, 0.0).astype(bf16)
    p1_ref[M:M + 8, :] = jnp.zeros((8, 224), bf16)

    # ---- conv2 (6->16, k=5): 5 banded matmuls, row stride 2 -----------------
    acc2 = jnp.dot(p1_ref[0:M, :], w2_ref[0], preferred_element_type=f32)
    for ki in range(1, 5):
        acc2 = acc2 + jnp.dot(p1_ref[2 * ki:2 * ki + M, :], w2_ref[ki],
                              preferred_element_type=f32)
    z2_ref[0:M, :] = acc2 + b2_ref[...]
    z2_ref[M:M + 8, :] = jnp.zeros((8, 160), f32)

    # ---- maxpool 2x2 + ReLU (valid at per-sample rows 4*i2, 32j2+o2 lanes) --
    m2 = jnp.maximum(
        jnp.maximum(z2_ref[0:M, 0:144], z2_ref[0:M, 16:160]),
        jnp.maximum(z2_ref[2:2 + M, 0:144], z2_ref[2:2 + M, 16:160]))
    p2 = jnp.maximum(m2, 0.0).astype(bf16)           # (M, 144) value

    # ---- flatten + fc1(400->120), batched over the tile ---------------------
    # For each of the 5 valid pool2 rows per sample, gather the B_TILE rows
    # with a 0/1 selection matmul, then one (B_TILE,144)x(144,128) dot.
    h = jnp.zeros((B_TILE, 128), f32) + fc1b_ref[...]
    for i2 in range(5):
        g = jnp.dot(sel_ref[i2], p2, preferred_element_type=f32).astype(bf16)
        h = h + jnp.dot(g, fc1w_ref[i2], preferred_element_type=f32)
    h = jnp.maximum(h, 0.0)

    # ---- fc2(120->84) + ReLU, Dropout(eval)=identity, fc3(84->n_out) --------
    # TODO(synk): nn.Dropout(p=0.2) is identity (eval mode).
    h = jnp.maximum(
        jnp.dot(h.astype(bf16), fc2w_ref[...], preferred_element_type=f32)
        + fc2b_ref[...], 0.0)
    out = (jnp.dot(h.astype(bf16), fc3w_ref[...], preferred_element_type=f32)
           + fc3b_ref[...])
    o_ref[...] = out.astype(o_ref.dtype)


# ----------------------- host-side weight packing (once) --------------------

def pack_params(params):
    """Repack PyTorch-layout weights into banded bf16 matrices matching the
    kernel's stacked planar-wide activation layout (done once, off hot path)."""
    (cw1, cb1, cw2, cb2, fw1, fb1, fw2, fb2, fw3, fb3) = [
        np.asarray(p, np.float32) for p in params]
    n_out = fw3.shape[0]
    nout_pad = max(128, ((n_out + 127) // 128) * 128)

    # conv1: w1[ki, w*4 + c, ow*8 + o] = cw1[o, c, ki, w - ow]  (0 <= w-ow <= 4)
    w1 = np.zeros((5, 128, 232), np.float32)
    b1 = np.zeros((1, 232), np.float32)
    for ki in range(5):
        for ow in range(28):
            for kj in range(5):
                w = ow + kj
                w1[ki, w * 4:w * 4 + 3, ow * 8:ow * 8 + 6] = cw1[:, :, ki, kj].T
    for ow in range(28):
        b1[0, ow * 8:ow * 8 + 6] = cb1

    # conv2: w2[ki, j*16 + c, ow*16 + o2] = cw2[o2, c, ki, j - ow]
    w2 = np.zeros((5, 224, 160), np.float32)
    b2 = np.zeros((1, 160), np.float32)
    for ki in range(5):
        for ow in range(10):
            for kj in range(5):
                j = ow + kj
                w2[ki, j * 16:j * 16 + 6, ow * 16:ow * 16 + 16] = cw2[:, :, ki, kj].T
    for ow in range(10):
        b2[0, ow * 16:ow * 16 + 16] = cb2

    # fc1: rows indexed by the pool2 lane layout (32*j2 + o2), stacked over i2,
    # output padded 120 -> 128 lanes.  Matches PyTorch flatten order
    # (c*25 + i*5 + j).  Zero rows kill the pooling-garbage lanes.
    fc1w = np.zeros((5, 144, 128), np.float32)
    for i2 in range(5):
        for j2 in range(5):
            for o2 in range(16):
                fc1w[i2, 32 * j2 + o2, :120] = fw1[:, o2 * 25 + i2 * 5 + j2]
    fc1b = np.zeros((1, 128), np.float32)
    fc1b[0, :120] = fb1

    fc2w = np.zeros((128, 128), np.float32)
    fc2w[:120, :84] = fw2.T
    fc2b = np.zeros((1, 128), np.float32)
    fc2b[0, :84] = fb2

    fc3w = np.zeros((128, nout_pad), np.float32)
    fc3w[:84, :n_out] = fw3.T
    fc3b = np.zeros((1, nout_pad), np.float32)
    fc3b[0, :n_out] = fb3

    # Row-gather matrices for fc1: sel[i2, s, s*32 + 4*i2] = 1.
    sel = np.zeros((5, B_TILE, M_ROWS), np.float32)
    for i2 in range(5):
        for s in range(B_TILE):
            sel[i2, s, s * 32 + 4 * i2] = 1.0

    return dict(
        w1=jnp.asarray(w1, jnp.bfloat16), b1=jnp.asarray(b1, jnp.float32),
        w2=jnp.asarray(w2, jnp.bfloat16), b2=jnp.asarray(b2, jnp.float32),
        sel=jnp.asarray(sel, jnp.bfloat16),
        fc1w=jnp.asarray(fc1w, jnp.bfloat16), fc1b=jnp.asarray(fc1b, jnp.float32),
        fc2w=jnp.asarray(fc2w, jnp.bfloat16), fc2b=jnp.asarray(fc2b, jnp.float32),
        fc3w=jnp.asarray(fc3w, jnp.bfloat16), fc3b=jnp.asarray(fc3b, jnp.float32),
    )


# ------------------------------- forward ------------------------------------

@functools.partial(jax.jit, static_argnames=("n_out",))
def lenet_forward(x, packed, *, n_out):
    B = x.shape[0]
    nout_pad = packed["fc3b"].shape[-1]
    n_tiles = -(-B // B_TILE)
    Bp = n_tiles * B_TILE

    # NCHW -> channel-last planar-wide bf16 slabs of B_TILE stacked samples.
    xp = jnp.transpose(x, (0, 2, 3, 1)).astype(jnp.bfloat16)     # (B,32,32,3)
    xp = jnp.pad(xp, ((0, Bp - B), (0, 0), (0, 0), (0, 1)))      # (Bp,32,32,4)
    xp = xp.reshape(n_tiles, M_ROWS, 128)                        # stacked slabs
    xp = jnp.pad(xp, ((0, 0), (0, 8), (0, 0)))                   # +8 zero rows

    w_names = ("w1", "b1", "w2", "b2", "sel", "fc1w", "fc1b",
               "fc2w", "fc2b", "fc3w", "fc3b")
    ws = [packed[k] for k in w_names]

    def _resident(a):
        nd = a.ndim

        def imap(t):
            return (0,) * nd                 # grid-invariant -> stays resident
        return pl.BlockSpec(a.shape, imap)

    out = pl.pallas_call(
        _lenet_kernel,
        out_shape=jax.ShapeDtypeStruct((n_tiles, B_TILE, nout_pad), jnp.float32),
        grid=(n_tiles,),
        in_specs=[pl.BlockSpec((None, M_ROWS + 8, 128), lambda t: (t, 0, 0))]
                 + [_resident(a) for a in ws],
        out_specs=pl.BlockSpec((None, B_TILE, nout_pad), lambda t: (t, 0, 0)),
        scratch_shapes=[
            pltpu.VMEM((M_ROWS + 8, 232), jnp.float32),    # conv1 pre-pool
            pltpu.VMEM((M_ROWS + 8, 224), jnp.bfloat16),   # pool1 (bf16 MXU lhs)
            pltpu.VMEM((M_ROWS + 8, 160), jnp.float32),    # conv2 pre-pool
        ],
        compiler_params=pltpu.CompilerParams(
            dimension_semantics=("parallel",)),
    )(xp, *ws)
    return out.reshape(Bp, nout_pad)[:B, :n_out]


# ---------------------------- pure-JAX reference ----------------------------

def lenet_reference(x, params):
    (cw1, cb1, cw2, cb2, fw1, fb1, fw2, fb2, fw3, fb3) = params
    dn = ("NCHW", "OIHW", "NCHW")
    y = lax.conv_general_dilated(x, cw1, (1, 1), "VALID", dimension_numbers=dn)
    y = y + cb1[None, :, None, None]
    y = lax.reduce_window(y, -jnp.inf, lax.max, (1, 1, 2, 2), (1, 1, 2, 2), "VALID")
    y = jnp.maximum(y, 0.0)
    y = lax.conv_general_dilated(y, cw2, (1, 1), "VALID", dimension_numbers=dn)
    y = y + cb2[None, :, None, None]
    y = lax.reduce_window(y, -jnp.inf, lax.max, (1, 1, 2, 2), (1, 1, 2, 2), "VALID")
    y = jnp.maximum(y, 0.0)
    y = y.reshape(y.shape[0], -1)
    y = jnp.maximum(y @ fw1.T + fb1, 0.0)
    y = jnp.maximum(y @ fw2.T + fb2, 0.0)
    return y @ fw3.T + fb3


# --------------------------------- driver -----------------------------------

def init_params(key, out_features):
    ks = jax.random.split(key, 10)
    s = 0.05
    cw1 = jax.random.normal(ks[0], (6, 3, 5, 5), jnp.float32) * s
    cb1 = jax.random.normal(ks[1], (6,), jnp.float32) * s
    cw2 = jax.random.normal(ks[2], (16, 6, 5, 5), jnp.float32) * s
    cb2 = jax.random.normal(ks[3], (16,), jnp.float32) * s
    fw1 = jax.random.normal(ks[4], (120, 400), jnp.float32) * s
    fb1 = jax.random.normal(ks[5], (120,), jnp.float32) * s
    fw2 = jax.random.normal(ks[6], (84, 120), jnp.float32) * s
    fb2 = jax.random.normal(ks[7], (84,), jnp.float32) * s
    fw3 = jax.random.normal(ks[8], (out_features, 84), jnp.float32) * s
    fb3 = jax.random.normal(ks[9], (out_features,), jnp.float32) * s
    return (cw1, cb1, cw2, cb2, fw1, fb1, fw2, fb2, fw3, fb3)


if __name__ == "__main__":
    key = jax.random.PRNGKey(0)
    k_x, k_p = jax.random.split(key)

    out_features = 10
    B = 12   # exercises 2 grid steps (v7x megacore) and the batch-padding path
    x = jax.random.normal(k_x, (B, 3, 32, 32), jnp.float32)   # NCHW LeNet input
    params = init_params(k_p, out_features)
    packed = pack_params(params)

    out = jax.block_until_ready(lenet_forward(x, packed, n_out=out_features))
    ref = jax.block_until_ready(lenet_reference(x, params))

    assert out.shape == (B, out_features), out.shape
    # bf16 MXU operands (f32 accumulation) vs an all-f32 reference -> 2e-2 tol.
    np.testing.assert_allclose(np.asarray(out), np.asarray(ref),
                               rtol=2e-2, atol=2e-2)
    print("KERNEL_OK")
</pallas_src>

<mosaic_0001>
module attributes {stable_mosaic.version = 11 : i64} {
  func.func @_lenet_kernel(%arg0: i32, %arg1: memref<1x264x128xbf16, #tpu.memory_space<vmem>>, %arg2: memref<5x128x232xbf16, #tpu.memory_space<vmem>>, %arg3: memref<1x232xf32, #tpu.memory_space<vmem>>, %arg4: memref<5x224x160xbf16, #tpu.memory_space<vmem>>, %arg5: memref<1x160xf32, #tpu.memory_space<vmem>>, %arg6: memref<5x8x256xbf16, #tpu.memory_space<vmem>>, %arg7: memref<5x144x128xbf16, #tpu.memory_space<vmem>>, %arg8: memref<1x128xf32, #tpu.memory_space<vmem>>, %arg9: memref<128x128xbf16, #tpu.memory_space<vmem>>, %arg10: memref<1x128xf32, #tpu.memory_space<vmem>>, %arg11: memref<128x128xbf16, #tpu.memory_space<vmem>>, %arg12: memref<1x128xf32, #tpu.memory_space<vmem>>, %arg13: memref<1x8x128xf32, #tpu.memory_space<vmem>>, %arg14: memref<264x232xf32, #tpu.memory_space<vmem>>, %arg15: memref<264x224xbf16, #tpu.memory_space<vmem>>, %arg16: memref<264x160xf32, #tpu.memory_space<vmem>>) attributes {dimension_semantics = [#tpu.dimension_semantics<parallel>], iteration_bounds = array<i64: 2>, scalar_prefetch = 0 : i64, scratch_operands = 3 : i64, tpu.core_type = #tpu.core_type<tc>, window_params = [{transform_indices = @transform_0, window_bounds = array<i64: 1, 264, 128>}, {pipeline_mode = #tpu.pipeline_mode<synchronous>, transform_indices = @transform_1, window_bounds = array<i64: 5, 128, 232>}, {pipeline_mode = #tpu.pipeline_mode<synchronous>, transform_indices = @transform_2, window_bounds = array<i64: 1, 232>}, {pipeline_mode = #tpu.pipeline_mode<synchronous>, transform_indices = @transform_3, window_bounds = array<i64: 5, 224, 160>}, {pipeline_mode = #tpu.pipeline_mode<synchronous>, transform_indices = @transform_4, window_bounds = array<i64: 1, 160>}, {pipeline_mode = #tpu.pipeline_mode<synchronous>, transform_indices = @transform_5, window_bounds = array<i64: 5, 8, 256>}, {pipeline_mode = #tpu.pipeline_mode<synchronous>, transform_indices = @transform_6, window_bounds = array<i64: 5, 144, 128>}, {pipeline_mode = #tpu.pipeline_mode<synchronous>, transform_indices = @transform_7, window_bounds = array<i64: 1, 128>}, {pipeline_mode = #tpu.pipeline_mode<synchronous>, transform_indices = @transform_8, window_bounds = array<i64: 128, 128>}, {pipeline_mode = #tpu.pipeline_mode<synchronous>, transform_indices = @transform_9, window_bounds = array<i64: 1, 128>}, {pipeline_mode = #tpu.pipeline_mode<synchronous>, transform_indices = @transform_10, window_bounds = array<i64: 128, 128>}, {pipeline_mode = #tpu.pipeline_mode<synchronous>, transform_indices = @transform_11, window_bounds = array<i64: 1, 128>}, {transform_indices = @transform_12, window_bounds = array<i64: 1, 8, 128>}]} {
    %c0 = arith.constant 0 : index
    %c0_0 = arith.constant 0 : index
    %c0_1 = arith.constant 0 : index
    %0 = vector.load %arg1[%c0, %c0_0, %c0_1] : memref<1x264x128xbf16, #tpu.memory_space<vmem>>, vector<1x256x128xbf16>
    %1 = vector.shape_cast %0 : vector<1x256x128xbf16> to vector<256x128xbf16>
    %c0_2 = arith.constant 0 : index
    %c0_3 = arith.constant 0 : index
    %c0_4 = arith.constant 0 : index
    %2 = vector.load %arg2[%c0_2, %c0_3, %c0_4] : memref<5x128x232xbf16, #tpu.memory_space<vmem>>, vector<1x128x232xbf16>
    %3 = vector.shape_cast %2 : vector<1x128x232xbf16> to vector<128x232xbf16>
    %cst = arith.constant dense<0.000000e+00> : vector<256x232xf32>
    %4 = tpu.matmul %1, %3, %cst {dimension_numbers = #tpu.dot_dimension_numbers<[1], [0], [0], [1], [0, 0, 1, 1], [], []>} : vector<256x128xbf16>, vector<128x232xbf16>, vector<256x232xf32> -> vector<256x232xf32>
    %c0_5 = arith.constant 0 : index
    %c1 = arith.constant 1 : index
    %c0_6 = arith.constant 0 : index
    %5 = vector.load %arg1[%c0_5, %c1, %c0_6] : memref<1x264x128xbf16, #tpu.memory_space<vmem>>, vector<1x256x128xbf16>
    %6 = vector.shape_cast %5 : vector<1x256x128xbf16> to vector<256x128xbf16>
    %c1_7 = arith.constant 1 : index
    %c0_8 = arith.constant 0 : index
    %c0_9 = arith.constant 0 : index
    %7 = vector.load %arg2[%c1_7, %c0_8, %c0_9] : memref<5x128x232xbf16, #tpu.memory_space<vmem>>, vector<1x128x232xbf16>
    %8 = vector.shape_cast %7 : vector<1x128x232xbf16> to vector<128x232xbf16>
    %cst_10 = arith.constant dense<0.000000e+00> : vector<256x232xf32>
    %9 = tpu.matmul %6, %8, %cst_10 {dimension_numbers = #tpu.dot_dimension_numbers<[1], [0], [0], [1], [0, 0, 1, 1], [], []>} : vector<256x128xbf16>, vector<128x232xbf16>, vector<256x232xf32> -> vector<256x232xf32>
    %10 = arith.addf %4, %9 : vector<256x232xf32>
    %c0_11 = arith.constant 0 : index
    %c2 = arith.constant 2 : index
    %c0_12 = arith.constant 0 : index
    %11 = vector.load %arg1[%c0_11, %c2, %c0_12] : memref<1x264x128xbf16, #tpu.memory_space<vmem>>, vector<1x256x128xbf16>
    %12 = vector.shape_cast %11 : vector<1x256x128xbf16> to vector<256x128xbf16>
    %c2_13 = arith.constant 2 : index
    %c0_14 = arith.constant 0 : index
    %c0_15 = arith.constant 0 : index
    %13 = vector.load %arg2[%c2_13, %c0_14, %c0_15] : memref<5x128x232xbf16, #tpu.memory_space<vmem>>, vector<1x128x232xbf16>
    %14 = vector.shape_cast %13 : vector<1x128x232xbf16> to vector<128x232xbf16>
    %cst_16 = arith.constant dense<0.000000e+00> : vector<256x232xf32>
    %15 = tpu.matmul %12, %14, %cst_16 {dimension_numbers = #tpu.dot_dimension_numbers<[1], [0], [0], [1], [0, 0, 1, 1], [], []>} : vector<256x128xbf16>, vector<128x232xbf16>, vector<256x232xf32> -> vector<256x232xf32>
    %16 = arith.addf %10, %15 : vector<256x232xf32>
    %c0_17 = arith.constant 0 : index
    %c3 = arith.constant 3 : index
    %c0_18 = arith.constant 0 : index
    %17 = vector.load %arg1[%c0_17, %c3, %c0_18] : memref<1x264x128xbf16, #tpu.memory_space<vmem>>, vector<1x256x128xbf16>
    %18 = vector.shape_cast %17 : vector<1x256x128xbf16> to vector<256x128xbf16>
    %c3_19 = arith.constant 3 : index
    %c0_20 = arith.constant 0 : index
    %c0_21 = arith.constant 0 : index
    %19 = vector.load %arg2[%c3_19, %c0_20, %c0_21] : memref<5x128x232xbf16, #tpu.memory_space<vmem>>, vector<1x128x232xbf16>
    %20 = vector.shape_cast %19 : vector<1x128x232xbf16> to vector<128x232xbf16>
    %cst_22 = arith.constant dense<0.000000e+00> : vector<256x232xf32>
    %21 = tpu.matmul %18, %20, %cst_22 {dimension_numbers = #tpu.dot_dimension_numbers<[1], [0], [0], [1], [0, 0, 1, 1], [], []>} : vector<256x128xbf16>, vector<128x232xbf16>, vector<256x232xf32> -> vector<256x232xf32>
    %22 = arith.addf %16, %21 : vector<256x232xf32>
    %c0_23 = arith.constant 0 : index
    %c4 = arith.constant 4 : index
    %c0_24 = arith.constant 0 : index
    %23 = vector.load %arg1[%c0_23, %c4, %c0_24] : memref<1x264x128xbf16, #tpu.memory_space<vmem>>, vector<1x256x128xbf16>
    %24 = vector.shape_cast %23 : vector<1x256x128xbf16> to vector<256x128xbf16>
    %c4_25 = arith.constant 4 : index
    %c0_26 = arith.constant 0 : index
    %c0_27 = arith.constant 0 : index
    %25 = vector.load %arg2[%c4_25, %c0_26, %c0_27] : memref<5x128x232xbf16, #tpu.memory_space<vmem>>, vector<1x128x232xbf16>
    %26 = vector.shape_cast %25 : vector<1x128x232xbf16> to vector<128x232xbf16>
    %cst_28 = arith.constant dense<0.000000e+00> : vector<256x232xf32>
    %27 = tpu.matmul %24, %26, %cst_28 {dimension_numbers = #tpu.dot_dimension_numbers<[1], [0], [0], [1], [0, 0, 1, 1], [], []>} : vector<256x128xbf16>, vector<128x232xbf16>, vector<256x232xf32> -> vector<256x232xf32>
    %28 = arith.addf %22, %27 : vector<256x232xf32>
    %c0_29 = arith.constant 0 : index
    %c0_30 = arith.constant 0 : index
    %29 = vector.load %arg3[%c0_29, %c0_30] : memref<1x232xf32, #tpu.memory_space<vmem>>, vector<1x232xf32>
    %30 = vector.broadcast %29 : vector<1x232xf32> to vector<256x232xf32>
    %31 = arith.addf %28, %30 : vector<256x232xf32>
    %c0_31 = arith.constant 0 : index
    %c0_32 = arith.constant 0 : index
    %32 = vector.load %arg14[%c0_31, %c0_32] : memref<264x232xf32, #tpu.memory_space<vmem>>, vector<256x232xf32>
    tpu.vector_store %arg14[%c0_31, %c0_32], %31 {strides = array<i32>} : memref<264x232xf32, #tpu.memory_space<vmem>>, vector<256x232xf32>,
    %cst_33 = arith.constant 0.000000e+00 : f32
    %33 = vector.broadcast %cst_33 : f32 to vector<8x232xf32>
    %c256 = arith.constant 256 : index
    %c0_34 = arith.constant 0 : index
    %34 = vector.load %arg14[%c256, %c0_34] : memref<264x232xf32, #tpu.memory_space<vmem>>, vector<8x232xf32>
    tpu.vector_store %arg14[%c256, %c0_34], %33 {strides = array<i32>} : memref<264x232xf32, #tpu.memory_space<vmem>>, vector<8x232xf32>,
    %c0_35 = arith.constant 0 : index
    %c0_36 = arith.constant 0 : index
    %35 = vector.load %arg14[%c0_35, %c0_36] : memref<264x232xf32, #tpu.memory_space<vmem>>, vector<256x224xf32>
    %c0_37 = arith.constant 0 : index
    %c8 = arith.constant 8 : index
    %36 = vector.load %arg14[%c0_37, %c8] : memref<264x232xf32, #tpu.memory_space<vmem>>, vector<256x224xf32>
    %37 = arith.maximumf %35, %36 : vector<256x224xf32>
    %c1_38 = arith.constant 1 : index
    %c0_39 = arith.constant 0 : index
    %38 = vector.load %arg14[%c1_38, %c0_39] : memref<264x232xf32, #tpu.memory_space<vmem>>, vector<256x224xf32>
    %c1_40 = arith.constant 1 : index
    %c8_41 = arith.constant 8 : index
    %39 = vector.load %arg14[%c1_40, %c8_41] : memref<264x232xf32, #tpu.memory_space<vmem>>, vector<256x224xf32>
    %40 = arith.maximumf %38, %39 : vector<256x224xf32>
    %41 = arith.maximumf %37, %40 : vector<256x224xf32>
    %cst_42 = arith.constant 0.000000e+00 : f32
    %42 = vector.broadcast %cst_42 : f32 to vector<256x224xf32>
    %43 = arith.maximumf %41, %42 : vector<256x224xf32>
    %44 = arith.truncf %43 : vector<256x224xf32> to vector<256x224xbf16>
    %c0_43 = arith.constant 0 : index
    %c0_44 = arith.constant 0 : index
    %45 = vector.load %arg15[%c0_43, %c0_44] : memref<264x224xbf16, #tpu.memory_space<vmem>>, vector<256x224xbf16>
    tpu.vector_store %arg15[%c0_43, %c0_44], %44 {strides = array<i32>} : memref<264x224xbf16, #tpu.memory_space<vmem>>, vector<256x224xbf16>,
    %cst_45 = arith.constant 0.000000e+00 : bf16
    %46 = vector.broadcast %cst_45 : bf16 to vector<8x224xbf16>
    %c256_46 = arith.constant 256 : index
    %c0_47 = arith.constant 0 : index
    %47 = vector.load %arg15[%c256_46, %c0_47] : memref<264x224xbf16, #tpu.memory_space<vmem>>, vector<8x224xbf16>
    tpu.vector_store %arg15[%c256_46, %c0_47], %46 {strides = array<i32>} : memref<264x224xbf16, #tpu.memory_space<vmem>>, vector<8x224xbf16>,
    %c0_48 = arith.constant 0 : index
    %c0_49 = arith.constant 0 : index
    %48 = vector.load %arg15[%c0_48, %c0_49] : memref<264x224xbf16, #tpu.memory_space<vmem>>, vector<256x224xbf16>
    %c0_50 = arith.constant 0 : index
    %c0_51 = arith.constant 0 : index
    %c0_52 = arith.constant 0 : index
    %49 = vector.load %arg4[%c0_50, %c0_51, %c0_52] : memref<5x224x160xbf16, #tpu.memory_space<vmem>>, vector<1x224x160xbf16>
    %50 = vector.shape_cast %49 : vector<1x224x160xbf16> to vector<224x160xbf16>
    %cst_53 = arith.constant dense<0.000000e+00> : vector<256x160xf32>
    %51 = tpu.matmul %48, %50, %cst_53 {dimension_numbers = #tpu.dot_dimension_numbers<[1], [0], [0], [1], [0, 0, 1, 1], [], []>} : vector<256x224xbf16>, vector<224x160xbf16>, vector<256x160xf32> -> vector<256x160xf32>
    %c2_54 = arith.constant 2 : index
    %c0_55 = arith.constant 0 : index
    %52 = vector.load %arg15[%c2_54, %c0_55] : memref<264x224xbf16, #tpu.memory_space<vmem>>, vector<256x224xbf16>
    %c1_56 = arith.constant 1 : index
    %c0_57 = arith.constant 0 : index
    %c0_58 = arith.constant 0 : index
    %53 = vector.load %arg4[%c1_56, %c0_57, %c0_58] : memref<5x224x160xbf16, #tpu.memory_space<vmem>>, vector<1x224x160xbf16>
    %54 = vector.shape_cast %53 : vector<1x224x160xbf16> to vector<224x160xbf16>
    %cst_59 = arith.constant dense<0.000000e+00> : vector<256x160xf32>
    %55 = tpu.matmul %52, %54, %cst_59 {dimension_numbers = #tpu.dot_dimension_numbers<[1], [0], [0], [1], [0, 0, 1, 1], [], []>} : vector<256x224xbf16>, vector<224x160xbf16>, vector<256x160xf32> -> vector<256x160xf32>
    %56 = arith.addf %51, %55 : vector<256x160xf32>
    %c4_60 = arith.constant 4 : index
    %c0_61 = arith.constant 0 : index
    %57 = vector.load %arg15[%c4_60, %c0_61] : memref<264x224xbf16, #tpu.memory_space<vmem>>, vector<256x224xbf16>
    %c2_62 = arith.constant 2 : index
    %c0_63 = arith.constant 0 : index
    %c0_64 = arith.constant 0 : index
    %58 = vector.load %arg4[%c2_62, %c0_63, %c0_64] : memref<5x224x160xbf16, #tpu.memory_space<vmem>>, vector<1x224x160xbf16>
    %59 = vector.shape_cast %58 : vector<1x224x160xbf16> to vector<224x160xbf16>
    %cst_65 = arith.constant dense<0.000000e+00> : vector<256x160xf32>
    %60 = tpu.matmul %57, %59, %cst_65 {dimension_numbers = #tpu.dot_dimension_numbers<[1], [0], [0], [1], [0, 0, 1, 1], [], []>} : vector<256x224xbf16>, vector<224x160xbf16>, vector<256x160xf32> -> vector<256x160xf32>
    %61 = arith.addf %56, %60 : vector<256x160xf32>
    %c6 = arith.constant 6 : index
    %c0_66 = arith.constant 0 : index
    %62 = vector.load %arg15[%c6, %c0_66] : memref<264x224xbf16, #tpu.memory_space<vmem>>, vector<256x224xbf16>
    %c3_67 = arith.constant 3 : index
    %c0_68 = arith.constant 0 : index
    %c0_69 = arith.constant 0 : index
    %63 = vector.load %arg4[%c3_67, %c0_68, %c0_69] : memref<5x224x160xbf16, #tpu.memory_space<vmem>>, vector<1x224x160xbf16>
    %64 = vector.shape_cast %63 : vector<1x224x160xbf16> to vector<224x160xbf16>
    %cst_70 = arith.constant dense<0.000000e+00> : vector<256x160xf32>
    %65 = tpu.matmul %62, %64, %cst_70 {dimension_numbers = #tpu.dot_dimension_numbers<[1], [0], [0], [1], [0, 0, 1, 1], [], []>} : vector<256x224xbf16>, vector<224x160xbf16>, vector<256x160xf32> -> vector<256x160xf32>
    %66 = arith.addf %61, %65 : vector<256x160xf32>
    %c8_71 = arith.constant 8 : index
    %c0_72 = arith.constant 0 : index
    %67 = vector.load %arg15[%c8_71, %c0_72] : memref<264x224xbf16, #tpu.memory_space<vmem>>, vector<256x224xbf16>
    %c4_73 = arith.constant 4 : index
    %c0_74 = arith.constant 0 : index
    %c0_75 = arith.constant 0 : index
    %68 = vector.load %arg4[%c4_73, %c0_74, %c0_75] : memref<5x224x160xbf16, #tpu.memory_space<vmem>>, vector<1x224x160xbf16>
    %69 = vector.shape_cast %68 : vector<1x224x160xbf16> to vector<224x160xbf16>
    %cst_76 = arith.constant dense<0.000000e+00> : vector<256x160xf32>
    %70 = tpu.matmul %67, %69, %cst_76 {dimension_numbers = #tpu.dot_dimension_numbers<[1], [0], [0], [1], [0, 0, 1, 1], [], []>} : vector<256x224xbf16>, vector<224x160xbf16>, vector<256x160xf32> -> vector<256x160xf32>
    %71 = arith.addf %66, %70 : vector<256x160xf32>
    %c0_77 = arith.constant 0 : index
    %c0_78 = arith.constant 0 : index
    %72 = vector.load %arg5[%c0_77, %c0_78] : memref<1x160xf32, #tpu.memory_space<vmem>>, vector<1x160xf32>
    %73 = vector.broadcast %72 : vector<1x160xf32> to vector<256x160xf32>
    %74 = arith.addf %71, %73 : vector<256x160xf32>
    %c0_79 = arith.constant 0 : index
    %c0_80 = arith.constant 0 : index
    %75 = vector.load %arg16[%c0_79, %c0_80] : memref<264x160xf32, #tpu.memory_space<vmem>>, vector<256x160xf32>
    tpu.vector_store %arg16[%c0_79, %c0_80], %74 {strides = array<i32>} : memref<264x160xf32, #tpu.memory_space<vmem>>, vector<256x160xf32>,
    %cst_81 = arith.constant 0.000000e+00 : f32
    %76 = vector.broadcast %cst_81 : f32 to vector<8x160xf32>
    %c256_82 = arith.constant 256 : index
    %c0_83 = arith.constant 0 : index
    %77 = vector.load %arg16[%c256_82, %c0_83] : memref<264x160xf32, #tpu.memory_space<vmem>>, vector<8x160xf32>
    tpu.vector_store %arg16[%c256_82, %c0_83], %76 {strides = array<i32>} : memref<264x160xf32, #tpu.memory_space<vmem>>, vector<8x160xf32>,
    %c0_84 = arith.constant 0 : index
    %c0_85 = arith.constant 0 : index
    %78 = vector.load %arg16[%c0_84, %c0_85] : memref<264x160xf32, #tpu.memory_space<vmem>>, vector<256x144xf32>
    %c0_86 = arith.constant 0 : index
    %c16 = arith.constant 16 : index
    %79 = vector.load %arg16[%c0_86, %c16] : memref<264x160xf32, #tpu.memory_space<vmem>>, vector<256x144xf32>
    %80 = arith.maximumf %78, %79 : vector<256x144xf32>
    %c2_87 = arith.constant 2 : index
    %c0_88 = arith.constant 0 : index
    %81 = vector.load %arg16[%c2_87, %c0_88] : memref<264x160xf32, #tpu.memory_space<vmem>>, vector<256x144xf32>
    %c2_89 = arith.constant 2 : index
    %c16_90 = arith.constant 16 : index
    %82 = vector.load %arg16[%c2_89, %c16_90] : memref<264x160xf32, #tpu.memory_space<vmem>>, vector<256x144xf32>
    %83 = arith.maximumf %81, %82 : vector<256x144xf32>
    %84 = arith.maximumf %80, %83 : vector<256x144xf32>
    %cst_91 = arith.constant 0.000000e+00 : f32
    %85 = vector.broadcast %cst_91 : f32 to vector<256x144xf32>
    %86 = arith.maximumf %84, %85 : vector<256x144xf32>
    %87 = arith.truncf %86 : vector<256x144xf32> to vector<256x144xbf16>
    %cst_92 = arith.constant 0.000000e+00 : f32
    %88 = vector.broadcast %cst_92 : f32 to vector<8x128xf32>
    %c0_93 = arith.constant 0 : index
    %c0_94 = arith.constant 0 : index
    %89 = vector.load %arg8[%c0_93, %c0_94] : memref<1x128xf32, #tpu.memory_space<vmem>>, vector<1x128xf32>
    %90 = vector.broadcast %89 : vector<1x128xf32> to vector<8x128xf32>
    %91 = arith.addf %88, %90 : vector<8x128xf32>
    %c0_95 = arith.constant 0 : index
    %c0_96 = arith.constant 0 : index
    %c0_97 = arith.constant 0 : index
    %92 = vector.load %arg6[%c0_95, %c0_96, %c0_97] : memref<5x8x256xbf16, #tpu.memory_space<vmem>>, vector<1x8x256xbf16>
    %93 = vector.shape_cast %92 : vector<1x8x256xbf16> to vector<8x256xbf16>
    %cst_98 = arith.constant dense<0.000000e+00> : vector<8x144xf32>
    %94 = tpu.matmul %93, %87, %cst_98 {dimension_numbers = #tpu.dot_dimension_numbers<[1], [0], [0], [1], [0, 0, 1, 1], [], []>} : vector<8x256xbf16>, vector<256x144xbf16>, vector<8x144xf32> -> vector<8x144xf32>
    %95 = arith.truncf %94 : vector<8x144xf32> to vector<8x144xbf16>
    %c0_99 = arith.constant 0 : index
    %c0_100 = arith.constant 0 : index
    %c0_101 = arith.constant 0 : index
    %96 = vector.load %arg7[%c0_99, %c0_100, %c0_101] : memref<5x144x128xbf16, #tpu.memory_space<vmem>>, vector<1x144x128xbf16>
    %97 = vector.shape_cast %96 : vector<1x144x128xbf16> to vector<144x128xbf16>
    %cst_102 = arith.constant dense<0.000000e+00> : vector<8x128xf32>
    %98 = tpu.matmul %95, %97, %cst_102 {dimension_numbers = #tpu.dot_dimension_numbers<[1], [0], [0], [1], [0, 0, 1, 1], [], []>} : vector<8x144xbf16>, vector<144x128xbf16>, vector<8x128xf32> -> vector<8x128xf32>
    %99 = arith.addf %91, %98 : vector<8x128xf32>
    %c1_103 = arith.constant 1 : index
    %c0_104 = arith.constant 0 : index
    %c0_105 = arith.constant 0 : index
    %100 = vector.load %arg6[%c1_103, %c0_104, %c0_105] : memref<5x8x256xbf16, #tpu.memory_space<vmem>>, vector<1x8x256xbf16>
    %101 = vector.shape_cast %100 : vector<1x8x256xbf16> to vector<8x256xbf16>
    %cst_106 = arith.constant dense<0.000000e+00> : vector<8x144xf32>
    %102 = tpu.matmul %101, %87, %cst_106 {dimension_numbers = #tpu.dot_dimension_numbers<[1], [0], [0], [1], [0, 0, 1, 1], [], []>} : vector<8x256xbf16>, vector<256x144xbf16>, vector<8x144xf32> -> vector<8x144xf32>
    %103 = arith.truncf %102 : vector<8x144xf32> to vector<8x144xbf16>
    %c1_107 = arith.constant 1 : index
    %c0_108 = arith.constant 0 : index
    %c0_109 = arith.constant 0 : index
    %104 = vector.load %arg7[%c1_107, %c0_108, %c0_109] : memref<5x144x128xbf16, #tpu.memory_space<vmem>>, vector<1x144x128xbf16>
    %105 = vector.shape_cast %104 : vector<1x144x128xbf16> to vector<144x128xbf16>
    %cst_110 = arith.constant dense<0.000000e+00> : vector<8x128xf32>
    %106 = tpu.matmul %103, %105, %cst_110 {dimension_numbers = #tpu.dot_dimension_numbers<[1], [0], [0], [1], [0, 0, 1, 1], [], []>} : vector<8x144xbf16>, vector<144x128xbf16>, vector<8x128xf32> -> vector<8x128xf32>
    %107 = arith.addf %99, %106 : vector<8x128xf32>
    %c2_111 = arith.constant 2 : index
    %c0_112 = arith.constant 0 : index
    %c0_113 = arith.constant 0 : index
    %108 = vector.load %arg6[%c2_111, %c0_112, %c0_113] : memref<5x8x256xbf16, #tpu.memory_space<vmem>>, vector<1x8x256xbf16>
    %109 = vector.shape_cast %108 : vector<1x8x256xbf16> to vector<8x256xbf16>
    %cst_114 = arith.constant dense<0.000000e+00> : vector<8x144xf32>
    %110 = tpu.matmul %109, %87, %cst_114 {dimension_numbers = #tpu.dot_dimension_numbers<[1], [0], [0], [1], [0, 0, 1, 1], [], []>} : vector<8x256xbf16>, vector<256x144xbf16>, vector<8x144xf32> -> vector<8x144xf32>
    %111 = arith.truncf %110 : vector<8x144xf32> to vector<8x144xbf16>
    %c2_115 = arith.constant 2 : index
    %c0_116 = arith.constant 0 : index
    %c0_117 = arith.constant 0 : index
    %112 = vector.load %arg7[%c2_115, %c0_116, %c0_117] : memref<5x144x128xbf16, #tpu.memory_space<vmem>>, vector<1x144x128xbf16>
    %113 = vector.shape_cast %112 : vector<1x144x128xbf16> to vector<144x128xbf16>
    %cst_118 = arith.constant dense<0.000000e+00> : vector<8x128xf32>
    %114 = tpu.matmul %111, %113, %cst_118 {dimension_numbers = #tpu.dot_dimension_numbers<[1], [0], [0], [1], [0, 0, 1, 1], [], []>} : vector<8x144xbf16>, vector<144x128xbf16>, vector<8x128xf32> -> vector<8x128xf32>
    %115 = arith.addf %107, %114 : vector<8x128xf32>
    %c3_119 = arith.constant 3 : index
    %c0_120 = arith.constant 0 : index
    %c0_121 = arith.constant 0 : index
    %116 = vector.load %arg6[%c3_119, %c0_120, %c0_121] : memref<5x8x256xbf16, #tpu.memory_space<vmem>>, vector<1x8x256xbf16>
    %117 = vector.shape_cast %116 : vector<1x8x256xbf16> to vector<8x256xbf16>
    %cst_122 = arith.constant dense<0.000000e+00> : vector<8x144xf32>
    %118 = tpu.matmul %117, %87, %cst_122 {dimension_numbers = #tpu.dot_dimension_numbers<[1], [0], [0], [1], [0, 0, 1, 1], [], []>} : vector<8x256xbf16>, vector<256x144xbf16>, vector<8x144xf32> -> vector<8x144xf32>
    %119 = arith.truncf %118 : vector<8x144xf32> to vector<8x144xbf16>
    %c3_123 = arith.constant 3 : index
    %c0_124 = arith.constant 0 : index
    %c0_125 = arith.constant 0 : index
    %120 = vector.load %arg7[%c3_123, %c0_124, %c0_125] : memref<5x144x128xbf16, #tpu.memory_space<vmem>>, vector<1x144x128xbf16>
    %121 = vector.shape_cast %120 : vector<1x144x128xbf16> to vector<144x128xbf16>
    %cst_126 = arith.constant dense<0.000000e+00> : vector<8x128xf32>
    %122 = tpu.matmul %119, %121, %cst_126 {dimension_numbers = #tpu.dot_dimension_numbers<[1], [0], [0], [1], [0, 0, 1, 1], [], []>} : vector<8x144xbf16>, vector<144x128xbf16>, vector<8x128xf32> -> vector<8x128xf32>
    %123 = arith.addf %115, %122 : vector<8x128xf32>
    %c4_127 = arith.constant 4 : index
    %c0_128 = arith.constant 0 : index
    %c0_129 = arith.constant 0 : index
    %124 = vector.load %arg6[%c4_127, %c0_128, %c0_129] : memref<5x8x256xbf16, #tpu.memory_space<vmem>>, vector<1x8x256xbf16>
    %125 = vector.shape_cast %124 : vector<1x8x256xbf16> to vector<8x256xbf16>
    %cst_130 = arith.constant dense<0.000000e+00> : vector<8x144xf32>
    %126 = tpu.matmul %125, %87, %cst_130 {dimension_numbers = #tpu.dot_dimension_numbers<[1], [0], [0], [1], [0, 0, 1, 1], [], []>} : vector<8x256xbf16>, vector<256x144xbf16>, vector<8x144xf32> -> vector<8x144xf32>
    %127 = arith.truncf %126 : vector<8x144xf32> to vector<8x144xbf16>
    %c4_131 = arith.constant 4 : index
    %c0_132 = arith.constant 0 : index
    %c0_133 = arith.constant 0 : index
    %128 = vector.load %arg7[%c4_131, %c0_132, %c0_133] : memref<5x144x128xbf16, #tpu.memory_space<vmem>>, vector<1x144x128xbf16>
    %129 = vector.shape_cast %128 : vector<1x144x128xbf16> to vector<144x128xbf16>
    %cst_134 = arith.constant dense<0.000000e+00> : vector<8x128xf32>
    %130 = tpu.matmul %127, %129, %cst_134 {dimension_numbers = #tpu.dot_dimension_numbers<[1], [0], [0], [1], [0, 0, 1, 1], [], []>} : vector<8x144xbf16>, vector<144x128xbf16>, vector<8x128xf32> -> vector<8x128xf32>
    %131 = arith.addf %123, %130 : vector<8x128xf32>
    %cst_135 = arith.constant 0.000000e+00 : f32
    %132 = vector.broadcast %cst_135 : f32 to vector<8x128xf32>
    %133 = arith.maximumf %131, %132 : vector<8x128xf32>
    %134 = arith.truncf %133 : vector<8x128xf32> to vector<8x128xbf16>
    %c0_136 = arith.constant 0 : index
    %c0_137 = arith.constant 0 : index
    %135 = vector.load %arg9[%c0_136, %c0_137] : memref<128x128xbf16, #tpu.memory_space<vmem>>, vector<128x128xbf16>
    %cst_138 = arith.constant dense<0.000000e+00> : vector<8x128xf32>
    %136 = tpu.matmul %134, %135, %cst_138 {dimension_numbers = #tpu.dot_dimension_numbers<[1], [0], [0], [1], [0, 0, 1, 1], [], []>} : vector<8x128xbf16>, vector<128x128xbf16>, vector<8x128xf32> -> vector<8x128xf32>
    %c0_139 = arith.constant 0 : index
    %c0_140 = arith.constant 0 : index
    %137 = vector.load %arg10[%c0_139, %c0_140] : memref<1x128xf32, #tpu.memory_space<vmem>>, vector<1x128xf32>
    %138 = vector.broadcast %137 : vector<1x128xf32> to vector<8x128xf32>
    %139 = arith.addf %136, %138 : vector<8x128xf32>
    %cst_141 = arith.constant 0.000000e+00 : f32
    %140 = vector.broadcast %cst_141 : f32 to vector<8x128xf32>
    %141 = arith.maximumf %139, %140 : vector<8x128xf32>
    %142 = arith.truncf %141 : vector<8x128xf32> to vector<8x128xbf16>
    %c0_142 = arith.constant 0 : index
    %c0_143 = arith.constant 0 : index
    %143 = vector.load %arg11[%c0_142, %c0_143] : memref<128x128xbf16, #tpu.memory_space<vmem>>, vector<128x128xbf16>
    %cst_144 = arith.constant dense<0.000000e+00> : vector<8x128xf32>
    %144 = tpu.matmul %142, %143, %cst_144 {dimension_numbers = #tpu.dot_dimension_numbers<[1], [0], [0], [1], [0, 0, 1, 1], [], []>} : vector<8x128xbf16>, vector<128x128xbf16>, vector<8x128xf32> -> vector<8x128xf32>
    %c0_145 = arith.constant 0 : index
    %c0_146 = arith.constant 0 : index
    %145 = vector.load %arg12[%c0_145, %c0_146] : memref<1x128xf32, #tpu.memory_space<vmem>>, vector<1x128xf32>
    %146 = vector.broadcast %145 : vector<1x128xf32> to vector<8x128xf32>
    %147 = arith.addf %144, %146 : vector<8x128xf32>
    %c0_147 = arith.constant 0 : index
    %c0_148 = arith.constant 0 : index
    %c0_149 = arith.constant 0 : index
    %148 = vector.load %arg13[%c0_147, %c0_148, %c0_149] : memref<1x8x128xf32, #tpu.memory_space<vmem>>, vector<1x8x128xf32>
    %149 = vector.shape_cast %148 : vector<1x8x128xf32> to vector<8x128xf32>
    %150 = vector.shape_cast %147 : vector<8x128xf32> to vector<1x8x128xf32>
    tpu.vector_store %arg13[%c0_147, %c0_148, %c0_149], %150 {strides = array<i32>} : memref<1x8x128xf32, #tpu.memory_space<vmem>>, vector<1x8x128xf32>,
    return
  }
  func.func @transform_0(%arg0: i32) -> (i32, i32, i32) {
    %c0_i32 = arith.constant 0 : i32
    %c0_i32_0 = arith.constant 0 : i32
    %c0_i32_1 = arith.constant 0 : i32
    return %arg0, %c0_i32, %c0_i32_0 : i32, i32, i32
  }
  func.func @transform_1(%arg0: i32) -> (i32, i32, i32) {
    %c0_i32 = arith.constant 0 : i32
    %c0_i32_0 = arith.constant 0 : i32
    %c0_i32_1 = arith.constant 0 : i32
    %c0_i32_2 = arith.constant 0 : i32
    return %c0_i32, %c0_i32_0, %c0_i32_1 : i32, i32, i32
  }
  func.func @transform_2(%arg0: i32) -> (i32, i32) {
    %c0_i32 = arith.constant 0 : i32
    %c0_i32_0 = arith.constant 0 : i32
    %c0_i32_1 = arith.constant 0 : i32
    return %c0_i32, %c0_i32_0 : i32, i32
  }
  func.func @transform_3(%arg0: i32) -> (i32, i32, i32) {
    %c0_i32 = arith.constant 0 : i32
    %c0_i32_0 = arith.constant 0 : i32
    %c0_i32_1 = arith.constant 0 : i32
    %c0_i32_2 = arith.constant 0 : i32
    return %c0_i32, %c0_i32_0, %c0_i32_1 : i32, i32, i32
  }
  func.func @transform_4(%arg0: i32) -> (i32, i32) {
    %c0_i32 = arith.constant 0 : i32
    %c0_i32_0 = arith.constant 0 : i32
    %c0_i32_1 = arith.constant 0 : i32
    return %c0_i32, %c0_i32_0 : i32, i32
  }
  func.func @transform_5(%arg0: i32) -> (i32, i32, i32) {
    %c0_i32 = arith.constant 0 : i32
    %c0_i32_0 = arith.constant 0 : i32
    %c0_i32_1 = arith.constant 0 : i32
    %c0_i32_2 = arith.constant 0 : i32
    return %c0_i32, %c0_i32_0, %c0_i32_1 : i32, i32, i32
  }
  func.func @transform_6(%arg0: i32) -> (i32, i32, i32) {
    %c0_i32 = arith.constant 0 : i32
    %c0_i32_0 = arith.constant 0 : i32
    %c0_i32_1 = arith.constant 0 : i32
    %c0_i32_2 = arith.constant 0 : i32
    return %c0_i32, %c0_i32_0, %c0_i32_1 : i32, i32, i32
  }
  func.func @transform_7(%arg0: i32) -> (i32, i32) {
    %c0_i32 = arith.constant 0 : i32
    %c0_i32_0 = arith.constant 0 : i32
    %c0_i32_1 = arith.constant 0 : i32
    return %c0_i32, %c0_i32_0 : i32, i32
  }
  func.func @transform_8(%arg0: i32) -> (i32, i32) {
    %c0_i32 = arith.constant 0 : i32
    %c0_i32_0 = arith.constant 0 : i32
    %c0_i32_1 = arith.constant 0 : i32
    return %c0_i32, %c0_i32_0 : i32, i32
  }
  func.func @transform_9(%arg0: i32) -> (i32, i32) {
    %c0_i32 = arith.constant 0 : i32
    %c0_i32_0 = arith.constant 0 : i32
    %c0_i32_1 = arith.constant 0 : i32
    return %c0_i32, %c0_i32_0 : i32, i32
  }
  func.func @transform_10(%arg0: i32) -> (i32, i32) {
    %c0_i32 = arith.constant 0 : i32
    %c0_i32_0 = arith.constant 0 : i32
    %c0_i32_1 = arith.constant 0 : i32
    return %c0_i32, %c0_i32_0 : i32, i32
  }
  func.func @transform_11(%arg0: i32) -> (i32, i32) {
    %c0_i32 = arith.constant 0 : i32
    %c0_i32_0 = arith.constant 0 : i32
    %c0_i32_1 = arith.constant 0 : i32
    return %c0_i32, %c0_i32_0 : i32, i32
  }
  func.func @transform_12(%arg0: i32) -> (i32, i32, i32) {
    %c0_i32 = arith.constant 0 : i32
    %c0_i32_0 = arith.constant 0 : i32
    %c0_i32_1 = arith.constant 0 : i32
    return %arg0, %c0_i32, %c0_i32_0 : i32, i32, i32
  }
}

</mosaic_0001>

<llo_original>
// kernel: lenet_forward.1
$region0: #{lenet_forward.1}
  #allocation0 [shape = 'u32[]', space=smem, size = 0x4, offset = 0x4, fixed_abs, tag = 'smem constant byte address 0x4 - core index']
  #allocation1 [shape = 'u32[144,128]{1,0:T(1,128)}', space=vmem, size = 0x12000, scoped, tag = 'internal scratch']
  #allocation2 [shape = 'f32[264,232]{1,0:T(8,128)}', space=vmem, size = 0x42000, scoped, tag = 'scratch operand']
  #allocation3 [shape = 'bf16[264,224]{1,0:T(8,128)(2,1)}', space=vmem, size = 0x21000, scoped, tag = 'scratch operand']
  #allocation4 [shape = 'f32[264,160]{1,0:T(8,128)}', space=vmem, size = 0x42000, scoped, tag = 'scratch operand']
  %s0 = inlined_call_operand.vmem [shape: bf16[2,264,128], index: 0, kind: input, shape index: {}]
  %s1 = inlined_call_operand.vmem [shape: bf16[5,128,232], index: 1, kind: input, shape index: {}]
  %s2 = inlined_call_operand.vmem [shape: f32[1,232], index: 2, kind: input, shape index: {}]
  %s3 = inlined_call_operand.vmem [shape: bf16[5,224,160], index: 3, kind: input, shape index: {}]
  %s4 = inlined_call_operand.vmem [shape: f32[1,160], index: 4, kind: input, shape index: {}]
  %s5 = inlined_call_operand.vmem [shape: bf16[5,8,256], index: 5, kind: input, shape index: {}]
  %s6 = inlined_call_operand.vmem [shape: bf16[5,144,128], index: 6, kind: input, shape index: {}]
  %s7 = inlined_call_operand.vmem [shape: f32[1,128], index: 7, kind: input, shape index: {}]
  %s8 = inlined_call_operand.vmem [shape: bf16[128,128], index: 8, kind: input, shape index: {}]
  %s9 = inlined_call_operand.vmem [shape: f32[1,128], index: 9, kind: input, shape index: {}]
  %s10 = inlined_call_operand.vmem [shape: bf16[128,128], index: 10, kind: input, shape index: {}]
  %s11 = inlined_call_operand.vmem [shape: f32[1,128], index: 11, kind: input, shape index: {}]
  %s12 = inlined_call_operand.hbm [shape: f32[2,8,128], index: 12, kind: output, shape index: {}]
  %s13 = sld [smem:[#allocation0]]
  $region81: #{lenet_forward.1} parent=0
    _
  %s15 = ssub.s32 1, %s13
  %s16 = scalar_select 0, %s15, %s13
  $region1: #{lenet_forward.1} parent=0
    #allocation5 [shape = 'u8[8192]{0}', space=vmem, size = 0x2000, scoped, tag = 'output window, operand 0']
    #allocation6 [shape = 's32[2]{0}', space=sflag, size = 0x8, scoped, tag = 'scoped memory for lenet_forward.1']
    %17 = vsyncpa [#allocation6], 0
    %s18 = scalar_lea.sflag [#allocation6], 1
    %19 = vsyncpa %s18, 0
    loop: start=0, step=1, limit=4
    $region2: #{lenet_forward.1} parent=1 // loop_pre_header
      _
    $region3: #{lenet_forward.1} parent=1 // loop_header
      %s21 = sphi 0, %s25
      %p22 = scmp.ge.s32.totalorder %s21, 4
      %s31 = sphi 0, %s33
      %s34 = sphi 0, %s31
      %s35 = sphi 0, %s34
      %s51 = sphi 0, %s35
      %s55 = sphi 0, %s55
      %s57 = sphi 0, %s55
      %s58 = sphi 0, %s57
      %s72 = sphi 0, %s58
      %s76 = sphi 0, %s76
      %s78 = sphi 0, %s76
      %s79 = sphi 0, %s78
      %s93 = sphi 0, %s79
      %s97 = sphi 0, %s97
      %s99 = sphi 0, %s97
      %s100 = sphi 0, %s99
      %s114 = sphi 0, %s100
      %s118 = sphi 0, %s118
      %s120 = sphi 0, %s118
      %s121 = sphi 0, %s120
      %s135 = sphi 0, %s121
      %s139 = sphi 0, %s139
      %s141 = sphi 0, %s139
      %s142 = sphi 0, %s141
      %s156 = sphi 0, %s142
      %s160 = sphi 0, %s160
      %s162 = sphi 0, %s160
      %s163 = sphi 0, %s162
      %s177 = sphi 0, %s163
      %s181 = sphi 0, %s181
      %s183 = sphi 0, %s181
      %s184 = sphi 0, %s183
      %s198 = sphi 0, %s184
      %s202 = sphi 0, %s202
      %s204 = sphi 0, %s202
      %s205 = sphi 0, %s204
      %s219 = sphi 0, %s205
      %s223 = sphi 0, %s223
      %s225 = sphi 0, %s223
      %s226 = sphi 0, %s225
      %s240 = sphi 0, %s226
      %s244 = sphi 0, %s244
      %s246 = sphi 0, %s244
      %s247 = sphi 0, %s246
      %s261 = sphi 0, %s247
      %s265 = sphi 0, %s265
      %s267 = sphi 0, %s265
      %s268 = sphi 0, %s267
      %s282 = sphi 0, %s268
      %s288 = sphi 0, %s290
      %s291 = sphi 0, %s288
      %s292 = sphi 0, %s291
      %s308 = sphi 0, %s292
    $region4: #{lenet_forward.1} parent=1 // loop_header_branch
      %24 = sbr.rel (%p22) target = $region8
    $region5: #{lenet_forward.1} parent=1 // loop_body
      %s26 = ssub.s32 %s21, 1
      %s27 = ssub.s32 %s21, 2
      %s28 = sadd.s32 %s21, 1
      %s29 = ssub.s32 %s21, %s28
      %p30 = scmp.eq.s32.totalorder %s29, 0
      %s32 = sadd.s32 %s31, 1
      %s33 = scalar_select %p30, %s31, %s32
      %p36 = pneg %p30
      %p37 = scmp.eq.s32.totalorder %s21, 1
      %p38 = por %p36, %p37
      %p39 = scmp.ne.s32.totalorder %s31, %s34
      %p40 = scmp.eq.s32.totalorder %s21, 0
      %p41 = por %p39, %p40
      %p42 = scmp.ne.s32.totalorder %s31, %s34
      %p43 = scmp.eq.s32.totalorder %s26, 1
      %p44 = por %p42, %p43
      %p45 = scmp.ne.s32.totalorder %s34, %s35
      %p46 = scmp.eq.s32.totalorder %s26, 0
      %p47 = por %p45, %p46
      %p48 = scmp.ne.s32.totalorder %s34, %s35
      %p49 = scmp.eq.s32.totalorder %s27, 1
      %p50 = por %p48, %p49
      %p52 = scmp.ne.s32.totalorder %s35, %s51
      %p53 = scmp.eq.s32.totalorder %s27, 0
      %p54 = por %p52, %p53
      %s56 = sadd.s32 %s55, 1
      %p59 = scmp.eq.s32.totalorder %s21, 1
      %p60 = scmp.ne.s32.totalorder %s55, %s57
      %p61 = scmp.eq.s32.totalorder %s21, 0
      %p62 = por %p60, %p61
      %p63 = scmp.ne.s32.totalorder %s55, %s57
      %p64 = scmp.eq.s32.totalorder %s26, 1
      %p65 = por %p63, %p64
      %p66 = scmp.ne.s32.totalorder %s57, %s58
      %p67 = scmp.eq.s32.totalorder %s26, 0
      %p68 = por %p66, %p67
      %p69 = scmp.ne.s32.totalorder %s57, %s58
      %p70 = scmp.eq.s32.totalorder %s27, 1
      %p71 = por %p69, %p70
      %p73 = scmp.ne.s32.totalorder %s58, %s72
      %p74 = scmp.eq.s32.totalorder %s27, 0
      %p75 = por %p73, %p74
      %s77 = sadd.s32 %s76, 1
      %p80 = scmp.eq.s32.totalorder %s21, 1
      %p81 = scmp.ne.s32.totalorder %s76, %s78
      %p82 = scmp.eq.s32.totalorder %s21, 0
      %p83 = por %p81, %p82
      %p84 = scmp.ne.s32.totalorder %s76, %s78
      %p85 = scmp.eq.s32.totalorder %s26, 1
      %p86 = por %p84, %p85
      %p87 = scmp.ne.s32.totalorder %s78, %s79
      %p88 = scmp.eq.s32.totalorder %s26, 0
      %p89 = por %p87, %p88
      %p90 = scmp.ne.s32.totalorder %s78, %s79
      %p91 = scmp.eq.s32.totalorder %s27, 1
      %p92 = por %p90, %p91
      %p94 = scmp.ne.s32.totalorder %s79, %s93
      %p95 = scmp.eq.s32.totalorder %s27, 0
      %p96 = por %p94, %p95
      %s98 = sadd.s32 %s97, 1
      %p101 = scmp.eq.s32.totalorder %s21, 1
      %p102 = scmp.ne.s32.totalorder %s97, %s99
      %p103 = scmp.eq.s32.totalorder %s21, 0
      %p104 = por %p102, %p103
      %p105 = scmp.ne.s32.totalorder %s97, %s99
      %p106 = scmp.eq.s32.totalorder %s26, 1
      %p107 = por %p105, %p106
      %p108 = scmp.ne.s32.totalorder %s99, %s100
      %p109 = scmp.eq.s32.totalorder %s26, 0
      %p110 = por %p108, %p109
      %p111 = scmp.ne.s32.totalorder %s99, %s100
      %p112 = scmp.eq.s32.totalorder %s27, 1
      %p113 = por %p111, %p112
      %p115 = scmp.ne.s32.totalorder %s100, %s114
      %p116 = scmp.eq.s32.totalorder %s27, 0
      %p117 = por %p115, %p116
      %s119 = sadd.s32 %s118, 1
      %p122 = scmp.eq.s32.totalorder %s21, 1
      %p123 = scmp.ne.s32.totalorder %s118, %s120
      %p124 = scmp.eq.s32.totalorder %s21, 0
      %p125 = por %p123, %p124
      %p126 = scmp.ne.s32.totalorder %s118, %s120
      %p127 = scmp.eq.s32.totalorder %s26, 1
      %p128 = por %p126, %p127
      %p129 = scmp.ne.s32.totalorder %s120, %s121
      %p130 = scmp.eq.s32.totalorder %s26, 0
      %p131 = por %p129, %p130
      %p132 = scmp.ne.s32.totalorder %s120, %s121
      %p133 = scmp.eq.s32.totalorder %s27, 1
      %p134 = por %p132, %p133
      %p136 = scmp.ne.s32.totalorder %s121, %s135
      %p137 = scmp.eq.s32.totalorder %s27, 0
      %p138 = por %p136, %p137
      %s140 = sadd.s32 %s139, 1
      %p143 = scmp.eq.s32.totalorder %s21, 1
      %p144 = scmp.ne.s32.totalorder %s139, %s141
      %p145 = scmp.eq.s32.totalorder %s21, 0
      %p146 = por %p144, %p145
      %p147 = scmp.ne.s32.totalorder %s139, %s141
      %p148 = scmp.eq.s32.totalorder %s26, 1
      %p149 = por %p147, %p148
      %p150 = scmp.ne.s32.totalorder %s141, %s142
      %p151 = scmp.eq.s32.totalorder %s26, 0
      %p152 = por %p150, %p151
      %p153 = scmp.ne.s32.totalorder %s141, %s142
      %p154 = scmp.eq.s32.totalorder %s27, 1
      %p155 = por %p153, %p154
      %p157 = scmp.ne.s32.totalorder %s142, %s156
      %p158 = scmp.eq.s32.totalorder %s27, 0
      %p159 = por %p157, %p158
      %s161 = sadd.s32 %s160, 1
      %p164 = scmp.eq.s32.totalorder %s21, 1
      %p165 = scmp.ne.s32.totalorder %s160, %s162
      %p166 = scmp.eq.s32.totalorder %s21, 0
      %p167 = por %p165, %p166
      %p168 = scmp.ne.s32.totalorder %s160, %s162
      %p169 = scmp.eq.s32.totalorder %s26, 1
      %p170 = por %p168, %p169
      %p171 = scmp.ne.s32.totalorder %s162, %s163
      %p172 = scmp.eq.s32.totalorder %s26, 0
      %p173 = por %p171, %p172
      %p174 = scmp.ne.s32.totalorder %s162, %s163
      %p175 = scmp.eq.s32.totalorder %s27, 1
      %p176 = por %p174, %p175
      %p178 = scmp.ne.s32.totalorder %s163, %s177
      %p179 = scmp.eq.s32.totalorder %s27, 0
      %p180 = por %p178, %p179
      %s182 = sadd.s32 %s181, 1
      %p185 = scmp.eq.s32.totalorder %s21, 1
      %p186 = scmp.ne.s32.totalorder %s181, %s183
      %p187 = scmp.eq.s32.totalorder %s21, 0
      %p188 = por %p186, %p187
      %p189 = scmp.ne.s32.totalorder %s181, %s183
      %p190 = scmp.eq.s32.totalorder %s26, 1
      %p191 = por %p189, %p190
      %p192 = scmp.ne.s32.totalorder %s183, %s184
      %p193 = scmp.eq.s32.totalorder %s26, 0
      %p194 = por %p192, %p193
      %p195 = scmp.ne.s32.totalorder %s183, %s184
      %p196 = scmp.eq.s32.totalorder %s27, 1
      %p197 = por %p195, %p196
      %p199 = scmp.ne.s32.totalorder %s184, %s198
      %p200 = scmp.eq.s32.totalorder %s27, 0
      %p201 = por %p199, %p200
      %s203 = sadd.s32 %s202, 1
      %p206 = scmp.eq.s32.totalorder %s21, 1
      %p207 = scmp.ne.s32.totalorder %s202, %s204
      %p208 = scmp.eq.s32.totalorder %s21, 0
      %p209 = por %p207, %p208
      %p210 = scmp.ne.s32.totalorder %s202, %s204
      %p211 = scmp.eq.s32.totalorder %s26, 1
      %p212 = por %p210, %p211
      %p213 = scmp.ne.s32.totalorder %s204, %s205
      %p214 = scmp.eq.s32.totalorder %s26, 0
      %p215 = por %p213, %p214
      %p216 = scmp.ne.s32.totalorder %s204, %s205
      %p217 = scmp.eq.s32.totalorder %s27, 1
      %p218 = por %p216, %p217
      %p220 = scmp.ne.s32.totalorder %s205, %s219
      %p221 = scmp.eq.s32.totalorder %s27, 0
      %p222 = por %p220, %p221
      %s224 = sadd.s32 %s223, 1
      %p227 = scmp.eq.s32.totalorder %s21, 1
      %p228 = scmp.ne.s32.totalorder %s223, %s225
      %p229 = scmp.eq.s32.totalorder %s21, 0
      %p230 = por %p228, %p229
      %p231 = scmp.ne.s32.totalorder %s223, %s225
      %p232 = scmp.eq.s32.totalorder %s26, 1
      %p233 = por %p231, %p232
      %p234 = scmp.ne.s32.totalorder %s225, %s226
      %p235 = scmp.eq.s32.totalorder %s26, 0
      %p236 = por %p234, %p235
      %p237 = scmp.ne.s32.totalorder %s225, %s226
      %p238 = scmp.eq.s32.totalorder %s27, 1
      %p239 = por %p237, %p238
      %p241 = scmp.ne.s32.totalorder %s226, %s240
      %p242 = scmp.eq.s32.totalorder %s27, 0
      %p243 = por %p241, %p242
      %s245 = sadd.s32 %s244, 1
      %p248 = scmp.eq.s32.totalorder %s21, 1
      %p249 = scmp.ne.s32.totalorder %s244, %s246
      %p250 = scmp.eq.s32.totalorder %s21, 0
      %p251 = por %p249, %p250
      %p252 = scmp.ne.s32.totalorder %s244, %s246
      %p253 = scmp.eq.s32.totalorder %s26, 1
      %p254 = por %p252, %p253
      %p255 = scmp.ne.s32.totalorder %s246, %s247
      %p256 = scmp.eq.s32.totalorder %s26, 0
      %p257 = por %p255, %p256
      %p258 = scmp.ne.s32.totalorder %s246, %s247
      %p259 = scmp.eq.s32.totalorder %s27, 1
      %p260 = por %p258, %p259
      %p262 = scmp.ne.s32.totalorder %s247, %s261
      %p263 = scmp.eq.s32.totalorder %s27, 0
      %p264 = por %p262, %p263
      %s266 = sadd.s32 %s265, 1
      %p269 = scmp.eq.s32.totalorder %s21, 1
      %p270 = scmp.ne.s32.totalorder %s265, %s267
      %p271 = scmp.eq.s32.totalorder %s21, 0
      %p272 = por %p270, %p271
      %p273 = scmp.ne.s32.totalorder %s265, %s267
      %p274 = scmp.eq.s32.totalorder %s26, 1
      %p275 = por %p273, %p274
      %p276 = scmp.ne.s32.totalorder %s267, %s268
      %p277 = scmp.eq.s32.totalorder %s26, 0
      %p278 = por %p276, %p277
      %p279 = scmp.ne.s32.totalorder %s267, %s268
      %p280 = scmp.eq.s32.totalorder %s27, 1
      %p281 = por %p279, %p280
      %p283 = scmp.ne.s32.totalorder %s268, %s282
      %p284 = scmp.eq.s32.totalorder %s27, 0
      %p285 = por %p283, %p284
      %s286 = ssub.s32 %s21, %s28
      %p287 = scmp.eq.s32.totalorder %s286, 0
      %s289 = sadd.s32 %s288, 1
      %s290 = scalar_select %p287, %s288, %s289
      %p293 = pneg %p287
      %p294 = scmp.eq.s32.totalorder %s21, 1
      %p295 = por %p293, %p294
      %p296 = scmp.ne.s32.totalorder %s288, %s291
      %p297 = scmp.eq.s32.totalorder %s21, 0
      %p298 = por %p296, %p297
      %p299 = scmp.ne.s32.totalorder %s288, %s291
      %p300 = scmp.eq.s32.totalorder %s26, 1
      %p301 = por %p299, %p300
      %p302 = scmp.ne.s32.totalorder %s291, %s292
      %p303 = scmp.eq.s32.totalorder %s26, 0
      %p304 = por %p302, %p303
      %p305 = scmp.ne.s32.totalorder %s291, %s292
      %p306 = scmp.eq.s32.totalorder %s27, 1
      %p307 = por %p305, %p306
      %p309 = scmp.ne.s32.totalorder %s292, %s308
      %p310 = scmp.eq.s32.totalorder %s27, 0
      %p311 = por %p309, %p310
      %p312 = scmp.le.s32.totalorder 1, %s21
      %p313 = scmp.lt.s32.totalorder %s21, 3
      %p314 = pnand %p312, %p313
      %p315 = pneg %p314
      // Predicated region
      $region9: #{lenet_forward.1} parent=5 // pred_check
        _
      $region10: #{lenet_forward.1} parent=5 // pred_check_branch
        %317 = sbr.rel (%p314) target = $region12
      $region11: #{lenet_forward.1} parent=5 // pred_region
        %s318 = ssub.s32 %s21, 1
        // Predicated region
        $region13: #{lenet_forward.1} parent=11 // pred_check
          %p319 = pneg %p68
        $region14: #{lenet_forward.1} parent=11 // pred_check_branch
          %321 = sbr.rel (%p319) target = $region16
        $region15: #{lenet_forward.1} parent=11 // pred_region
          _
        $region16: #{lenet_forward.1} parent=11 // pred_fallthru
          _
        // Predicated region
        $region17: #{lenet_forward.1} parent=11 // pred_check
          %p322 = pneg %p89
        $region18: #{lenet_forward.1} parent=11 // pred_check_branch
          %324 = sbr.rel (%p322) target = $region20
        $region19: #{lenet_forward.1} parent=11 // pred_region
          _
        $region20: #{lenet_forward.1} parent=11 // pred_fallthru
          _
        // Predicated region
        $region21: #{lenet_forward.1} parent=11 // pred_check
          %p325 = pneg %p110
        $region22: #{lenet_forward.1} parent=11 // pred_check_branch
          %327 = sbr.rel (%p325) target = $region24
        $region23: #{lenet_forward.1} parent=11 // pred_region
          _
        $region24: #{lenet_forward.1} parent=11 // pred_fallthru
          _
        // Predicated region
        $region25: #{lenet_forward.1} parent=11 // pred_check
          %p328 = pneg %p131
        $region26: #{lenet_forward.1} parent=11 // pred_check_branch
          %330 = sbr.rel (%p328) target = $region28
        $region27: #{lenet_forward.1} parent=11 // pred_region
          _
        $region28: #{lenet_forward.1} parent=11 // pred_fallthru
          _
        // Predicated region
        $region29: #{lenet_forward.1} parent=11 // pred_check
          %p331 = pneg %p152
        $region30: #{lenet_forward.1} parent=11 // pred_check_branch
          %333 = sbr.rel (%p331) target = $region32
        $region31: #{lenet_forward.1} parent=11 // pred_region
          _
        $region32: #{lenet_forward.1} parent=11 // pred_fallthru
          _
        // Predicated region
        $region33: #{lenet_forward.1} parent=11 // pred_check
          %p334 = pneg %p173
        $region34: #{lenet_forward.1} parent=11 // pred_check_branch
          %336 = sbr.rel (%p334) target = $region36
        $region35: #{lenet_forward.1} parent=11 // pred_region
          _
        $region36: #{lenet_forward.1} parent=11 // pred_fallthru
          _
        // Predicated region
        $region37: #{lenet_forward.1} parent=11 // pred_check
          %p337 = pneg %p194
        $region38: #{lenet_forward.1} parent=11 // pred_check_branch
          %339 = sbr.rel (%p337) target = $region40
        $region39: #{lenet_forward.1} parent=11 // pred_region
          _
        $region40: #{lenet_forward.1} parent=11 // pred_fallthru
          _
        // Predicated region
        $region41: #{lenet_forward.1} parent=11 // pred_check
          %p340 = pneg %p215
        $region42: #{lenet_forward.1} parent=11 // pred_check_branch
          %342 = sbr.rel (%p340) target = $region44
        $region43: #{lenet_forward.1} parent=11 // pred_region
          _
        $region44: #{lenet_forward.1} parent=11 // pred_fallthru
          _
        // Predicated region
        $region45: #{lenet_forward.1} parent=11 // pred_check
          %p343 = pneg %p236
        $region46: #{lenet_forward.1} parent=11 // pred_check_branch
          %345 = sbr.rel (%p343) target = $region48
        $region47: #{lenet_forward.1} parent=11 // pred_region
          _
        $region48: #{lenet_forward.1} parent=11 // pred_fallthru
          _
        // Predicated region
        $region49: #{lenet_forward.1} parent=11 // pred_check
          %p346 = pneg %p257
        $region50: #{lenet_forward.1} parent=11 // pred_check_branch
          %348 = sbr.rel (%p346) target = $region52
        $region51: #{lenet_forward.1} parent=11 // pred_region
          _
        $region52: #{lenet_forward.1} parent=11 // pred_fallthru
          _
        // Predicated region
        $region53: #{lenet_forward.1} parent=11 // pred_check
          %p349 = pneg %p278
        $region54: #{lenet_forward.1} parent=11 // pred_check_branch
          %351 = sbr.rel (%p349) target = $region56
        $region55: #{lenet_forward.1} parent=11 // pred_region
          _
        $region56: #{lenet_forward.1} parent=11 // pred_fallthru
          _
      $region12: #{lenet_forward.1} parent=5 // pred_fallthru
        _
      %p352 = scmp.lt.s32.totalorder %s21, 2
      // Predicated region
      $region57: #{lenet_forward.1} parent=5 // pred_check
        %p353 = pneg %p352
      $region58: #{lenet_forward.1} parent=5 // pred_check_branch
        %355 = sbr.rel (%p353) target = $region60
      $region59: #{lenet_forward.1} parent=5 // pred_region
        // Predicated region
        $region61: #{lenet_forward.1} parent=59 // pred_check
          %p356 = pneg %p41
        $region62: #{lenet_forward.1} parent=59 // pred_check_branch
          %358 = sbr.rel (%p356) target = $region64
        $region63: #{lenet_forward.1} parent=59 // pred_region
          %p359 = scmp.lt.s32.totalorder %s21, 1
          %s360 = scalar_select %p359, %s21, 1
          %s361 = smul.addr %s360, 33
          %s362 = smul.addr %s361, 4
          %s363 = scalar_lea.vmem %s0, %s362
        $region64: #{lenet_forward.1} parent=59 // pred_fallthru
          _
      $region60: #{lenet_forward.1} parent=5 // pred_fallthru
        _
      %p364 = scmp.le.s32.totalorder 1, %s21
      %p365 = scmp.lt.s32.totalorder %s21, 3
      %p366 = pnand %p364, %p365
      %p367 = pneg %p366
      // Predicated region
      $region65: #{lenet_forward.1} parent=5 // pred_check
        _
      $region66: #{lenet_forward.1} parent=5 // pred_check_branch
        %369 = sbr.rel (%p366) target = $region68
      $region67: #{lenet_forward.1} parent=5 // pred_region
        %s370 = ssub.s32 %s21, 1
        %p371 = scmp.lt.s32.totalorder %s26, 1
        %s372 = scalar_select %p371, %s26, 1
        %s373 = smul.addr %s372, 33
        %s374 = smul.addr %s373, 4
        %s375 = scalar_lea.vmem %s0, %s374
        %p376 = pneg %p47
        %p377 = pneg %p44
        %p378 = pneg %p68
        %p379 = pneg %p65
        %p380 = pneg %p89
        %p381 = pneg %p86
        %p382 = pneg %p110
        %p383 = pneg %p107
        %p384 = pneg %p131
        %p385 = pneg %p128
        %p386 = pneg %p152
        %p387 = pneg %p149
        %p388 = pneg %p173
        %p389 = pneg %p170
        %p390 = pneg %p194
        %p391 = pneg %p191
        %p392 = pneg %p215
        %p393 = pneg %p212
        %p394 = pneg %p236
        %p395 = pneg %p233
        %p396 = pneg %p257
        %p397 = pneg %p254
        %p398 = pneg %p278
        %p399 = pneg %p275
        %p400 = pneg %p304
        %p401 = pneg %p301
        %s402 = sand.u32 %s291, 1
        %s403 = scalar_lea.sflag [#allocation6], %s402
        %s404 = sand.u32 %s291, 1
        %s405 = smul.addr %s404, 8
        %s406 = scalar_lea.vmem [#allocation5], %s405
        %p407 = scmp.lt.s32.totalorder %s26, 1
        %s408 = scalar_select %p407, %s26, 1
        %s409 = smul.addr %s408, 33
        %s410 = smul.addr %s409, 4
        %s411 = scalar_lea.vmem %s0, %s410
        %v413 = vld [vmem:[%s411] sm:$0xf]
        %v414 = vld [vmem:[%s411 + $0x4] sm:$0xf]
        %v415 = vld [vmem:[%s411 + $0x8] sm:$0xf]
        %v416 = vld [vmem:[%s411 + $0xc] sm:$0xf]
        %v417 = vld [vmem:[%s411 + $0x10] sm:$0xf]
        %v418 = vld [vmem:[%s411 + $0x14] sm:$0xf]
        %v419 = vld [vmem:[%s411 + $0x18] sm:$0xf]
        %v420 = vld [vmem:[%s411 + $0x1c] sm:$0xf]
        %v421 = vld [vmem:[%s411 + $0x20] sm:$0xf]
        %v422 = vld [vmem:[%s411 + $0x24] sm:$0xf]
        %v423 = vld [vmem:[%s411 + $0x28] sm:$0xf]
        %v424 = vld [vmem:[%s411 + $0x2c] sm:$0xf]
        %v425 = vld [vmem:[%s411 + $0x30] sm:$0xf]
        %v426 = vld [vmem:[%s411 + $0x34] sm:$0xf]
        %v427 = vld [vmem:[%s411 + $0x38] sm:$0xf]
        %v428 = vld [vmem:[%s411 + $0x3c] sm:$0xf]
        %v429 = vld [vmem:[%s411 + $0x40] sm:$0xf]
        %v430 = vld [vmem:[%s411 + $0x44] sm:$0xf]
        %v431 = vld [vmem:[%s411 + $0x48] sm:$0xf]
        %v432 = vld [vmem:[%s411 + $0x4c] sm:$0xf]
        %v433 = vld [vmem:[%s411 + $0x50] sm:$0xf]
        %v434 = vld [vmem:[%s411 + $0x54] sm:$0xf]
        %v435 = vld [vmem:[%s411 + $0x58] sm:$0xf]
        %v436 = vld [vmem:[%s411 + $0x5c] sm:$0xf]
        %v437 = vld [vmem:[%s411 + $0x60] sm:$0xf]
        %v438 = vld [vmem:[%s411 + $0x64] sm:$0xf]
        %v439 = vld [vmem:[%s411 + $0x68] sm:$0xf]
        %v440 = vld [vmem:[%s411 + $0x6c] sm:$0xf]
        %v441 = vld [vmem:[%s411 + $0x70] sm:$0xf]
        %v442 = vld [vmem:[%s411 + $0x74] sm:$0xf]
        %v443 = vld [vmem:[%s411 + $0x78] sm:$0xf]
        %v444 = vld [vmem:[%s411 + $0x7c] sm:$0xf]
        %v445 = vld [vmem:[%s1] sm:$0xff]
        %v446 = vld [vmem:[%s1 + $0x8] sm:$0xff]
        %v447 = vld [vmem:[%s1 + $0x10] sm:$0xff]
        %v448 = vld [vmem:[%s1 + $0x18] sm:$0xff]
        %v449 = vld [vmem:[%s1 + $0x20] sm:$0xff]
        %v450 = vld [vmem:[%s1 + $0x28] sm:$0xff]
        %v451 = vld [vmem:[%s1 + $0x30] sm:$0xff]
        %v452 = vld [vmem:[%s1 + $0x38] sm:$0xff]
        %v453 = vld [vmem:[%s1 + $0x40] sm:$0xff]
        %v454 = vld [vmem:[%s1 + $0x48] sm:$0xff]
        %v455 = vld [vmem:[%s1 + $0x50] sm:$0xff]
        %v456 = vld [vmem:[%s1 + $0x58] sm:$0xff]
        %v457 = vld [vmem:[%s1 + $0x60] sm:$0xff]
        %v458 = vld [vmem:[%s1 + $0x68] sm:$0xff]
        %v459 = vld [vmem:[%s1 + $0x70] sm:$0xff]
        %v460 = vld [vmem:[%s1 + $0x78] sm:$0xff]
        %v461 = vld [vmem:[%s411] sm:$0xf]
        %v462 = vld [vmem:[%s411 + $0x4] sm:$0xf]
        %v463 = vld [vmem:[%s411 + $0x8] sm:$0xf]
        %v464 = vld [vmem:[%s411 + $0xc] sm:$0xf]
        %v465 = vld [vmem:[%s411 + $0x10] sm:$0xf]
        %v466 = vld [vmem:[%s411 + $0x14] sm:$0xf]
        %v467 = vld [vmem:[%s411 + $0x18] sm:$0xf]
        %v468 = vld [vmem:[%s411 + $0x1c] sm:$0xf]
        %v469 = vld [vmem:[%s411 + $0x20] sm:$0xf]
        %v470 = vld [vmem:[%s411 + $0x24] sm:$0xf]
        %v471 = vld [vmem:[%s411 + $0x28] sm:$0xf]
        %v472 = vld [vmem:[%s411 + $0x2c] sm:$0xf]
        %v473 = vld [vmem:[%s411 + $0x30] sm:$0xf]
        %v474 = vld [vmem:[%s411 + $0x34] sm:$0xf]
        %v475 = vld [vmem:[%s411 + $0x38] sm:$0xf]
        %v476 = vld [vmem:[%s411 + $0x3c] sm:$0xf]
        %v477 = vld [vmem:[%s411 + $0x40] sm:$0xf]
        %v478 = vld [vmem:[%s411 + $0x44] sm:$0xf]
        %v479 = vld [vmem:[%s411 + $0x48] sm:$0xf]
        %v480 = vld [vmem:[%s411 + $0x4c] sm:$0xf]
        %v481 = vld [vmem:[%s411 + $0x50] sm:$0xf]
        %v482 = vld [vmem:[%s411 + $0x54] sm:$0xf]
        %v483 = vld [vmem:[%s411 + $0x58] sm:$0xf]
        %v484 = vld [vmem:[%s411 + $0x5c] sm:$0xf]
        %v485 = vld [vmem:[%s411 + $0x60] sm:$0xf]
        %v486 = vld [vmem:[%s411 + $0x64] sm:$0xf]
        %v487 = vld [vmem:[%s411 + $0x68] sm:$0xf]
        %v488 = vld [vmem:[%s411 + $0x6c] sm:$0xf]
        %v489 = vld [vmem:[%s411 + $0x70] sm:$0xf]
        %v490 = vld [vmem:[%s411 + $0x74] sm:$0xf]
        %v491 = vld [vmem:[%s411 + $0x78] sm:$0xf]
        %v492 = vld [vmem:[%s411 + $0x7c] sm:$0xf]
        %v493 = vld [vmem:[%s411 + $0x80] sm:$0x1]
        %s494 = scalar_lea.vmem %s1, 128
        %v495 = vld [vmem:[%s494] sm:$0xff]
        %v496 = vld [vmem:[%s494 + $0x8] sm:$0xff]
        %v497 = vld [vmem:[%s494 + $0x10] sm:$0xff]
        %v498 = vld [vmem:[%s494 + $0x18] sm:$0xff]
        %v499 = vld [vmem:[%s494 + $0x20] sm:$0xff]
        %v500 = vld [vmem:[%s494 + $0x28] sm:$0xff]
        %v501 = vld [vmem:[%s494 + $0x30] sm:$0xff]
        %v502 = vld [vmem:[%s494 + $0x38] sm:$0xff]
        %v503 = vld [vmem:[%s494 + $0x40] sm:$0xff]
        %v504 = vld [vmem:[%s494 + $0x48] sm:$0xff]
        %v505 = vld [vmem:[%s494 + $0x50] sm:$0xff]
        %v506 = vld [vmem:[%s494 + $0x58] sm:$0xff]
        %v507 = vld [vmem:[%s494 + $0x60] sm:$0xff]
        %v508 = vld [vmem:[%s494 + $0x68] sm:$0xff]
        %v509 = vld [vmem:[%s494 + $0x70] sm:$0xff]
        %v510 = vld [vmem:[%s494 + $0x78] sm:$0xff]
        %v544 = vunpack.c.l.b16 %v461
        %v545 = vunpack.c.l.b16 %v462
        %v546 = vunpack.c.l.b16 %v463
        %v547 = vunpack.c.l.b16 %v464
        %v548 = vunpack.c.l.b16 %v465
        %v549 = vunpack.c.l.b16 %v466
        %v550 = vunpack.c.l.b16 %v467
        %v551 = vunpack.c.l.b16 %v468
        %v552 = vunpack.c.l.b16 %v469
        %v553 = vunpack.c.l.b16 %v470
        %v554 = vunpack.c.l.b16 %v471
        %v555 = vunpack.c.l.b16 %v472
        %v556 = vunpack.c.l.b16 %v473
        %v557 = vunpack.c.l.b16 %v474
        %v558 = vunpack.c.l.b16 %v475
        %v559 = vunpack.c.l.b16 %v476
        %v560 = vunpack.c.l.b16 %v477
        %v561 = vunpack.c.l.b16 %v478
        %v562 = vunpack.c.l.b16 %v479
        %v563 = vunpack.c.l.b16 %v480
        %v564 = vunpack.c.l.b16 %v481
        %v565 = vunpack.c.l.b16 %v482
        %v566 = vunpack.c.l.b16 %v483
        %v567 = vunpack.c.l.b16 %v484
        %v568 = vunpack.c.l.b16 %v485
        %v569 = vunpack.c.l.b16 %v486
        %v570 = vunpack.c.l.b16 %v487
        %v571 = vunpack.c.l.b16 %v488
        %v572 = vunpack.c.l.b16 %v489
        %v573 = vunpack.c.l.b16 %v490
        %v574 = vunpack.c.l.b16 %v491
        %v575 = vunpack.c.l.b16 %v492
        %v576 = vunpack.c.l.b16 %v493
        %v577 = vpack.c.b16 %v545, %v544
        %v578 = vpack.c.b16 %v547, %v546
        %v579 = vpack.c.b16 %v549, %v548
        %v580 = vpack.c.b16 %v551, %v550
        %v581 = vpack.c.b16 %v553, %v552
        %v582 = vpack.c.b16 %v555, %v554
        %v583 = vpack.c.b16 %v557, %v556
        %v584 = vpack.c.b16 %v559, %v558
        %v585 = vpack.c.b16 %v561, %v560
        %v586 = vpack.c.b16 %v563, %v562
        %v587 = vpack.c.b16 %v565, %v564
        %v588 = vpack.c.b16 %v567, %v566
        %v589 = vpack.c.b16 %v569, %v568
        %v590 = vpack.c.b16 %v571, %v570
        %v591 = vpack.c.b16 %v573, %v572
        %v592 = vpack.c.b16 %v575, %v574
        %v593 = vpack.c.b16 %v576, %v576
        %vm594 = vsmask.f32 7424
        %v596 = vshrl.u32 %v577, 16
        %v598 = vshll.u32 %v577, 16
        %v600 = vrot.slane %v598, 1
        %v601 = vor.u32 %v596, %v600
        %v603 = vshll.u32 %v578, 16
        %v605 = vrot.slane %v603, 1
        %v606 = vsel %vm594, %v601, %v605
        %v607 = vshrl.u32 %v578, 16
        %v609 = vor.u32 %v607, %v605
        %v611 = vshll.u32 %v579, 16
        %v613 = vrot.slane %v611, 1
        %v614 = vsel %vm594, %v609, %v613
        %v615 = vshrl.u32 %v579, 16
        %v617 = vor.u32 %v615, %v613
        %v619 = vshll.u32 %v580, 16
        %v621 = vrot.slane %v619, 1
        %v622 = vsel %vm594, %v617, %v621
        %v623 = vshrl.u32 %v580, 16
        %v625 = vor.u32 %v623, %v621
        %v627 = vshll.u32 %v581, 16
        %v629 = vrot.slane %v627, 1
        %v630 = vsel %vm594, %v625, %v629
        %v631 = vshrl.u32 %v581, 16
        %v633 = vor.u32 %v631, %v629
        %v635 = vshll.u32 %v582, 16
        %v637 = vrot.slane %v635, 1
        %v638 = vsel %vm594, %v633, %v637
        %v639 = vshrl.u32 %v582, 16
        %v641 = vor.u32 %v639, %v637
        %v643 = vshll.u32 %v583, 16
        %v645 = vrot.slane %v643, 1
        %v646 = vsel %vm594, %v641, %v645
        %v647 = vshrl.u32 %v583, 16
        %v649 = vor.u32 %v647, %v645
        %v651 = vshll.u32 %v584, 16
        %v653 = vrot.slane %v651, 1
        %v654 = vsel %vm594, %v649, %v653
        %v655 = vshrl.u32 %v584, 16
        %v657 = vor.u32 %v655, %v653
        %v659 = vshll.u32 %v585, 16
        %v661 = vrot.slane %v659, 1
        %v662 = vsel %vm594, %v657, %v661
        %v663 = vshrl.u32 %v585, 16
        %v665 = vor.u32 %v663, %v661
        %v667 = vshll.u32 %v586, 16
        %v669 = vrot.slane %v667, 1
        %v670 = vsel %vm594, %v665, %v669
        %v671 = vshrl.u32 %v586, 16
        %v673 = vor.u32 %v671, %v669
        %v675 = vshll.u32 %v587, 16
        %v677 = vrot.slane %v675, 1
        %v678 = vsel %vm594, %v673, %v677
        %v679 = vshrl.u32 %v587, 16
        %v681 = vor.u32 %v679, %v677
        %v683 = vshll.u32 %v588, 16
        %v685 = vrot.slane %v683, 1
        %v686 = vsel %vm594, %v681, %v685
        %v687 = vshrl.u32 %v588, 16
        %v689 = vor.u32 %v687, %v685
        %v691 = vshll.u32 %v589, 16
        %v693 = vrot.slane %v691, 1
        %v694 = vsel %vm594, %v689, %v693
        %v695 = vshrl.u32 %v589, 16
        %v697 = vor.u32 %v695, %v693
        %v699 = vshll.u32 %v590, 16
        %v701 = vrot.slane %v699, 1
        %v702 = vsel %vm594, %v697, %v701
        %v703 = vshrl.u32 %v590, 16
        %v705 = vor.u32 %v703, %v701
        %v707 = vshll.u32 %v591, 16
        %v709 = vrot.slane %v707, 1
        %v710 = vsel %vm594, %v705, %v709
        %v711 = vshrl.u32 %v591, 16
        %v713 = vor.u32 %v711, %v709
        %v715 = vshll.u32 %v592, 16
        %v717 = vrot.slane %v715, 1
        %v718 = vsel %vm594, %v713, %v717
        %v719 = vshrl.u32 %v592, 16
        %v721 = vor.u32 %v719, %v717
        %v723 = vshll.u32 %v593, 16
        %v725 = vrot.slane %v723, 1
        %v726 = vsel %vm594, %v721, %v725
        %v759 = vunpack.c.l.b16 %v495
        %v760 = vunpack.c.h.b16 %v495
        %v761 = vunpack.c.l.b16 %v496
        %v762 = vunpack.c.h.b16 %v496
        %v763 = vunpack.c.l.b16 %v497
        %v764 = vunpack.c.h.b16 %v497
        %v765 = vunpack.c.l.b16 %v498
        %v766 = vunpack.c.h.b16 %v498
        %v767 = vunpack.c.l.b16 %v499
        %v768 = vunpack.c.h.b16 %v499
        %v769 = vunpack.c.l.b16 %v500
        %v770 = vunpack.c.h.b16 %v500
        %v771 = vunpack.c.l.b16 %v501
        %v772 = vunpack.c.h.b16 %v501
        %v773 = vunpack.c.l.b16 %v502
        %v774 = vunpack.c.h.b16 %v502
        %v775 = vunpack.c.l.b16 %v503
        %v776 = vunpack.c.h.b16 %v503
        %v777 = vunpack.c.l.b16 %v504
        %v778 = vunpack.c.h.b16 %v504
        %v779 = vunpack.c.l.b16 %v505
        %v780 = vunpack.c.h.b16 %v505
        %v781 = vunpack.c.l.b16 %v506
        %v782 = vunpack.c.h.b16 %v506
        %v783 = vunpack.c.l.b16 %v507
        %v784 = vunpack.c.h.b16 %v507
        %v785 = vunpack.c.l.b16 %v508
        %v786 = vunpack.c.h.b16 %v508
        %v787 = vunpack.c.l.b16 %v509
        %v788 = vunpack.c.h.b16 %v509
        %v789 = vunpack.c.l.b16 %v510
        %v790 = vunpack.c.h.b16 %v510
        %v791 = vpack.c.b16 %v761, %v759
        %v792 = vpack.c.b16 %v762, %v760
        %v793 = vpack.c.b16 %v765, %v763
        %v794 = vpack.c.b16 %v766, %v764
        %v795 = vpack.c.b16 %v769, %v767
        %v796 = vpack.c.b16 %v770, %v768
        %v797 = vpack.c.b16 %v773, %v771
        %v798 = vpack.c.b16 %v774, %v772
        %v799 = vpack.c.b16 %v777, %v775
        %v800 = vpack.c.b16 %v778, %v776
        %v801 = vpack.c.b16 %v781, %v779
        %v802 = vpack.c.b16 %v782, %v780
        %v803 = vpack.c.b16 %v785, %v783
        %v804 = vpack.c.b16 %v786, %v784
        %v805 = vpack.c.b16 %v789, %v787
        %v806 = vpack.c.b16 %v790, %v788
        %823 = vmatprep.subr.bf16.mxu0 %v792
        %824 = vmatpush1.bf16.msra.mxu0 %v791
        %825 = vmatprep.subr.bf16.mxu0 %v794
        %826 = vmatpush1.bf16.msra.mxu0 %v793
        %827 = vmatprep.subr.bf16.mxu0 %v796
        %828 = vmatpush1.bf16.msra.mxu0 %v795
        %829 = vmatprep.subr.bf16.mxu0 %v798
        %830 = vmatpush1.bf16.msra.mxu0 %v797
        %831 = vmatprep.subr.bf16.mxu0 %v800
        %832 = vmatpush1.bf16.msra.mxu0 %v799
        %833 = vmatprep.subr.bf16.mxu0 %v802
        %834 = vmatpush1.bf16.msra.mxu0 %v801
        %835 = vmatprep.subr.bf16.mxu0 %v804
        %836 = vmatpush1.bf16.msra.mxu0 %v803
        %837 = vmatprep.subr.bf16.mxu0 %v806
        %838 = vmatpush1.bf16.msra.mxu0 %v805
        %839 = vmatprep.subr.bf16.mxu0 0
        %840 = vmatpush1.bf16.msra.mxu0 0
        %841 = vmatprep.subr.bf16.mxu0 0
        %842 = vmatpush1.bf16.msra.mxu0 0
        %843 = vmatprep.subr.bf16.mxu0 0
        %844 = vmatpush1.bf16.msra.mxu0 0
        %845 = vmatprep.subr.bf16.mxu0 0
        %846 = vmatpush1.bf16.msra.mxu0 0
        %847 = vmatprep.subr.bf16.mxu0 0
        %848 = vmatpush1.bf16.msra.mxu0 0
        %849 = vmatprep.subr.bf16.mxu0 0
        %850 = vmatpush1.bf16.msra.mxu0 0
        %851 = vmatprep.subr.bf16.mxu0 0
        %852 = vmatpush1.bf16.msra.mxu0 0
        %853 = vmatprep.subr.bf16.mxu0 0
        %854 = vmatpush1.bf16.msra.mxu0 0
        %855 = vmatprep.mubr.bf16.mxu0 0
        %856 = vmatmul.mubr.bf16.gmra.mrb[0].mxu0 %v606
        %v857 = vpop.f32.mrb[0].mxu0
        %v858 = vadd.f32 0.0, %v857
        %v859 = vpop.f32.mrb[0].mxu0
        %v860 = vadd.f32 0.0, %v859
        %v861 = vpop.f32.mrb[0].mxu0
        %v862 = vadd.f32 0.0, %v861
        %v863 = vpop.f32.mrb[0].mxu0
        %v864 = vadd.f32 0.0, %v863
        %865 = vmatprep.mubr.bf16.mxu0 0
        %866 = vmatmul.mubr.bf16.gmra.mrb[0].mxu0 %v614
        %v867 = vpop.f32.mrb[0].mxu0
        %v868 = vadd.f32 0.0, %v867
        %v869 = vpop.f32.mrb[0].mxu0
        %v870 = vadd.f32 0.0, %v869
        %v871 = vpop.f32.mrb[0].mxu0
        %v872 = vadd.f32 0.0, %v871
        %v873 = vpop.f32.mrb[0].mxu0
        %v874 = vadd.f32 0.0, %v873
        %875 = vmatprep.mubr.bf16.mxu0 0
        %876 = vmatmul.mubr.bf16.gmra.mrb[0].mxu0 %v622
        %v877 = vpop.f32.mrb[0].mxu0
        %v878 = vadd.f32 0.0, %v877
        %v879 = vpop.f32.mrb[0].mxu0
        %v880 = vadd.f32 0.0, %v879
        %v881 = vpop.f32.mrb[0].mxu0
        %v882 = vadd.f32 0.0, %v881
        %v883 = vpop.f32.mrb[0].mxu0
        %v884 = vadd.f32 0.0, %v883
        %885 = vmatprep.mubr.bf16.mxu0 0
        %886 = vmatmul.mubr.bf16.gmra.mrb[0].mxu0 %v630
        %v887 = vpop.f32.mrb[0].mxu0
        %v888 = vadd.f32 0.0, %v887
        %v889 = vpop.f32.mrb[0].mxu0
        %v890 = vadd.f32 0.0, %v889
        %v891 = vpop.f32.mrb[0].mxu0
        %v892 = vadd.f32 0.0, %v891
        %v893 = vpop.f32.mrb[0].mxu0
        %v894 = vadd.f32 0.0, %v893
        %895 = vmatprep.mubr.bf16.mxu0 0
        %896 = vmatmul.mubr.bf16.gmra.mrb[0].mxu0 %v638
        %v897 = vpop.f32.mrb[0].mxu0
        %v898 = vadd.f32 0.0, %v897
        %v899 = vpop.f32.mrb[0].mxu0
        %v900 = vadd.f32 0.0, %v899
        %v901 = vpop.f32.mrb[0].mxu0
        %v902 = vadd.f32 0.0, %v901
        %v903 = vpop.f32.mrb[0].mxu0
        %v904 = vadd.f32 0.0, %v903
        %905 = vmatprep.mubr.bf16.mxu0 0
        %906 = vmatmul.mubr.bf16.gmra.mrb[0].mxu0 %v646
        %v907 = vpop.f32.mrb[0].mxu0
        %v908 = vadd.f32 0.0, %v907
        %v909 = vpop.f32.mrb[0].mxu0
        %v910 = vadd.f32 0.0, %v909
        %v911 = vpop.f32.mrb[0].mxu0
        %v912 = vadd.f32 0.0, %v911
        %v913 = vpop.f32.mrb[0].mxu0
        %v914 = vadd.f32 0.0, %v913
        %915 = vmatprep.mubr.bf16.mxu0 0
        %916 = vmatmul.mubr.bf16.gmra.mrb[0].mxu0 %v654
        %v917 = vpop.f32.mrb[0].mxu0
        %v918 = vadd.f32 0.0, %v917
        %v919 = vpop.f32.mrb[0].mxu0
        %v920 = vadd.f32 0.0, %v919
        %v921 = vpop.f32.mrb[0].mxu0
        %v922 = vadd.f32 0.0, %v921
        %v923 = vpop.f32.mrb[0].mxu0
        %v924 = vadd.f32 0.0, %v923
        %925 = vmatprep.mubr.bf16.mxu0 0
        %926 = vmatmul.mubr.bf16.gmra.mrb[0].mxu0 %v662
        %v927 = vpop.f32.mrb[0].mxu0
        %v928 = vadd.f32 0.0, %v927
        %v929 = vpop.f32.mrb[0].mxu0
        %v930 = vadd.f32 0.0, %v929
        %v931 = vpop.f32.mrb[0].mxu0
        %v932 = vadd.f32 0.0, %v931
        %v933 = vpop.f32.mrb[0].mxu0
        %v934 = vadd.f32 0.0, %v933
        %935 = vmatprep.mubr.bf16.mxu0 0
        %936 = vmatmul.mubr.bf16.gmra.mrb[0].mxu0 %v670
        %v937 = vpop.f32.mrb[0].mxu0
        %v938 = vadd.f32 0.0, %v937
        %v939 = vpop.f32.mrb[0].mxu0
        %v940 = vadd.f32 0.0, %v939
        %v941 = vpop.f32.mrb[0].mxu0
        %v942 = vadd.f32 0.0, %v941
        %v943 = vpop.f32.mrb[0].mxu0
        %v944 = vadd.f32 0.0, %v943
        %945 = vmatprep.mubr.bf16.mxu0 0
        %946 = vmatmul.mubr.bf16.gmra.mrb[0].mxu0 %v678
        %v947 = vpop.f32.mrb[0].mxu0
        %v948 = vadd.f32 0.0, %v947
        %v949 = vpop.f32.mrb[0].mxu0
        %v950 = vadd.f32 0.0, %v949
        %v951 = vpop.f32.mrb[0].mxu0
        %v952 = vadd.f32 0.0, %v951
        %v953 = vpop.f32.mrb[0].mxu0
        %v954 = vadd.f32 0.0, %v953
        %955 = vmatprep.mubr.bf16.mxu0 0
        %956 = vmatmul.mubr.bf16.gmra.mrb[0].mxu0 %v686
        %v957 = vpop.f32.mrb[0].mxu0
        %v958 = vadd.f32 0.0, %v957
        %v959 = vpop.f32.mrb[0].mxu0
        %v960 = vadd.f32 0.0, %v959
        %v961 = vpop.f32.mrb[0].mxu0
        %v962 = vadd.f32 0.0, %v961
        %v963 = vpop.f32.mrb[0].mxu0
        %v964 = vadd.f32 0.0, %v963
        %965 = vmatprep.mubr.bf16.mxu0 0
        %966 = vmatmul.mubr.bf16.gmra.mrb[0].mxu0 %v694
        %v967 = vpop.f32.mrb[0].mxu0
        %v968 = vadd.f32 0.0, %v967
        %v969 = vpop.f32.mrb[0].mxu0
        %v970 = vadd.f32 0.0, %v969
        %v971 = vpop.f32.mrb[0].mxu0
        %v972 = vadd.f32 0.0, %v971
        %v973 = vpop.f32.mrb[0].mxu0
        %v974 = vadd.f32 0.0, %v973
        %975 = vmatprep.mubr.bf16.mxu0 0
        %976 = vmatmul.mubr.bf16.gmra.mrb[0].mxu0 %v702
        %v977 = vpop.f32.mrb[0].mxu0
        %v978 = vadd.f32 0.0, %v977
        %v979 = vpop.f32.mrb[0].mxu0
        %v980 = vadd.f32 0.0, %v979
        %v981 = vpop.f32.mrb[0].mxu0
        %v982 = vadd.f32 0.0, %v981
        %v983 = vpop.f32.mrb[0].mxu0
        %v984 = vadd.f32 0.0, %v983
        %985 = vmatprep.mubr.bf16.mxu0 0
        %986 = vmatmul.mubr.bf16.gmra.mrb[0].mxu0 %v710
        %v987 = vpop.f32.mrb[0].mxu0
        %v988 = vadd.f32 0.0, %v987
        %v989 = vpop.f32.mrb[0].mxu0
        %v990 = vadd.f32 0.0, %v989
        %v991 = vpop.f32.mrb[0].mxu0
        %v992 = vadd.f32 0.0, %v991
        %v993 = vpop.f32.mrb[0].mxu0
        %v994 = vadd.f32 0.0, %v993
        %995 = vmatprep.mubr.bf16.mxu0 0
        %996 = vmatmul.mubr.bf16.gmra.mrb[0].mxu0 %v718
        %v997 = vpop.f32.mrb[0].mxu0
        %v998 = vadd.f32 0.0, %v997
        %v999 = vpop.f32.mrb[0].mxu0
        %v1000 = vadd.f32 0.0, %v999
        %v1001 = vpop.f32.mrb[0].mxu0
        %v1002 = vadd.f32 0.0, %v1001
        %v1003 = vpop.f32.mrb[0].mxu0
        %v1004 = vadd.f32 0.0, %v1003
        %1005 = vmatprep.mubr.bf16.mxu0 0
        %1006 = vmatmul.mubr.bf16.gmra.mrb[0].mxu0 %v726
        %v1007 = vpop.f32.mrb[0].mxu0
        %v1008 = vadd.f32 0.0, %v1007
        %v1009 = vpop.f32.mrb[0].mxu0
        %v1010 = vadd.f32 0.0, %v1009
        %v1011 = vpop.f32.mrb[0].mxu0
        %v1012 = vadd.f32 0.0, %v1011
        %v1013 = vpop.f32.mrb[0].mxu0
        %v1014 = vadd.f32 0.0, %v1013
        %1015 = vdwg.mxu0
        %v1048 = vunpack.c.l.b16 %v413
        %v1049 = vunpack.c.l.b16 %v414
        %v1050 = vunpack.c.l.b16 %v415
        %v1051 = vunpack.c.l.b16 %v416
        %v1052 = vunpack.c.l.b16 %v417
        %v1053 = vunpack.c.l.b16 %v418
        %v1054 = vunpack.c.l.b16 %v419
        %v1055 = vunpack.c.l.b16 %v420
        %v1056 = vunpack.c.l.b16 %v421
        %v1057 = vunpack.c.l.b16 %v422
        %v1058 = vunpack.c.l.b16 %v423
        %v1059 = vunpack.c.l.b16 %v424
        %v1060 = vunpack.c.l.b16 %v425
        %v1061 = vunpack.c.l.b16 %v426
        %v1062 = vunpack.c.l.b16 %v427
        %v1063 = vunpack.c.l.b16 %v428
        %v1064 = vunpack.c.l.b16 %v429
        %v1065 = vunpack.c.l.b16 %v430
        %v1066 = vunpack.c.l.b16 %v431
        %v1067 = vunpack.c.l.b16 %v432
        %v1068 = vunpack.c.l.b16 %v433
        %v1069 = vunpack.c.l.b16 %v434
        %v1070 = vunpack.c.l.b16 %v435
        %v1071 = vunpack.c.l.b16 %v436
        %v1072 = vunpack.c.l.b16 %v437
        %v1073 = vunpack.c.l.b16 %v438
        %v1074 = vunpack.c.l.b16 %v439
        %v1075 = vunpack.c.l.b16 %v440
        %v1076 = vunpack.c.l.b16 %v441
        %v1077 = vunpack.c.l.b16 %v442
        %v1078 = vunpack.c.l.b16 %v443
        %v1079 = vunpack.c.l.b16 %v444
        %v1080 = vpack.c.b16 %v1049, %v1048
        %v1081 = vpack.c.b16 %v1051, %v1050
        %v1082 = vpack.c.b16 %v1053, %v1052
        %v1083 = vpack.c.b16 %v1055, %v1054
        %v1084 = vpack.c.b16 %v1057, %v1056
        %v1085 = vpack.c.b16 %v1059, %v1058
        %v1086 = vpack.c.b16 %v1061, %v1060
        %v1087 = vpack.c.b16 %v1063, %v1062
        %v1088 = vpack.c.b16 %v1065, %v1064
        %v1089 = vpack.c.b16 %v1067, %v1066
        %v1090 = vpack.c.b16 %v1069, %v1068
        %v1091 = vpack.c.b16 %v1071, %v1070
        %v1092 = vpack.c.b16 %v1073, %v1072
        %v1093 = vpack.c.b16 %v1075, %v1074
        %v1094 = vpack.c.b16 %v1077, %v1076
        %v1095 = vpack.c.b16 %v1079, %v1078
        %v1128 = vunpack.c.l.b16 %v445
        %v1129 = vunpack.c.h.b16 %v445
        %v1130 = vunpack.c.l.b16 %v446
        %v1131 = vunpack.c.h.b16 %v446
        %v1132 = vunpack.c.l.b16 %v447
        %v1133 = vunpack.c.h.b16 %v447
        %v1134 = vunpack.c.l.b16 %v448
        %v1135 = vunpack.c.h.b16 %v448
        %v1136 = vunpack.c.l.b16 %v449
        %v1137 = vunpack.c.h.b16 %v449
        %v1138 = vunpack.c.l.b16 %v450
        %v1139 = vunpack.c.h.b16 %v450
        %v1140 = vunpack.c.l.b16 %v451
        %v1141 = vunpack.c.h.b16 %v451
        %v1142 = vunpack.c.l.b16 %v452
        %v1143 = vunpack.c.h.b16 %v452
        %v1144 = vunpack.c.l.b16 %v453
        %v1145 = vunpack.c.h.b16 %v453
        %v1146 = vunpack.c.l.b16 %v454
        %v1147 = vunpack.c.h.b16 %v454
        %v1148 = vunpack.c.l.b16 %v455
        %v1149 = vunpack.c.h.b16 %v455
        %v1150 = vunpack.c.l.b16 %v456
        %v1151 = vunpack.c.h.b16 %v456
        %v1152 = vunpack.c.l.b16 %v457
        %v1153 = vunpack.c.h.b16 %v457
        %v1154 = vunpack.c.l.b16 %v458
        %v1155 = vunpack.c.h.b16 %v458
        %v1156 = vunpack.c.l.b16 %v459
        %v1157 = vunpack.c.h.b16 %v459
        %v1158 = vunpack.c.l.b16 %v460
        %v1159 = vunpack.c.h.b16 %v460
        %v1160 = vpack.c.b16 %v1130, %v1128
        %v1161 = vpack.c.b16 %v1131, %v1129
        %v1162 = vpack.c.b16 %v1134, %v1132
        %v1163 = vpack.c.b16 %v1135, %v1133
        %v1164 = vpack.c.b16 %v1138, %v1136
        %v1165 = vpack.c.b16 %v1139, %v1137
        %v1166 = vpack.c.b16 %v1142, %v1140
        %v1167 = vpack.c.b16 %v1143, %v1141
        %v1168 = vpack.c.b16 %v1146, %v1144
        %v1169 = vpack.c.b16 %v1147, %v1145
        %v1170 = vpack.c.b16 %v1150, %v1148
        %v1171 = vpack.c.b16 %v1151, %v1149
        %v1172 = vpack.c.b16 %v1154, %v1152
        %v1173 = vpack.c.b16 %v1155, %v1153
        %v1174 = vpack.c.b16 %v1158, %v1156
        %v1175 = vpack.c.b16 %v1159, %v1157
        %1192 = vmatprep.subr.bf16.mxu0 %v1161
        %1193 = vmatpush1.bf16.msra.mxu0 %v1160
        %1194 = vmatprep.subr.bf16.mxu0 %v1163
        %1195 = vmatpush1.bf16.msra.mxu0 %v1162
        %1196 = vmatprep.subr.bf16.mxu0 %v1165
        %1197 = vmatpush1.bf16.msra.mxu0 %v1164
        %1198 = vmatprep.subr.bf16.mxu0 %v1167
        %1199 = vmatpush1.bf16.msra.mxu0 %v1166
        %1200 = vmatprep.subr.bf16.mxu0 %v1169
        %1201 = vmatpush1.bf16.msra.mxu0 %v1168
        %1202 = vmatprep.subr.bf16.mxu0 %v1171
        %1203 = vmatpush1.bf16.msra.mxu0 %v1170
        %1204 = vmatprep.subr.bf16.mxu0 %v1173
        %1205 = vmatpush1.bf16.msra.mxu0 %v1172
        %1206 = vmatprep.subr.bf16.mxu0 %v1175
        %1207 = vmatpush1.bf16.msra.mxu0 %v1174
        %1208 = vmatprep.subr.bf16.mxu0 0
        %1209 = vmatpush1.bf16.msra.mxu0 0
        %1210 = vmatprep.subr.bf16.mxu0 0
        %1211 = vmatpush1.bf16.msra.mxu0 0
        %1212 = vmatprep.subr.bf16.mxu0 0
        %1213 = vmatpush1.bf16.msra.mxu0 0
        %1214 = vmatprep.subr.bf16.mxu0 0
        %1215 = vmatpush1.bf16.msra.mxu0 0
        %1216 = vmatprep.subr.bf16.mxu0 0
        %1217 = vmatpush1.bf16.msra.mxu0 0
        %1218 = vmatprep.subr.bf16.mxu0 0
        %1219 = vmatpush1.bf16.msra.mxu0 0
        %1220 = vmatprep.subr.bf16.mxu0 0
        %1221 = vmatpush1.bf16.msra.mxu0 0
        %1222 = vmatprep.subr.bf16.mxu0 0
        %1223 = vmatpush1.bf16.msra.mxu0 0
        %1224 = vmatprep.mubr.bf16.mxu0 0
        %1225 = vmatmul.mubr.bf16.gmra.mrb[0].mxu0 %v1080
        %v1226 = vpop.f32.mrb[0].mxu0
        %v1227 = vadd.f32 %v858, %v1226
        %v1228 = vpop.f32.mrb[0].mxu0
        %v1229 = vadd.f32 %v860, %v1228
        %v1230 = vpop.f32.mrb[0].mxu0
        %v1231 = vadd.f32 %v862, %v1230
        %v1232 = vpop.f32.mrb[0].mxu0
        %v1233 = vadd.f32 %v864, %v1232
        %1234 = vmatprep.mubr.bf16.mxu0 0
        %1235 = vmatmul.mubr.bf16.gmra.mrb[0].mxu0 %v1081
        %v1236 = vpop.f32.mrb[0].mxu0
        %v1237 = vadd.f32 %v868, %v1236
        %v1238 = vpop.f32.mrb[0].mxu0
        %v1239 = vadd.f32 %v870, %v1238
        %v1240 = vpop.f32.mrb[0].mxu0
        %v1241 = vadd.f32 %v872, %v1240
        %v1242 = vpop.f32.mrb[0].mxu0
        %v1243 = vadd.f32 %v874, %v1242
        %1244 = vmatprep.mubr.bf16.mxu0 0
        %1245 = vmatmul.mubr.bf16.gmra.mrb[0].mxu0 %v1082
        %v1246 = vpop.f32.mrb[0].mxu0
        %v1247 = vadd.f32 %v878, %v1246
        %v1248 = vpop.f32.mrb[0].mxu0
        %v1249 = vadd.f32 %v880, %v1248
        %v1250 = vpop.f32.mrb[0].mxu0
        %v1251 = vadd.f32 %v882, %v1250
        %v1252 = vpop.f32.mrb[0].mxu0
        %v1253 = vadd.f32 %v884, %v1252
        %1254 = vmatprep.mubr.bf16.mxu0 0
        %1255 = vmatmul.mubr.bf16.gmra.mrb[0].mxu0 %v1083
        %v1256 = vpop.f32.mrb[0].mxu0
        %v1257 = vadd.f32 %v888, %v1256
        %v1258 = vpop.f32.mrb[0].mxu0
        %v1259 = vadd.f32 %v890, %v1258
        %v1260 = vpop.f32.mrb[0].mxu0
        %v1261 = vadd.f32 %v892, %v1260
        %v1262 = vpop.f32.mrb[0].mxu0
        %v1263 = vadd.f32 %v894, %v1262
        %1264 = vmatprep.mubr.bf16.mxu0 0
        %1265 = vmatmul.mubr.bf16.gmra.mrb[0].mxu0 %v1084
        %v1266 = vpop.f32.mrb[0].mxu0
        %v1267 = vadd.f32 %v898, %v1266
        %v1268 = vpop.f32.mrb[0].mxu0
        %v1269 = vadd.f32 %v900, %v1268
        %v1270 = vpop.f32.mrb[0].mxu0
        %v1271 = vadd.f32 %v902, %v1270
        %v1272 = vpop.f32.mrb[0].mxu0
        %v1273 = vadd.f32 %v904, %v1272
        %1274 = vmatprep.mubr.bf16.mxu0 0
        %1275 = vmatmul.mubr.bf16.gmra.mrb[0].mxu0 %v1085
        %v1276 = vpop.f32.mrb[0].mxu0
        %v1277 = vadd.f32 %v908, %v1276
        %v1278 = vpop.f32.mrb[0].mxu0
        %v1279 = vadd.f32 %v910, %v1278
        %v1280 = vpop.f32.mrb[0].mxu0
        %v1281 = vadd.f32 %v912, %v1280
        %v1282 = vpop.f32.mrb[0].mxu0
        %v1283 = vadd.f32 %v914, %v1282
        %1284 = vmatprep.mubr.bf16.mxu0 0
        %1285 = vmatmul.mubr.bf16.gmra.mrb[0].mxu0 %v1086
        %v1286 = vpop.f32.mrb[0].mxu0
        %v1287 = vadd.f32 %v918, %v1286
        %v1288 = vpop.f32.mrb[0].mxu0
        %v1289 = vadd.f32 %v920, %v1288
        %v1290 = vpop.f32.mrb[0].mxu0
        %v1291 = vadd.f32 %v922, %v1290
        %v1292 = vpop.f32.mrb[0].mxu0
        %v1293 = vadd.f32 %v924, %v1292
        %1294 = vmatprep.mubr.bf16.mxu0 0
        %1295 = vmatmul.mubr.bf16.gmra.mrb[0].mxu0 %v1087
        %v1296 = vpop.f32.mrb[0].mxu0
        %v1297 = vadd.f32 %v928, %v1296
        %v1298 = vpop.f32.mrb[0].mxu0
        %v1299 = vadd.f32 %v930, %v1298
        %v1300 = vpop.f32.mrb[0].mxu0
        %v1301 = vadd.f32 %v932, %v1300
        %v1302 = vpop.f32.mrb[0].mxu0
        %v1303 = vadd.f32 %v934, %v1302
        %1304 = vmatprep.mubr.bf16.mxu0 0
        %1305 = vmatmul.mubr.bf16.gmra.mrb[0].mxu0 %v1088
        %v1306 = vpop.f32.mrb[0].mxu0
        %v1307 = vadd.f32 %v938, %v1306
        %v1308 = vpop.f32.mrb[0].mxu0
        %v1309 = vadd.f32 %v940, %v1308
        %v1310 = vpop.f32.mrb[0].mxu0
        %v1311 = vadd.f32 %v942, %v1310
        %v1312 = vpop.f32.mrb[0].mxu0
        %v1313 = vadd.f32 %v944, %v1312
        %1314 = vmatprep.mubr.bf16.mxu0 0
        %1315 = vmatmul.mubr.bf16.gmra.mrb[0].mxu0 %v1089
        %v1316 = vpop.f32.mrb[0].mxu0
        %v1317 = vadd.f32 %v948, %v1316
        %v1318 = vpop.f32.mrb[0].mxu0
        %v1319 = vadd.f32 %v950, %v1318
        %v1320 = vpop.f32.mrb[0].mxu0
        %v1321 = vadd.f32 %v952, %v1320
        %v1322 = vpop.f32.mrb[0].mxu0
        %v1323 = vadd.f32 %v954, %v1322
        %1324 = vmatprep.mubr.bf16.mxu0 0
        %1325 = vmatmul.mubr.bf16.gmra.mrb[0].mxu0 %v1090
        %v1326 = vpop.f32.mrb[0].mxu0
        %v1327 = vadd.f32 %v958, %v1326
        %v1328 = vpop.f32.mrb[0].mxu0
        %v1329 = vadd.f32 %v960, %v1328
        %v1330 = vpop.f32.mrb[0].mxu0
        %v1331 = vadd.f32 %v962, %v1330
        %v1332 = vpop.f32.mrb[0].mxu0
        %v1333 = vadd.f32 %v964, %v1332
        %1334 = vmatprep.mubr.bf16.mxu0 0
        %1335 = vmatmul.mubr.bf16.gmra.mrb[0].mxu0 %v1091
        %v1336 = vpop.f32.mrb[0].mxu0
        %v1337 = vadd.f32 %v968, %v1336
        %v1338 = vpop.f32.mrb[0].mxu0
        %v1339 = vadd.f32 %v970, %v1338
        %v1340 = vpop.f32.mrb[0].mxu0
        %v1341 = vadd.f32 %v972, %v1340
        %v1342 = vpop.f32.mrb[0].mxu0
        %v1343 = vadd.f32 %v974, %v1342
        %1344 = vmatprep.mubr.bf16.mxu0 0
        %1345 = vmatmul.mubr.bf16.gmra.mrb[0].mxu0 %v1092
        %v1346 = vpop.f32.mrb[0].mxu0
        %v1347 = vadd.f32 %v978, %v1346
        %v1348 = vpop.f32.mrb[0].mxu0
        %v1349 = vadd.f32 %v980, %v1348
        %v1350 = vpop.f32.mrb[0].mxu0
        %v1351 = vadd.f32 %v982, %v1350
        %v1352 = vpop.f32.mrb[0].mxu0
        %v1353 = vadd.f32 %v984, %v1352
        %1354 = vmatprep.mubr.bf16.mxu0 0
        %1355 = vmatmul.mubr.bf16.gmra.mrb[0].mxu0 %v1093
        %v1356 = vpop.f32.mrb[0].mxu0
        %v1357 = vadd.f32 %v988, %v1356
        %v1358 = vpop.f32.mrb[0].mxu0
        %v1359 = vadd.f32 %v990, %v1358
        %v1360 = vpop.f32.mrb[0].mxu0
        %v1361 = vadd.f32 %v992, %v1360
        %v1362 = vpop.f32.mrb[0].mxu0
        %v1363 = vadd.f32 %v994, %v1362
        %1364 = vmatprep.mubr.bf16.mxu0 0
        %1365 = vmatmul.mubr.bf16.gmra.mrb[0].mxu0 %v1094
        %v1366 = vpop.f32.mrb[0].mxu0
        %v1367 = vadd.f32 %v998, %v1366
        %v1368 = vpop.f32.mrb[0].mxu0
        %v1369 = vadd.f32 %v1000, %v1368
        %v1370 = vpop.f32.mrb[0].mxu0
        %v1371 = vadd.f32 %v1002, %v1370
        %v1372 = vpop.f32.mrb[0].mxu0
        %v1373 = vadd.f32 %v1004, %v1372
        %1374 = vmatprep.mubr.bf16.mxu0 0
        %1375 = vmatmul.mubr.bf16.gmra.mrb[0].mxu0 %v1095
        %v1376 = vpop.f32.mrb[0].mxu0
        %v1377 = vadd.f32 %v1008, %v1376
        %v1378 = vpop.f32.mrb[0].mxu0
        %v1379 = vadd.f32 %v1010, %v1378
        %v1380 = vpop.f32.mrb[0].mxu0
        %v1381 = vadd.f32 %v1012, %v1380
        %v1382 = vpop.f32.mrb[0].mxu0
        %v1383 = vadd.f32 %v1014, %v1382
        %1384 = vdwg.mxu0
        %v1385 = vld [vmem:[%s411] sm:$0xe]
        %s1386 = scalar_lea.vmem %s1, 256
        %v1387 = vld [vmem:[%s1386] sm:$0xff]
        %v1388 = vld [vmem:[%s1386 + $0x8] sm:$0xff]
        %v1389 = vld [vmem:[%s1386 + $0x10] sm:$0xff]
        %v1390 = vld [vmem:[%s1386 + $0x18] sm:$0xff]
        %v1391 = vld [vmem:[%s1386 + $0x20] sm:$0xff]
        %v1392 = vld [vmem:[%s1386 + $0x28] sm:$0xff]
        %v1393 = vld [vmem:[%s1386 + $0x30] sm:$0xff]
        %v1394 = vld [vmem:[%s1386 + $0x38] sm:$0xff]
        %v1395 = vld [vmem:[%s1386 + $0x40] sm:$0xff]
        %v1396 = vld [vmem:[%s1386 + $0x48] sm:$0xff]
        %v1397 = vld [vmem:[%s1386 + $0x50] sm:$0xff]
        %v1398 = vld [vmem:[%s1386 + $0x58] sm:$0xff]
        %v1399 = vld [vmem:[%s1386 + $0x60] sm:$0xff]
        %v1400 = vld [vmem:[%s1386 + $0x68] sm:$0xff]
        %v1401 = vld [vmem:[%s1386 + $0x70] sm:$0xff]
        %v1402 = vld [vmem:[%s1386 + $0x78] sm:$0xff]
        %v1404 = vunpack.c.l.b16 %v1385
        %v1405 = vpack.c.b16 %v545, %v1404
        %vm1406 = vcmask 1046528
        %v1407 = vrot.slane %v1405, 1
        %v1408 = vrot.slane %v578, 1
        %v1409 = vsel %vm1406, %v1407, %v1408
        %v1410 = vrot.slane %v579, 1
        %v1411 = vsel %vm1406, %v1408, %v1410
        %v1412 = vrot.slane %v580, 1
        %v1413 = vsel %vm1406, %v1410, %v1412
        %v1414 = vrot.slane %v581, 1
        %v1415 = vsel %vm1406, %v1412, %v1414
        %v1416 = vrot.slane %v582, 1
        %v1417 = vsel %vm1406, %v1414, %v1416
        %v1418 = vrot.slane %v583, 1
        %v1419 = vsel %vm1406, %v1416, %v1418
        %v1420 = vrot.slane %v584, 1
        %v1421 = vsel %vm1406, %v1418, %v1420
        %v1422 = vrot.slane %v585, 1
        %v1423 = vsel %vm1406, %v1420, %v1422
        %v1424 = vrot.slane %v586, 1
        %v1425 = vsel %vm1406, %v1422, %v1424
        %v1426 = vrot.slane %v587, 1
        %v1427 = vsel %vm1406, %v1424, %v1426
        %v1428 = vrot.slane %v588, 1
        %v1429 = vsel %vm1406, %v1426, %v1428
        %v1430 = vrot.slane %v589, 1
        %v1431 = vsel %vm1406, %v1428, %v1430
        %v1432 = vrot.slane %v590, 1
        %v1433 = vsel %vm1406, %v1430, %v1432
        %v1434 = vrot.slane %v591, 1
        %v1435 = vsel %vm1406, %v1432, %v1434
        %v1436 = vrot.slane %v592, 1
        %v1437 = vsel %vm1406, %v1434, %v1436
        %v1438 = vrot.slane %v593, 1
        %v1439 = vsel %vm1406, %v1436, %v1438
        %v1472 = vunpack.c.l.b16 %v1387
        %v1473 = vunpack.c.h.b16 %v1387
        %v1474 = vunpack.c.l.b16 %v1388
        %v1475 = vunpack.c.h.b16 %v1388
        %v1476 = vunpack.c.l.b16 %v1389
        %v1477 = vunpack.c.h.b16 %v1389
        %v1478 = vunpack.c.l.b16 %v1390
        %v1479 = vunpack.c.h.b16 %v1390
        %v1480 = vunpack.c.l.b16 %v1391
        %v1481 = vunpack.c.h.b16 %v1391
        %v1482 = vunpack.c.l.b16 %v1392
        %v1483 = vunpack.c.h.b16 %v1392
        %v1484 = vunpack.c.l.b16 %v1393
        %v1485 = vunpack.c.h.b16 %v1393
        %v1486 = vunpack.c.l.b16 %v1394
        %v1487 = vunpack.c.h.b16 %v1394
        %v1488 = vunpack.c.l.b16 %v1395
        %v1489 = vunpack.c.h.b16 %v1395
        %v1490 = vunpack.c.l.b16 %v1396
        %v1491 = vunpack.c.h.b16 %v1396
        %v1492 = vunpack.c.l.b16 %v1397
        %v1493 = vunpack.c.h.b16 %v1397
        %v1494 = vunpack.c.l.b16 %v1398
        %v1495 = vunpack.c.h.b16 %v1398
        %v1496 = vunpack.c.l.b16 %v1399
        %v1497 = vunpack.c.h.b16 %v1399
        %v1498 = vunpack.c.l.b16 %v1400
        %v1499 = vunpack.c.h.b16 %v1400
        %v1500 = vunpack.c.l.b16 %v1401
        %v1501 = vunpack.c.h.b16 %v1401
        %v1502 = vunpack.c.l.b16 %v1402
        %v1503 = vunpack.c.h.b16 %v1402
        %v1504 = vpack.c.b16 %v1474, %v1472
        %v1505 = vpack.c.b16 %v1475, %v1473
        %v1506 = vpack.c.b16 %v1478, %v1476
        %v1507 = vpack.c.b16 %v1479, %v1477
        %v1508 = vpack.c.b16 %v1482, %v1480
        %v1509 = vpack.c.b16 %v1483, %v1481
        %v1510 = vpack.c.b16 %v1486, %v1484
        %v1511 = vpack.c.b16 %v1487, %v1485
        %v1512 = vpack.c.b16 %v1490, %v1488
        %v1513 = vpack.c.b16 %v1491, %v1489
        %v1514 = vpack.c.b16 %v1494, %v1492
        %v1515 = vpack.c.b16 %v1495, %v1493
        %v1516 = vpack.c.b16 %v1498, %v1496
        %v1517 = vpack.c.b16 %v1499, %v1497
        %v1518 = vpack.c.b16 %v1502, %v1500
        %v1519 = vpack.c.b16 %v1503, %v1501
        %1536 = vmatprep.subr.bf16.mxu0 %v1505
        %1537 = vmatpush1.bf16.msra.mxu0 %v1504
        %1538 = vmatprep.subr.bf16.mxu0 %v1507
        %1539 = vmatpush1.bf16.msra.mxu0 %v1506
        %1540 = vmatprep.subr.bf16.mxu0 %v1509
        %1541 = vmatpush1.bf16.msra.mxu0 %v1508
        %1542 = vmatprep.subr.bf16.mxu0 %v1511
        %1543 = vmatpush1.bf16.msra.mxu0 %v1510
        %1544 = vmatprep.subr.bf16.mxu0 %v1513
        %1545 = vmatpush1.bf16.msra.mxu0 %v1512
        %1546 = vmatprep.subr.bf16.mxu0 %v1515
        %1547 = vmatpush1.bf16.msra.mxu0 %v1514
        %1548 = vmatprep.subr.bf16.mxu0 %v1517
        %1549 = vmatpush1.bf16.msra.mxu0 %v1516
        %1550 = vmatprep.subr.bf16.mxu0 %v1519
        %1551 = vmatpush1.bf16.msra.mxu0 %v1518
        %1552 = vmatprep.subr.bf16.mxu0 0
        %1553 = vmatpush1.bf16.msra.mxu0 0
        %1554 = vmatprep.subr.bf16.mxu0 0
        %1555 = vmatpush1.bf16.msra.mxu0 0
        %1556 = vmatprep.subr.bf16.mxu0 0
        %1557 = vmatpush1.bf16.msra.mxu0 0
        %1558 = vmatprep.subr.bf16.mxu0 0
        %1559 = vmatpush1.bf16.msra.mxu0 0
        %1560 = vmatprep.subr.bf16.mxu0 0
        %1561 = vmatpush1.bf16.msra.mxu0 0
        %1562 = vmatprep.subr.bf16.mxu0 0
        %1563 = vmatpush1.bf16.msra.mxu0 0
        %1564 = vmatprep.subr.bf16.mxu0 0
        %1565 = vmatpush1.bf16.msra.mxu0 0
        %1566 = vmatprep.subr.bf16.mxu0 0
        %1567 = vmatpush1.bf16.msra.mxu0 0
        %1568 = vmatprep.mubr.bf16.mxu0 0
        %1569 = vmatmul.mubr.bf16.gmra.mrb[0].mxu0 %v1409
        %v1570 = vpop.f32.mrb[0].mxu0
        %v1571 = vadd.f32 0.0, %v1570
        %v1572 = vpop.f32.mrb[0].mxu0
        %v1573 = vadd.f32 0.0, %v1572
        %v1574 = vpop.f32.mrb[0].mxu0
        %v1575 = vadd.f32 0.0, %v1574
        %v1576 = vpop.f32.mrb[0].mxu0
        %v1577 = vadd.f32 0.0, %v1576
        %1578 = vmatprep.mubr.bf16.mxu0 0
        %1579 = vmatmul.mubr.bf16.gmra.mrb[0].mxu0 %v1411
        %v1580 = vpop.f32.mrb[0].mxu0
        %v1581 = vadd.f32 0.0, %v1580
        %v1582 = vpop.f32.mrb[0].mxu0
        %v1583 = vadd.f32 0.0, %v1582
        %v1584 = vpop.f32.mrb[0].mxu0
        %v1585 = vadd.f32 0.0, %v1584
        %v1586 = vpop.f32.mrb[0].mxu0
        %v1587 = vadd.f32 0.0, %v1586
        %1588 = vmatprep.mubr.bf16.mxu0 0
        %1589 = vmatmul.mubr.bf16.gmra.mrb[0].mxu0 %v1413
        %v1590 = vpop.f32.mrb[0].mxu0
        %v1591 = vadd.f32 0.0, %v1590
        %v1592 = vpop.f32.mrb[0].mxu0
        %v1593 = vadd.f32 0.0, %v1592
        %v1594 = vpop.f32.mrb[0].mxu0
        %v1595 = vadd.f32 0.0, %v1594
        %v1596 = vpop.f32.mrb[0].mxu0
        %v1597 = vadd.f32 0.0, %v1596
        %1598 = vmatprep.mubr.bf16.mxu0 0
        %1599 = vmatmul.mubr.bf16.gmra.mrb[0].mxu0 %v1415
        %v1600 = vpop.f32.mrb[0].mxu0
        %v1601 = vadd.f32 0.0, %v1600
        %v1602 = vpop.f32.mrb[0].mxu0
        %v1603 = vadd.f32 0.0, %v1602
        %v1604 = vpop.f32.mrb[0].mxu0
        %v1605 = vadd.f32 0.0, %v1604
        %v1606 = vpop.f32.mrb[0].mxu0
        %v1607 = vadd.f32 0.0, %v1606
        %1608 = vmatprep.mubr.bf16.mxu0 0
        %1609 = vmatmul.mubr.bf16.gmra.mrb[0].mxu0 %v1417
        %v1610 = vpop.f32.mrb[0].mxu0
        %v1611 = vadd.f32 0.0, %v1610
        %v1612 = vpop.f32.mrb[0].mxu0
        %v1613 = vadd.f32 0.0, %v1612
        %v1614 = vpop.f32.mrb[0].mxu0
        %v1615 = vadd.f32 0.0, %v1614
        %v1616 = vpop.f32.mrb[0].mxu0
        %v1617 = vadd.f32 0.0, %v1616
        %1618 = vmatprep.mubr.bf16.mxu0 0
        %1619 = vmatmul.mubr.bf16.gmra.mrb[0].mxu0 %v1419
        %v1620 = vpop.f32.mrb[0].mxu0
        %v1621 = vadd.f32 0.0, %v1620
        %v1622 = vpop.f32.mrb[0].mxu0
        %v1623 = vadd.f32 0.0, %v1622
        %v1624 = vpop.f32.mrb[0].mxu0
        %v1625 = vadd.f32 0.0, %v1624
        %v1626 = vpop.f32.mrb[0].mxu0
        %v1627 = vadd.f32 0.0, %v1626
        %1628 = vmatprep.mubr.bf16.mxu0 0
        %1629 = vmatmul.mubr.bf16.gmra.mrb[0].mxu0 %v1421
        %v1630 = vpop.f32.mrb[0].mxu0
        %v1631 = vadd.f32 0.0, %v1630
        %v1632 = vpop.f32.mrb[0].mxu0
        %v1633 = vadd.f32 0.0, %v1632
        %v1634 = vpop.f32.mrb[0].mxu0
        %v1635 = vadd.f32 0.0, %v1634
        %v1636 = vpop.f32.mrb[0].mxu0
        %v1637 = vadd.f32 0.0, %v1636
        %1638 = vmatprep.mubr.bf16.mxu0 0
        %1639 = vmatmul.mubr.bf16.gmra.mrb[0].mxu0 %v1423
        %v1640 = vpop.f32.mrb[0].mxu0
        %v1641 = vadd.f32 0.0, %v1640
        %v1642 = vpop.f32.mrb[0].mxu0
        %v1643 = vadd.f32 0.0, %v1642
        %v1644 = vpop.f32.mrb[0].mxu0
        %v1645 = vadd.f32 0.0, %v1644
        %v1646 = vpop.f32.mrb[0].mxu0
        %v1647 = vadd.f32 0.0, %v1646
        %1648 = vmatprep.mubr.bf16.mxu0 0
        %1649 = vmatmul.mubr.bf16.gmra.mrb[0].mxu0 %v1425
        %v1650 = vpop.f32.mrb[0].mxu0
        %v1651 = vadd.f32 0.0, %v1650
        %v1652 = vpop.f32.mrb[0].mxu0
        %v1653 = vadd.f32 0.0, %v1652
        %v1654 = vpop.f32.mrb[0].mxu0
        %v1655 = vadd.f32 0.0, %v1654
        %v1656 = vpop.f32.mrb[0].mxu0
        %v1657 = vadd.f32 0.0, %v1656
        %1658 = vmatprep.mubr.bf16.mxu0 0
        %1659 = vmatmul.mubr.bf16.gmra.mrb[0].mxu0 %v1427
        %v1660 = vpop.f32.mrb[0].mxu0
        %v1661 = vadd.f32 0.0, %v1660
        %v1662 = vpop.f32.mrb[0].mxu0
        %v1663 = vadd.f32 0.0, %v1662
        %v1664 = vpop.f32.mrb[0].mxu0
        %v1665 = vadd.f32 0.0, %v1664
        %v1666 = vpop.f32.mrb[0].mxu0
        %v1667 = vadd.f32 0.0, %v1666
        %1668 = vmatprep.mubr.bf16.mxu0 0
        %1669 = vmatmul.mubr.bf16.gmra.mrb[0].mxu0 %v1429
        %v1670 = vpop.f32.mrb[0].mxu0
        %v1671 = vadd.f32 0.0, %v1670
        %v1672 = vpop.f32.mrb[0].mxu0
        %v1673 = vadd.f32 0.0, %v1672
        %v1674 = vpop.f32.mrb[0].mxu0
        %v1675 = vadd.f32 0.0, %v1674
        %v1676 = vpop.f32.mrb[0].mxu0
        %v1677 = vadd.f32 0.0, %v1676
        %1678 = vmatprep.mubr.bf16.mxu0 0
        %1679 = vmatmul.mubr.bf16.gmra.mrb[0].mxu0 %v1431
        %v1680 = vpop.f32.mrb[0].mxu0
        %v1681 = vadd.f32 0.0, %v1680
        %v1682 = vpop.f32.mrb[0].mxu0
        %v1683 = vadd.f32 0.0, %v1682
        %v1684 = vpop.f32.mrb[0].mxu0
        %v1685 = vadd.f32 0.0, %v1684
        %v1686 = vpop.f32.mrb[0].mxu0
        %v1687 = vadd.f32 0.0, %v1686
        %1688 = vmatprep.mubr.bf16.mxu0 0
        %1689 = vmatmul.mubr.bf16.gmra.mrb[0].mxu0 %v1433
        %v1690 = vpop.f32.mrb[0].mxu0
        %v1691 = vadd.f32 0.0, %v1690
        %v1692 = vpop.f32.mrb[0].mxu0
        %v1693 = vadd.f32 0.0, %v1692
        %v1694 = vpop.f32.mrb[0].mxu0
        %v1695 = vadd.f32 0.0, %v1694
        %v1696 = vpop.f32.mrb[0].mxu0
        %v1697 = vadd.f32 0.0, %v1696
        %1698 = vmatprep.mubr.bf16.mxu0 0
        %1699 = vmatmul.mubr.bf16.gmra.mrb[0].mxu0 %v1435
        %v1700 = vpop.f32.mrb[0].mxu0
        %v1701 = vadd.f32 0.0, %v1700
        %v1702 = vpop.f32.mrb[0].mxu0
        %v1703 = vadd.f32 0.0, %v1702
        %v1704 = vpop.f32.mrb[0].mxu0
        %v1705 = vadd.f32 0.0, %v1704
        %v1706 = vpop.f32.mrb[0].mxu0
        %v1707 = vadd.f32 0.0, %v1706
        %1708 = vmatprep.mubr.bf16.mxu0 0
        %1709 = vmatmul.mubr.bf16.gmra.mrb[0].mxu0 %v1437
        %v1710 = vpop.f32.mrb[0].mxu0
        %v1711 = vadd.f32 0.0, %v1710
        %v1712 = vpop.f32.mrb[0].mxu0
        %v1713 = vadd.f32 0.0, %v1712
        %v1714 = vpop.f32.mrb[0].mxu0
        %v1715 = vadd.f32 0.0, %v1714
        %v1716 = vpop.f32.mrb[0].mxu0
        %v1717 = vadd.f32 0.0, %v1716
        %1718 = vmatprep.mubr.bf16.mxu0 0
        %1719 = vmatmul.mubr.bf16.gmra.mrb[0].mxu0 %v1439
        %v1720 = vpop.f32.mrb[0].mxu0
        %v1721 = vadd.f32 0.0, %v1720
        %v1722 = vpop.f32.mrb[0].mxu0
        %v1723 = vadd.f32 0.0, %v1722
        %v1724 = vpop.f32.mrb[0].mxu0
        %v1725 = vadd.f32 0.0, %v1724
        %v1726 = vpop.f32.mrb[0].mxu0
        %v1727 = vadd.f32 0.0, %v1726
        %1728 = vdwg.mxu0
        %v1729 = vadd.f32 %v1227, %v1571
        %v1730 = vadd.f32 %v1229, %v1573
        %v1731 = vadd.f32 %v1231, %v1575
        %v1732 = vadd.f32 %v1233, %v1577
        %v1733 = vadd.f32 %v1237, %v1581
        %v1734 = vadd.f32 %v1239, %v1583
        %v1735 = vadd.f32 %v1241, %v1585
        %v1736 = vadd.f32 %v1243, %v1587
        %v1737 = vadd.f32 %v1247, %v1591
        %v1738 = vadd.f32 %v1249, %v1593
        %v1739 = vadd.f32 %v1251, %v1595
        %v1740 = vadd.f32 %v1253, %v1597
        %v1741 = vadd.f32 %v1257, %v1601
        %v1742 = vadd.f32 %v1259, %v1603
        %v1743 = vadd.f32 %v1261, %v1605
        %v1744 = vadd.f32 %v1263, %v1607
        %v1745 = vadd.f32 %v1267, %v1611
        %v1746 = vadd.f32 %v1269, %v1613
        %v1747 = vadd.f32 %v1271, %v1615
        %v1748 = vadd.f32 %v1273, %v1617
        %v1749 = vadd.f32 %v1277, %v1621
        %v1750 = vadd.f32 %v1279, %v1623
        %v1751 = vadd.f32 %v1281, %v1625
        %v1752 = vadd.f32 %v1283, %v1627
        %v1753 = vadd.f32 %v1287, %v1631
        %v1754 = vadd.f32 %v1289, %v1633
        %v1755 = vadd.f32 %v1291, %v1635
        %v1756 = vadd.f32 %v1293, %v1637
        %v1757 = vadd.f32 %v1297, %v1641
        %v1758 = vadd.f32 %v1299, %v1643
        %v1759 = vadd.f32 %v1301, %v1645
        %v1760 = vadd.f32 %v1303, %v1647
        %v1761 = vadd.f32 %v1307, %v1651
        %v1762 = vadd.f32 %v1309, %v1653
        %v1763 = vadd.f32 %v1311, %v1655
        %v1764 = vadd.f32 %v1313, %v1657
        %v1765 = vadd.f32 %v1317, %v1661
        %v1766 = vadd.f32 %v1319, %v1663
        %v1767 = vadd.f32 %v1321, %v1665
        %v1768 = vadd.f32 %v1323, %v1667
        %v1769 = vadd.f32 %v1327, %v1671
        %v1770 = vadd.f32 %v1329, %v1673
        %v1771 = vadd.f32 %v1331, %v1675
        %v1772 = vadd.f32 %v1333, %v1677
        %v1773 = vadd.f32 %v1337, %v1681
        %v1774 = vadd.f32 %v1339, %v1683
        %v1775 = vadd.f32 %v1341, %v1685
        %v1776 = vadd.f32 %v1343, %v1687
        %v1777 = vadd.f32 %v1347, %v1691
        %v1778 = vadd.f32 %v1349, %v1693
        %v1779 = vadd.f32 %v1351, %v1695
        %v1780 = vadd.f32 %v1353, %v1697
        %v1781 = vadd.f32 %v1357, %v1701
        %v1782 = vadd.f32 %v1359, %v1703
        %v1783 = vadd.f32 %v1361, %v1705
        %v1784 = vadd.f32 %v1363, %v1707
        %v1785 = vadd.f32 %v1367, %v1711
        %v1786 = vadd.f32 %v1369, %v1713
        %v1787 = vadd.f32 %v1371, %v1715
        %v1788 = vadd.f32 %v1373, %v1717
        %v1789 = vadd.f32 %v1377, %v1721
        %v1790 = vadd.f32 %v1379, %v1723
        %v1791 = vadd.f32 %v1381, %v1725
        %v1792 = vadd.f32 %v1383, %v1727
        %v1793 = vld [vmem:[%s411 + $0x80] sm:$0x3]
        %s1794 = scalar_lea.vmem %s1, 384
        %v1795 = vld [vmem:[%s1794] sm:$0xff]
        %v1796 = vld [vmem:[%s1794 + $0x8] sm:$0xff]
        %v1797 = vld [vmem:[%s1794 + $0x10] sm:$0xff]
        %v1798 = vld [vmem:[%s1794 + $0x18] sm:$0xff]
        %v1799 = vld [vmem:[%s1794 + $0x20] sm:$0xff]
        %v1800 = vld [vmem:[%s1794 + $0x28] sm:$0xff]
        %v1801 = vld [vmem:[%s1794 + $0x30] sm:$0xff]
        %v1802 = vld [vmem:[%s1794 + $0x38] sm:$0xff]
        %v1803 = vld [vmem:[%s1794 + $0x40] sm:$0xff]
        %v1804 = vld [vmem:[%s1794 + $0x48] sm:$0xff]
        %v1805 = vld [vmem:[%s1794 + $0x50] sm:$0xff]
        %v1806 = vld [vmem:[%s1794 + $0x58] sm:$0xff]
        %v1807 = vld [vmem:[%s1794 + $0x60] sm:$0xff]
        %v1808 = vld [vmem:[%s1794 + $0x68] sm:$0xff]
        %v1809 = vld [vmem:[%s1794 + $0x70] sm:$0xff]
        %v1810 = vld [vmem:[%s1794 + $0x78] sm:$0xff]
        %v1812 = vunpack.c.l.b16 %v1793
        %v1813 = vpack.c.b16 %v1812, %v1812
        %vm1814 = vsmask.f32 6400
        %v1816 = vshrl.u32 %v1405, 16
        %v1818 = vrot.slane %v1816, 1
        %v1819 = vshll.u32 %v1405, 16
        %v1821 = vrot.slane %v1819, 2
        %v1822 = vor.u32 %v1818, %v1821
        %v1823 = vrot.slane %v607, 1
        %v1824 = vrot.slane %v603, 2
        %v1825 = vor.u32 %v1823, %v1824
        %v1826 = vsel %vm1814, %v1822, %v1825
        %v1827 = vrot.slane %v615, 1
        %v1828 = vrot.slane %v611, 2
        %v1829 = vor.u32 %v1827, %v1828
        %v1830 = vsel %vm1814, %v1825, %v1829
        %v1831 = vrot.slane %v623, 1
        %v1832 = vrot.slane %v619, 2
        %v1833 = vor.u32 %v1831, %v1832
        %v1834 = vsel %vm1814, %v1829, %v1833
        %v1835 = vrot.slane %v631, 1
        %v1836 = vrot.slane %v627, 2
        %v1837 = vor.u32 %v1835, %v1836
        %v1838 = vsel %vm1814, %v1833, %v1837
        %v1839 = vrot.slane %v639, 1
        %v1840 = vrot.slane %v635, 2
        %v1841 = vor.u32 %v1839, %v1840
        %v1842 = vsel %vm1814, %v1837, %v1841
        %v1843 = vrot.slane %v647, 1
        %v1844 = vrot.slane %v643, 2
        %v1845 = vor.u32 %v1843, %v1844
        %v1846 = vsel %vm1814, %v1841, %v1845
        %v1847 = vrot.slane %v655, 1
        %v1848 = vrot.slane %v651, 2
        %v1849 = vor.u32 %v1847, %v1848
        %v1850 = vsel %vm1814, %v1845, %v1849
        %v1851 = vrot.slane %v663, 1
        %v1852 = vrot.slane %v659, 2
        %v1853 = vor.u32 %v1851, %v1852
        %v1854 = vsel %vm1814, %v1849, %v1853
        %v1855 = vrot.slane %v671, 1
        %v1856 = vrot.slane %v667, 2
        %v1857 = vor.u32 %v1855, %v1856
        %v1858 = vsel %vm1814, %v1853, %v1857
        %v1859 = vrot.slane %v679, 1
        %v1860 = vrot.slane %v675, 2
        %v1861 = vor.u32 %v1859, %v1860
        %v1862 = vsel %vm1814, %v1857, %v1861
        %v1863 = vrot.slane %v687, 1
        %v1864 = vrot.slane %v683, 2
        %v1865 = vor.u32 %v1863, %v1864
        %v1866 = vsel %vm1814, %v1861, %v1865
        %v1867 = vrot.slane %v695, 1
        %v1868 = vrot.slane %v691, 2
        %v1869 = vor.u32 %v1867, %v1868
        %v1870 = vsel %vm1814, %v1865, %v1869
        %v1871 = vrot.slane %v703, 1
        %v1872 = vrot.slane %v699, 2
        %v1873 = vor.u32 %v1871, %v1872
        %v1874 = vsel %vm1814, %v1869, %v1873
        %v1875 = vrot.slane %v711, 1
        %v1876 = vrot.slane %v707, 2
        %v1877 = vor.u32 %v1875, %v1876
        %v1878 = vsel %vm1814, %v1873, %v1877
        %v1879 = vrot.slane %v719, 1
        %v1880 = vrot.slane %v715, 2
        %v1881 = vor.u32 %v1879, %v1880
        %v1882 = vsel %vm1814, %v1877, %v1881
        %v1884 = vshrl.u32 %v1813, 16
        %v1886 = vrot.slane %v1884, 1
        %v1887 = vshll.u32 %v1813, 16
        %v1889 = vrot.slane %v1887, 2
        %v1890 = vor.u32 %v1886, %v1889
        %v1891 = vsel %vm1814, %v1881, %v1890
        %v1924 = vunpack.c.l.b16 %v1795
        %v1925 = vunpack.c.h.b16 %v1795
        %v1926 = vunpack.c.l.b16 %v1796
        %v1927 = vunpack.c.h.b16 %v1796
        %v1928 = vunpack.c.l.b16 %v1797
        %v1929 = vunpack.c.h.b16 %v1797
        %v1930 = vunpack.c.l.b16 %v1798
        %v1931 = vunpack.c.h.b16 %v1798
        %v1932 = vunpack.c.l.b16 %v1799
        %v1933 = vunpack.c.h.b16 %v1799
        %v1934 = vunpack.c.l.b16 %v1800
        %v1935 = vunpack.c.h.b16 %v1800
        %v1936 = vunpack.c.l.b16 %v1801
        %v1937 = vunpack.c.h.b16 %v1801
        %v1938 = vunpack.c.l.b16 %v1802
        %v1939 = vunpack.c.h.b16 %v1802
        %v1940 = vunpack.c.l.b16 %v1803
        %v1941 = vunpack.c.h.b16 %v1803
        %v1942 = vunpack.c.l.b16 %v1804
        %v1943 = vunpack.c.h.b16 %v1804
        %v1944 = vunpack.c.l.b16 %v1805
        %v1945 = vunpack.c.h.b16 %v1805
        %v1946 = vunpack.c.l.b16 %v1806
        %v1947 = vunpack.c.h.b16 %v1806
        %v1948 = vunpack.c.l.b16 %v1807
        %v1949 = vunpack.c.h.b16 %v1807
        %v1950 = vunpack.c.l.b16 %v1808
        %v1951 = vunpack.c.h.b16 %v1808
        %v1952 = vunpack.c.l.b16 %v1809
        %v1953 = vunpack.c.h.b16 %v1809
        %v1954 = vunpack.c.l.b16 %v1810
        %v1955 = vunpack.c.h.b16 %v1810
        %v1956 = vpack.c.b16 %v1926, %v1924
        %v1957 = vpack.c.b16 %v1927, %v1925
        %v1958 = vpack.c.b16 %v1930, %v1928
        %v1959 = vpack.c.b16 %v1931, %v1929
        %v1960 = vpack.c.b16 %v1934, %v1932
        %v1961 = vpack.c.b16 %v1935, %v1933
        %v1962 = vpack.c.b16 %v1938, %v1936
        %v1963 = vpack.c.b16 %v1939, %v1937
        %v1964 = vpack.c.b16 %v1942, %v1940
        %v1965 = vpack.c.b16 %v1943, %v1941
        %v1966 = vpack.c.b16 %v1946, %v1944
        %v1967 = vpack.c.b16 %v1947, %v1945
        %v1968 = vpack.c.b16 %v1950, %v1948
        %v1969 = vpack.c.b16 %v1951, %v1949
        %v1970 = vpack.c.b16 %v1954, %v1952
        %v1971 = vpack.c.b16 %v1955, %v1953
        %1988 = vmatprep.subr.bf16.mxu0 %v1957
        %1989 = vmatpush1.bf16.msra.mxu0 %v1956
        %1990 = vmatprep.subr.bf16.mxu0 %v1959
        %1991 = vmatpush1.bf16.msra.mxu0 %v1958
        %1992 = vmatprep.subr.bf16.mxu0 %v1961
        %1993 = vmatpush1.bf16.msra.mxu0 %v1960
        %1994 = vmatprep.subr.bf16.mxu0 %v1963
        %1995 = vmatpush1.bf16.msra.mxu0 %v1962
        %1996 = vmatprep.subr.bf16.mxu0 %v1965
        %1997 = vmatpush1.bf16.msra.mxu0 %v1964
        %1998 = vmatprep.subr.bf16.mxu0 %v1967
        %1999 = vmatpush1.bf16.msra.mxu0 %v1966
        %2000 = vmatprep.subr.bf16.mxu0 %v1969
        %2001 = vmatpush1.bf16.msra.mxu0 %v1968
        %2002 = vmatprep.subr.bf16.mxu0 %v1971
        %2003 = vmatpush1.bf16.msra.mxu0 %v1970
        %2004 = vmatprep.subr.bf16.mxu0 0
        %2005 = vmatpush1.bf16.msra.mxu0 0
        %2006 = vmatprep.subr.bf16.mxu0 0
        %2007 = vmatpush1.bf16.msra.mxu0 0
        %2008 = vmatprep.subr.bf16.mxu0 0
        %2009 = vmatpush1.bf16.msra.mxu0 0
        %2010 = vmatprep.subr.bf16.mxu0 0
        %2011 = vmatpush1.bf16.msra.mxu0 0
        %2012 = vmatprep.subr.bf16.mxu0 0
        %2013 = vmatpush1.bf16.msra.mxu0 0
        %2014 = vmatprep.subr.bf16.mxu0 0
        %2015 = vmatpush1.bf16.msra.mxu0 0
        %2016 = vmatprep.subr.bf16.mxu0 0
        %2017 = vmatpush1.bf16.msra.mxu0 0
        %2018 = vmatprep.subr.bf16.mxu0 0
        %2019 = vmatpush1.bf16.msra.mxu0 0
        %2020 = vmatprep.mubr.bf16.mxu0 0
        %2021 = vmatmul.mubr.bf16.gmra.mrb[0].mxu0 %v1826
        %v2022 = vpop.f32.mrb[0].mxu0
        %v2023 = vadd.f32 0.0, %v2022
        %v2024 = vpop.f32.mrb[0].mxu0
        %v2025 = vadd.f32 0.0, %v2024
        %v2026 = vpop.f32.mrb[0].mxu0
        %v2027 = vadd.f32 0.0, %v2026
        %v2028 = vpop.f32.mrb[0].mxu0
        %v2029 = vadd.f32 0.0, %v2028
        %2030 = vmatprep.mubr.bf16.mxu0 0
        %2031 = vmatmul.mubr.bf16.gmra.mrb[0].mxu0 %v1830
        %v2032 = vpop.f32.mrb[0].mxu0
        %v2033 = vadd.f32 0.0, %v2032
        %v2034 = vpop.f32.mrb[0].mxu0
        %v2035 = vadd.f32 0.0, %v2034
        %v2036 = vpop.f32.mrb[0].mxu0
        %v2037 = vadd.f32 0.0, %v2036
        %v2038 = vpop.f32.mrb[0].mxu0
        %v2039 = vadd.f32 0.0, %v2038
        %2040 = vmatprep.mubr.bf16.mxu0 0
        %2041 = vmatmul.mubr.bf16.gmra.mrb[0].mxu0 %v1834
        %v2042 = vpop.f32.mrb[0].mxu0
        %v2043 = vadd.f32 0.0, %v2042
        %v2044 = vpop.f32.mrb[0].mxu0
        %v2045 = vadd.f32 0.0, %v2044
        %v2046 = vpop.f32.mrb[0].mxu0
        %v2047 = vadd.f32 0.0, %v2046
        %v2048 = vpop.f32.mrb[0].mxu0
        %v2049 = vadd.f32 0.0, %v2048
        %2050 = vmatprep.mubr.bf16.mxu0 0
        %2051 = vmatmul.mubr.bf16.gmra.mrb[0].mxu0 %v1838
        %v2052 = vpop.f32.mrb[0].mxu0
        %v2053 = vadd.f32 0.0, %v2052
        %v2054 = vpop.f32.mrb[0].mxu0
        %v2055 = vadd.f32 0.0, %v2054
        %v2056 = vpop.f32.mrb[0].mxu0
        %v2057 = vadd.f32 0.0, %v2056
        %v2058 = vpop.f32.mrb[0].mxu0
        %v2059 = vadd.f32 0.0, %v2058
        %2060 = vmatprep.mubr.bf16.mxu0 0
        %2061 = vmatmul.mubr.bf16.gmra.mrb[0].mxu0 %v1842
        %v2062 = vpop.f32.mrb[0].mxu0
        %v2063 = vadd.f32 0.0, %v2062
        %v2064 = vpop.f32.mrb[0].mxu0
        %v2065 = vadd.f32 0.0, %v2064
        %v2066 = vpop.f32.mrb[0].mxu0
        %v2067 = vadd.f32 0.0, %v2066
        %v2068 = vpop.f32.mrb[0].mxu0
        %v2069 = vadd.f32 0.0, %v2068
        %2070 = vmatprep.mubr.bf16.mxu0 0
        %2071 = vmatmul.mubr.bf16.gmra.mrb[0].mxu0 %v1846
        %v2072 = vpop.f32.mrb[0].mxu0
        %v2073 = vadd.f32 0.0, %v2072
        %v2074 = vpop.f32.mrb[0].mxu0
        %v2075 = vadd.f32 0.0, %v2074
        %v2076 = vpop.f32.mrb[0].mxu0
        %v2077 = vadd.f32 0.0, %v2076
        %v2078 = vpop.f32.mrb[0].mxu0
        %v2079 = vadd.f32 0.0, %v2078
        %2080 = vmatprep.mubr.bf16.mxu0 0
        %2081 = vmatmul.mubr.bf16.gmra.mrb[0].mxu0 %v1850
        %v2082 = vpop.f32.mrb[0].mxu0
        %v2083 = vadd.f32 0.0, %v2082
        %v2084 = vpop.f32.mrb[0].mxu0
        %v2085 = vadd.f32 0.0, %v2084
        %v2086 = vpop.f32.mrb[0].mxu0
        %v2087 = vadd.f32 0.0, %v2086
        %v2088 = vpop.f32.mrb[0].mxu0
        %v2089 = vadd.f32 0.0, %v2088
        %2090 = vmatprep.mubr.bf16.mxu0 0
        %2091 = vmatmul.mubr.bf16.gmra.mrb[0].mxu0 %v1854
        %v2092 = vpop.f32.mrb[0].mxu0
        %v2093 = vadd.f32 0.0, %v2092
        %v2094 = vpop.f32.mrb[0].mxu0
        %v2095 = vadd.f32 0.0, %v2094
        %v2096 = vpop.f32.mrb[0].mxu0
        %v2097 = vadd.f32 0.0, %v2096
        %v2098 = vpop.f32.mrb[0].mxu0
        %v2099 = vadd.f32 0.0, %v2098
        %2100 = vmatprep.mubr.bf16.mxu0 0
        %2101 = vmatmul.mubr.bf16.gmra.mrb[0].mxu0 %v1858
        %v2102 = vpop.f32.mrb[0].mxu0
        %v2103 = vadd.f32 0.0, %v2102
        %v2104 = vpop.f32.mrb[0].mxu0
        %v2105 = vadd.f32 0.0, %v2104
        %v2106 = vpop.f32.mrb[0].mxu0
        %v2107 = vadd.f32 0.0, %v2106
        %v2108 = vpop.f32.mrb[0].mxu0
        %v2109 = vadd.f32 0.0, %v2108
        %2110 = vmatprep.mubr.bf16.mxu0 0
        %2111 = vmatmul.mubr.bf16.gmra.mrb[0].mxu0 %v1862
        %v2112 = vpop.f32.mrb[0].mxu0
        %v2113 = vadd.f32 0.0, %v2112
        %v2114 = vpop.f32.mrb[0].mxu0
        %v2115 = vadd.f32 0.0, %v2114
        %v2116 = vpop.f32.mrb[0].mxu0
        %v2117 = vadd.f32 0.0, %v2116
        %v2118 = vpop.f32.mrb[0].mxu0
        %v2119 = vadd.f32 0.0, %v2118
        %2120 = vmatprep.mubr.bf16.mxu0 0
        %2121 = vmatmul.mubr.bf16.gmra.mrb[0].mxu0 %v1866
        %v2122 = vpop.f32.mrb[0].mxu0
        %v2123 = vadd.f32 0.0, %v2122
        %v2124 = vpop.f32.mrb[0].mxu0
        %v2125 = vadd.f32 0.0, %v2124
        %v2126 = vpop.f32.mrb[0].mxu0
        %v2127 = vadd.f32 0.0, %v2126
        %v2128 = vpop.f32.mrb[0].mxu0
        %v2129 = vadd.f32 0.0, %v2128
        %2130 = vmatprep.mubr.bf16.mxu0 0
        %2131 = vmatmul.mubr.bf16.gmra.mrb[0].mxu0 %v1870
        %v2132 = vpop.f32.mrb[0].mxu0
        %v2133 = vadd.f32 0.0, %v2132
        %v2134 = vpop.f32.mrb[0].mxu0
        %v2135 = vadd.f32 0.0, %v2134
        %v2136 = vpop.f32.mrb[0].mxu0
        %v2137 = vadd.f32 0.0, %v2136
        %v2138 = vpop.f32.mrb[0].mxu0
        %v2139 = vadd.f32 0.0, %v2138
        %2140 = vmatprep.mubr.bf16.mxu0 0
        %2141 = vmatmul.mubr.bf16.gmra.mrb[0].mxu0 %v1874
        %v2142 = vpop.f32.mrb[0].mxu0
        %v2143 = vadd.f32 0.0, %v2142
        %v2144 = vpop.f32.mrb[0].mxu0
        %v2145 = vadd.f32 0.0, %v2144
        %v2146 = vpop.f32.mrb[0].mxu0
        %v2147 = vadd.f32 0.0, %v2146
        %v2148 = vpop.f32.mrb[0].mxu0
        %v2149 = vadd.f32 0.0, %v2148
        %2150 = vmatprep.mubr.bf16.mxu0 0
        %2151 = vmatmul.mubr.bf16.gmra.mrb[0].mxu0 %v1878
        %v2152 = vpop.f32.mrb[0].mxu0
        %v2153 = vadd.f32 0.0, %v2152
        %v2154 = vpop.f32.mrb[0].mxu0
        %v2155 = vadd.f32 0.0, %v2154
        %v2156 = vpop.f32.mrb[0].mxu0
        %v2157 = vadd.f32 0.0, %v2156
        %v2158 = vpop.f32.mrb[0].mxu0
        %v2159 = vadd.f32 0.0, %v2158
        %2160 = vmatprep.mubr.bf16.mxu0 0
        %2161 = vmatmul.mubr.bf16.gmra.mrb[0].mxu0 %v1882
        %v2162 = vpop.f32.mrb[0].mxu0
        %v2163 = vadd.f32 0.0, %v2162
        %v2164 = vpop.f32.mrb[0].mxu0
        %v2165 = vadd.f32 0.0, %v2164
        %v2166 = vpop.f32.mrb[0].mxu0
        %v2167 = vadd.f32 0.0, %v2166
        %v2168 = vpop.f32.mrb[0].mxu0
        %v2169 = vadd.f32 0.0, %v2168
        %2170 = vmatprep.mubr.bf16.mxu0 0
        %2171 = vmatmul.mubr.bf16.gmra.mrb[0].mxu0 %v1891
        %v2172 = vpop.f32.mrb[0].mxu0
        %v2173 = vadd.f32 0.0, %v2172
        %v2174 = vpop.f32.mrb[0].mxu0
        %v2175 = vadd.f32 0.0, %v2174
        %v2176 = vpop.f32.mrb[0].mxu0
        %v2177 = vadd.f32 0.0, %v2176
        %v2178 = vpop.f32.mrb[0].mxu0
        %v2179 = vadd.f32 0.0, %v2178
        %2180 = vdwg.mxu0
        %v2181 = vadd.f32 %v1729, %v2023
        %v2182 = vadd.f32 %v1730, %v2025
        %v2183 = vadd.f32 %v1731, %v2027
        %v2184 = vadd.f32 %v1732, %v2029
        %v2185 = vadd.f32 %v1733, %v2033
        %v2186 = vadd.f32 %v1734, %v2035
        %v2187 = vadd.f32 %v1735, %v2037
        %v2188 = vadd.f32 %v1736, %v2039
        %v2189 = vadd.f32 %v1737, %v2043
        %v2190 = vadd.f32 %v1738, %v2045
        %v2191 = vadd.f32 %v1739, %v2047
        %v2192 = vadd.f32 %v1740, %v2049
        %v2193 = vadd.f32 %v1741, %v2053
        %v2194 = vadd.f32 %v1742, %v2055
        %v2195 = vadd.f32 %v1743, %v2057
        %v2196 = vadd.f32 %v1744, %v2059
        %v2197 = vadd.f32 %v1745, %v2063
        %v2198 = vadd.f32 %v1746, %v2065
        %v2199 = vadd.f32 %v1747, %v2067
        %v2200 = vadd.f32 %v1748, %v2069
        %v2201 = vadd.f32 %v1749, %v2073
        %v2202 = vadd.f32 %v1750, %v2075
        %v2203 = vadd.f32 %v1751, %v2077
        %v2204 = vadd.f32 %v1752, %v2079
        %v2205 = vadd.f32 %v1753, %v2083
        %v2206 = vadd.f32 %v1754, %v2085
        %v2207 = vadd.f32 %v1755, %v2087
        %v2208 = vadd.f32 %v1756, %v2089
        %v2209 = vadd.f32 %v1757, %v2093
        %v2210 = vadd.f32 %v1758, %v2095
        %v2211 = vadd.f32 %v1759, %v2097
        %v2212 = vadd.f32 %v1760, %v2099
        %v2213 = vadd.f32 %v1761, %v2103
        %v2214 = vadd.f32 %v1762, %v2105
        %v2215 = vadd.f32 %v1763, %v2107
        %v2216 = vadd.f32 %v1764, %v2109
        %v2217 = vadd.f32 %v1765, %v2113
        %v2218 = vadd.f32 %v1766, %v2115
        %v2219 = vadd.f32 %v1767, %v2117
        %v2220 = vadd.f32 %v1768, %v2119
        %v2221 = vadd.f32 %v1769, %v2123
        %v2222 = vadd.f32 %v1770, %v2125
        %v2223 = vadd.f32 %v1771, %v2127
        %v2224 = vadd.f32 %v1772, %v2129
        %v2225 = vadd.f32 %v1773, %v2133
        %v2226 = vadd.f32 %v1774, %v2135
        %v2227 = vadd.f32 %v1775, %v2137
        %v2228 = vadd.f32 %v1776, %v2139
        %v2229 = vadd.f32 %v1777, %v2143
        %v2230 = vadd.f32 %v1778, %v2145
        %v2231 = vadd.f32 %v1779, %v2147
        %v2232 = vadd.f32 %v1780, %v2149
        %v2233 = vadd.f32 %v1781, %v2153
        %v2234 = vadd.f32 %v1782, %v2155
        %v2235 = vadd.f32 %v1783, %v2157
        %v2236 = vadd.f32 %v1784, %v2159
        %v2237 = vadd.f32 %v1785, %v2163
        %v2238 = vadd.f32 %v1786, %v2165
        %v2239 = vadd.f32 %v1787, %v2167
        %v2240 = vadd.f32 %v1788, %v2169
        %v2241 = vadd.f32 %v1789, %v2173
        %v2242 = vadd.f32 %v1790, %v2175
        %v2243 = vadd.f32 %v1791, %v2177
        %v2244 = vadd.f32 %v1792, %v2179
        %v2245 = vld [vmem:[%s411] sm:$0xc]
        %s2246 = scalar_lea.vmem %s1, 512
        %v2247 = vld [vmem:[%s2246] sm:$0xff]
        %v2248 = vld [vmem:[%s2246 + $0x8] sm:$0xff]
        %v2249 = vld [vmem:[%s2246 + $0x10] sm:$0xff]
        %v2250 = vld [vmem:[%s2246 + $0x18] sm:$0xff]
        %v2251 = vld [vmem:[%s2246 + $0x20] sm:$0xff]
        %v2252 = vld [vmem:[%s2246 + $0x28] sm:$0xff]
        %v2253 = vld [vmem:[%s2246 + $0x30] sm:$0xff]
        %v2254 = vld [vmem:[%s2246 + $0x38] sm:$0xff]
        %v2255 = vld [vmem:[%s2246 + $0x40] sm:$0xff]
        %v2256 = vld [vmem:[%s2246 + $0x48] sm:$0xff]
        %v2257 = vld [vmem:[%s2246 + $0x50] sm:$0xff]
        %v2258 = vld [vmem:[%s2246 + $0x58] sm:$0xff]
        %v2259 = vld [vmem:[%s2246 + $0x60] sm:$0xff]
        %v2260 = vld [vmem:[%s2246 + $0x68] sm:$0xff]
        %v2261 = vld [vmem:[%s2246 + $0x70] sm:$0xff]
        %v2262 = vld [vmem:[%s2246 + $0x78] sm:$0xff]
        %v2264 = vunpack.c.l.b16 %v2245
        %v2265 = vpack.c.b16 %v545, %v2264
        %vm2266 = vcmask 1045504
        %v2267 = vrot.slane %v2265, 2
        %v2268 = vrot.slane %v578, 2
        %v2269 = vsel %vm2266, %v2267, %v2268
        %v2270 = vrot.slane %v579, 2
        %v2271 = vsel %vm2266, %v2268, %v2270
        %v2272 = vrot.slane %v580, 2
        %v2273 = vsel %vm2266, %v2270, %v2272
        %v2274 = vrot.slane %v581, 2
        %v2275 = vsel %vm2266, %v2272, %v2274
        %v2276 = vrot.slane %v582, 2
        %v2277 = vsel %vm2266, %v2274, %v2276
        %v2278 = vrot.slane %v583, 2
        %v2279 = vsel %vm2266, %v2276, %v2278
        %v2280 = vrot.slane %v584, 2
        %v2281 = vsel %vm2266, %v2278, %v2280
        %v2282 = vrot.slane %v585, 2
        %v2283 = vsel %vm2266, %v2280, %v2282
        %v2284 = vrot.slane %v586, 2
        %v2285 = vsel %vm2266, %v2282, %v2284
        %v2286 = vrot.slane %v587, 2
        %v2287 = vsel %vm2266, %v2284, %v2286
        %v2288 = vrot.slane %v588, 2
        %v2289 = vsel %vm2266, %v2286, %v2288
        %v2290 = vrot.slane %v589, 2
        %v2291 = vsel %vm2266, %v2288, %v2290
        %v2292 = vrot.slane %v590, 2
        %v2293 = vsel %vm2266, %v2290, %v2292
        %v2294 = vrot.slane %v591, 2
        %v2295 = vsel %vm2266, %v2292, %v2294
        %v2296 = vrot.slane %v592, 2
        %v2297 = vsel %vm2266, %v2294, %v2296
        %v2298 = vrot.slane %v1813, 2
        %v2299 = vsel %vm2266, %v2296, %v2298
        %v2332 = vunpack.c.l.b16 %v2247
        %v2333 = vunpack.c.h.b16 %v2247
        %v2334 = vunpack.c.l.b16 %v2248
        %v2335 = vunpack.c.h.b16 %v2248
        %v2336 = vunpack.c.l.b16 %v2249
        %v2337 = vunpack.c.h.b16 %v2249
        %v2338 = vunpack.c.l.b16 %v2250
        %v2339 = vunpack.c.h.b16 %v2250
        %v2340 = vunpack.c.l.b16 %v2251
        %v2341 = vunpack.c.h.b16 %v2251
        %v2342 = vunpack.c.l.b16 %v2252
        %v2343 = vunpack.c.h.b16 %v2252
        %v2344 = vunpack.c.l.b16 %v2253
        %v2345 = vunpack.c.h.b16 %v2253
        %v2346 = vunpack.c.l.b16 %v2254
        %v2347 = vunpack.c.h.b16 %v2254
        %v2348 = vunpack.c.l.b16 %v2255
        %v2349 = vunpack.c.h.b16 %v2255
        %v2350 = vunpack.c.l.b16 %v2256
        %v2351 = vunpack.c.h.b16 %v2256
        %v2352 = vunpack.c.l.b16 %v2257
        %v2353 = vunpack.c.h.b16 %v2257
        %v2354 = vunpack.c.l.b16 %v2258
        %v2355 = vunpack.c.h.b16 %v2258
        %v2356 = vunpack.c.l.b16 %v2259
        %v2357 = vunpack.c.h.b16 %v2259
        %v2358 = vunpack.c.l.b16 %v2260
        %v2359 = vunpack.c.h.b16 %v2260
        %v2360 = vunpack.c.l.b16 %v2261
        %v2361 = vunpack.c.h.b16 %v2261
        %v2362 = vunpack.c.l.b16 %v2262
        %v2363 = vunpack.c.h.b16 %v2262
        %v2364 = vpack.c.b16 %v2334, %v2332
        %v2365 = vpack.c.b16 %v2335, %v2333
        %v2366 = vpack.c.b16 %v2338, %v2336
        %v2367 = vpack.c.b16 %v2339, %v2337
        %v2368 = vpack.c.b16 %v2342, %v2340
        %v2369 = vpack.c.b16 %v2343, %v2341
        %v2370 = vpack.c.b16 %v2346, %v2344
        %v2371 = vpack.c.b16 %v2347, %v2345
        %v2372 = vpack.c.b16 %v2350, %v2348
        %v2373 = vpack.c.b16 %v2351, %v2349
        %v2374 = vpack.c.b16 %v2354, %v2352
        %v2375 = vpack.c.b16 %v2355, %v2353
        %v2376 = vpack.c.b16 %v2358, %v2356
        %v2377 = vpack.c.b16 %v2359, %v2357
        %v2378 = vpack.c.b16 %v2362, %v2360
        %v2379 = vpack.c.b16 %v2363, %v2361
        %2396 = vmatprep.subr.bf16.mxu0 %v2365
        %2397 = vmatpush1.bf16.msra.mxu0 %v2364
        %2398 = vmatprep.subr.bf16.mxu0 %v2367
        %2399 = vmatpush1.bf16.msra.mxu0 %v2366
        %2400 = vmatprep.subr.bf16.mxu0 %v2369
        %2401 = vmatpush1.bf16.msra.mxu0 %v2368
        %2402 = vmatprep.subr.bf16.mxu0 %v2371
        %2403 = vmatpush1.bf16.msra.mxu0 %v2370
        %2404 = vmatprep.subr.bf16.mxu0 %v2373
        %2405 = vmatpush1.bf16.msra.mxu0 %v2372
        %2406 = vmatprep.subr.bf16.mxu0 %v2375
        %2407 = vmatpush1.bf16.msra.mxu0 %v2374
        %2408 = vmatprep.subr.bf16.mxu0 %v2377
        %2409 = vmatpush1.bf16.msra.mxu0 %v2376
        %2410 = vmatprep.subr.bf16.mxu0 %v2379
        %2411 = vmatpush1.bf16.msra.mxu0 %v2378
        %2412 = vmatprep.subr.bf16.mxu0 0
        %2413 = vmatpush1.bf16.msra.mxu0 0
        %2414 = vmatprep.subr.bf16.mxu0 0
        %2415 = vmatpush1.bf16.msra.mxu0 0
        %2416 = vmatprep.subr.bf16.mxu0 0
        %2417 = vmatpush1.bf16.msra.mxu0 0
        %2418 = vmatprep.subr.bf16.mxu0 0
        %2419 = vmatpush1.bf16.msra.mxu0 0
        %2420 = vmatprep.subr.bf16.mxu0 0
        %2421 = vmatpush1.bf16.msra.mxu0 0
        %2422 = vmatprep.subr.bf16.mxu0 0
        %2423 = vmatpush1.bf16.msra.mxu0 0
        %2424 = vmatprep.subr.bf16.mxu0 0
        %2425 = vmatpush1.bf16.msra.mxu0 0
        %2426 = vmatprep.subr.bf16.mxu0 0
        %2427 = vmatpush1.bf16.msra.mxu0 0
        %2428 = vmatprep.mubr.bf16.mxu0 0
        %2429 = vmatmul.mubr.bf16.gmra.mrb[0].mxu0 %v2269
        %v2430 = vpop.f32.mrb[0].mxu0
        %v2431 = vadd.f32 0.0, %v2430
        %v2432 = vpop.f32.mrb[0].mxu0
        %v2433 = vadd.f32 0.0, %v2432
        %v2434 = vpop.f32.mrb[0].mxu0
        %v2435 = vadd.f32 0.0, %v2434
        %v2436 = vpop.f32.mrb[0].mxu0
        %v2437 = vadd.f32 0.0, %v2436
        %2438 = vmatprep.mubr.bf16.mxu0 0
        %2439 = vmatmul.mubr.bf16.gmra.mrb[0].mxu0 %v2271
        %v2440 = vpop.f32.mrb[0].mxu0
        %v2441 = vadd.f32 0.0, %v2440
        %v2442 = vpop.f32.mrb[0].mxu0
        %v2443 = vadd.f32 0.0, %v2442
        %v2444 = vpop.f32.mrb[0].mxu0
        %v2445 = vadd.f32 0.0, %v2444
        %v2446 = vpop.f32.mrb[0].mxu0
        %v2447 = vadd.f32 0.0, %v2446
        %2448 = vmatprep.mubr.bf16.mxu0 0
        %2449 = vmatmul.mubr.bf16.gmra.mrb[0].mxu0 %v2273
        %v2450 = vpop.f32.mrb[0].mxu0
        %v2451 = vadd.f32 0.0, %v2450
        %v2452 = vpop.f32.mrb[0].mxu0
        %v2453 = vadd.f32 0.0, %v2452
        %v2454 = vpop.f32.mrb[0].mxu0
        %v2455 = vadd.f32 0.0, %v2454
        %v2456 = vpop.f32.mrb[0].mxu0
        %v2457 = vadd.f32 0.0, %v2456
        %2458 = vmatprep.mubr.bf16.mxu0 0
        %2459 = vmatmul.mubr.bf16.gmra.mrb[0].mxu0 %v2275
        %v2460 = vpop.f32.mrb[0].mxu0
        %v2461 = vadd.f32 0.0, %v2460
        %v2462 = vpop.f32.mrb[0].mxu0
        %v2463 = vadd.f32 0.0, %v2462
        %v2464 = vpop.f32.mrb[0].mxu0
        %v2465 = vadd.f32 0.0, %v2464
        %v2466 = vpop.f32.mrb[0].mxu0
        %v2467 = vadd.f32 0.0, %v2466
        %2468 = vmatprep.mubr.bf16.mxu0 0
        %2469 = vmatmul.mubr.bf16.gmra.mrb[0].mxu0 %v2277
        %v2470 = vpop.f32.mrb[0].mxu0
        %v2471 = vadd.f32 0.0, %v2470
        %v2472 = vpop.f32.mrb[0].mxu0
        %v2473 = vadd.f32 0.0, %v2472
        %v2474 = vpop.f32.mrb[0].mxu0
        %v2475 = vadd.f32 0.0, %v2474
        %v2476 = vpop.f32.mrb[0].mxu0
        %v2477 = vadd.f32 0.0, %v2476
        %2478 = vmatprep.mubr.bf16.mxu0 0
        %2479 = vmatmul.mubr.bf16.gmra.mrb[0].mxu0 %v2279
        %v2480 = vpop.f32.mrb[0].mxu0
        %v2481 = vadd.f32 0.0, %v2480
        %v2482 = vpop.f32.mrb[0].mxu0
        %v2483 = vadd.f32 0.0, %v2482
        %v2484 = vpop.f32.mrb[0].mxu0
        %v2485 = vadd.f32 0.0, %v2484
        %v2486 = vpop.f32.mrb[0].mxu0
        %v2487 = vadd.f32 0.0, %v2486
        %2488 = vmatprep.mubr.bf16.mxu0 0
        %2489 = vmatmul.mubr.bf16.gmra.mrb[0].mxu0 %v2281
        %v2490 = vpop.f32.mrb[0].mxu0
        %v2491 = vadd.f32 0.0, %v2490
        %v2492 = vpop.f32.mrb[0].mxu0
        %v2493 = vadd.f32 0.0, %v2492
        %v2494 = vpop.f32.mrb[0].mxu0
        %v2495 = vadd.f32 0.0, %v2494
        %v2496 = vpop.f32.mrb[0].mxu0
        %v2497 = vadd.f32 0.0, %v2496
        %2498 = vmatprep.mubr.bf16.mxu0 0
        %2499 = vmatmul.mubr.bf16.gmra.mrb[0].mxu0 %v2283
        %v2500 = vpop.f32.mrb[0].mxu0
        %v2501 = vadd.f32 0.0, %v2500
        %v2502 = vpop.f32.mrb[0].mxu0
        %v2503 = vadd.f32 0.0, %v2502
        %v2504 = vpop.f32.mrb[0].mxu0
        %v2505 = vadd.f32 0.0, %v2504
        %v2506 = vpop.f32.mrb[0].mxu0
        %v2507 = vadd.f32 0.0, %v2506
        %2508 = vmatprep.mubr.bf16.mxu0 0
        %2509 = vmatmul.mubr.bf16.gmra.mrb[0].mxu0 %v2285
        %v2510 = vpop.f32.mrb[0].mxu0
        %v2511 = vadd.f32 0.0, %v2510
        %v2512 = vpop.f32.mrb[0].mxu0
        %v2513 = vadd.f32 0.0, %v2512
        %v2514 = vpop.f32.mrb[0].mxu0
        %v2515 = vadd.f32 0.0, %v2514
        %v2516 = vpop.f32.mrb[0].mxu0
        %v2517 = vadd.f32 0.0, %v2516
        %2518 = vmatprep.mubr.bf16.mxu0 0
        %2519 = vmatmul.mubr.bf16.gmra.mrb[0].mxu0 %v2287
        %v2520 = vpop.f32.mrb[0].mxu0
        %v2521 = vadd.f32 0.0, %v2520
        %v2522 = vpop.f32.mrb[0].mxu0
        %v2523 = vadd.f32 0.0, %v2522
        %v2524 = vpop.f32.mrb[0].mxu0
        %v2525 = vadd.f32 0.0, %v2524
        %v2526 = vpop.f32.mrb[0].mxu0
        %v2527 = vadd.f32 0.0, %v2526
        %2528 = vmatprep.mubr.bf16.mxu0 0
        %2529 = vmatmul.mubr.bf16.gmra.mrb[0].mxu0 %v2289
        %v2530 = vpop.f32.mrb[0].mxu0
        %v2531 = vadd.f32 0.0, %v2530
        %v2532 = vpop.f32.mrb[0].mxu0
        %v2533 = vadd.f32 0.0, %v2532
        %v2534 = vpop.f32.mrb[0].mxu0
        %v2535 = vadd.f32 0.0, %v2534
        %v2536 = vpop.f32.mrb[0].mxu0
        %v2537 = vadd.f32 0.0, %v2536
        %2538 = vmatprep.mubr.bf16.mxu0 0
        %2539 = vmatmul.mubr.bf16.gmra.mrb[0].mxu0 %v2291
        %v2540 = vpop.f32.mrb[0].mxu0
        %v2541 = vadd.f32 0.0, %v2540
        %v2542 = vpop.f32.mrb[0].mxu0
        %v2543 = vadd.f32 0.0, %v2542
        %v2544 = vpop.f32.mrb[0].mxu0
        %v2545 = vadd.f32 0.0, %v2544
        %v2546 = vpop.f32.mrb[0].mxu0
        %v2547 = vadd.f32 0.0, %v2546
        %2548 = vmatprep.mubr.bf16.mxu0 0
        %2549 = vmatmul.mubr.bf16.gmra.mrb[0].mxu0 %v2293
        %v2550 = vpop.f32.mrb[0].mxu0
        %v2551 = vadd.f32 0.0, %v2550
        %v2552 = vpop.f32.mrb[0].mxu0
        %v2553 = vadd.f32 0.0, %v2552
        %v2554 = vpop.f32.mrb[0].mxu0
        %v2555 = vadd.f32 0.0, %v2554
        %v2556 = vpop.f32.mrb[0].mxu0
        %v2557 = vadd.f32 0.0, %v2556
        %2558 = vmatprep.mubr.bf16.mxu0 0
        %2559 = vmatmul.mubr.bf16.gmra.mrb[0].mxu0 %v2295
        %v2560 = vpop.f32.mrb[0].mxu0
        %v2561 = vadd.f32 0.0, %v2560
        %v2562 = vpop.f32.mrb[0].mxu0
        %v2563 = vadd.f32 0.0, %v2562
        %v2564 = vpop.f32.mrb[0].mxu0
        %v2565 = vadd.f32 0.0, %v2564
        %v2566 = vpop.f32.mrb[0].mxu0
        %v2567 = vadd.f32 0.0, %v2566
        %2568 = vmatprep.mubr.bf16.mxu0 0
        %2569 = vmatmul.mubr.bf16.gmra.mrb[0].mxu0 %v2297
        %v2570 = vpop.f32.mrb[0].mxu0
        %v2571 = vadd.f32 0.0, %v2570
        %v2572 = vpop.f32.mrb[0].mxu0
        %v2573 = vadd.f32 0.0, %v2572
        %v2574 = vpop.f32.mrb[0].mxu0
        %v2575 = vadd.f32 0.0, %v2574
        %v2576 = vpop.f32.mrb[0].mxu0
        %v2577 = vadd.f32 0.0, %v2576
        %2578 = vmatprep.mubr.bf16.mxu0 0
        %2579 = vmatmul.mubr.bf16.gmra.mrb[0].mxu0 %v2299
        %v2580 = vpop.f32.mrb[0].mxu0
        %v2581 = vadd.f32 0.0, %v2580
        %v2582 = vpop.f32.mrb[0].mxu0
        %v2583 = vadd.f32 0.0, %v2582
        %v2584 = vpop.f32.mrb[0].mxu0
        %v2585 = vadd.f32 0.0, %v2584
        %v2586 = vpop.f32.mrb[0].mxu0
        %v2587 = vadd.f32 0.0, %v2586
        %2588 = vdwg.mxu0
        %v2589 = vadd.f32 %v2181, %v2431
        %v2590 = vadd.f32 %v2182, %v2433
        %v2591 = vadd.f32 %v2183, %v2435
        %v2592 = vadd.f32 %v2184, %v2437
        %v2593 = vadd.f32 %v2185, %v2441
        %v2594 = vadd.f32 %v2186, %v2443
        %v2595 = vadd.f32 %v2187, %v2445
        %v2596 = vadd.f32 %v2188, %v2447
        %v2597 = vadd.f32 %v2189, %v2451
        %v2598 = vadd.f32 %v2190, %v2453
        %v2599 = vadd.f32 %v2191, %v2455
        %v2600 = vadd.f32 %v2192, %v2457
        %v2601 = vadd.f32 %v2193, %v2461
        %v2602 = vadd.f32 %v2194, %v2463
        %v2603 = vadd.f32 %v2195, %v2465
        %v2604 = vadd.f32 %v2196, %v2467
        %v2605 = vadd.f32 %v2197, %v2471
        %v2606 = vadd.f32 %v2198, %v2473
        %v2607 = vadd.f32 %v2199, %v2475
        %v2608 = vadd.f32 %v2200, %v2477
        %v2609 = vadd.f32 %v2201, %v2481
        %v2610 = vadd.f32 %v2202, %v2483
        %v2611 = vadd.f32 %v2203, %v2485
        %v2612 = vadd.f32 %v2204, %v2487
        %v2613 = vadd.f32 %v2205, %v2491
        %v2614 = vadd.f32 %v2206, %v2493
        %v2615 = vadd.f32 %v2207, %v2495
        %v2616 = vadd.f32 %v2208, %v2497
        %v2617 = vadd.f32 %v2209, %v2501
        %v2618 = vadd.f32 %v2210, %v2503
        %v2619 = vadd.f32 %v2211, %v2505
        %v2620 = vadd.f32 %v2212, %v2507
        %v2621 = vadd.f32 %v2213, %v2511
        %v2622 = vadd.f32 %v2214, %v2513
        %v2623 = vadd.f32 %v2215, %v2515
        %v2624 = vadd.f32 %v2216, %v2517
        %v2625 = vadd.f32 %v2217, %v2521
        %v2626 = vadd.f32 %v2218, %v2523
        %v2627 = vadd.f32 %v2219, %v2525
        %v2628 = vadd.f32 %v2220, %v2527
        %v2629 = vadd.f32 %v2221, %v2531
        %v2630 = vadd.f32 %v2222, %v2533
        %v2631 = vadd.f32 %v2223, %v2535
        %v2632 = vadd.f32 %v2224, %v2537
        %v2633 = vadd.f32 %v2225, %v2541
        %v2634 = vadd.f32 %v2226, %v2543
        %v2635 = vadd.f32 %v2227, %v2545
        %v2636 = vadd.f32 %v2228, %v2547
        %v2637 = vadd.f32 %v2229, %v2551
        %v2638 = vadd.f32 %v2230, %v2553
        %v2639 = vadd.f32 %v2231, %v2555
        %v2640 = vadd.f32 %v2232, %v2557
        %v2641 = vadd.f32 %v2233, %v2561
        %v2642 = vadd.f32 %v2234, %v2563
        %v2643 = vadd.f32 %v2235, %v2565
        %v2644 = vadd.f32 %v2236, %v2567
        %v2645 = vadd.f32 %v2237, %v2571
        %v2646 = vadd.f32 %v2238, %v2573
        %v2647 = vadd.f32 %v2239, %v2575
        %v2648 = vadd.f32 %v2240, %v2577
        %v2649 = vadd.f32 %v2241, %v2581
        %v2650 = vadd.f32 %v2242, %v2583
        %v2651 = vadd.f32 %v2243, %v2585
        %v2652 = vadd.f32 %v2244, %v2587
        %v2653 = vld [vmem:[%s2] sm:$0x3]
        %v2655 = vlaneseq
        %v2656 = vshrl.u32 %v2655, 7
        %v2657 = vsub.s32 0, %v2656
        %v2658 = vrot.slane %v2653, %v2657
        %v2659 = vlaneseq
        %v2660 = vshrl.u32 %v2659, 7
        %v2661 = vsub.s32 1, %v2660
        %v2662 = vrot.slane %v2653, %v2661
        %v2665 = vadd.f32 %v2589, %v2658
        %v2666 = vadd.f32 %v2590, %v2662
        %v2667 = vadd.f32 %v2591, %v2658
        %v2668 = vadd.f32 %v2592, %v2662
        %v2669 = vadd.f32 %v2593, %v2658
        %v2670 = vadd.f32 %v2594, %v2662
        %v2671 = vadd.f32 %v2595, %v2658
        %v2672 = vadd.f32 %v2596, %v2662
        %v2673 = vadd.f32 %v2597, %v2658
        %v2674 = vadd.f32 %v2598, %v2662
        %v2675 = vadd.f32 %v2599, %v2658
        %v2676 = vadd.f32 %v2600, %v2662
        %v2677 = vadd.f32 %v2601, %v2658
        %v2678 = vadd.f32 %v2602, %v2662
        %v2679 = vadd.f32 %v2603, %v2658
        %v2680 = vadd.f32 %v2604, %v2662
        %v2681 = vadd.f32 %v2605, %v2658
        %v2682 = vadd.f32 %v2606, %v2662
        %v2683 = vadd.f32 %v2607, %v2658
        %v2684 = vadd.f32 %v2608, %v2662
        %v2685 = vadd.f32 %v2609, %v2658
        %v2686 = vadd.f32 %v2610, %v2662
        %v2687 = vadd.f32 %v2611, %v2658
        %v2688 = vadd.f32 %v2612, %v2662
        %v2689 = vadd.f32 %v2613, %v2658
        %v2690 = vadd.f32 %v2614, %v2662
        %v2691 = vadd.f32 %v2615, %v2658
        %v2692 = vadd.f32 %v2616, %v2662
        %v2693 = vadd.f32 %v2617, %v2658
        %v2694 = vadd.f32 %v2618, %v2662
        %v2695 = vadd.f32 %v2619, %v2658
        %v2696 = vadd.f32 %v2620, %v2662
        %v2697 = vadd.f32 %v2621, %v2658
        %v2698 = vadd.f32 %v2622, %v2662
        %v2699 = vadd.f32 %v2623, %v2658
        %v2700 = vadd.f32 %v2624, %v2662
        %v2701 = vadd.f32 %v2625, %v2658
        %v2702 = vadd.f32 %v2626, %v2662
        %v2703 = vadd.f32 %v2627, %v2658
        %v2704 = vadd.f32 %v2628, %v2662
        %v2705 = vadd.f32 %v2629, %v2658
        %v2706 = vadd.f32 %v2630, %v2662
        %v2707 = vadd.f32 %v2631, %v2658
        %v2708 = vadd.f32 %v2632, %v2662
        %v2709 = vadd.f32 %v2633, %v2658
        %v2710 = vadd.f32 %v2634, %v2662
        %v2711 = vadd.f32 %v2635, %v2658
        %v2712 = vadd.f32 %v2636, %v2662
        %v2713 = vadd.f32 %v2637, %v2658
        %v2714 = vadd.f32 %v2638, %v2662
        %v2715 = vadd.f32 %v2639, %v2658
        %v2716 = vadd.f32 %v2640, %v2662
        %v2717 = vadd.f32 %v2641, %v2658
        %v2718 = vadd.f32 %v2642, %v2662
        %v2719 = vadd.f32 %v2643, %v2658
        %v2720 = vadd.f32 %v2644, %v2662
        %v2721 = vadd.f32 %v2645, %v2658
        %v2722 = vadd.f32 %v2646, %v2662
        %v2723 = vadd.f32 %v2647, %v2658
        %v2724 = vadd.f32 %v2648, %v2662
        %v2725 = vadd.f32 %v2649, %v2658
        %v2726 = vadd.f32 %v2650, %v2662
        %v2727 = vadd.f32 %v2651, %v2658
        %v2728 = vadd.f32 %v2652, %v2662
        %2729 = vst [vmem:[#allocation2] sm:$0xff] %v2665
        %vm2730 = vcmask 850944
        %2731 = vst.msk [vmem:[#allocation2 + $0x8] sm:$0xff] %vm2730, %v2666
        %2732 = vst [vmem:[#allocation2 + $0x10] sm:$0xff] %v2667
        %2733 = vst.msk [vmem:[#allocation2 + $0x18] sm:$0xff] %vm2730, %v2668
        %2734 = vst [vmem:[#allocation2 + $0x20] sm:$0xff] %v2669
        %2735 = vst.msk [vmem:[#allocation2 + $0x28] sm:$0xff] %vm2730, %v2670
        %2736 = vst [vmem:[#allocation2 + $0x30] sm:$0xff] %v2671
        %2737 = vst.msk [vmem:[#allocation2 + $0x38] sm:$0xff] %vm2730, %v2672
        %2738 = vst [vmem:[#allocation2 + $0x40] sm:$0xff] %v2673
        %2739 = vst.msk [vmem:[#allocation2 + $0x48] sm:$0xff] %vm2730, %v2674
        %2740 = vst [vmem:[#allocation2 + $0x50] sm:$0xff] %v2675
        %2741 = vst.msk [vmem:[#allocation2 + $0x58] sm:$0xff] %vm2730, %v2676
        %2742 = vst [vmem:[#allocation2 + $0x60] sm:$0xff] %v2677
        %2743 = vst.msk [vmem:[#allocation2 + $0x68] sm:$0xff] %vm2730, %v2678
        %2744 = vst [vmem:[#allocation2 + $0x70] sm:$0xff] %v2679
        %2745 = vst.msk [vmem:[#allocation2 + $0x78] sm:$0xff] %vm2730, %v2680
        %2746 = vst [vmem:[#allocation2 + $0x80] sm:$0xff] %v2681
        %2747 = vst.msk [vmem:[#allocation2 + $0x88] sm:$0xff] %vm2730, %v2682
        %2748 = vst [vmem:[#allocation2 + $0x90] sm:$0xff] %v2683
        %2749 = vst.msk [vmem:[#allocation2 + $0x98] sm:$0xff] %vm2730, %v2684
        %2750 = vst [vmem:[#allocation2 + $0xa0] sm:$0xff] %v2685
        %2751 = vst.msk [vmem:[#allocation2 + $0xa8] sm:$0xff] %vm2730, %v2686
        %2752 = vst [vmem:[#allocation2 + $0xb0] sm:$0xff] %v2687
        %2753 = vst.msk [vmem:[#allocation2 + $0xb8] sm:$0xff] %vm2730, %v2688
        %2754 = vst [vmem:[#allocation2 + $0xc0] sm:$0xff] %v2689
        %2755 = vst.msk [vmem:[#allocation2 + $0xc8] sm:$0xff] %vm2730, %v2690
        %2756 = vst [vmem:[#allocation2 + $0xd0] sm:$0xff] %v2691
        %2757 = vst.msk [vmem:[#allocation2 + $0xd8] sm:$0xff] %vm2730, %v2692
        %2758 = vst [vmem:[#allocation2 + $0xe0] sm:$0xff] %v2693
        %2759 = vst.msk [vmem:[#allocation2 + $0xe8] sm:$0xff] %vm2730, %v2694
        %2760 = vst [vmem:[#allocation2 + $0xf0] sm:$0xff] %v2695
        %2761 = vst.msk [vmem:[#allocation2 + $0xf8] sm:$0xff] %vm2730, %v2696
        %2762 = vst [vmem:[#allocation2 + $0x100] sm:$0xff] %v2697
        %2763 = vst.msk [vmem:[#allocation2 + $0x108] sm:$0xff] %vm2730, %v2698
        %2764 = vst [vmem:[#allocation2 + $0x110] sm:$0xff] %v2699
        %2765 = vst.msk [vmem:[#allocation2 + $0x118] sm:$0xff] %vm2730, %v2700
        %2766 = vst [vmem:[#allocation2 + $0x120] sm:$0xff] %v2701
        %2767 = vst.msk [vmem:[#allocation2 + $0x128] sm:$0xff] %vm2730, %v2702
        %2768 = vst [vmem:[#allocation2 + $0x130] sm:$0xff] %v2703
        %2769 = vst.msk [vmem:[#allocation2 + $0x138] sm:$0xff] %vm2730, %v2704
        %2770 = vst [vmem:[#allocation2 + $0x140] sm:$0xff] %v2705
        %2771 = vst.msk [vmem:[#allocation2 + $0x148] sm:$0xff] %vm2730, %v2706
        %2772 = vst [vmem:[#allocation2 + $0x150] sm:$0xff] %v2707
        %2773 = vst.msk [vmem:[#allocation2 + $0x158] sm:$0xff] %vm2730, %v2708
        %2774 = vst [vmem:[#allocation2 + $0x160] sm:$0xff] %v2709
        %2775 = vst.msk [vmem:[#allocation2 + $0x168] sm:$0xff] %vm2730, %v2710
        %2776 = vst [vmem:[#allocation2 + $0x170] sm:$0xff] %v2711
        %2777 = vst.msk [vmem:[#allocation2 + $0x178] sm:$0xff] %vm2730, %v2712
        %2778 = vst [vmem:[#allocation2 + $0x180] sm:$0xff] %v2713
        %2779 = vst.msk [vmem:[#allocation2 + $0x188] sm:$0xff] %vm2730, %v2714
        %2780 = vst [vmem:[#allocation2 + $0x190] sm:$0xff] %v2715
        %2781 = vst.msk [vmem:[#allocation2 + $0x198] sm:$0xff] %vm2730, %v2716
        %2782 = vst [vmem:[#allocation2 + $0x1a0] sm:$0xff] %v2717
        %2783 = vst.msk [vmem:[#allocation2 + $0x1a8] sm:$0xff] %vm2730, %v2718
        %2784 = vst [vmem:[#allocation2 + $0x1b0] sm:$0xff] %v2719
        %2785 = vst.msk [vmem:[#allocation2 + $0x1b8] sm:$0xff] %vm2730, %v2720
        %2786 = vst [vmem:[#allocation2 + $0x1c0] sm:$0xff] %v2721
        %2787 = vst.msk [vmem:[#allocation2 + $0x1c8] sm:$0xff] %vm2730, %v2722
        %2788 = vst [vmem:[#allocation2 + $0x1d0] sm:$0xff] %v2723
        %2789 = vst.msk [vmem:[#allocation2 + $0x1d8] sm:$0xff] %vm2730, %v2724
        %2790 = vst [vmem:[#allocation2 + $0x1e0] sm:$0xff] %v2725
        %2791 = vst.msk [vmem:[#allocation2 + $0x1e8] sm:$0xff] %vm2730, %v2726
        %2792 = vst [vmem:[#allocation2 + $0x1f0] sm:$0xff] %v2727
        %2793 = vst.msk [vmem:[#allocation2 + $0x1f8] sm:$0xff] %vm2730, %v2728
        %2794 = vst [vmem:[#allocation2 + $0x200] sm:$0xff] 0.0
        %2795 = vst.msk [vmem:[#allocation2 + $0x208] sm:$0xff] %vm2730, 0.0
        %v2796 = vld [vmem:[#allocation2] sm:$0xff]
        %v2797 = vld [vmem:[#allocation2 + $0x8] sm:$0xff]
        %v2798 = vld [vmem:[#allocation2 + $0x10] sm:$0xff]
        %v2799 = vld [vmem:[#allocation2 + $0x18] sm:$0xff]
        %v2800 = vld [vmem:[#allocation2 + $0x20] sm:$0xff]
        %v2801 = vld [vmem:[#allocation2 + $0x28] sm:$0xff]
        %v2802 = vld [vmem:[#allocation2 + $0x30] sm:$0xff]
        %v2803 = vld [vmem:[#allocation2 + $0x38] sm:$0xff]
        %v2804 = vld [vmem:[#allocation2 + $0x40] sm:$0xff]
        %v2805 = vld [vmem:[#allocation2 + $0x48] sm:$0xff]
        %v2806 = vld [vmem:[#allocation2 + $0x50] sm:$0xff]
        %v2807 = vld [vmem:[#allocation2 + $0x58] sm:$0xff]
        %v2808 = vld [vmem:[#allocation2 + $0x60] sm:$0xff]
        %v2809 = vld [vmem:[#allocation2 + $0x68] sm:$0xff]
        %v2810 = vld [vmem:[#allocation2 + $0x70] sm:$0xff]
        %v2811 = vld [vmem:[#allocation2 + $0x78] sm:$0xff]
        %v2812 = vld [vmem:[#allocation2 + $0x80] sm:$0xff]
        %v2813 = vld [vmem:[#allocation2 + $0x88] sm:$0xff]
        %v2814 = vld [vmem:[#allocation2 + $0x90] sm:$0xff]
        %v2815 = vld [vmem:[#allocation2 + $0x98] sm:$0xff]
        %v2816 = vld [vmem:[#allocation2 + $0xa0] sm:$0xff]
        %v2817 = vld [vmem:[#allocation2 + $0xa8] sm:$0xff]
        %v2818 = vld [vmem:[#allocation2 + $0xb0] sm:$0xff]
        %v2819 = vld [vmem:[#allocation2 + $0xb8] sm:$0xff]
        %v2820 = vld [vmem:[#allocation2 + $0xc0] sm:$0xff]
        %v2821 = vld [vmem:[#allocation2 + $0xc8] sm:$0xff]
        %v2822 = vld [vmem:[#allocation2 + $0xd0] sm:$0xff]
        %v2823 = vld [vmem:[#allocation2 + $0xd8] sm:$0xff]
        %v2824 = vld [vmem:[#allocation2 + $0xe0] sm:$0xff]
        %v2825 = vld [vmem:[#allocation2 + $0xe8] sm:$0xff]
        %v2826 = vld [vmem:[#allocation2 + $0xf0] sm:$0xff]
        %v2827 = vld [vmem:[#allocation2 + $0xf8] sm:$0xff]
        %v2828 = vld [vmem:[#allocation2 + $0x100] sm:$0xff]
        %v2829 = vld [vmem:[#allocation2 + $0x108] sm:$0xff]
        %v2830 = vld [vmem:[#allocation2 + $0x110] sm:$0xff]
        %v2831 = vld [vmem:[#allocation2 + $0x118] sm:$0xff]
        %v2832 = vld [vmem:[#allocation2 + $0x120] sm:$0xff]
        %v2833 = vld [vmem:[#allocation2 + $0x128] sm:$0xff]
        %v2834 = vld [vmem:[#allocation2 + $0x130] sm:$0xff]
        %v2835 = vld [vmem:[#allocation2 + $0x138] sm:$0xff]
        %v2836 = vld [vmem:[#allocation2 + $0x140] sm:$0xff]
        %v2837 = vld [vmem:[#allocation2 + $0x148] sm:$0xff]
        %v2838 = vld [vmem:[#allocation2 + $0x150] sm:$0xff]
        %v2839 = vld [vmem:[#allocation2 + $0x158] sm:$0xff]
        %v2840 = vld [vmem:[#allocation2 + $0x160] sm:$0xff]
        %v2841 = vld [vmem:[#allocation2 + $0x168] sm:$0xff]
        %v2842 = vld [vmem:[#allocation2 + $0x170] sm:$0xff]
        %v2843 = vld [vmem:[#allocation2 + $0x178] sm:$0xff]
        %v2844 = vld [vmem:[#allocation2 + $0x180] sm:$0xff]
        %v2845 = vld [vmem:[#allocation2 + $0x188] sm:$0xff]
        %v2846 = vld [vmem:[#allocation2 + $0x190] sm:$0xff]
        %v2847 = vld [vmem:[#allocation2 + $0x198] sm:$0xff]
        %v2848 = vld [vmem:[#allocation2 + $0x1a0] sm:$0xff]
        %v2849 = vld [vmem:[#allocation2 + $0x1a8] sm:$0xff]
        %v2850 = vld [vmem:[#allocation2 + $0x1b0] sm:$0xff]
        %v2851 = vld [vmem:[#allocation2 + $0x1b8] sm:$0xff]
        %v2852 = vld [vmem:[#allocation2 + $0x1c0] sm:$0xff]
        %v2853 = vld [vmem:[#allocation2 + $0x1c8] sm:$0xff]
        %v2854 = vld [vmem:[#allocation2 + $0x1d0] sm:$0xff]
        %v2855 = vld [vmem:[#allocation2 + $0x1d8] sm:$0xff]
        %v2856 = vld [vmem:[#allocation2 + $0x1e0] sm:$0xff]
        %v2857 = vld [vmem:[#allocation2 + $0x1e8] sm:$0xff]
        %v2858 = vld [vmem:[#allocation2 + $0x1f0] sm:$0xff]
        %v2859 = vld [vmem:[#allocation2 + $0x1f8] sm:$0xff]
        %2924 = vrot.lane.b32.xlu0 %v2796, 120
        %v2925 = vpop.permute.xlu0 %2924
        %2926 = vrot.lane.b32.xlu0 %v2797, 120
        %v2927 = vpop.permute.xlu0 %2926
        %2928 = vrot.lane.b32.xlu0 %v2798, 120
        %v2929 = vpop.permute.xlu0 %2928
        %2930 = vrot.lane.b32.xlu0 %v2799, 120
        %v2931 = vpop.permute.xlu0 %2930
        %2932 = vrot.lane.b32.xlu0 %v2800, 120
        %v2933 = vpop.permute.xlu0 %2932
        %2934 = vrot.lane.b32.xlu0 %v2801, 120
        %v2935 = vpop.permute.xlu0 %2934
        %2936 = vrot.lane.b32.xlu0 %v2802, 120
        %v2937 = vpop.permute.xlu0 %2936
        %2938 = vrot.lane.b32.xlu0 %v2803, 120
        %v2939 = vpop.permute.xlu0 %2938
        %2940 = vrot.lane.b32.xlu0 %v2804, 120
        %v2941 = vpop.permute.xlu0 %2940
        %2942 = vrot.lane.b32.xlu0 %v2805, 120
        %v2943 = vpop.permute.xlu0 %2942
        %2944 = vrot.lane.b32.xlu0 %v2806, 120
        %v2945 = vpop.permute.xlu0 %2944
        %2946 = vrot.lane.b32.xlu0 %v2807, 120
        %v2947 = vpop.permute.xlu0 %2946
        %2948 = vrot.lane.b32.xlu0 %v2808, 120
        %v2949 = vpop.permute.xlu0 %2948
        %2950 = vrot.lane.b32.xlu0 %v2809, 120
        %v2951 = vpop.permute.xlu0 %2950
        %2952 = vrot.lane.b32.xlu0 %v2810, 120
        %v2953 = vpop.permute.xlu0 %2952
        %2954 = vrot.lane.b32.xlu0 %v2811, 120
        %v2955 = vpop.permute.xlu0 %2954
        %2956 = vrot.lane.b32.xlu0 %v2812, 120
        %v2957 = vpop.permute.xlu0 %2956
        %2958 = vrot.lane.b32.xlu0 %v2813, 120
        %v2959 = vpop.permute.xlu0 %2958
        %2960 = vrot.lane.b32.xlu0 %v2814, 120
        %v2961 = vpop.permute.xlu0 %2960
        %2962 = vrot.lane.b32.xlu0 %v2815, 120
        %v2963 = vpop.permute.xlu0 %2962
        %2964 = vrot.lane.b32.xlu0 %v2816, 120
        %v2965 = vpop.permute.xlu0 %2964
        %2966 = vrot.lane.b32.xlu0 %v2817, 120
        %v2967 = vpop.permute.xlu0 %2966
        %2968 = vrot.lane.b32.xlu0 %v2818, 120
        %v2969 = vpop.permute.xlu0 %2968
        %2970 = vrot.lane.b32.xlu0 %v2819, 120
        %v2971 = vpop.permute.xlu0 %2970
        %2972 = vrot.lane.b32.xlu0 %v2820, 120
        %v2973 = vpop.permute.xlu0 %2972
        %2974 = vrot.lane.b32.xlu0 %v2821, 120
        %v2975 = vpop.permute.xlu0 %2974
        %2976 = vrot.lane.b32.xlu0 %v2822, 120
        %v2977 = vpop.permute.xlu0 %2976
        %2978 = vrot.lane.b32.xlu0 %v2823, 120
        %v2979 = vpop.permute.xlu0 %2978
        %2980 = vrot.lane.b32.xlu0 %v2824, 120
        %v2981 = vpop.permute.xlu0 %2980
        %2982 = vrot.lane.b32.xlu0 %v2825, 120
        %v2983 = vpop.permute.xlu0 %2982
        %2984 = vrot.lane.b32.xlu0 %v2826, 120
        %v2985 = vpop.permute.xlu0 %2984
        %2986 = vrot.lane.b32.xlu0 %v2827, 120
        %v2987 = vpop.permute.xlu0 %2986
        %2988 = vrot.lane.b32.xlu0 %v2828, 120
        %v2989 = vpop.permute.xlu0 %2988
        %2990 = vrot.lane.b32.xlu0 %v2829, 120
        %v2991 = vpop.permute.xlu0 %2990
        %2992 = vrot.lane.b32.xlu0 %v2830, 120
        %v2993 = vpop.permute.xlu0 %2992
        %2994 = vrot.lane.b32.xlu0 %v2831, 120
        %v2995 = vpop.permute.xlu0 %2994
        %2996 = vrot.lane.b32.xlu0 %v2832, 120
        %v2997 = vpop.permute.xlu0 %2996
        %2998 = vrot.lane.b32.xlu0 %v2833, 120
        %v2999 = vpop.permute.xlu0 %2998
        %3000 = vrot.lane.b32.xlu0 %v2834, 120
        %v3001 = vpop.permute.xlu0 %3000
        %3002 = vrot.lane.b32.xlu0 %v2835, 120
        %v3003 = vpop.permute.xlu0 %3002
        %3004 = vrot.lane.b32.xlu0 %v2836, 120
        %v3005 = vpop.permute.xlu0 %3004
        %3006 = vrot.lane.b32.xlu0 %v2837, 120
        %v3007 = vpop.permute.xlu0 %3006
        %3008 = vrot.lane.b32.xlu0 %v2838, 120
        %v3009 = vpop.permute.xlu0 %3008
        %3010 = vrot.lane.b32.xlu0 %v2839, 120
        %v3011 = vpop.permute.xlu0 %3010
        %3012 = vrot.lane.b32.xlu0 %v2840, 120
        %v3013 = vpop.permute.xlu0 %3012
        %3014 = vrot.lane.b32.xlu0 %v2841, 120
        %v3015 = vpop.permute.xlu0 %3014
        %3016 = vrot.lane.b32.xlu0 %v2842, 120
        %v3017 = vpop.permute.xlu0 %3016
        %3018 = vrot.lane.b32.xlu0 %v2843, 120
        %v3019 = vpop.permute.xlu0 %3018
        %3020 = vrot.lane.b32.xlu0 %v2844, 120
        %v3021 = vpop.permute.xlu0 %3020
        %3022 = vrot.lane.b32.xlu0 %v2845, 120
        %v3023 = vpop.permute.xlu0 %3022
        %3024 = vrot.lane.b32.xlu0 %v2846, 120
        %v3025 = vpop.permute.xlu0 %3024
        %3026 = vrot.lane.b32.xlu0 %v2847, 120
        %v3027 = vpop.permute.xlu0 %3026
        %3028 = vrot.lane.b32.xlu0 %v2848, 120
        %v3029 = vpop.permute.xlu0 %3028
        %3030 = vrot.lane.b32.xlu0 %v2849, 120
        %v3031 = vpop.permute.xlu0 %3030
        %3032 = vrot.lane.b32.xlu0 %v2850, 120
        %v3033 = vpop.permute.xlu0 %3032
        %3034 = vrot.lane.b32.xlu0 %v2851, 120
        %v3035 = vpop.permute.xlu0 %3034
        %3036 = vrot.lane.b32.xlu0 %v2852, 120
        %v3037 = vpop.permute.xlu0 %3036
        %3038 = vrot.lane.b32.xlu0 %v2853, 120
        %v3039 = vpop.permute.xlu0 %3038
        %3040 = vrot.lane.b32.xlu0 %v2854, 120
        %v3041 = vpop.permute.xlu0 %3040
        %3042 = vrot.lane.b32.xlu0 %v2855, 120
        %v3043 = vpop.permute.xlu0 %3042
        %3044 = vrot.lane.b32.xlu0 %v2856, 120
        %v3045 = vpop.permute.xlu0 %3044
        %3046 = vrot.lane.b32.xlu0 %v2857, 120
        %v3047 = vpop.permute.xlu0 %3046
        %3048 = vrot.lane.b32.xlu0 %v2858, 120
        %v3049 = vpop.permute.xlu0 %3048
        %3050 = vrot.lane.b32.xlu0 %v2859, 120
        %v3051 = vpop.permute.xlu0 %3050
        %vm3052 = vcmask 982016
        %v3053 = vsel %vm3052, %v2925, %v2927
        %v3054 = vsel %vm3052, %v2929, %v2931
        %v3055 = vsel %vm3052, %v2933, %v2935
        %v3056 = vsel %vm3052, %v2937, %v2939
        %v3057 = vsel %vm3052, %v2941, %v2943
        %v3058 = vsel %vm3052, %v2945, %v2947
        %v3059 = vsel %vm3052, %v2949, %v2951
        %v3060 = vsel %vm3052, %v2953, %v2955
        %v3061 = vsel %vm3052, %v2957, %v2959
        %v3062 = vsel %vm3052, %v2961, %v2963
        %v3063 = vsel %vm3052, %v2965, %v2967
        %v3064 = vsel %vm3052, %v2969, %v2971
        %v3065 = vsel %vm3052, %v2973, %v2975
        %v3066 = vsel %vm3052, %v2977, %v2979
        %v3067 = vsel %vm3052, %v2981, %v2983
        %v3068 = vsel %vm3052, %v2985, %v2987
        %v3069 = vsel %vm3052, %v2989, %v2991
        %v3070 = vsel %vm3052, %v2993, %v2995
        %v3071 = vsel %vm3052, %v2997, %v2999
        %v3072 = vsel %vm3052, %v3001, %v3003
        %v3073 = vsel %vm3052, %v3005, %v3007
        %v3074 = vsel %vm3052, %v3009, %v3011
        %v3075 = vsel %vm3052, %v3013, %v3015
        %v3076 = vsel %vm3052, %v3017, %v3019
        %v3077 = vsel %vm3052, %v3021, %v3023
        %v3078 = vsel %vm3052, %v3025, %v3027
        %v3079 = vsel %vm3052, %v3029, %v3031
        %v3080 = vsel %vm3052, %v3033, %v3035
        %v3081 = vsel %vm3052, %v3037, %v3039
        %v3082 = vsel %vm3052, %v3041, %v3043
        %v3083 = vsel %vm3052, %v3045, %v3047
        %v3084 = vsel %vm3052, %v3049, %v3051
        %v3149 = vmax.f32 %v2796, %v3053
        %v3150 = vmax.f32 %v2797, %v2927
        %v3151 = vmax.f32 %v2798, %v3054
        %v3152 = vmax.f32 %v2799, %v2931
        %v3153 = vmax.f32 %v2800, %v3055
        %v3154 = vmax.f32 %v2801, %v2935
        %v3155 = vmax.f32 %v2802, %v3056
        %v3156 = vmax.f32 %v2803, %v2939
        %v3157 = vmax.f32 %v2804, %v3057
        %v3158 = vmax.f32 %v2805, %v2943
        %v3159 = vmax.f32 %v2806, %v3058
        %v3160 = vmax.f32 %v2807, %v2947
        %v3161 = vmax.f32 %v2808, %v3059
        %v3162 = vmax.f32 %v2809, %v2951
        %v3163 = vmax.f32 %v2810, %v3060
        %v3164 = vmax.f32 %v2811, %v2955
        %v3165 = vmax.f32 %v2812, %v3061
        %v3166 = vmax.f32 %v2813, %v2959
        %v3167 = vmax.f32 %v2814, %v3062
        %v3168 = vmax.f32 %v2815, %v2963
        %v3169 = vmax.f32 %v2816, %v3063
        %v3170 = vmax.f32 %v2817, %v2967
        %v3171 = vmax.f32 %v2818, %v3064
        %v3172 = vmax.f32 %v2819, %v2971
        %v3173 = vmax.f32 %v2820, %v3065
        %v3174 = vmax.f32 %v2821, %v2975
        %v3175 = vmax.f32 %v2822, %v3066
        %v3176 = vmax.f32 %v2823, %v2979
        %v3177 = vmax.f32 %v2824, %v3067
        %v3178 = vmax.f32 %v2825, %v2983
        %v3179 = vmax.f32 %v2826, %v3068
        %v3180 = vmax.f32 %v2827, %v2987
        %v3181 = vmax.f32 %v2828, %v3069
        %v3182 = vmax.f32 %v2829, %v2991
        %v3183 = vmax.f32 %v2830, %v3070
        %v3184 = vmax.f32 %v2831, %v2995
        %v3185 = vmax.f32 %v2832, %v3071
        %v3186 = vmax.f32 %v2833, %v2999
        %v3187 = vmax.f32 %v2834, %v3072
        %v3188 = vmax.f32 %v2835, %v3003
        %v3189 = vmax.f32 %v2836, %v3073
        %v3190 = vmax.f32 %v2837, %v3007
        %v3191 = vmax.f32 %v2838, %v3074
        %v3192 = vmax.f32 %v2839, %v3011
        %v3193 = vmax.f32 %v2840, %v3075
        %v3194 = vmax.f32 %v2841, %v3015
        %v3195 = vmax.f32 %v2842, %v3076
        %v3196 = vmax.f32 %v2843, %v3019
        %v3197 = vmax.f32 %v2844, %v3077
        %v3198 = vmax.f32 %v2845, %v3023
        %v3199 = vmax.f32 %v2846, %v3078
        %v3200 = vmax.f32 %v2847, %v3027
        %v3201 = vmax.f32 %v2848, %v3079
        %v3202 = vmax.f32 %v2849, %v3031
        %v3203 = vmax.f32 %v2850, %v3080
        %v3204 = vmax.f32 %v2851, %v3035
        %v3205 = vmax.f32 %v2852, %v3081
        %v3206 = vmax.f32 %v2853, %v3039
        %v3207 = vmax.f32 %v2854, %v3082
        %v3208 = vmax.f32 %v2855, %v3043
        %v3209 = vmax.f32 %v2856, %v3083
        %v3210 = vmax.f32 %v2857, %v3047
        %v3211 = vmax.f32 %v2858, %v3084
        %v3212 = vmax.f32 %v2859, %v3051
        %v3213 = vld [vmem:[#allocation2] sm:$0xfe]
        %v3214 = vld [vmem:[#allocation2 + $0x8] sm:$0xfe]
        %v3215 = vld [vmem:[#allocation2 + $0x200] sm:$0x1]
        %v3216 = vld [vmem:[#allocation2 + $0x208] sm:$0x1]
        %3221 = vrot.lane.b32.xlu0 %v3213, 120
        %v3222 = vpop.permute.xlu0 %3221
        %3223 = vrot.lane.b32.xlu0 %v3214, 120
        %v3224 = vpop.permute.xlu0 %3223
        %3225 = vrot.lane.b32.xlu0 %v3215, 120
        %v3226 = vpop.permute.xlu0 %3225
        %3227 = vrot.lane.b32.xlu0 %v3216, 120
        %v3228 = vpop.permute.xlu0 %3227
        %v3229 = vsel %vm3052, %v3222, %v3224
        %v3230 = vsel %vm3052, %v3226, %v3228
        %v3235 = vmax.f32 %v3213, %v3229
        %v3236 = vmax.f32 %v3214, %v3224
        %v3237 = vmax.f32 %v3215, %v3230
        %v3238 = vmax.f32 %v3216, %v3228
        %vm3305 = vcmask 1046528
        %v3306 = vrot.slane %v3235, 1
        %v3307 = vrot.slane %v3151, 1
        %v3308 = vsel %vm3305, %v3306, %v3307
        %v3309 = vrot.slane %v3236, 1
        %v3310 = vrot.slane %v3152, 1
        %v3311 = vsel %vm3305, %v3309, %v3310
        %v3312 = vrot.slane %v3153, 1
        %v3313 = vsel %vm3305, %v3307, %v3312
        %v3314 = vrot.slane %v3154, 1
        %v3315 = vsel %vm3305, %v3310, %v3314
        %v3316 = vrot.slane %v3155, 1
        %v3317 = vsel %vm3305, %v3312, %v3316
        %v3318 = vrot.slane %v3156, 1
        %v3319 = vsel %vm3305, %v3314, %v3318
        %v3320 = vrot.slane %v3157, 1
        %v3321 = vsel %vm3305, %v3316, %v3320
        %v3322 = vrot.slane %v3158, 1
        %v3323 = vsel %vm3305, %v3318, %v3322
        %v3324 = vrot.slane %v3159, 1
        %v3325 = vsel %vm3305, %v3320, %v3324
        %v3326 = vrot.slane %v3160, 1
        %v3327 = vsel %vm3305, %v3322, %v3326
        %v3328 = vrot.slane %v3161, 1
        %v3329 = vsel %vm3305, %v3324, %v3328
        %v3330 = vrot.slane %v3162, 1
        %v3331 = vsel %vm3305, %v3326, %v3330
        %v3332 = vrot.slane %v3163, 1
        %v3333 = vsel %vm3305, %v3328, %v3332
        %v3334 = vrot.slane %v3164, 1
        %v3335 = vsel %vm3305, %v3330, %v3334
        %v3336 = vrot.slane %v3165, 1
        %v3337 = vsel %vm3305, %v3332, %v3336
        %v3338 = vrot.slane %v3166, 1
        %v3339 = vsel %vm3305, %v3334, %v3338
        %v3340 = vrot.slane %v3167, 1
        %v3341 = vsel %vm3305, %v3336, %v3340
        %v3342 = vrot.slane %v3168, 1
        %v3343 = vsel %vm3305, %v3338, %v3342
        %v3344 = vrot.slane %v3169, 1
        %v3345 = vsel %vm3305, %v3340, %v3344
        %v3346 = vrot.slane %v3170, 1
        %v3347 = vsel %vm3305, %v3342, %v3346
        %v3348 = vrot.slane %v3171, 1
        %v3349 = vsel %vm3305, %v3344, %v3348
        %v3350 = vrot.slane %v3172, 1
        %v3351 = vsel %vm3305, %v3346, %v3350
        %v3352 = vrot.slane %v3173, 1
        %v3353 = vsel %vm3305, %v3348, %v3352
        %v3354 = vrot.slane %v3174, 1
        %v3355 = vsel %vm3305, %v3350, %v3354
        %v3356 = vrot.slane %v3175, 1
        %v3357 = vsel %vm3305, %v3352, %v3356
        %v3358 = vrot.slane %v3176, 1
        %v3359 = vsel %vm3305, %v3354, %v3358
        %v3360 = vrot.slane %v3177, 1
        %v3361 = vsel %vm3305, %v3356, %v3360
        %v3362 = vrot.slane %v3178, 1
        %v3363 = vsel %vm3305, %v3358, %v3362
        %v3364 = vrot.slane %v3179, 1
        %v3365 = vsel %vm3305, %v3360, %v3364
        %v3366 = vrot.slane %v3180, 1
        %v3367 = vsel %vm3305, %v3362, %v3366
        %v3368 = vrot.slane %v3181, 1
        %v3369 = vsel %vm3305, %v3364, %v3368
        %v3370 = vrot.slane %v3182, 1
        %v3371 = vsel %vm3305, %v3366, %v3370
        %v3372 = vrot.slane %v3183, 1
        %v3373 = vsel %vm3305, %v3368, %v3372
        %v3374 = vrot.slane %v3184, 1
        %v3375 = vsel %vm3305, %v3370, %v3374
        %v3376 = vrot.slane %v3185, 1
        %v3377 = vsel %vm3305, %v3372, %v3376
        %v3378 = vrot.slane %v3186, 1
        %v3379 = vsel %vm3305, %v3374, %v3378
        %v3380 = vrot.slane %v3187, 1
        %v3381 = vsel %vm3305, %v3376, %v3380
        %v3382 = vrot.slane %v3188, 1
        %v3383 = vsel %vm3305, %v3378, %v3382
        %v3384 = vrot.slane %v3189, 1
        %v3385 = vsel %vm3305, %v3380, %v3384
        %v3386 = vrot.slane %v3190, 1
        %v3387 = vsel %vm3305, %v3382, %v3386
        %v3388 = vrot.slane %v3191, 1
        %v3389 = vsel %vm3305, %v3384, %v3388
        %v3390 = vrot.slane %v3192, 1
        %v3391 = vsel %vm3305, %v3386, %v3390
        %v3392 = vrot.slane %v3193, 1
        %v3393 = vsel %vm3305, %v3388, %v3392
        %v3394 = vrot.slane %v3194, 1
        %v3395 = vsel %vm3305, %v3390, %v3394
        %v3396 = vrot.slane %v3195, 1
        %v3397 = vsel %vm3305, %v3392, %v3396
        %v3398 = vrot.slane %v3196, 1
        %v3399 = vsel %vm3305, %v3394, %v3398
        %v3400 = vrot.slane %v3197, 1
        %v3401 = vsel %vm3305, %v3396, %v3400
        %v3402 = vrot.slane %v3198, 1
        %v3403 = vsel %vm3305, %v3398, %v3402
        %v3404 = vrot.slane %v3199, 1
        %v3405 = vsel %vm3305, %v3400, %v3404
        %v3406 = vrot.slane %v3200, 1
        %v3407 = vsel %vm3305, %v3402, %v3406
        %v3408 = vrot.slane %v3201, 1
        %v3409 = vsel %vm3305, %v3404, %v3408
        %v3410 = vrot.slane %v3202, 1
        %v3411 = vsel %vm3305, %v3406, %v3410
        %v3412 = vrot.slane %v3203, 1
        %v3413 = vsel %vm3305, %v3408, %v3412
        %v3414 = vrot.slane %v3204, 1
        %v3415 = vsel %vm3305, %v3410, %v3414
        %v3416 = vrot.slane %v3205, 1
        %v3417 = vsel %vm3305, %v3412, %v3416
        %v3418 = vrot.slane %v3206, 1
        %v3419 = vsel %vm3305, %v3414, %v3418
        %v3420 = vrot.slane %v3207, 1
        %v3421 = vsel %vm3305, %v3416, %v3420
        %v3422 = vrot.slane %v3208, 1
        %v3423 = vsel %vm3305, %v3418, %v3422
        %v3424 = vrot.slane %v3209, 1
        %v3425 = vsel %vm3305, %v3420, %v3424
        %v3426 = vrot.slane %v3210, 1
        %v3427 = vsel %vm3305, %v3422, %v3426
        %v3428 = vrot.slane %v3211, 1
        %v3429 = vsel %vm3305, %v3424, %v3428
        %v3430 = vrot.slane %v3212, 1
        %v3431 = vsel %vm3305, %v3426, %v3430
        %v3432 = vrot.slane %v3237, 1
        %v3433 = vsel %vm3305, %v3428, %v3432
        %v3434 = vrot.slane %v3238, 1
        %v3435 = vsel %vm3305, %v3430, %v3434
        %v3500 = vmax.f32 %v3149, %v3308
        %v3501 = vmax.f32 %v3150, %v3311
        %v3502 = vmax.f32 %v3151, %v3313
        %v3503 = vmax.f32 %v3152, %v3315
        %v3504 = vmax.f32 %v3153, %v3317
        %v3505 = vmax.f32 %v3154, %v3319
        %v3506 = vmax.f32 %v3155, %v3321
        %v3507 = vmax.f32 %v3156, %v3323
        %v3508 = vmax.f32 %v3157, %v3325
        %v3509 = vmax.f32 %v3158, %v3327
        %v3510 = vmax.f32 %v3159, %v3329
        %v3511 = vmax.f32 %v3160, %v3331
        %v3512 = vmax.f32 %v3161, %v3333
        %v3513 = vmax.f32 %v3162, %v3335
        %v3514 = vmax.f32 %v3163, %v3337
        %v3515 = vmax.f32 %v3164, %v3339
        %v3516 = vmax.f32 %v3165, %v3341
        %v3517 = vmax.f32 %v3166, %v3343
        %v3518 = vmax.f32 %v3167, %v3345
        %v3519 = vmax.f32 %v3168, %v3347
        %v3520 = vmax.f32 %v3169, %v3349
        %v3521 = vmax.f32 %v3170, %v3351
        %v3522 = vmax.f32 %v3171, %v3353
        %v3523 = vmax.f32 %v3172, %v3355
        %v3524 = vmax.f32 %v3173, %v3357
        %v3525 = vmax.f32 %v3174, %v3359
        %v3526 = vmax.f32 %v3175, %v3361
        %v3527 = vmax.f32 %v3176, %v3363
        %v3528 = vmax.f32 %v3177, %v3365
        %v3529 = vmax.f32 %v3178, %v3367
        %v3530 = vmax.f32 %v3179, %v3369
        %v3531 = vmax.f32 %v3180, %v3371
        %v3532 = vmax.f32 %v3181, %v3373
        %v3533 = vmax.f32 %v3182, %v3375
        %v3534 = vmax.f32 %v3183, %v3377
        %v3535 = vmax.f32 %v3184, %v3379
        %v3536 = vmax.f32 %v3185, %v3381
        %v3537 = vmax.f32 %v3186, %v3383
        %v3538 = vmax.f32 %v3187, %v3385
        %v3539 = vmax.f32 %v3188, %v3387
        %v3540 = vmax.f32 %v3189, %v3389
        %v3541 = vmax.f32 %v3190, %v3391
        %v3542 = vmax.f32 %v3191, %v3393
        %v3543 = vmax.f32 %v3192, %v3395
        %v3544 = vmax.f32 %v3193, %v3397
        %v3545 = vmax.f32 %v3194, %v3399
        %v3546 = vmax.f32 %v3195, %v3401
        %v3547 = vmax.f32 %v3196, %v3403
        %v3548 = vmax.f32 %v3197, %v3405
        %v3549 = vmax.f32 %v3198, %v3407
        %v3550 = vmax.f32 %v3199, %v3409
        %v3551 = vmax.f32 %v3200, %v3411
        %v3552 = vmax.f32 %v3201, %v3413
        %v3553 = vmax.f32 %v3202, %v3415
        %v3554 = vmax.f32 %v3203, %v3417
        %v3555 = vmax.f32 %v3204, %v3419
        %v3556 = vmax.f32 %v3205, %v3421
        %v3557 = vmax.f32 %v3206, %v3423
        %v3558 = vmax.f32 %v3207, %v3425
        %v3559 = vmax.f32 %v3208, %v3427
        %v3560 = vmax.f32 %v3209, %v3429
        %v3561 = vmax.f32 %v3210, %v3431
        %v3562 = vmax.f32 %v3211, %v3433
        %v3563 = vmax.f32 %v3212, %v3435
        %v3564 = vmax.f32 %v3500, 0.0
        %v3565 = vmax.f32 %v3501, 0.0
        %v3566 = vmax.f32 %v3502, 0.0
        %v3567 = vmax.f32 %v3503, 0.0
        %v3568 = vmax.f32 %v3504, 0.0
        %v3569 = vmax.f32 %v3505, 0.0
        %v3570 = vmax.f32 %v3506, 0.0
        %v3571 = vmax.f32 %v3507, 0.0
        %v3572 = vmax.f32 %v3508, 0.0
        %v3573 = vmax.f32 %v3509, 0.0
        %v3574 = vmax.f32 %v3510, 0.0
        %v3575 = vmax.f32 %v3511, 0.0
        %v3576 = vmax.f32 %v3512, 0.0
        %v3577 = vmax.f32 %v3513, 0.0
        %v3578 = vmax.f32 %v3514, 0.0
        %v3579 = vmax.f32 %v3515, 0.0
        %v3580 = vmax.f32 %v3516, 0.0
        %v3581 = vmax.f32 %v3517, 0.0
        %v3582 = vmax.f32 %v3518, 0.0
        %v3583 = vmax.f32 %v3519, 0.0
        %v3584 = vmax.f32 %v3520, 0.0
        %v3585 = vmax.f32 %v3521, 0.0
        %v3586 = vmax.f32 %v3522, 0.0
        %v3587 = vmax.f32 %v3523, 0.0
        %v3588 = vmax.f32 %v3524, 0.0
        %v3589 = vmax.f32 %v3525, 0.0
        %v3590 = vmax.f32 %v3526, 0.0
        %v3591 = vmax.f32 %v3527, 0.0
        %v3592 = vmax.f32 %v3528, 0.0
        %v3593 = vmax.f32 %v3529, 0.0
        %v3594 = vmax.f32 %v3530, 0.0
        %v3595 = vmax.f32 %v3531, 0.0
        %v3596 = vmax.f32 %v3532, 0.0
        %v3597 = vmax.f32 %v3533, 0.0
        %v3598 = vmax.f32 %v3534, 0.0
        %v3599 = vmax.f32 %v3535, 0.0
        %v3600 = vmax.f32 %v3536, 0.0
        %v3601 = vmax.f32 %v3537, 0.0
        %v3602 = vmax.f32 %v3538, 0.0
        %v3603 = vmax.f32 %v3539, 0.0
        %v3604 = vmax.f32 %v3540, 0.0
        %v3605 = vmax.f32 %v3541, 0.0
        %v3606 = vmax.f32 %v3542, 0.0
        %v3607 = vmax.f32 %v3543, 0.0
        %v3608 = vmax.f32 %v3544, 0.0
        %v3609 = vmax.f32 %v3545, 0.0
        %v3610 = vmax.f32 %v3546, 0.0
        %v3611 = vmax.f32 %v3547, 0.0
        %v3612 = vmax.f32 %v3548, 0.0
        %v3613 = vmax.f32 %v3549, 0.0
        %v3614 = vmax.f32 %v3550, 0.0
        %v3615 = vmax.f32 %v3551, 0.0
        %v3616 = vmax.f32 %v3552, 0.0
        %v3617 = vmax.f32 %v3553, 0.0
        %v3618 = vmax.f32 %v3554, 0.0
        %v3619 = vmax.f32 %v3555, 0.0
        %v3620 = vmax.f32 %v3556, 0.0
        %v3621 = vmax.f32 %v3557, 0.0
        %v3622 = vmax.f32 %v3558, 0.0
        %v3623 = vmax.f32 %v3559, 0.0
        %v3624 = vmax.f32 %v3560, 0.0
        %v3625 = vmax.f32 %v3561, 0.0
        %v3626 = vmax.f32 %v3562, 0.0
        %v3627 = vmax.f32 %v3563, 0.0
        %v3628 = vpack.c.bf16 %v3566, %v3564
        %v3629 = vpack.c.bf16 %v3567, %v3565
        %v3630 = vpack.c.bf16 %v3570, %v3568
        %v3631 = vpack.c.bf16 %v3571, %v3569
        %v3632 = vpack.c.bf16 %v3574, %v3572
        %v3633 = vpack.c.bf16 %v3575, %v3573
        %v3634 = vpack.c.bf16 %v3578, %v3576
        %v3635 = vpack.c.bf16 %v3579, %v3577
        %v3636 = vpack.c.bf16 %v3582, %v3580
        %v3637 = vpack.c.bf16 %v3583, %v3581
        %v3638 = vpack.c.bf16 %v3586, %v3584
        %v3639 = vpack.c.bf16 %v3587, %v3585
        %v3640 = vpack.c.bf16 %v3590, %v3588
        %v3641 = vpack.c.bf16 %v3591, %v3589
        %v3642 = vpack.c.bf16 %v3594, %v3592
        %v3643 = vpack.c.bf16 %v3595, %v3593
        %v3644 = vpack.c.bf16 %v3598, %v3596
        %v3645 = vpack.c.bf16 %v3599, %v3597
        %v3646 = vpack.c.bf16 %v3602, %v3600
        %v3647 = vpack.c.bf16 %v3603, %v3601
        %v3648 = vpack.c.bf16 %v3606, %v3604
        %v3649 = vpack.c.bf16 %v3607, %v3605
        %v3650 = vpack.c.bf16 %v3610, %v3608
        %v3651 = vpack.c.bf16 %v3611, %v3609
        %v3652 = vpack.c.bf16 %v3614, %v3612
        %v3653 = vpack.c.bf16 %v3615, %v3613
        %v3654 = vpack.c.bf16 %v3618, %v3616
        %v3655 = vpack.c.bf16 %v3619, %v3617
        %v3656 = vpack.c.bf16 %v3622, %v3620
        %v3657 = vpack.c.bf16 %v3623, %v3621
        %v3658 = vpack.c.bf16 %v3626, %v3624
        %v3659 = vpack.c.bf16 %v3627, %v3625
        %v3692 = vunpack.c.l.b16 %v3628
        %v3693 = vunpack.c.l.b16 %v3629
        %v3694 = vunpack.c.h.b16 %v3628
        %v3695 = vunpack.c.h.b16 %v3629
        %v3696 = vunpack.c.l.b16 %v3630
        %v3697 = vunpack.c.l.b16 %v3631
        %v3698 = vunpack.c.h.b16 %v3630
        %v3699 = vunpack.c.h.b16 %v3631
        %v3700 = vunpack.c.l.b16 %v3632
        %v3701 = vunpack.c.l.b16 %v3633
        %v3702 = vunpack.c.h.b16 %v3632
        %v3703 = vunpack.c.h.b16 %v3633
        %v3704 = vunpack.c.l.b16 %v3634
        %v3705 = vunpack.c.l.b16 %v3635
        %v3706 = vunpack.c.h.b16 %v3634
        %v3707 = vunpack.c.h.b16 %v3635
        %v3708 = vunpack.c.l.b16 %v3636
        %v3709 = vunpack.c.l.b16 %v3637
        %v3710 = vunpack.c.h.b16 %v3636
        %v3711 = vunpack.c.h.b16 %v3637
        %v3712 = vunpack.c.l.b16 %v3638
        %v3713 = vunpack.c.l.b16 %v3639
        %v3714 = vunpack.c.h.b16 %v3638
        %v3715 = vunpack.c.h.b16 %v3639
        %v3716 = vunpack.c.l.b16 %v3640
        %v3717 = vunpack.c.l.b16 %v3641
        %v3718 = vunpack.c.h.b16 %v3640
        %v3719 = vunpack.c.h.b16 %v3641
        %v3720 = vunpack.c.l.b16 %v3642
        %v3721 = vunpack.c.l.b16 %v3643
        %v3722 = vunpack.c.h.b16 %v3642
        %v3723 = vunpack.c.h.b16 %v3643
        %v3724 = vunpack.c.l.b16 %v3644
        %v3725 = vunpack.c.l.b16 %v3645
        %v3726 = vunpack.c.h.b16 %v3644
        %v3727 = vunpack.c.h.b16 %v3645
        %v3728 = vunpack.c.l.b16 %v3646
        %v3729 = vunpack.c.l.b16 %v3647
        %v3730 = vunpack.c.h.b16 %v3646
        %v3731 = vunpack.c.h.b16 %v3647
        %v3732 = vunpack.c.l.b16 %v3648
        %v3733 = vunpack.c.l.b16 %v3649
        %v3734 = vunpack.c.h.b16 %v3648
        %v3735 = vunpack.c.h.b16 %v3649
        %v3736 = vunpack.c.l.b16 %v3650
        %v3737 = vunpack.c.l.b16 %v3651
        %v3738 = vunpack.c.h.b16 %v3650
        %v3739 = vunpack.c.h.b16 %v3651
        %v3740 = vunpack.c.l.b16 %v3652
        %v3741 = vunpack.c.l.b16 %v3653
        %v3742 = vunpack.c.h.b16 %v3652
        %v3743 = vunpack.c.h.b16 %v3653
        %v3744 = vunpack.c.l.b16 %v3654
        %v3745 = vunpack.c.l.b16 %v3655
        %v3746 = vunpack.c.h.b16 %v3654
        %v3747 = vunpack.c.h.b16 %v3655
        %v3748 = vunpack.c.l.b16 %v3656
        %v3749 = vunpack.c.l.b16 %v3657
        %v3750 = vunpack.c.h.b16 %v3656
        %v3751 = vunpack.c.h.b16 %v3657
        %v3752 = vunpack.c.l.b16 %v3658
        %v3753 = vunpack.c.l.b16 %v3659
        %v3754 = vunpack.c.h.b16 %v3658
        %v3755 = vunpack.c.h.b16 %v3659
        %v3756 = vpack.c.b16 %v3693, %v3692
        %v3757 = vpack.c.b16 %v3695, %v3694
        %v3758 = vpack.c.b16 %v3697, %v3696
        %v3759 = vpack.c.b16 %v3699, %v3698
        %v3760 = vpack.c.b16 %v3701, %v3700
        %v3761 = vpack.c.b16 %v3703, %v3702
        %v3762 = vpack.c.b16 %v3705, %v3704
        %v3763 = vpack.c.b16 %v3707, %v3706
        %v3764 = vpack.c.b16 %v3709, %v3708
        %v3765 = vpack.c.b16 %v3711, %v3710
        %v3766 = vpack.c.b16 %v3713, %v3712
        %v3767 = vpack.c.b16 %v3715, %v3714
        %v3768 = vpack.c.b16 %v3717, %v3716
        %v3769 = vpack.c.b16 %v3719, %v3718
        %v3770 = vpack.c.b16 %v3721, %v3720
        %v3771 = vpack.c.b16 %v3723, %v3722
        %v3772 = vpack.c.b16 %v3725, %v3724
        %v3773 = vpack.c.b16 %v3727, %v3726
        %v3774 = vpack.c.b16 %v3729, %v3728
        %v3775 = vpack.c.b16 %v3731, %v3730
        %v3776 = vpack.c.b16 %v3733, %v3732
        %v3777 = vpack.c.b16 %v3735, %v3734
        %v3778 = vpack.c.b16 %v3737, %v3736
        %v3779 = vpack.c.b16 %v3739, %v3738
        %v3780 = vpack.c.b16 %v3741, %v3740
        %v3781 = vpack.c.b16 %v3743, %v3742
        %v3782 = vpack.c.b16 %v3745, %v3744
        %v3783 = vpack.c.b16 %v3747, %v3746
        %v3784 = vpack.c.b16 %v3749, %v3748
        %v3785 = vpack.c.b16 %v3751, %v3750
        %v3786 = vpack.c.b16 %v3753, %v3752
        %v3787 = vpack.c.b16 %v3755, %v3754
        %vm3820 = vcmask 1043456
        %vm3821 = vcmask 785412
        %vm3822 = vmor %vm3821, %vm3820
        %3823 = vst.msk [vmem:[#allocation3] sm:$0xff] %vm3822, %v3756
        %3824 = vst.msk [vmem:[#allocation3 + $0x8] sm:$0xff] %vm3822, %v3757
        %3825 = vst.msk [vmem:[#allocation3 + $0x10] sm:$0xff] %vm3822, %v3758
        %3826 = vst.msk [vmem:[#allocation3 + $0x18] sm:$0xff] %vm3822, %v3759
        %3827 = vst.msk [vmem:[#allocation3 + $0x20] sm:$0xff] %vm3822, %v3760
        %3828 = vst.msk [vmem:[#allocation3 + $0x28] sm:$0xff] %vm3822, %v3761
        %3829 = vst.msk [vmem:[#allocation3 + $0x30] sm:$0xff] %vm3822, %v3762
        %3830 = vst.msk [vmem:[#allocation3 + $0x38] sm:$0xff] %vm3822, %v3763
        %3831 = vst.msk [vmem:[#allocation3 + $0x40] sm:$0xff] %vm3822, %v3764
        %3832 = vst.msk [vmem:[#allocation3 + $0x48] sm:$0xff] %vm3822, %v3765
        %3833 = vst.msk [vmem:[#allocation3 + $0x50] sm:$0xff] %vm3822, %v3766
        %3834 = vst.msk [vmem:[#allocation3 + $0x58] sm:$0xff] %vm3822, %v3767
        %3835 = vst.msk [vmem:[#allocation3 + $0x60] sm:$0xff] %vm3822, %v3768
        %3836 = vst.msk [vmem:[#allocation3 + $0x68] sm:$0xff] %vm3822, %v3769
        %3837 = vst.msk [vmem:[#allocation3 + $0x70] sm:$0xff] %vm3822, %v3770
        %3838 = vst.msk [vmem:[#allocation3 + $0x78] sm:$0xff] %vm3822, %v3771
        %3839 = vst.msk [vmem:[#allocation3 + $0x80] sm:$0xff] %vm3822, %v3772
        %3840 = vst.msk [vmem:[#allocation3 + $0x88] sm:$0xff] %vm3822, %v3773
        %3841 = vst.msk [vmem:[#allocation3 + $0x90] sm:$0xff] %vm3822, %v3774
        %3842 = vst.msk [vmem:[#allocation3 + $0x98] sm:$0xff] %vm3822, %v3775
        %3843 = vst.msk [vmem:[#allocation3 + $0xa0] sm:$0xff] %vm3822, %v3776
        %3844 = vst.msk [vmem:[#allocation3 + $0xa8] sm:$0xff] %vm3822, %v3777
        %3845 = vst.msk [vmem:[#allocation3 + $0xb0] sm:$0xff] %vm3822, %v3778
        %3846 = vst.msk [vmem:[#allocation3 + $0xb8] sm:$0xff] %vm3822, %v3779
        %3847 = vst.msk [vmem:[#allocation3 + $0xc0] sm:$0xff] %vm3822, %v3780
        %3848 = vst.msk [vmem:[#allocation3 + $0xc8] sm:$0xff] %vm3822, %v3781
        %3849 = vst.msk [vmem:[#allocation3 + $0xd0] sm:$0xff] %vm3822, %v3782
        %3850 = vst.msk [vmem:[#allocation3 + $0xd8] sm:$0xff] %vm3822, %v3783
        %3851 = vst.msk [vmem:[#allocation3 + $0xe0] sm:$0xff] %vm3822, %v3784
        %3852 = vst.msk [vmem:[#allocation3 + $0xe8] sm:$0xff] %vm3822, %v3785
        %3853 = vst.msk [vmem:[#allocation3 + $0xf0] sm:$0xff] %vm3822, %v3786
        %3854 = vst.msk [vmem:[#allocation3 + $0xf8] sm:$0xff] %vm3822, %v3787
        %3855 = vst.msk [vmem:[#allocation3 + $0x100] sm:$0xff] %vm3822, 0
        %v3856 = vld [vmem:[#allocation3] sm:$0xff]
        %v3857 = vld [vmem:[#allocation3 + $0x8] sm:$0xff]
        %v3858 = vld [vmem:[#allocation3 + $0x10] sm:$0xff]
        %v3859 = vld [vmem:[#allocation3 + $0x18] sm:$0xff]
        %v3860 = vld [vmem:[#allocation3 + $0x20] sm:$0xff]
        %v3861 = vld [vmem:[#allocation3 + $0x28] sm:$0xff]
        %v3862 = vld [vmem:[#allocation3 + $0x30] sm:$0xff]
        %v3863 = vld [vmem:[#allocation3 + $0x38] sm:$0xff]
        %v3864 = vld [vmem:[#allocation3 + $0x40] sm:$0xff]
        %v3865 = vld [vmem:[#allocation3 + $0x48] sm:$0xff]
        %v3866 = vld [vmem:[#allocation3 + $0x50] sm:$0xff]
        %v3867 = vld [vmem:[#allocation3 + $0x58] sm:$0xff]
        %v3868 = vld [vmem:[#allocation3 + $0x60] sm:$0xff]
        %v3869 = vld [vmem:[#allocation3 + $0x68] sm:$0xff]
        %v3870 = vld [vmem:[#allocation3 + $0x70] sm:$0xff]
        %v3871 = vld [vmem:[#allocation3 + $0x78] sm:$0xff]
        %v3872 = vld [vmem:[#allocation3 + $0x80] sm:$0xff]
        %v3873 = vld [vmem:[#allocation3 + $0x88] sm:$0xff]
        %v3874 = vld [vmem:[#allocation3 + $0x90] sm:$0xff]
        %v3875 = vld [vmem:[#allocation3 + $0x98] sm:$0xff]
        %v3876 = vld [vmem:[#allocation3 + $0xa0] sm:$0xff]
        %v3877 = vld [vmem:[#allocation3 + $0xa8] sm:$0xff]
        %v3878 = vld [vmem:[#allocation3 + $0xb0] sm:$0xff]
        %v3879 = vld [vmem:[#allocation3 + $0xb8] sm:$0xff]
        %v3880 = vld [vmem:[#allocation3 + $0xc0] sm:$0xff]
        %v3881 = vld [vmem:[#allocation3 + $0xc8] sm:$0xff]
        %v3882 = vld [vmem:[#allocation3 + $0xd0] sm:$0xff]
        %v3883 = vld [vmem:[#allocation3 + $0xd8] sm:$0xff]
        %v3884 = vld [vmem:[#allocation3 + $0xe0] sm:$0xff]
        %v3885 = vld [vmem:[#allocation3 + $0xe8] sm:$0xff]
        %v3886 = vld [vmem:[#allocation3 + $0xf0] sm:$0xff]
        %v3887 = vld [vmem:[#allocation3 + $0xf8] sm:$0xff]
        %v3888 = vld [vmem:[%s3] sm:$0xff]
        %v3889 = vld [vmem:[%s3 + $0x8] sm:$0xff]
        %v3890 = vld [vmem:[%s3 + $0x10] sm:$0xff]
        %v3891 = vld [vmem:[%s3 + $0x18] sm:$0xff]
        %v3892 = vld [vmem:[%s3 + $0x20] sm:$0xff]
        %v3893 = vld [vmem:[%s3 + $0x28] sm:$0xff]
        %v3894 = vld [vmem:[%s3 + $0x30] sm:$0xff]
        %v3895 = vld [vmem:[%s3 + $0x38] sm:$0xff]
        %v3896 = vld [vmem:[%s3 + $0x40] sm:$0xff]
        %v3897 = vld [vmem:[%s3 + $0x48] sm:$0xff]
        %v3898 = vld [vmem:[%s3 + $0x50] sm:$0xff]
        %v3899 = vld [vmem:[%s3 + $0x58] sm:$0xff]
        %v3900 = vld [vmem:[%s3 + $0x60] sm:$0xff]
        %v3901 = vld [vmem:[%s3 + $0x68] sm:$0xff]
        %v3902 = vld [vmem:[%s3 + $0x70] sm:$0xff]
        %v3903 = vld [vmem:[%s3 + $0x78] sm:$0xff]
        %v3904 = vld [vmem:[%s3 + $0x80] sm:$0xff]
        %v3905 = vld [vmem:[%s3 + $0x88] sm:$0xff]
        %v3906 = vld [vmem:[%s3 + $0x90] sm:$0xff]
        %v3907 = vld [vmem:[%s3 + $0x98] sm:$0xff]
        %v3908 = vld [vmem:[%s3 + $0xa0] sm:$0xff]
        %v3909 = vld [vmem:[%s3 + $0xa8] sm:$0xff]
        %v3910 = vld [vmem:[%s3 + $0xb0] sm:$0xff]
        %v3911 = vld [vmem:[%s3 + $0xb8] sm:$0xff]
        %v3912 = vld [vmem:[%s3 + $0xc0] sm:$0xff]
        %v3913 = vld [vmem:[%s3 + $0xc8] sm:$0xff]
        %v3914 = vld [vmem:[%s3 + $0xd0] sm:$0xff]
        %v3915 = vld [vmem:[%s3 + $0xd8] sm:$0xff]
        %v3916 = vld [vmem:[#allocation3] sm:$0xee]
        %v3917 = vld [vmem:[#allocation3 + $0x100] sm:$0x11]
        %s3918 = scalar_lea.vmem %s3, 224
        %v3919 = vld [vmem:[%s3918] sm:$0xff]
        %v3920 = vld [vmem:[%s3918 + $0x8] sm:$0xff]
        %v3921 = vld [vmem:[%s3918 + $0x10] sm:$0xff]
        %v3922 = vld [vmem:[%s3918 + $0x18] sm:$0xff]
        %v3923 = vld [vmem:[%s3918 + $0x20] sm:$0xff]
        %v3924 = vld [vmem:[%s3918 + $0x28] sm:$0xff]
        %v3925 = vld [vmem:[%s3918 + $0x30] sm:$0xff]
        %v3926 = vld [vmem:[%s3918 + $0x38] sm:$0xff]
        %v3927 = vld [vmem:[%s3918 + $0x40] sm:$0xff]
        %v3928 = vld [vmem:[%s3918 + $0x48] sm:$0xff]
        %v3929 = vld [vmem:[%s3918 + $0x50] sm:$0xff]
        %v3930 = vld [vmem:[%s3918 + $0x58] sm:$0xff]
        %v3931 = vld [vmem:[%s3918 + $0x60] sm:$0xff]
        %v3932 = vld [vmem:[%s3918 + $0x68] sm:$0xff]
        %v3933 = vld [vmem:[%s3918 + $0x70] sm:$0xff]
        %v3934 = vld [vmem:[%s3918 + $0x78] sm:$0xff]
        %v3935 = vld [vmem:[%s3918 + $0x80] sm:$0xff]
        %v3936 = vld [vmem:[%s3918 + $0x88] sm:$0xff]
        %v3937 = vld [vmem:[%s3918 + $0x90] sm:$0xff]
        %v3938 = vld [vmem:[%s3918 + $0x98] sm:$0xff]
        %v3939 = vld [vmem:[%s3918 + $0xa0] sm:$0xff]
        %v3940 = vld [vmem:[%s3918 + $0xa8] sm:$0xff]
        %v3941 = vld [vmem:[%s3918 + $0xb0] sm:$0xff]
        %v3942 = vld [vmem:[%s3918 + $0xb8] sm:$0xff]
        %v3943 = vld [vmem:[%s3918 + $0xc0] sm:$0xff]
        %v3944 = vld [vmem:[%s3918 + $0xc8] sm:$0xff]
        %v3945 = vld [vmem:[%s3918 + $0xd0] sm:$0xff]
        %v3946 = vld [vmem:[%s3918 + $0xd8] sm:$0xff]
        %v3980 = vunpack.c.l.b16 %v3916
        %v3981 = vunpack.c.h.b16 %v3916
        %v3982 = vunpack.c.l.b16 %v3857
        %v3983 = vunpack.c.h.b16 %v3857
        %v3984 = vunpack.c.l.b16 %v3858
        %v3985 = vunpack.c.h.b16 %v3858
        %v3986 = vunpack.c.l.b16 %v3859
        %v3987 = vunpack.c.h.b16 %v3859
        %v3988 = vunpack.c.l.b16 %v3860
        %v3989 = vunpack.c.h.b16 %v3860
        %v3990 = vunpack.c.l.b16 %v3861
        %v3991 = vunpack.c.h.b16 %v3861
        %v3992 = vunpack.c.l.b16 %v3862
        %v3993 = vunpack.c.h.b16 %v3862
        %v3994 = vunpack.c.l.b16 %v3863
        %v3995 = vunpack.c.h.b16 %v3863
        %v3996 = vunpack.c.l.b16 %v3864
        %v3997 = vunpack.c.h.b16 %v3864
        %v3998 = vunpack.c.l.b16 %v3865
        %v3999 = vunpack.c.h.b16 %v3865
        %v4000 = vunpack.c.l.b16 %v3866
        %v4001 = vunpack.c.h.b16 %v3866
        %v4002 = vunpack.c.l.b16 %v3867
        %v4003 = vunpack.c.h.b16 %v3867
        %v4004 = vunpack.c.l.b16 %v3868
        %v4005 = vunpack.c.h.b16 %v3868
        %v4006 = vunpack.c.l.b16 %v3869
        %v4007 = vunpack.c.h.b16 %v3869
        %v4008 = vunpack.c.l.b16 %v3870
        %v4009 = vunpack.c.h.b16 %v3870
        %v4010 = vunpack.c.l.b16 %v3871
        %v4011 = vunpack.c.h.b16 %v3871
        %v4012 = vunpack.c.l.b16 %v3872
        %v4013 = vunpack.c.h.b16 %v3872
        %v4014 = vunpack.c.l.b16 %v3873
        %v4015 = vunpack.c.h.b16 %v3873
        %v4016 = vunpack.c.l.b16 %v3874
        %v4017 = vunpack.c.h.b16 %v3874
        %v4018 = vunpack.c.l.b16 %v3875
        %v4019 = vunpack.c.h.b16 %v3875
        %v4020 = vunpack.c.l.b16 %v3876
        %v4021 = vunpack.c.h.b16 %v3876
        %v4022 = vunpack.c.l.b16 %v3877
        %v4023 = vunpack.c.h.b16 %v3877
        %v4024 = vunpack.c.l.b16 %v3878
        %v4025 = vunpack.c.h.b16 %v3878
        %v4026 = vunpack.c.l.b16 %v3879
        %v4027 = vunpack.c.h.b16 %v3879
        %v4028 = vunpack.c.l.b16 %v3880
        %v4029 = vunpack.c.h.b16 %v3880
        %v4030 = vunpack.c.l.b16 %v3881
        %v4031 = vunpack.c.h.b16 %v3881
        %v4032 = vunpack.c.l.b16 %v3882
        %v4033 = vunpack.c.h.b16 %v3882
        %v4034 = vunpack.c.l.b16 %v3883
        %v4035 = vunpack.c.h.b16 %v3883
        %v4036 = vunpack.c.l.b16 %v3884
        %v4037 = vunpack.c.h.b16 %v3884
        %v4038 = vunpack.c.l.b16 %v3885
        %v4039 = vunpack.c.h.b16 %v3885
        %v4040 = vunpack.c.l.b16 %v3886
        %v4041 = vunpack.c.h.b16 %v3886
        %v4042 = vunpack.c.l.b16 %v3887
        %v4043 = vunpack.c.h.b16 %v3887
        %v4044 = vunpack.c.l.b16 %v3917
        %v4045 = vunpack.c.h.b16 %v3917
        %v4046 = vpack.c.b16 %v3982, %v3980
        %v4047 = vpack.c.b16 %v3983, %v3981
        %v4048 = vpack.c.b16 %v3986, %v3984
        %v4049 = vpack.c.b16 %v3987, %v3985
        %v4050 = vpack.c.b16 %v3990, %v3988
        %v4051 = vpack.c.b16 %v3991, %v3989
        %v4052 = vpack.c.b16 %v3994, %v3992
        %v4053 = vpack.c.b16 %v3995, %v3993
        %v4054 = vpack.c.b16 %v3998, %v3996
        %v4055 = vpack.c.b16 %v3999, %v3997
        %v4056 = vpack.c.b16 %v4002, %v4000
        %v4057 = vpack.c.b16 %v4003, %v4001
        %v4058 = vpack.c.b16 %v4006, %v4004
        %v4059 = vpack.c.b16 %v4007, %v4005
        %v4060 = vpack.c.b16 %v4010, %v4008
        %v4061 = vpack.c.b16 %v4011, %v4009
        %v4062 = vpack.c.b16 %v4014, %v4012
        %v4063 = vpack.c.b16 %v4015, %v4013
        %v4064 = vpack.c.b16 %v4018, %v4016
        %v4065 = vpack.c.b16 %v4019, %v4017
        %v4066 = vpack.c.b16 %v4022, %v4020
        %v4067 = vpack.c.b16 %v4023, %v4021
        %v4068 = vpack.c.b16 %v4026, %v4024
        %v4069 = vpack.c.b16 %v4027, %v4025
        %v4070 = vpack.c.b16 %v4030, %v4028
        %v4071 = vpack.c.b16 %v4031, %v4029
        %v4072 = vpack.c.b16 %v4034, %v4032
        %v4073 = vpack.c.b16 %v4035, %v4033
        %v4074 = vpack.c.b16 %v4038, %v4036
        %v4075 = vpack.c.b16 %v4039, %v4037
        %v4076 = vpack.c.b16 %v4042, %v4040
        %v4077 = vpack.c.b16 %v4043, %v4041
        %v4078 = vpack.c.b16 %v4044, %v4044
        %v4079 = vpack.c.b16 %v4045, %v4045
        %v4080 = vrot.slane %v4046, 1
        %v4081 = vrot.slane %v4048, 1
        %v4082 = vsel %vm1406, %v4080, %v4081
        %v4083 = vrot.slane %v4047, 1
        %v4084 = vrot.slane %v4049, 1
        %v4085 = vsel %vm1406, %v4083, %v4084
        %v4086 = vrot.slane %v4050, 1
        %v4087 = vsel %vm1406, %v4081, %v4086
        %v4088 = vrot.slane %v4051, 1
        %v4089 = vsel %vm1406, %v4084, %v4088
        %v4090 = vrot.slane %v4052, 1
        %v4091 = vsel %vm1406, %v4086, %v4090
        %v4092 = vrot.slane %v4053, 1
        %v4093 = vsel %vm1406, %v4088, %v4092
        %v4094 = vrot.slane %v4054, 1
        %v4095 = vsel %vm1406, %v4090, %v4094
        %v4096 = vrot.slane %v4055, 1
        %v4097 = vsel %vm1406, %v4092, %v4096
        %v4098 = vrot.slane %v4056, 1
        %v4099 = vsel %vm1406, %v4094, %v4098
        %v4100 = vrot.slane %v4057, 1
        %v4101 = vsel %vm1406, %v4096, %v4100
        %v4102 = vrot.slane %v4058, 1
        %v4103 = vsel %vm1406, %v4098, %v4102
        %v4104 = vrot.slane %v4059, 1
        %v4105 = vsel %vm1406, %v4100, %v4104
        %v4106 = vrot.slane %v4060, 1
        %v4107 = vsel %vm1406, %v4102, %v4106
        %v4108 = vrot.slane %v4061, 1
        %v4109 = vsel %vm1406, %v4104, %v4108
        %v4110 = vrot.slane %v4062, 1
        %v4111 = vsel %vm1406, %v4106, %v4110
        %v4112 = vrot.slane %v4063, 1
        %v4113 = vsel %vm1406, %v4108, %v4112
        %v4114 = vrot.slane %v4064, 1
        %v4115 = vsel %vm1406, %v4110, %v4114
        %v4116 = vrot.slane %v4065, 1
        %v4117 = vsel %vm1406, %v4112, %v4116
        %v4118 = vrot.slane %v4066, 1
        %v4119 = vsel %vm1406, %v4114, %v4118
        %v4120 = vrot.slane %v4067, 1
        %v4121 = vsel %vm1406, %v4116, %v4120
        %v4122 = vrot.slane %v4068, 1
        %v4123 = vsel %vm1406, %v4118, %v4122
        %v4124 = vrot.slane %v4069, 1
        %v4125 = vsel %vm1406, %v4120, %v4124
        %v4126 = vrot.slane %v4070, 1
        %v4127 = vsel %vm1406, %v4122, %v4126
        %v4128 = vrot.slane %v4071, 1
        %v4129 = vsel %vm1406, %v4124, %v4128
        %v4130 = vrot.slane %v4072, 1
        %v4131 = vsel %vm1406, %v4126, %v4130
        %v4132 = vrot.slane %v4073, 1
        %v4133 = vsel %vm1406, %v4128, %v4132
        %v4134 = vrot.slane %v4074, 1
        %v4135 = vsel %vm1406, %v4130, %v4134
        %v4136 = vrot.slane %v4075, 1
        %v4137 = vsel %vm1406, %v4132, %v4136
        %v4138 = vrot.slane %v4076, 1
        %v4139 = vsel %vm1406, %v4134, %v4138
        %v4140 = vrot.slane %v4077, 1
        %v4141 = vsel %vm1406, %v4136, %v4140
        %v4142 = vrot.slane %v4078, 1
        %v4143 = vsel %vm1406, %v4138, %v4142
        %v4144 = vrot.slane %v4079, 1
        %v4145 = vsel %vm1406, %v4140, %v4144
        %v4190 = vunpack.c.l.b16 %v3919
        %v4191 = vunpack.c.h.b16 %v3919
        %v4192 = vunpack.c.l.b16 %v3920
        %v4193 = vunpack.c.h.b16 %v3920
        %v4194 = vunpack.c.l.b16 %v3921
        %v4195 = vunpack.c.h.b16 %v3921
        %v4196 = vunpack.c.l.b16 %v3922
        %v4197 = vunpack.c.h.b16 %v3922
        %v4198 = vunpack.c.l.b16 %v3923
        %v4199 = vunpack.c.h.b16 %v3923
        %v4200 = vunpack.c.l.b16 %v3924
        %v4201 = vunpack.c.h.b16 %v3924
        %v4202 = vunpack.c.l.b16 %v3925
        %v4203 = vunpack.c.h.b16 %v3925
        %v4204 = vunpack.c.l.b16 %v3926
        %v4205 = vunpack.c.h.b16 %v3926
        %v4206 = vunpack.c.l.b16 %v3927
        %v4207 = vunpack.c.h.b16 %v3927
        %v4208 = vunpack.c.l.b16 %v3928
        %v4209 = vunpack.c.h.b16 %v3928
        %v4210 = vunpack.c.l.b16 %v3929
        %v4211 = vunpack.c.h.b16 %v3929
        %v4212 = vunpack.c.l.b16 %v3930
        %v4213 = vunpack.c.h.b16 %v3930
        %v4214 = vunpack.c.l.b16 %v3931
        %v4215 = vunpack.c.h.b16 %v3931
        %v4216 = vunpack.c.l.b16 %v3932
        %v4217 = vunpack.c.h.b16 %v3932
        %v4218 = vunpack.c.l.b16 %v3933
        %v4219 = vunpack.c.h.b16 %v3933
        %v4220 = vunpack.c.l.b16 %v3934
        %v4221 = vunpack.c.h.b16 %v3934
        %v4222 = vunpack.c.l.b16 %v3935
        %v4223 = vunpack.c.h.b16 %v3935
        %v4224 = vunpack.c.l.b16 %v3936
        %v4225 = vunpack.c.h.b16 %v3936
        %v4226 = vunpack.c.l.b16 %v3937
        %v4227 = vunpack.c.h.b16 %v3937
        %v4228 = vunpack.c.l.b16 %v3938
        %v4229 = vunpack.c.h.b16 %v3938
        %v4230 = vunpack.c.l.b16 %v3939
        %v4231 = vunpack.c.h.b16 %v3939
        %v4232 = vunpack.c.l.b16 %v3940
        %v4233 = vunpack.c.h.b16 %v3940
        %v4234 = vunpack.c.l.b16 %v3941
        %v4235 = vunpack.c.h.b16 %v3941
        %v4236 = vunpack.c.l.b16 %v3942
        %v4237 = vunpack.c.h.b16 %v3942
        %v4238 = vunpack.c.l.b16 %v3943
        %v4239 = vunpack.c.h.b16 %v3943
        %v4240 = vunpack.c.l.b16 %v3944
        %v4241 = vunpack.c.h.b16 %v3944
        %v4242 = vunpack.c.l.b16 %v3945
        %v4243 = vunpack.c.h.b16 %v3945
        %v4244 = vunpack.c.l.b16 %v3946
        %v4245 = vunpack.c.h.b16 %v3946
        %v4246 = vpack.c.b16 %v4192, %v4190
        %v4247 = vpack.c.b16 %v4193, %v4191
        %v4248 = vpack.c.b16 %v4196, %v4194
        %v4249 = vpack.c.b16 %v4197, %v4195
        %v4250 = vpack.c.b16 %v4200, %v4198
        %v4251 = vpack.c.b16 %v4201, %v4199
        %v4252 = vpack.c.b16 %v4204, %v4202
        %v4253 = vpack.c.b16 %v4205, %v4203
        %v4254 = vpack.c.b16 %v4208, %v4206
        %v4255 = vpack.c.b16 %v4209, %v4207
        %v4256 = vpack.c.b16 %v4212, %v4210
        %v4257 = vpack.c.b16 %v4213, %v4211
        %v4258 = vpack.c.b16 %v4216, %v4214
        %v4259 = vpack.c.b16 %v4217, %v4215
        %v4260 = vpack.c.b16 %v4220, %v4218
        %v4261 = vpack.c.b16 %v4221, %v4219
        %v4262 = vpack.c.b16 %v4224, %v4222
        %v4263 = vpack.c.b16 %v4225, %v4223
        %v4264 = vpack.c.b16 %v4228, %v4226
        %v4265 = vpack.c.b16 %v4229, %v4227
        %v4266 = vpack.c.b16 %v4232, %v4230
        %v4267 = vpack.c.b16 %v4233, %v4231
        %v4268 = vpack.c.b16 %v4236, %v4234
        %v4269 = vpack.c.b16 %v4237, %v4235
        %v4270 = vpack.c.b16 %v4240, %v4238
        %v4271 = vpack.c.b16 %v4241, %v4239
        %v4272 = vpack.c.b16 %v4244, %v4242
        %v4273 = vpack.c.b16 %v4245, %v4243
        %vm4302 = vcmask 785408
        %v4304 = vsel %vm4302, %v4085, 0
        %v4307 = vsel %vm4302, %v4089, 0
        %v4310 = vsel %vm4302, %v4093, 0
        %v4313 = vsel %vm4302, %v4097, 0
        %v4316 = vsel %vm4302, %v4101, 0
        %v4319 = vsel %vm4302, %v4105, 0
        %v4322 = vsel %vm4302, %v4109, 0
        %v4325 = vsel %vm4302, %v4113, 0
        %v4328 = vsel %vm4302, %v4117, 0
        %v4331 = vsel %vm4302, %v4121, 0
        %v4334 = vsel %vm4302, %v4125, 0
        %v4337 = vsel %vm4302, %v4129, 0
        %v4340 = vsel %vm4302, %v4133, 0
        %v4343 = vsel %vm4302, %v4137, 0
        %v4346 = vsel %vm4302, %v4141, 0
        %v4349 = vsel %vm4302, %v4145, 0
        %4351 = vmatprep.subr.bf16.mxu0 %v4247
        %4352 = vmatpush1.bf16.msra.mxu0 %v4246
        %4353 = vmatprep.subr.bf16.mxu0 %v4249
        %4354 = vmatpush1.bf16.msra.mxu0 %v4248
        %4355 = vmatprep.subr.bf16.mxu0 %v4251
        %4356 = vmatpush1.bf16.msra.mxu0 %v4250
        %4357 = vmatprep.subr.bf16.mxu0 %v4253
        %4358 = vmatpush1.bf16.msra.mxu0 %v4252
        %4359 = vmatprep.subr.bf16.mxu0 %v4255
        %4360 = vmatpush1.bf16.msra.mxu0 %v4254
        %4361 = vmatprep.subr.bf16.mxu0 %v4257
        %4362 = vmatpush1.bf16.msra.mxu0 %v4256
        %4363 = vmatprep.subr.bf16.mxu0 %v4259
        %4364 = vmatpush1.bf16.msra.mxu0 %v4258
        %4365 = vmatprep.subr.bf16.mxu0 %v4261
        %4366 = vmatpush1.bf16.msra.mxu0 %v4260
        %4367 = vmatprep.subr.bf16.mxu0 %v4263
        %4368 = vmatpush1.bf16.msra.mxu0 %v4262
        %4369 = vmatprep.subr.bf16.mxu0 %v4265
        %4370 = vmatpush1.bf16.msra.mxu0 %v4264
        %4371 = vmatprep.subr.bf16.mxu0 %v4267
        %4372 = vmatpush1.bf16.msra.mxu0 %v4266
        %4373 = vmatprep.subr.bf16.mxu0 %v4269
        %4374 = vmatpush1.bf16.msra.mxu0 %v4268
        %4375 = vmatprep.subr.bf16.mxu0 %v4271
        %4376 = vmatpush1.bf16.msra.mxu0 %v4270
        %4377 = vmatprep.subr.bf16.mxu0 %v4273
        %4378 = vmatpush1.bf16.msra.mxu0 %v4272
        %4379 = vmatprep.subr.bf16.mxu0 0
        %4380 = vmatpush1.bf16.msra.mxu0 0
        %4381 = vmatprep.subr.bf16.mxu0 0
        %4382 = vmatpush1.bf16.msra.mxu0 0
        %4383 = vmatprep.mubr.bf16.mxu0 %v4304
        %4384 = vmatmul.mubr.bf16.gmra.mrb[0].mxu0 %v4082
        %v4385 = vpop.f32.mrb[0].mxu0
        %v4386 = vadd.f32 0.0, %v4385
        %v4387 = vpop.f32.mrb[0].mxu0
        %v4388 = vadd.f32 0.0, %v4387
        %v4389 = vpop.f32.mrb[0].mxu0
        %v4390 = vadd.f32 0.0, %v4389
        %v4391 = vpop.f32.mrb[0].mxu0
        %v4392 = vadd.f32 0.0, %v4391
        %4393 = vmatprep.mubr.bf16.mxu0 %v4307
        %4394 = vmatmul.mubr.bf16.gmra.mrb[0].mxu0 %v4087
        %v4395 = vpop.f32.mrb[0].mxu0
        %v4396 = vadd.f32 0.0, %v4395
        %v4397 = vpop.f32.mrb[0].mxu0
        %v4398 = vadd.f32 0.0, %v4397
        %v4399 = vpop.f32.mrb[0].mxu0
        %v4400 = vadd.f32 0.0, %v4399
        %v4401 = vpop.f32.mrb[0].mxu0
        %v4402 = vadd.f32 0.0, %v4401
        %4403 = vmatprep.mubr.bf16.mxu0 %v4310
        %4404 = vmatmul.mubr.bf16.gmra.mrb[0].mxu0 %v4091
        %v4405 = vpop.f32.mrb[0].mxu0
        %v4406 = vadd.f32 0.0, %v4405
        %v4407 = vpop.f32.mrb[0].mxu0
        %v4408 = vadd.f32 0.0, %v4407
        %v4409 = vpop.f32.mrb[0].mxu0
        %v4410 = vadd.f32 0.0, %v4409
        %v4411 = vpop.f32.mrb[0].mxu0
        %v4412 = vadd.f32 0.0, %v4411
        %4413 = vmatprep.mubr.bf16.mxu0 %v4313
        %4414 = vmatmul.mubr.bf16.gmra.mrb[0].mxu0 %v4095
        %v4415 = vpop.f32.mrb[0].mxu0
        %v4416 = vadd.f32 0.0, %v4415
        %v4417 = vpop.f32.mrb[0].mxu0
        %v4418 = vadd.f32 0.0, %v4417
        %v4419 = vpop.f32.mrb[0].mxu0
        %v4420 = vadd.f32 0.0, %v4419
        %v4421 = vpop.f32.mrb[0].mxu0
        %v4422 = vadd.f32 0.0, %v4421
        %4423 = vmatprep.mubr.bf16.mxu0 %v4316
        %4424 = vmatmul.mubr.bf16.gmra.mrb[0].mxu0 %v4099
        %v4425 = vpop.f32.mrb[0].mxu0
        %v4426 = vadd.f32 0.0, %v4425
        %v4427 = vpop.f32.mrb[0].mxu0
        %v4428 = vadd.f32 0.0, %v4427
        %v4429 = vpop.f32.mrb[0].mxu0
        %v4430 = vadd.f32 0.0, %v4429
        %v4431 = vpop.f32.mrb[0].mxu0
        %v4432 = vadd.f32 0.0, %v4431
        %4433 = vmatprep.mubr.bf16.mxu0 %v4319
        %4434 = vmatmul.mubr.bf16.gmra.mrb[0].mxu0 %v4103
        %v4435 = vpop.f32.mrb[0].mxu0
        %v4436 = vadd.f32 0.0, %v4435
        %v4437 = vpop.f32.mrb[0].mxu0
        %v4438 = vadd.f32 0.0, %v4437
        %v4439 = vpop.f32.mrb[0].mxu0
        %v4440 = vadd.f32 0.0, %v4439
        %v4441 = vpop.f32.mrb[0].mxu0
        %v4442 = vadd.f32 0.0, %v4441
        %4443 = vmatprep.mubr.bf16.mxu0 %v4322
        %4444 = vmatmul.mubr.bf16.gmra.mrb[0].mxu0 %v4107
        %v4445 = vpop.f32.mrb[0].mxu0
        %v4446 = vadd.f32 0.0, %v4445
        %v4447 = vpop.f32.mrb[0].mxu0
        %v4448 = vadd.f32 0.0, %v4447
        %v4449 = vpop.f32.mrb[0].mxu0
        %v4450 = vadd.f32 0.0, %v4449
        %v4451 = vpop.f32.mrb[0].mxu0
        %v4452 = vadd.f32 0.0, %v4451
        %4453 = vmatprep.mubr.bf16.mxu0 %v4325
        %4454 = vmatmul.mubr.bf16.gmra.mrb[0].mxu0 %v4111
        %v4455 = vpop.f32.mrb[0].mxu0
        %v4456 = vadd.f32 0.0, %v4455
        %v4457 = vpop.f32.mrb[0].mxu0
        %v4458 = vadd.f32 0.0, %v4457
        %v4459 = vpop.f32.mrb[0].mxu0
        %v4460 = vadd.f32 0.0, %v4459
        %v4461 = vpop.f32.mrb[0].mxu0
        %v4462 = vadd.f32 0.0, %v4461
        %4463 = vmatprep.mubr.bf16.mxu0 %v4328
        %4464 = vmatmul.mubr.bf16.gmra.mrb[0].mxu0 %v4115
        %v4465 = vpop.f32.mrb[0].mxu0
        %v4466 = vadd.f32 0.0, %v4465
        %v4467 = vpop.f32.mrb[0].mxu0
        %v4468 = vadd.f32 0.0, %v4467
        %v4469 = vpop.f32.mrb[0].mxu0
        %v4470 = vadd.f32 0.0, %v4469
        %v4471 = vpop.f32.mrb[0].mxu0
        %v4472 = vadd.f32 0.0, %v4471
        %4473 = vmatprep.mubr.bf16.mxu0 %v4331
        %4474 = vmatmul.mubr.bf16.gmra.mrb[0].mxu0 %v4119
        %v4475 = vpop.f32.mrb[0].mxu0
        %v4476 = vadd.f32 0.0, %v4475
        %v4477 = vpop.f32.mrb[0].mxu0
        %v4478 = vadd.f32 0.0, %v4477
        %v4479 = vpop.f32.mrb[0].mxu0
        %v4480 = vadd.f32 0.0, %v4479
        %v4481 = vpop.f32.mrb[0].mxu0
        %v4482 = vadd.f32 0.0, %v4481
        %4483 = vmatprep.mubr.bf16.mxu0 %v4334
        %4484 = vmatmul.mubr.bf16.gmra.mrb[0].mxu0 %v4123
        %v4485 = vpop.f32.mrb[0].mxu0
        %v4486 = vadd.f32 0.0, %v4485
        %v4487 = vpop.f32.mrb[0].mxu0
        %v4488 = vadd.f32 0.0, %v4487
        %v4489 = vpop.f32.mrb[0].mxu0
        %v4490 = vadd.f32 0.0, %v4489
        %v4491 = vpop.f32.mrb[0].mxu0
        %v4492 = vadd.f32 0.0, %v4491
        %4493 = vmatprep.mubr.bf16.mxu0 %v4337
        %4494 = vmatmul.mubr.bf16.gmra.mrb[0].mxu0 %v4127
        %v4495 = vpop.f32.mrb[0].mxu0
        %v4496 = vadd.f32 0.0, %v4495
        %v4497 = vpop.f32.mrb[0].mxu0
        %v4498 = vadd.f32 0.0, %v4497
        %v4499 = vpop.f32.mrb[0].mxu0
        %v4500 = vadd.f32 0.0, %v4499
        %v4501 = vpop.f32.mrb[0].mxu0
        %v4502 = vadd.f32 0.0, %v4501
        %4503 = vmatprep.mubr.bf16.mxu0 %v4340
        %4504 = vmatmul.mubr.bf16.gmra.mrb[0].mxu0 %v4131
        %v4505 = vpop.f32.mrb[0].mxu0
        %v4506 = vadd.f32 0.0, %v4505
        %v4507 = vpop.f32.mrb[0].mxu0
        %v4508 = vadd.f32 0.0, %v4507
        %v4509 = vpop.f32.mrb[0].mxu0
        %v4510 = vadd.f32 0.0, %v4509
        %v4511 = vpop.f32.mrb[0].mxu0
        %v4512 = vadd.f32 0.0, %v4511
        %4513 = vmatprep.mubr.bf16.mxu0 %v4343
        %4514 = vmatmul.mubr.bf16.gmra.mrb[0].mxu0 %v4135
        %v4515 = vpop.f32.mrb[0].mxu0
        %v4516 = vadd.f32 0.0, %v4515
        %v4517 = vpop.f32.mrb[0].mxu0
        %v4518 = vadd.f32 0.0, %v4517
        %v4519 = vpop.f32.mrb[0].mxu0
        %v4520 = vadd.f32 0.0, %v4519
        %v4521 = vpop.f32.mrb[0].mxu0
        %v4522 = vadd.f32 0.0, %v4521
        %4523 = vmatprep.mubr.bf16.mxu0 %v4346
        %4524 = vmatmul.mubr.bf16.gmra.mrb[0].mxu0 %v4139
        %v4525 = vpop.f32.mrb[0].mxu0
        %v4526 = vadd.f32 0.0, %v4525
        %v4527 = vpop.f32.mrb[0].mxu0
        %v4528 = vadd.f32 0.0, %v4527
        %v4529 = vpop.f32.mrb[0].mxu0
        %v4530 = vadd.f32 0.0, %v4529
        %v4531 = vpop.f32.mrb[0].mxu0
        %v4532 = vadd.f32 0.0, %v4531
        %4533 = vmatprep.mubr.bf16.mxu0 %v4349
        %4534 = vmatmul.mubr.bf16.gmra.mrb[0].mxu0 %v4143
        %v4535 = vpop.f32.mrb[0].mxu0
        %v4536 = vadd.f32 0.0, %v4535
        %v4537 = vpop.f32.mrb[0].mxu0
        %v4538 = vadd.f32 0.0, %v4537
        %v4539 = vpop.f32.mrb[0].mxu0
        %v4540 = vadd.f32 0.0, %v4539
        %v4541 = vpop.f32.mrb[0].mxu0
        %v4542 = vadd.f32 0.0, %v4541
        %4543 = vdwg.mxu0
        %v4545 = vunpack.c.l.b16 %v3856
        %v4546 = vunpack.c.h.b16 %v3856
        %v4547 = vpack.c.b16 %v3982, %v4545
        %v4548 = vpack.c.b16 %v3983, %v4546
        %v4593 = vunpack.c.l.b16 %v3888
        %v4594 = vunpack.c.h.b16 %v3888
        %v4595 = vunpack.c.l.b16 %v3889
        %v4596 = vunpack.c.h.b16 %v3889
        %v4597 = vunpack.c.l.b16 %v3890
        %v4598 = vunpack.c.h.b16 %v3890
        %v4599 = vunpack.c.l.b16 %v3891
        %v4600 = vunpack.c.h.b16 %v3891
        %v4601 = vunpack.c.l.b16 %v3892
        %v4602 = vunpack.c.h.b16 %v3892
        %v4603 = vunpack.c.l.b16 %v3893
        %v4604 = vunpack.c.h.b16 %v3893
        %v4605 = vunpack.c.l.b16 %v3894
        %v4606 = vunpack.c.h.b16 %v3894
        %v4607 = vunpack.c.l.b16 %v3895
        %v4608 = vunpack.c.h.b16 %v3895
        %v4609 = vunpack.c.l.b16 %v3896
        %v4610 = vunpack.c.h.b16 %v3896
        %v4611 = vunpack.c.l.b16 %v3897
        %v4612 = vunpack.c.h.b16 %v3897
        %v4613 = vunpack.c.l.b16 %v3898
        %v4614 = vunpack.c.h.b16 %v3898
        %v4615 = vunpack.c.l.b16 %v3899
        %v4616 = vunpack.c.h.b16 %v3899
        %v4617 = vunpack.c.l.b16 %v3900
        %v4618 = vunpack.c.h.b16 %v3900
        %v4619 = vunpack.c.l.b16 %v3901
        %v4620 = vunpack.c.h.b16 %v3901
        %v4621 = vunpack.c.l.b16 %v3902
        %v4622 = vunpack.c.h.b16 %v3902
        %v4623 = vunpack.c.l.b16 %v3903
        %v4624 = vunpack.c.h.b16 %v3903
        %v4625 = vunpack.c.l.b16 %v3904
        %v4626 = vunpack.c.h.b16 %v3904
        %v4627 = vunpack.c.l.b16 %v3905
        %v4628 = vunpack.c.h.b16 %v3905
        %v4629 = vunpack.c.l.b16 %v3906
        %v4630 = vunpack.c.h.b16 %v3906
        %v4631 = vunpack.c.l.b16 %v3907
        %v4632 = vunpack.c.h.b16 %v3907
        %v4633 = vunpack.c.l.b16 %v3908
        %v4634 = vunpack.c.h.b16 %v3908
        %v4635 = vunpack.c.l.b16 %v3909
        %v4636 = vunpack.c.h.b16 %v3909
        %v4637 = vunpack.c.l.b16 %v3910
        %v4638 = vunpack.c.h.b16 %v3910
        %v4639 = vunpack.c.l.b16 %v3911
        %v4640 = vunpack.c.h.b16 %v3911
        %v4641 = vunpack.c.l.b16 %v3912
        %v4642 = vunpack.c.h.b16 %v3912
        %v4643 = vunpack.c.l.b16 %v3913
        %v4644 = vunpack.c.h.b16 %v3913
        %v4645 = vunpack.c.l.b16 %v3914
        %v4646 = vunpack.c.h.b16 %v3914
        %v4647 = vunpack.c.l.b16 %v3915
        %v4648 = vunpack.c.h.b16 %v3915
        %v4649 = vpack.c.b16 %v4595, %v4593
        %v4650 = vpack.c.b16 %v4596, %v4594
        %v4651 = vpack.c.b16 %v4599, %v4597
        %v4652 = vpack.c.b16 %v4600, %v4598
        %v4653 = vpack.c.b16 %v4603, %v4601
        %v4654 = vpack.c.b16 %v4604, %v4602
        %v4655 = vpack.c.b16 %v4607, %v4605
        %v4656 = vpack.c.b16 %v4608, %v4606
        %v4657 = vpack.c.b16 %v4611, %v4609
        %v4658 = vpack.c.b16 %v4612, %v4610
        %v4659 = vpack.c.b16 %v4615, %v4613
        %v4660 = vpack.c.b16 %v4616, %v4614
        %v4661 = vpack.c.b16 %v4619, %v4617
        %v4662 = vpack.c.b16 %v4620, %v4618
        %v4663 = vpack.c.b16 %v4623, %v4621
        %v4664 = vpack.c.b16 %v4624, %v4622
        %v4665 = vpack.c.b16 %v4627, %v4625
        %v4666 = vpack.c.b16 %v4628, %v4626
        %v4667 = vpack.c.b16 %v4631, %v4629
        %v4668 = vpack.c.b16 %v4632, %v4630
        %v4669 = vpack.c.b16 %v4635, %v4633
        %v4670 = vpack.c.b16 %v4636, %v4634
        %v4671 = vpack.c.b16 %v4639, %v4637
        %v4672 = vpack.c.b16 %v4640, %v4638
        %v4673 = vpack.c.b16 %v4643, %v4641
        %v4674 = vpack.c.b16 %v4644, %v4642
        %v4675 = vpack.c.b16 %v4647, %v4645
        %v4676 = vpack.c.b16 %v4648, %v4646
        %v4706 = vsel %vm4302, %v4548, 0
        %v4709 = vsel %vm4302, %v4049, 0
        %v4712 = vsel %vm4302, %v4051, 0
        %v4715 = vsel %vm4302, %v4053, 0
        %v4718 = vsel %vm4302, %v4055, 0
        %v4721 = vsel %vm4302, %v4057, 0
        %v4724 = vsel %vm4302, %v4059, 0
        %v4727 = vsel %vm4302, %v4061, 0
        %v4730 = vsel %vm4302, %v4063, 0
        %v4733 = vsel %vm4302, %v4065, 0
        %v4736 = vsel %vm4302, %v4067, 0
        %v4739 = vsel %vm4302, %v4069, 0
        %v4742 = vsel %vm4302, %v4071, 0
        %v4745 = vsel %vm4302, %v4073, 0
        %v4748 = vsel %vm4302, %v4075, 0
        %v4751 = vsel %vm4302, %v4077, 0
        %4753 = vmatprep.subr.bf16.mxu0 %v4650
        %4754 = vmatpush1.bf16.msra.mxu0 %v4649
        %4755 = vmatprep.subr.bf16.mxu0 %v4652
        %4756 = vmatpush1.bf16.msra.mxu0 %v4651
        %4757 = vmatprep.subr.bf16.mxu0 %v4654
        %4758 = vmatpush1.bf16.msra.mxu0 %v4653
        %4759 = vmatprep.subr.bf16.mxu0 %v4656
        %4760 = vmatpush1.bf16.msra.mxu0 %v4655
        %4761 = vmatprep.subr.bf16.mxu0 %v4658
        %4762 = vmatpush1.bf16.msra.mxu0 %v4657
        %4763 = vmatprep.subr.bf16.mxu0 %v4660
        %4764 = vmatpush1.bf16.msra.mxu0 %v4659
        %4765 = vmatprep.subr.bf16.mxu0 %v4662
        %4766 = vmatpush1.bf16.msra.mxu0 %v4661
        %4767 = vmatprep.subr.bf16.mxu0 %v4664
        %4768 = vmatpush1.bf16.msra.mxu0 %v4663
        %4769 = vmatprep.subr.bf16.mxu0 %v4666
        %4770 = vmatpush1.bf16.msra.mxu0 %v4665
        %4771 = vmatprep.subr.bf16.mxu0 %v4668
        %4772 = vmatpush1.bf16.msra.mxu0 %v4667
        %4773 = vmatprep.subr.bf16.mxu0 %v4670
        %4774 = vmatpush1.bf16.msra.mxu0 %v4669
        %4775 = vmatprep.subr.bf16.mxu0 %v4672
        %4776 = vmatpush1.bf16.msra.mxu0 %v4671
        %4777 = vmatprep.subr.bf16.mxu0 %v4674
        %4778 = vmatpush1.bf16.msra.mxu0 %v4673
        %4779 = vmatprep.subr.bf16.mxu0 %v4676
        %4780 = vmatpush1.bf16.msra.mxu0 %v4675
        %4781 = vmatprep.subr.bf16.mxu0 0
        %4782 = vmatpush1.bf16.msra.mxu0 0
        %4783 = vmatprep.subr.bf16.mxu0 0
        %4784 = vmatpush1.bf16.msra.mxu0 0
        %4785 = vmatprep.mubr.bf16.mxu0 %v4706
        %4786 = vmatmul.mubr.bf16.gmra.mrb[0].mxu0 %v4547
        %v4787 = vpop.f32.mrb[0].mxu0
        %v4788 = vadd.f32 %v4386, %v4787
        %v4789 = vpop.f32.mrb[0].mxu0
        %v4790 = vadd.f32 %v4388, %v4789
        %v4791 = vpop.f32.mrb[0].mxu0
        %v4792 = vadd.f32 %v4390, %v4791
        %v4793 = vpop.f32.mrb[0].mxu0
        %v4794 = vadd.f32 %v4392, %v4793
        %4795 = vmatprep.mubr.bf16.mxu0 %v4709
        %4796 = vmatmul.mubr.bf16.gmra.mrb[0].mxu0 %v4048
        %v4797 = vpop.f32.mrb[0].mxu0
        %v4798 = vadd.f32 %v4396, %v4797
        %v4799 = vpop.f32.mrb[0].mxu0
        %v4800 = vadd.f32 %v4398, %v4799
        %v4801 = vpop.f32.mrb[0].mxu0
        %v4802 = vadd.f32 %v4400, %v4801
        %v4803 = vpop.f32.mrb[0].mxu0
        %v4804 = vadd.f32 %v4402, %v4803
        %4805 = vmatprep.mubr.bf16.mxu0 %v4712
        %4806 = vmatmul.mubr.bf16.gmra.mrb[0].mxu0 %v4050
        %v4807 = vpop.f32.mrb[0].mxu0
        %v4808 = vadd.f32 %v4406, %v4807
        %v4809 = vpop.f32.mrb[0].mxu0
        %v4810 = vadd.f32 %v4408, %v4809
        %v4811 = vpop.f32.mrb[0].mxu0
        %v4812 = vadd.f32 %v4410, %v4811
        %v4813 = vpop.f32.mrb[0].mxu0
        %v4814 = vadd.f32 %v4412, %v4813
        %4815 = vmatprep.mubr.bf16.mxu0 %v4715
        %4816 = vmatmul.mubr.bf16.gmra.mrb[0].mxu0 %v4052
        %v4817 = vpop.f32.mrb[0].mxu0
        %v4818 = vadd.f32 %v4416, %v4817
        %v4819 = vpop.f32.mrb[0].mxu0
        %v4820 = vadd.f32 %v4418, %v4819
        %v4821 = vpop.f32.mrb[0].mxu0
        %v4822 = vadd.f32 %v4420, %v4821
        %v4823 = vpop.f32.mrb[0].mxu0
        %v4824 = vadd.f32 %v4422, %v4823
        %4825 = vmatprep.mubr.bf16.mxu0 %v4718
        %4826 = vmatmul.mubr.bf16.gmra.mrb[0].mxu0 %v4054
        %v4827 = vpop.f32.mrb[0].mxu0
        %v4828 = vadd.f32 %v4426, %v4827
        %v4829 = vpop.f32.mrb[0].mxu0
        %v4830 = vadd.f32 %v4428, %v4829
        %v4831 = vpop.f32.mrb[0].mxu0
        %v4832 = vadd.f32 %v4430, %v4831
        %v4833 = vpop.f32.mrb[0].mxu0
        %v4834 = vadd.f32 %v4432, %v4833
        %4835 = vmatprep.mubr.bf16.mxu0 %v4721
        %4836 = vmatmul.mubr.bf16.gmra.mrb[0].mxu0 %v4056
        %v4837 = vpop.f32.mrb[0].mxu0
        %v4838 = vadd.f32 %v4436, %v4837
        %v4839 = vpop.f32.mrb[0].mxu0
        %v4840 = vadd.f32 %v4438, %v4839
        %v4841 = vpop.f32.mrb[0].mxu0
        %v4842 = vadd.f32 %v4440, %v4841
        %v4843 = vpop.f32.mrb[0].mxu0
        %v4844 = vadd.f32 %v4442, %v4843
        %4845 = vmatprep.mubr.bf16.mxu0 %v4724
        %4846 = vmatmul.mubr.bf16.gmra.mrb[0].mxu0 %v4058
        %v4847 = vpop.f32.mrb[0].mxu0
        %v4848 = vadd.f32 %v4446, %v4847
        %v4849 = vpop.f32.mrb[0].mxu0
        %v4850 = vadd.f32 %v4448, %v4849
        %v4851 = vpop.f32.mrb[0].mxu0
        %v4852 = vadd.f32 %v4450, %v4851
        %v4853 = vpop.f32.mrb[0].mxu0
        %v4854 = vadd.f32 %v4452, %v4853
        %4855 = vmatprep.mubr.bf16.mxu0 %v4727
        %4856 = vmatmul.mubr.bf16.gmra.mrb[0].mxu0 %v4060
        %v4857 = vpop.f32.mrb[0].mxu0
        %v4858 = vadd.f32 %v4456, %v4857
        %v4859 = vpop.f32.mrb[0].mxu0
        %v4860 = vadd.f32 %v4458, %v4859
        %v4861 = vpop.f32.mrb[0].mxu0
        %v4862 = vadd.f32 %v4460, %v4861
        %v4863 = vpop.f32.mrb[0].mxu0
        %v4864 = vadd.f32 %v4462, %v4863
        %4865 = vmatprep.mubr.bf16.mxu0 %v4730
        %4866 = vmatmul.mubr.bf16.gmra.mrb[0].mxu0 %v4062
        %v4867 = vpop.f32.mrb[0].mxu0
        %v4868 = vadd.f32 %v4466, %v4867
        %v4869 = vpop.f32.mrb[0].mxu0
        %v4870 = vadd.f32 %v4468, %v4869
        %v4871 = vpop.f32.mrb[0].mxu0
        %v4872 = vadd.f32 %v4470, %v4871
        %v4873 = vpop.f32.mrb[0].mxu0
        %v4874 = vadd.f32 %v4472, %v4873
        %4875 = vmatprep.mubr.bf16.mxu0 %v4733
        %4876 = vmatmul.mubr.bf16.gmra.mrb[0].mxu0 %v4064
        %v4877 = vpop.f32.mrb[0].mxu0
        %v4878 = vadd.f32 %v4476, %v4877
        %v4879 = vpop.f32.mrb[0].mxu0
        %v4880 = vadd.f32 %v4478, %v4879
        %v4881 = vpop.f32.mrb[0].mxu0
        %v4882 = vadd.f32 %v4480, %v4881
        %v4883 = vpop.f32.mrb[0].mxu0
        %v4884 = vadd.f32 %v4482, %v4883
        %4885 = vmatprep.mubr.bf16.mxu0 %v4736
        %4886 = vmatmul.mubr.bf16.gmra.mrb[0].mxu0 %v4066
        %v4887 = vpop.f32.mrb[0].mxu0
        %v4888 = vadd.f32 %v4486, %v4887
        %v4889 = vpop.f32.mrb[0].mxu0
        %v4890 = vadd.f32 %v4488, %v4889
        %v4891 = vpop.f32.mrb[0].mxu0
        %v4892 = vadd.f32 %v4490, %v4891
        %v4893 = vpop.f32.mrb[0].mxu0
        %v4894 = vadd.f32 %v4492, %v4893
        %4895 = vmatprep.mubr.bf16.mxu0 %v4739
        %4896 = vmatmul.mubr.bf16.gmra.mrb[0].mxu0 %v4068
        %v4897 = vpop.f32.mrb[0].mxu0
        %v4898 = vadd.f32 %v4496, %v4897
        %v4899 = vpop.f32.mrb[0].mxu0
        %v4900 = vadd.f32 %v4498, %v4899
        %v4901 = vpop.f32.mrb[0].mxu0
        %v4902 = vadd.f32 %v4500, %v4901
        %v4903 = vpop.f32.mrb[0].mxu0
        %v4904 = vadd.f32 %v4502, %v4903
        %4905 = vmatprep.mubr.bf16.mxu0 %v4742
        %4906 = vmatmul.mubr.bf16.gmra.mrb[0].mxu0 %v4070
        %v4907 = vpop.f32.mrb[0].mxu0
        %v4908 = vadd.f32 %v4506, %v4907
        %v4909 = vpop.f32.mrb[0].mxu0
        %v4910 = vadd.f32 %v4508, %v4909
        %v4911 = vpop.f32.mrb[0].mxu0
        %v4912 = vadd.f32 %v4510, %v4911
        %v4913 = vpop.f32.mrb[0].mxu0
        %v4914 = vadd.f32 %v4512, %v4913
        %4915 = vmatprep.mubr.bf16.mxu0 %v4745
        %4916 = vmatmul.mubr.bf16.gmra.mrb[0].mxu0 %v4072
        %v4917 = vpop.f32.mrb[0].mxu0
        %v4918 = vadd.f32 %v4516, %v4917
        %v4919 = vpop.f32.mrb[0].mxu0
        %v4920 = vadd.f32 %v4518, %v4919
        %v4921 = vpop.f32.mrb[0].mxu0
        %v4922 = vadd.f32 %v4520, %v4921
        %v4923 = vpop.f32.mrb[0].mxu0
        %v4924 = vadd.f32 %v4522, %v4923
        %4925 = vmatprep.mubr.bf16.mxu0 %v4748
        %4926 = vmatmul.mubr.bf16.gmra.mrb[0].mxu0 %v4074
        %v4927 = vpop.f32.mrb[0].mxu0
        %v4928 = vadd.f32 %v4526, %v4927
        %v4929 = vpop.f32.mrb[0].mxu0
        %v4930 = vadd.f32 %v4528, %v4929
        %v4931 = vpop.f32.mrb[0].mxu0
        %v4932 = vadd.f32 %v4530, %v4931
        %v4933 = vpop.f32.mrb[0].mxu0
        %v4934 = vadd.f32 %v4532, %v4933
        %4935 = vmatprep.mubr.bf16.mxu0 %v4751
        %4936 = vmatmul.mubr.bf16.gmra.mrb[0].mxu0 %v4076
        %v4937 = vpop.f32.mrb[0].mxu0
        %v4938 = vadd.f32 %v4536, %v4937
        %v4939 = vpop.f32.mrb[0].mxu0
        %v4940 = vadd.f32 %v4538, %v4939
        %v4941 = vpop.f32.mrb[0].mxu0
        %v4942 = vadd.f32 %v4540, %v4941
        %v4943 = vpop.f32.mrb[0].mxu0
        %v4944 = vadd.f32 %v4542, %v4943
        %4945 = vdwg.mxu0
        %v4946 = vld [vmem:[#allocation3] sm:$0xcc]
        %v4947 = vld [vmem:[#allocation3 + $0x100] sm:$0x33]
        %s4948 = scalar_lea.vmem %s3, 448
        %v4949 = vld [vmem:[%s4948] sm:$0xff]
        %v4950 = vld [vmem:[%s4948 + $0x8] sm:$0xff]
        %v4951 = vld [vmem:[%s4948 + $0x10] sm:$0xff]
        %v4952 = vld [vmem:[%s4948 + $0x18] sm:$0xff]
        %v4953 = vld [vmem:[%s4948 + $0x20] sm:$0xff]
        %v4954 = vld [vmem:[%s4948 + $0x28] sm:$0xff]
        %v4955 = vld [vmem:[%s4948 + $0x30] sm:$0xff]
        %v4956 = vld [vmem:[%s4948 + $0x38] sm:$0xff]
        %v4957 = vld [vmem:[%s4948 + $0x40] sm:$0xff]
        %v4958 = vld [vmem:[%s4948 + $0x48] sm:$0xff]
        %v4959 = vld [vmem:[%s4948 + $0x50] sm:$0xff]
        %v4960 = vld [vmem:[%s4948 + $0x58] sm:$0xff]
        %v4961 = vld [vmem:[%s4948 + $0x60] sm:$0xff]
        %v4962 = vld [vmem:[%s4948 + $0x68] sm:$0xff]
        %v4963 = vld [vmem:[%s4948 + $0x70] sm:$0xff]
        %v4964 = vld [vmem:[%s4948 + $0x78] sm:$0xff]
        %v4965 = vld [vmem:[%s4948 + $0x80] sm:$0xff]
        %v4966 = vld [vmem:[%s4948 + $0x88] sm:$0xff]
        %v4967 = vld [vmem:[%s4948 + $0x90] sm:$0xff]
        %v4968 = vld [vmem:[%s4948 + $0x98] sm:$0xff]
        %v4969 = vld [vmem:[%s4948 + $0xa0] sm:$0xff]
        %v4970 = vld [vmem:[%s4948 + $0xa8] sm:$0xff]
        %v4971 = vld [vmem:[%s4948 + $0xb0] sm:$0xff]
        %v4972 = vld [vmem:[%s4948 + $0xb8] sm:$0xff]
        %v4973 = vld [vmem:[%s4948 + $0xc0] sm:$0xff]
        %v4974 = vld [vmem:[%s4948 + $0xc8] sm:$0xff]
        %v4975 = vld [vmem:[%s4948 + $0xd0] sm:$0xff]
        %v4976 = vld [vmem:[%s4948 + $0xd8] sm:$0xff]
        %v4979 = vunpack.c.l.b16 %v4946
        %v4980 = vunpack.c.h.b16 %v4946
        %v4981 = vunpack.c.l.b16 %v4947
        %v4982 = vunpack.c.h.b16 %v4947
        %v4983 = vpack.c.b16 %v3982, %v4979
        %v4984 = vpack.c.b16 %v3983, %v4980
        %v4985 = vpack.c.b16 %v4981, %v4981
        %v4986 = vpack.c.b16 %v4982, %v4982
        %v4987 = vrot.slane %v4983, 2
        %v4988 = vrot.slane %v4048, 2
        %v4989 = vsel %vm2266, %v4987, %v4988
        %v4990 = vrot.slane %v4984, 2
        %v4991 = vrot.slane %v4049, 2
        %v4992 = vsel %vm2266, %v4990, %v4991
        %v4993 = vrot.slane %v4050, 2
        %v4994 = vsel %vm2266, %v4988, %v4993
        %v4995 = vrot.slane %v4051, 2
        %v4996 = vsel %vm2266, %v4991, %v4995
        %v4997 = vrot.slane %v4052, 2
        %v4998 = vsel %vm2266, %v4993, %v4997
        %v4999 = vrot.slane %v4053, 2
        %v5000 = vsel %vm2266, %v4995, %v4999
        %v5001 = vrot.slane %v4054, 2
        %v5002 = vsel %vm2266, %v4997, %v5001
        %v5003 = vrot.slane %v4055, 2
        %v5004 = vsel %vm2266, %v4999, %v5003
        %v5005 = vrot.slane %v4056, 2
        %v5006 = vsel %vm2266, %v5001, %v5005
        %v5007 = vrot.slane %v4057, 2
        %v5008 = vsel %vm2266, %v5003, %v5007
        %v5009 = vrot.slane %v4058, 2
        %v5010 = vsel %vm2266, %v5005, %v5009
        %v5011 = vrot.slane %v4059, 2
        %v5012 = vsel %vm2266, %v5007, %v5011
        %v5013 = vrot.slane %v4060, 2
        %v5014 = vsel %vm2266, %v5009, %v5013
        %v5015 = vrot.slane %v4061, 2
        %v5016 = vsel %vm2266, %v5011, %v5015
        %v5017 = vrot.slane %v4062, 2
        %v5018 = vsel %vm2266, %v5013, %v5017
        %v5019 = vrot.slane %v4063, 2
        %v5020 = vsel %vm2266, %v5015, %v5019
        %v5021 = vrot.slane %v4064, 2
        %v5022 = vsel %vm2266, %v5017, %v5021
        %v5023 = vrot.slane %v4065, 2
        %v5024 = vsel %vm2266, %v5019, %v5023
        %v5025 = vrot.slane %v4066, 2
        %v5026 = vsel %vm2266, %v5021, %v5025
        %v5027 = vrot.slane %v4067, 2
        %v5028 = vsel %vm2266, %v5023, %v5027
        %v5029 = vrot.slane %v4068, 2
        %v5030 = vsel %vm2266, %v5025, %v5029
        %v5031 = vrot.slane %v4069, 2
        %v5032 = vsel %vm2266, %v5027, %v5031
        %v5033 = vrot.slane %v4070, 2
        %v5034 = vsel %vm2266, %v5029, %v5033
        %v5035 = vrot.slane %v4071, 2
        %v5036 = vsel %vm2266, %v5031, %v5035
        %v5037 = vrot.slane %v4072, 2
        %v5038 = vsel %vm2266, %v5033, %v5037
        %v5039 = vrot.slane %v4073, 2
        %v5040 = vsel %vm2266, %v5035, %v5039
        %v5041 = vrot.slane %v4074, 2
        %v5042 = vsel %vm2266, %v5037, %v5041
        %v5043 = vrot.slane %v4075, 2
        %v5044 = vsel %vm2266, %v5039, %v5043
        %v5045 = vrot.slane %v4076, 2
        %v5046 = vsel %vm2266, %v5041, %v5045
        %v5047 = vrot.slane %v4077, 2
        %v5048 = vsel %vm2266, %v5043, %v5047
        %v5049 = vrot.slane %v4985, 2
        %v5050 = vsel %vm2266, %v5045, %v5049
        %v5051 = vrot.slane %v4986, 2
        %v5052 = vsel %vm2266, %v5047, %v5051
        %v5097 = vunpack.c.l.b16 %v4949
        %v5098 = vunpack.c.h.b16 %v4949
        %v5099 = vunpack.c.l.b16 %v4950
        %v5100 = vunpack.c.h.b16 %v4950
        %v5101 = vunpack.c.l.b16 %v4951
        %v5102 = vunpack.c.h.b16 %v4951
        %v5103 = vunpack.c.l.b16 %v4952
        %v5104 = vunpack.c.h.b16 %v4952
        %v5105 = vunpack.c.l.b16 %v4953
        %v5106 = vunpack.c.h.b16 %v4953
        %v5107 = vunpack.c.l.b16 %v4954
        %v5108 = vunpack.c.h.b16 %v4954
        %v5109 = vunpack.c.l.b16 %v4955
        %v5110 = vunpack.c.h.b16 %v4955
        %v5111 = vunpack.c.l.b16 %v4956
        %v5112 = vunpack.c.h.b16 %v4956
        %v5113 = vunpack.c.l.b16 %v4957
        %v5114 = vunpack.c.h.b16 %v4957
        %v5115 = vunpack.c.l.b16 %v4958
        %v5116 = vunpack.c.h.b16 %v4958
        %v5117 = vunpack.c.l.b16 %v4959
        %v5118 = vunpack.c.h.b16 %v4959
        %v5119 = vunpack.c.l.b16 %v4960
        %v5120 = vunpack.c.h.b16 %v4960
        %v5121 = vunpack.c.l.b16 %v4961
        %v5122 = vunpack.c.h.b16 %v4961
        %v5123 = vunpack.c.l.b16 %v4962
        %v5124 = vunpack.c.h.b16 %v4962
        %v5125 = vunpack.c.l.b16 %v4963
        %v5126 = vunpack.c.h.b16 %v4963
        %v5127 = vunpack.c.l.b16 %v4964
        %v5128 = vunpack.c.h.b16 %v4964
        %v5129 = vunpack.c.l.b16 %v4965
        %v5130 = vunpack.c.h.b16 %v4965
        %v5131 = vunpack.c.l.b16 %v4966
        %v5132 = vunpack.c.h.b16 %v4966
        %v5133 = vunpack.c.l.b16 %v4967
        %v5134 = vunpack.c.h.b16 %v4967
        %v5135 = vunpack.c.l.b16 %v4968
        %v5136 = vunpack.c.h.b16 %v4968
        %v5137 = vunpack.c.l.b16 %v4969
        %v5138 = vunpack.c.h.b16 %v4969
        %v5139 = vunpack.c.l.b16 %v4970
        %v5140 = vunpack.c.h.b16 %v4970
        %v5141 = vunpack.c.l.b16 %v4971
        %v5142 = vunpack.c.h.b16 %v4971
        %v5143 = vunpack.c.l.b16 %v4972
        %v5144 = vunpack.c.h.b16 %v4972
        %v5145 = vunpack.c.l.b16 %v4973
        %v5146 = vunpack.c.h.b16 %v4973
        %v5147 = vunpack.c.l.b16 %v4974
        %v5148 = vunpack.c.h.b16 %v4974
        %v5149 = vunpack.c.l.b16 %v4975
        %v5150 = vunpack.c.h.b16 %v4975
        %v5151 = vunpack.c.l.b16 %v4976
        %v5152 = vunpack.c.h.b16 %v4976
        %v5153 = vpack.c.b16 %v5099, %v5097
        %v5154 = vpack.c.b16 %v5100, %v5098
        %v5155 = vpack.c.b16 %v5103, %v5101
        %v5156 = vpack.c.b16 %v5104, %v5102
        %v5157 = vpack.c.b16 %v5107, %v5105
        %v5158 = vpack.c.b16 %v5108, %v5106
        %v5159 = vpack.c.b16 %v5111, %v5109
        %v5160 = vpack.c.b16 %v5112, %v5110
        %v5161 = vpack.c.b16 %v5115, %v5113
        %v5162 = vpack.c.b16 %v5116, %v5114
        %v5163 = vpack.c.b16 %v5119, %v5117
        %v5164 = vpack.c.b16 %v5120, %v5118
        %v5165 = vpack.c.b16 %v5123, %v5121
        %v5166 = vpack.c.b16 %v5124, %v5122
        %v5167 = vpack.c.b16 %v5127, %v5125
        %v5168 = vpack.c.b16 %v5128, %v5126
        %v5169 = vpack.c.b16 %v5131, %v5129
        %v5170 = vpack.c.b16 %v5132, %v5130
        %v5171 = vpack.c.b16 %v5135, %v5133
        %v5172 = vpack.c.b16 %v5136, %v5134
        %v5173 = vpack.c.b16 %v5139, %v5137
        %v5174 = vpack.c.b16 %v5140, %v5138
        %v5175 = vpack.c.b16 %v5143, %v5141
        %v5176 = vpack.c.b16 %v5144, %v5142
        %v5177 = vpack.c.b16 %v5147, %v5145
        %v5178 = vpack.c.b16 %v5148, %v5146
        %v5179 = vpack.c.b16 %v5151, %v5149
        %v5180 = vpack.c.b16 %v5152, %v5150
        %v5210 = vsel %vm4302, %v4992, 0
        %v5213 = vsel %vm4302, %v4996, 0
        %v5216 = vsel %vm4302, %v5000, 0
        %v5219 = vsel %vm4302, %v5004, 0
        %v5222 = vsel %vm4302, %v5008, 0
        %v5225 = vsel %vm4302, %v5012, 0
        %v5228 = vsel %vm4302, %v5016, 0
        %v5231 = vsel %vm4302, %v5020, 0
        %v5234 = vsel %vm4302, %v5024, 0
        %v5237 = vsel %vm4302, %v5028, 0
        %v5240 = vsel %vm4302, %v5032, 0
        %v5243 = vsel %vm4302, %v5036, 0
        %v5246 = vsel %vm4302, %v5040, 0
        %v5249 = vsel %vm4302, %v5044, 0
        %v5252 = vsel %vm4302, %v5048, 0
        %v5255 = vsel %vm4302, %v5052, 0
        %5257 = vmatprep.subr.bf16.mxu0 %v5154
        %5258 = vmatpush1.bf16.msra.mxu0 %v5153
        %5259 = vmatprep.subr.bf16.mxu0 %v5156
        %5260 = vmatpush1.bf16.msra.mxu0 %v5155
        %5261 = vmatprep.subr.bf16.mxu0 %v5158
        %5262 = vmatpush1.bf16.msra.mxu0 %v5157
        %5263 = vmatprep.subr.bf16.mxu0 %v5160
        %5264 = vmatpush1.bf16.msra.mxu0 %v5159
        %5265 = vmatprep.subr.bf16.mxu0 %v5162
        %5266 = vmatpush1.bf16.msra.mxu0 %v5161
        %5267 = vmatprep.subr.bf16.mxu0 %v5164
        %5268 = vmatpush1.bf16.msra.mxu0 %v5163
        %5269 = vmatprep.subr.bf16.mxu0 %v5166
        %5270 = vmatpush1.bf16.msra.mxu0 %v5165
        %5271 = vmatprep.subr.bf16.mxu0 %v5168
        %5272 = vmatpush1.bf16.msra.mxu0 %v5167
        %5273 = vmatprep.subr.bf16.mxu0 %v5170
        %5274 = vmatpush1.bf16.msra.mxu0 %v5169
        %5275 = vmatprep.subr.bf16.mxu0 %v5172
        %5276 = vmatpush1.bf16.msra.mxu0 %v5171
        %5277 = vmatprep.subr.bf16.mxu0 %v5174
        %5278 = vmatpush1.bf16.msra.mxu0 %v5173
        %5279 = vmatprep.subr.bf16.mxu0 %v5176
        %5280 = vmatpush1.bf16.msra.mxu0 %v5175
        %5281 = vmatprep.subr.bf16.mxu0 %v5178
        %5282 = vmatpush1.bf16.msra.mxu0 %v5177
        %5283 = vmatprep.subr.bf16.mxu0 %v5180
        %5284 = vmatpush1.bf16.msra.mxu0 %v5179
        %5285 = vmatprep.subr.bf16.mxu0 0
        %5286 = vmatpush1.bf16.msra.mxu0 0
        %5287 = vmatprep.subr.bf16.mxu0 0
        %5288 = vmatpush1.bf16.msra.mxu0 0
        %5289 = vmatprep.mubr.bf16.mxu0 %v5210
        %5290 = vmatmul.mubr.bf16.gmra.mrb[0].mxu0 %v4989
        %v5291 = vpop.f32.mrb[0].mxu0
        %v5292 = vadd.f32 0.0, %v5291
        %v5293 = vpop.f32.mrb[0].mxu0
        %v5294 = vadd.f32 0.0, %v5293
        %v5295 = vpop.f32.mrb[0].mxu0
        %v5296 = vadd.f32 0.0, %v5295
        %v5297 = vpop.f32.mrb[0].mxu0
        %v5298 = vadd.f32 0.0, %v5297
        %5299 = vmatprep.mubr.bf16.mxu0 %v5213
        %5300 = vmatmul.mubr.bf16.gmra.mrb[0].mxu0 %v4994
        %v5301 = vpop.f32.mrb[0].mxu0
        %v5302 = vadd.f32 0.0, %v5301
        %v5303 = vpop.f32.mrb[0].mxu0
        %v5304 = vadd.f32 0.0, %v5303
        %v5305 = vpop.f32.mrb[0].mxu0
        %v5306 = vadd.f32 0.0, %v5305
        %v5307 = vpop.f32.mrb[0].mxu0
        %v5308 = vadd.f32 0.0, %v5307
        %5309 = vmatprep.mubr.bf16.mxu0 %v5216
        %5310 = vmatmul.mubr.bf16.gmra.mrb[0].mxu0 %v4998
        %v5311 = vpop.f32.mrb[0].mxu0
        %v5312 = vadd.f32 0.0, %v5311
        %v5313 = vpop.f32.mrb[0].mxu0
        %v5314 = vadd.f32 0.0, %v5313
        %v5315 = vpop.f32.mrb[0].mxu0
        %v5316 = vadd.f32 0.0, %v5315
        %v5317 = vpop.f32.mrb[0].mxu0
        %v5318 = vadd.f32 0.0, %v5317
        %5319 = vmatprep.mubr.bf16.mxu0 %v5219
        %5320 = vmatmul.mubr.bf16.gmra.mrb[0].mxu0 %v5002
        %v5321 = vpop.f32.mrb[0].mxu0
        %v5322 = vadd.f32 0.0, %v5321
        %v5323 = vpop.f32.mrb[0].mxu0
        %v5324 = vadd.f32 0.0, %v5323
        %v5325 = vpop.f32.mrb[0].mxu0
        %v5326 = vadd.f32 0.0, %v5325
        %v5327 = vpop.f32.mrb[0].mxu0
        %v5328 = vadd.f32 0.0, %v5327
        %5329 = vmatprep.mubr.bf16.mxu0 %v5222
        %5330 = vmatmul.mubr.bf16.gmra.mrb[0].mxu0 %v5006
        %v5331 = vpop.f32.mrb[0].mxu0
        %v5332 = vadd.f32 0.0, %v5331
        %v5333 = vpop.f32.mrb[0].mxu0
        %v5334 = vadd.f32 0.0, %v5333
        %v5335 = vpop.f32.mrb[0].mxu0
        %v5336 = vadd.f32 0.0, %v5335
        %v5337 = vpop.f32.mrb[0].mxu0
        %v5338 = vadd.f32 0.0, %v5337
        %5339 = vmatprep.mubr.bf16.mxu0 %v5225
        %5340 = vmatmul.mubr.bf16.gmra.mrb[0].mxu0 %v5010
        %v5341 = vpop.f32.mrb[0].mxu0
        %v5342 = vadd.f32 0.0, %v5341
        %v5343 = vpop.f32.mrb[0].mxu0
        %v5344 = vadd.f32 0.0, %v5343
        %v5345 = vpop.f32.mrb[0].mxu0
        %v5346 = vadd.f32 0.0, %v5345
        %v5347 = vpop.f32.mrb[0].mxu0
        %v5348 = vadd.f32 0.0, %v5347
        %5349 = vmatprep.mubr.bf16.mxu0 %v5228
        %5350 = vmatmul.mubr.bf16.gmra.mrb[0].mxu0 %v5014
        %v5351 = vpop.f32.mrb[0].mxu0
        %v5352 = vadd.f32 0.0, %v5351
        %v5353 = vpop.f32.mrb[0].mxu0
        %v5354 = vadd.f32 0.0, %v5353
        %v5355 = vpop.f32.mrb[0].mxu0
        %v5356 = vadd.f32 0.0, %v5355
        %v5357 = vpop.f32.mrb[0].mxu0
        %v5358 = vadd.f32 0.0, %v5357
        %5359 = vmatprep.mubr.bf16.mxu0 %v5231
        %5360 = vmatmul.mubr.bf16.gmra.mrb[0].mxu0 %v5018
        %v5361 = vpop.f32.mrb[0].mxu0
        %v5362 = vadd.f32 0.0, %v5361
        %v5363 = vpop.f32.mrb[0].mxu0
        %v5364 = vadd.f32 0.0, %v5363
        %v5365 = vpop.f32.mrb[0].mxu0
        %v5366 = vadd.f32 0.0, %v5365
        %v5367 = vpop.f32.mrb[0].mxu0
        %v5368 = vadd.f32 0.0, %v5367
        %5369 = vmatprep.mubr.bf16.mxu0 %v5234
        %5370 = vmatmul.mubr.bf16.gmra.mrb[0].mxu0 %v5022
        %v5371 = vpop.f32.mrb[0].mxu0
        %v5372 = vadd.f32 0.0, %v5371
        %v5373 = vpop.f32.mrb[0].mxu0
        %v5374 = vadd.f32 0.0, %v5373
        %v5375 = vpop.f32.mrb[0].mxu0
        %v5376 = vadd.f32 0.0, %v5375
        %v5377 = vpop.f32.mrb[0].mxu0
        %v5378 = vadd.f32 0.0, %v5377
        %5379 = vmatprep.mubr.bf16.mxu0 %v5237
        %5380 = vmatmul.mubr.bf16.gmra.mrb[0].mxu0 %v5026
        %v5381 = vpop.f32.mrb[0].mxu0
        %v5382 = vadd.f32 0.0, %v5381
        %v5383 = vpop.f32.mrb[0].mxu0
        %v5384 = vadd.f32 0.0, %v5383
        %v5385 = vpop.f32.mrb[0].mxu0
        %v5386 = vadd.f32 0.0, %v5385
        %v5387 = vpop.f32.mrb[0].mxu0
        %v5388 = vadd.f32 0.0, %v5387
        %5389 = vmatprep.mubr.bf16.mxu0 %v5240
        %5390 = vmatmul.mubr.bf16.gmra.mrb[0].mxu0 %v5030
        %v5391 = vpop.f32.mrb[0].mxu0
        %v5392 = vadd.f32 0.0, %v5391
        %v5393 = vpop.f32.mrb[0].mxu0
        %v5394 = vadd.f32 0.0, %v5393
        %v5395 = vpop.f32.mrb[0].mxu0
        %v5396 = vadd.f32 0.0, %v5395
        %v5397 = vpop.f32.mrb[0].mxu0
        %v5398 = vadd.f32 0.0, %v5397
        %5399 = vmatprep.mubr.bf16.mxu0 %v5243
        %5400 = vmatmul.mubr.bf16.gmra.mrb[0].mxu0 %v5034
        %v5401 = vpop.f32.mrb[0].mxu0
        %v5402 = vadd.f32 0.0, %v5401
        %v5403 = vpop.f32.mrb[0].mxu0
        %v5404 = vadd.f32 0.0, %v5403
        %v5405 = vpop.f32.mrb[0].mxu0
        %v5406 = vadd.f32 0.0, %v5405
        %v5407 = vpop.f32.mrb[0].mxu0
        %v5408 = vadd.f32 0.0, %v5407
        %5409 = vmatprep.mubr.bf16.mxu0 %v5246
        %5410 = vmatmul.mubr.bf16.gmra.mrb[0].mxu0 %v5038
        %v5411 = vpop.f32.mrb[0].mxu0
        %v5412 = vadd.f32 0.0, %v5411
        %v5413 = vpop.f32.mrb[0].mxu0
        %v5414 = vadd.f32 0.0, %v5413
        %v5415 = vpop.f32.mrb[0].mxu0
        %v5416 = vadd.f32 0.0, %v5415
        %v5417 = vpop.f32.mrb[0].mxu0
        %v5418 = vadd.f32 0.0, %v5417
        %5419 = vmatprep.mubr.bf16.mxu0 %v5249
        %5420 = vmatmul.mubr.bf16.gmra.mrb[0].mxu0 %v5042
        %v5421 = vpop.f32.mrb[0].mxu0
        %v5422 = vadd.f32 0.0, %v5421
        %v5423 = vpop.f32.mrb[0].mxu0
        %v5424 = vadd.f32 0.0, %v5423
        %v5425 = vpop.f32.mrb[0].mxu0
        %v5426 = vadd.f32 0.0, %v5425
        %v5427 = vpop.f32.mrb[0].mxu0
        %v5428 = vadd.f32 0.0, %v5427
        %5429 = vmatprep.mubr.bf16.mxu0 %v5252
        %5430 = vmatmul.mubr.bf16.gmra.mrb[0].mxu0 %v5046
        %v5431 = vpop.f32.mrb[0].mxu0
        %v5432 = vadd.f32 0.0, %v5431
        %v5433 = vpop.f32.mrb[0].mxu0
        %v5434 = vadd.f32 0.0, %v5433
        %v5435 = vpop.f32.mrb[0].mxu0
        %v5436 = vadd.f32 0.0, %v5435
        %v5437 = vpop.f32.mrb[0].mxu0
        %v5438 = vadd.f32 0.0, %v5437
        %5439 = vmatprep.mubr.bf16.mxu0 %v5255
        %5440 = vmatmul.mubr.bf16.gmra.mrb[0].mxu0 %v5050
        %v5441 = vpop.f32.mrb[0].mxu0
        %v5442 = vadd.f32 0.0, %v5441
        %v5443 = vpop.f32.mrb[0].mxu0
        %v5444 = vadd.f32 0.0, %v5443
        %v5445 = vpop.f32.mrb[0].mxu0
        %v5446 = vadd.f32 0.0, %v5445
        %v5447 = vpop.f32.mrb[0].mxu0
        %v5448 = vadd.f32 0.0, %v5447
        %5449 = vdwg.mxu0
        %v5450 = vadd.f32 %v4788, %v5292
        %v5451 = vadd.f32 %v4790, %v5294
        %v5452 = vadd.f32 %v4792, %v5296
        %v5453 = vadd.f32 %v4794, %v5298
        %v5454 = vadd.f32 %v4798, %v5302
        %v5455 = vadd.f32 %v4800, %v5304
        %v5456 = vadd.f32 %v4802, %v5306
        %v5457 = vadd.f32 %v4804, %v5308
        %v5458 = vadd.f32 %v4808, %v5312
        %v5459 = vadd.f32 %v4810, %v5314
        %v5460 = vadd.f32 %v4812, %v5316
        %v5461 = vadd.f32 %v4814, %v5318
        %v5462 = vadd.f32 %v4818, %v5322
        %v5463 = vadd.f32 %v4820, %v5324
        %v5464 = vadd.f32 %v4822, %v5326
        %v5465 = vadd.f32 %v4824, %v5328
        %v5466 = vadd.f32 %v4828, %v5332
        %v5467 = vadd.f32 %v4830, %v5334
        %v5468 = vadd.f32 %v4832, %v5336
        %v5469 = vadd.f32 %v4834, %v5338
        %v5470 = vadd.f32 %v4838, %v5342
        %v5471 = vadd.f32 %v4840, %v5344
        %v5472 = vadd.f32 %v4842, %v5346
        %v5473 = vadd.f32 %v4844, %v5348
        %v5474 = vadd.f32 %v4848, %v5352
        %v5475 = vadd.f32 %v4850, %v5354
        %v5476 = vadd.f32 %v4852, %v5356
        %v5477 = vadd.f32 %v4854, %v5358
        %v5478 = vadd.f32 %v4858, %v5362
        %v5479 = vadd.f32 %v4860, %v5364
        %v5480 = vadd.f32 %v4862, %v5366
        %v5481 = vadd.f32 %v4864, %v5368
        %v5482 = vadd.f32 %v4868, %v5372
        %v5483 = vadd.f32 %v4870, %v5374
        %v5484 = vadd.f32 %v4872, %v5376
        %v5485 = vadd.f32 %v4874, %v5378
        %v5486 = vadd.f32 %v4878, %v5382
        %v5487 = vadd.f32 %v4880, %v5384
        %v5488 = vadd.f32 %v4882, %v5386
        %v5489 = vadd.f32 %v4884, %v5388
        %v5490 = vadd.f32 %v4888, %v5392
        %v5491 = vadd.f32 %v4890, %v5394
        %v5492 = vadd.f32 %v4892, %v5396
        %v5493 = vadd.f32 %v4894, %v5398
        %v5494 = vadd.f32 %v4898, %v5402
        %v5495 = vadd.f32 %v4900, %v5404
        %v5496 = vadd.f32 %v4902, %v5406
        %v5497 = vadd.f32 %v4904, %v5408
        %v5498 = vadd.f32 %v4908, %v5412
        %v5499 = vadd.f32 %v4910, %v5414
        %v5500 = vadd.f32 %v4912, %v5416
        %v5501 = vadd.f32 %v4914, %v5418
        %v5502 = vadd.f32 %v4918, %v5422
        %v5503 = vadd.f32 %v4920, %v5424
        %v5504 = vadd.f32 %v4922, %v5426
        %v5505 = vadd.f32 %v4924, %v5428
        %v5506 = vadd.f32 %v4928, %v5432
        %v5507 = vadd.f32 %v4930, %v5434
        %v5508 = vadd.f32 %v4932, %v5436
        %v5509 = vadd.f32 %v4934, %v5438
        %v5510 = vadd.f32 %v4938, %v5442
        %v5511 = vadd.f32 %v4940, %v5444
        %v5512 = vadd.f32 %v4942, %v5446
        %v5513 = vadd.f32 %v4944, %v5448
        %v5514 = vld [vmem:[#allocation3] sm:$0x88]
        %v5515 = vld [vmem:[#allocation3 + $0x100] sm:$0x77]
        %s5516 = scalar_lea.vmem %s3, 672
        %v5517 = vld [vmem:[%s5516] sm:$0xff]
        %v5518 = vld [vmem:[%s5516 + $0x8] sm:$0xff]
        %v5519 = vld [vmem:[%s5516 + $0x10] sm:$0xff]
        %v5520 = vld [vmem:[%s5516 + $0x18] sm:$0xff]
        %v5521 = vld [vmem:[%s5516 + $0x20] sm:$0xff]
        %v5522 = vld [vmem:[%s5516 + $0x28] sm:$0xff]
        %v5523 = vld [vmem:[%s5516 + $0x30] sm:$0xff]
        %v5524 = vld [vmem:[%s5516 + $0x38] sm:$0xff]
        %v5525 = vld [vmem:[%s5516 + $0x40] sm:$0xff]
        %v5526 = vld [vmem:[%s5516 + $0x48] sm:$0xff]
        %v5527 = vld [vmem:[%s5516 + $0x50] sm:$0xff]
        %v5528 = vld [vmem:[%s5516 + $0x58] sm:$0xff]
        %v5529 = vld [vmem:[%s5516 + $0x60] sm:$0xff]
        %v5530 = vld [vmem:[%s5516 + $0x68] sm:$0xff]
        %v5531 = vld [vmem:[%s5516 + $0x70] sm:$0xff]
        %v5532 = vld [vmem:[%s5516 + $0x78] sm:$0xff]
        %v5533 = vld [vmem:[%s5516 + $0x80] sm:$0xff]
        %v5534 = vld [vmem:[%s5516 + $0x88] sm:$0xff]
        %v5535 = vld [vmem:[%s5516 + $0x90] sm:$0xff]
        %v5536 = vld [vmem:[%s5516 + $0x98] sm:$0xff]
        %v5537 = vld [vmem:[%s5516 + $0xa0] sm:$0xff]
        %v5538 = vld [vmem:[%s5516 + $0xa8] sm:$0xff]
        %v5539 = vld [vmem:[%s5516 + $0xb0] sm:$0xff]
        %v5540 = vld [vmem:[%s5516 + $0xb8] sm:$0xff]
        %v5541 = vld [vmem:[%s5516 + $0xc0] sm:$0xff]
        %v5542 = vld [vmem:[%s5516 + $0xc8] sm:$0xff]
        %v5543 = vld [vmem:[%s5516 + $0xd0] sm:$0xff]
        %v5544 = vld [vmem:[%s5516 + $0xd8] sm:$0xff]
        %v5547 = vunpack.c.l.b16 %v5514
        %v5548 = vunpack.c.h.b16 %v5514
        %v5549 = vunpack.c.l.b16 %v5515
        %v5550 = vunpack.c.h.b16 %v5515
        %v5551 = vpack.c.b16 %v3982, %v5547
        %v5552 = vpack.c.b16 %v3983, %v5548
        %v5553 = vpack.c.b16 %v5549, %v5549
        %v5554 = vpack.c.b16 %v5550, %v5550
        %vm5555 = vcmask 1044480
        %v5556 = vrot.slane %v5551, 3
        %v5557 = vrot.slane %v4048, 3
        %v5558 = vsel %vm5555, %v5556, %v5557
        %v5559 = vrot.slane %v5552, 3
        %v5560 = vrot.slane %v4049, 3
        %v5561 = vsel %vm5555, %v5559, %v5560
        %v5562 = vrot.slane %v4050, 3
        %v5563 = vsel %vm5555, %v5557, %v5562
        %v5564 = vrot.slane %v4051, 3
        %v5565 = vsel %vm5555, %v5560, %v5564
        %v5566 = vrot.slane %v4052, 3
        %v5567 = vsel %vm5555, %v5562, %v5566
        %v5568 = vrot.slane %v4053, 3
        %v5569 = vsel %vm5555, %v5564, %v5568
        %v5570 = vrot.slane %v4054, 3
        %v5571 = vsel %vm5555, %v5566, %v5570
        %v5572 = vrot.slane %v4055, 3
        %v5573 = vsel %vm5555, %v5568, %v5572
        %v5574 = vrot.slane %v4056, 3
        %v5575 = vsel %vm5555, %v5570, %v5574
        %v5576 = vrot.slane %v4057, 3
        %v5577 = vsel %vm5555, %v5572, %v5576
        %v5578 = vrot.slane %v4058, 3
        %v5579 = vsel %vm5555, %v5574, %v5578
        %v5580 = vrot.slane %v4059, 3
        %v5581 = vsel %vm5555, %v5576, %v5580
        %v5582 = vrot.slane %v4060, 3
        %v5583 = vsel %vm5555, %v5578, %v5582
        %v5584 = vrot.slane %v4061, 3
        %v5585 = vsel %vm5555, %v5580, %v5584
        %v5586 = vrot.slane %v4062, 3
        %v5587 = vsel %vm5555, %v5582, %v5586
        %v5588 = vrot.slane %v4063, 3
        %v5589 = vsel %vm5555, %v5584, %v5588
        %v5590 = vrot.slane %v4064, 3
        %v5591 = vsel %vm5555, %v5586, %v5590
        %v5592 = vrot.slane %v4065, 3
        %v5593 = vsel %vm5555, %v5588, %v5592
        %v5594 = vrot.slane %v4066, 3
        %v5595 = vsel %vm5555, %v5590, %v5594
        %v5596 = vrot.slane %v4067, 3
        %v5597 = vsel %vm5555, %v5592, %v5596
        %v5598 = vrot.slane %v4068, 3
        %v5599 = vsel %vm5555, %v5594, %v5598
        %v5600 = vrot.slane %v4069, 3
        %v5601 = vsel %vm5555, %v5596, %v5600
        %v5602 = vrot.slane %v4070, 3
        %v5603 = vsel %vm5555, %v5598, %v5602
        %v5604 = vrot.slane %v4071, 3
        %v5605 = vsel %vm5555, %v5600, %v5604
        %v5606 = vrot.slane %v4072, 3
        %v5607 = vsel %vm5555, %v5602, %v5606
        %v5608 = vrot.slane %v4073, 3
        %v5609 = vsel %vm5555, %v5604, %v5608
        %v5610 = vrot.slane %v4074, 3
        %v5611 = vsel %vm5555, %v5606, %v5610
        %v5612 = vrot.slane %v4075, 3
        %v5613 = vsel %vm5555, %v5608, %v5612
        %v5614 = vrot.slane %v4076, 3
        %v5615 = vsel %vm5555, %v5610, %v5614
        %v5616 = vrot.slane %v4077, 3
        %v5617 = vsel %vm5555, %v5612, %v5616
        %v5618 = vrot.slane %v5553, 3
        %v5619 = vsel %vm5555, %v5614, %v5618
        %v5620 = vrot.slane %v5554, 3
        %v5621 = vsel %vm5555, %v5616, %v5620
        %v5666 = vunpack.c.l.b16 %v5517
        %v5667 = vunpack.c.h.b16 %v5517
        %v5668 = vunpack.c.l.b16 %v5518
        %v5669 = vunpack.c.h.b16 %v5518
        %v5670 = vunpack.c.l.b16 %v5519
        %v5671 = vunpack.c.h.b16 %v5519
        %v5672 = vunpack.c.l.b16 %v5520
        %v5673 = vunpack.c.h.b16 %v5520
        %v5674 = vunpack.c.l.b16 %v5521
        %v5675 = vunpack.c.h.b16 %v5521
        %v5676 = vunpack.c.l.b16 %v5522
        %v5677 = vunpack.c.h.b16 %v5522
        %v5678 = vunpack.c.l.b16 %v5523
        %v5679 = vunpack.c.h.b16 %v5523
        %v5680 = vunpack.c.l.b16 %v5524
        %v5681 = vunpack.c.h.b16 %v5524
        %v5682 = vunpack.c.l.b16 %v5525
        %v5683 = vunpack.c.h.b16 %v5525
        %v5684 = vunpack.c.l.b16 %v5526
        %v5685 = vunpack.c.h.b16 %v5526
        %v5686 = vunpack.c.l.b16 %v5527
        %v5687 = vunpack.c.h.b16 %v5527
        %v5688 = vunpack.c.l.b16 %v5528
        %v5689 = vunpack.c.h.b16 %v5528
        %v5690 = vunpack.c.l.b16 %v5529
        %v5691 = vunpack.c.h.b16 %v5529
        %v5692 = vunpack.c.l.b16 %v5530
        %v5693 = vunpack.c.h.b16 %v5530
        %v5694 = vunpack.c.l.b16 %v5531
        %v5695 = vunpack.c.h.b16 %v5531
        %v5696 = vunpack.c.l.b16 %v5532
        %v5697 = vunpack.c.h.b16 %v5532
        %v5698 = vunpack.c.l.b16 %v5533
        %v5699 = vunpack.c.h.b16 %v5533
        %v5700 = vunpack.c.l.b16 %v5534
        %v5701 = vunpack.c.h.b16 %v5534
        %v5702 = vunpack.c.l.b16 %v5535
        %v5703 = vunpack.c.h.b16 %v5535
        %v5704 = vunpack.c.l.b16 %v5536
        %v5705 = vunpack.c.h.b16 %v5536
        %v5706 = vunpack.c.l.b16 %v5537
        %v5707 = vunpack.c.h.b16 %v5537
        %v5708 = vunpack.c.l.b16 %v5538
        %v5709 = vunpack.c.h.b16 %v5538
        %v5710 = vunpack.c.l.b16 %v5539
        %v5711 = vunpack.c.h.b16 %v5539
        %v5712 = vunpack.c.l.b16 %v5540
        %v5713 = vunpack.c.h.b16 %v5540
        %v5714 = vunpack.c.l.b16 %v5541
        %v5715 = vunpack.c.h.b16 %v5541
        %v5716 = vunpack.c.l.b16 %v5542
        %v5717 = vunpack.c.h.b16 %v5542
        %v5718 = vunpack.c.l.b16 %v5543
        %v5719 = vunpack.c.h.b16 %v5543
        %v5720 = vunpack.c.l.b16 %v5544
        %v5721 = vunpack.c.h.b16 %v5544
        %v5722 = vpack.c.b16 %v5668, %v5666
        %v5723 = vpack.c.b16 %v5669, %v5667
        %v5724 = vpack.c.b16 %v5672, %v5670
        %v5725 = vpack.c.b16 %v5673, %v5671
        %v5726 = vpack.c.b16 %v5676, %v5674
        %v5727 = vpack.c.b16 %v5677, %v5675
        %v5728 = vpack.c.b16 %v5680, %v5678
        %v5729 = vpack.c.b16 %v5681, %v5679
        %v5730 = vpack.c.b16 %v5684, %v5682
        %v5731 = vpack.c.b16 %v5685, %v5683
        %v5732 = vpack.c.b16 %v5688, %v5686
        %v5733 = vpack.c.b16 %v5689, %v5687
        %v5734 = vpack.c.b16 %v5692, %v5690
        %v5735 = vpack.c.b16 %v5693, %v5691
        %v5736 = vpack.c.b16 %v5696, %v5694
        %v5737 = vpack.c.b16 %v5697, %v5695
        %v5738 = vpack.c.b16 %v5700, %v5698
        %v5739 = vpack.c.b16 %v5701, %v5699
        %v5740 = vpack.c.b16 %v5704, %v5702
        %v5741 = vpack.c.b16 %v5705, %v5703
        %v5742 = vpack.c.b16 %v5708, %v5706
        %v5743 = vpack.c.b16 %v5709, %v5707
        %v5744 = vpack.c.b16 %v5712, %v5710
        %v5745 = vpack.c.b16 %v5713, %v5711
        %v5746 = vpack.c.b16 %v5716, %v5714
        %v5747 = vpack.c.b16 %v5717, %v5715
        %v5748 = vpack.c.b16 %v5720, %v5718
        %v5749 = vpack.c.b16 %v5721, %v5719
        %v5779 = vsel %vm4302, %v5561, 0
        %v5782 = vsel %vm4302, %v5565, 0
        %v5785 = vsel %vm4302, %v5569, 0
        %v5788 = vsel %vm4302, %v5573, 0
        %v5791 = vsel %vm4302, %v5577, 0
        %v5794 = vsel %vm4302, %v5581, 0
        %v5797 = vsel %vm4302, %v5585, 0
        %v5800 = vsel %vm4302, %v5589, 0
        %v5803 = vsel %vm4302, %v5593, 0
        %v5806 = vsel %vm4302, %v5597, 0
        %v5809 = vsel %vm4302, %v5601, 0
        %v5812 = vsel %vm4302, %v5605, 0
        %v5815 = vsel %vm4302, %v5609, 0
        %v5818 = vsel %vm4302, %v5613, 0
        %v5821 = vsel %vm4302, %v5617, 0
        %v5824 = vsel %vm4302, %v5621, 0
        %5826 = vmatprep.subr.bf16.mxu0 %v5723
        %5827 = vmatpush1.bf16.msra.mxu0 %v5722
        %5828 = vmatprep.subr.bf16.mxu0 %v5725
        %5829 = vmatpush1.bf16.msra.mxu0 %v5724
        %5830 = vmatprep.subr.bf16.mxu0 %v5727
        %5831 = vmatpush1.bf16.msra.mxu0 %v5726
        %5832 = vmatprep.subr.bf16.mxu0 %v5729
        %5833 = vmatpush1.bf16.msra.mxu0 %v5728
        %5834 = vmatprep.subr.bf16.mxu0 %v5731
        %5835 = vmatpush1.bf16.msra.mxu0 %v5730
        %5836 = vmatprep.subr.bf16.mxu0 %v5733
        %5837 = vmatpush1.bf16.msra.mxu0 %v5732
        %5838 = vmatprep.subr.bf16.mxu0 %v5735
        %5839 = vmatpush1.bf16.msra.mxu0 %v5734
        %5840 = vmatprep.subr.bf16.mxu0 %v5737
        %5841 = vmatpush1.bf16.msra.mxu0 %v5736
        %5842 = vmatprep.subr.bf16.mxu0 %v5739
        %5843 = vmatpush1.bf16.msra.mxu0 %v5738
        %5844 = vmatprep.subr.bf16.mxu0 %v5741
        %5845 = vmatpush1.bf16.msra.mxu0 %v5740
        %5846 = vmatprep.subr.bf16.mxu0 %v5743
        %5847 = vmatpush1.bf16.msra.mxu0 %v5742
        %5848 = vmatprep.subr.bf16.mxu0 %v5745
        %5849 = vmatpush1.bf16.msra.mxu0 %v5744
        %5850 = vmatprep.subr.bf16.mxu0 %v5747
        %5851 = vmatpush1.bf16.msra.mxu0 %v5746
        %5852 = vmatprep.subr.bf16.mxu0 %v5749
        %5853 = vmatpush1.bf16.msra.mxu0 %v5748
        %5854 = vmatprep.subr.bf16.mxu0 0
        %5855 = vmatpush1.bf16.msra.mxu0 0
        %5856 = vmatprep.subr.bf16.mxu0 0
        %5857 = vmatpush1.bf16.msra.mxu0 0
        %5858 = vmatprep.mubr.bf16.mxu0 %v5779
        %5859 = vmatmul.mubr.bf16.gmra.mrb[0].mxu0 %v5558
        %v5860 = vpop.f32.mrb[0].mxu0
        %v5861 = vadd.f32 0.0, %v5860
        %v5862 = vpop.f32.mrb[0].mxu0
        %v5863 = vadd.f32 0.0, %v5862
        %v5864 = vpop.f32.mrb[0].mxu0
        %v5865 = vadd.f32 0.0, %v5864
        %v5866 = vpop.f32.mrb[0].mxu0
        %v5867 = vadd.f32 0.0, %v5866
        %5868 = vmatprep.mubr.bf16.mxu0 %v5782
        %5869 = vmatmul.mubr.bf16.gmra.mrb[0].mxu0 %v5563
        %v5870 = vpop.f32.mrb[0].mxu0
        %v5871 = vadd.f32 0.0, %v5870
        %v5872 = vpop.f32.mrb[0].mxu0
        %v5873 = vadd.f32 0.0, %v5872
        %v5874 = vpop.f32.mrb[0].mxu0
        %v5875 = vadd.f32 0.0, %v5874
        %v5876 = vpop.f32.mrb[0].mxu0
        %v5877 = vadd.f32 0.0, %v5876
        %5878 = vmatprep.mubr.bf16.mxu0 %v5785
        %5879 = vmatmul.mubr.bf16.gmra.mrb[0].mxu0 %v5567
        %v5880 = vpop.f32.mrb[0].mxu0
        %v5881 = vadd.f32 0.0, %v5880
        %v5882 = vpop.f32.mrb[0].mxu0
        %v5883 = vadd.f32 0.0, %v5882
        %v5884 = vpop.f32.mrb[0].mxu0
        %v5885 = vadd.f32 0.0, %v5884
        %v5886 = vpop.f32.mrb[0].mxu0
        %v5887 = vadd.f32 0.0, %v5886
        %5888 = vmatprep.mubr.bf16.mxu0 %v5788
        %5889 = vmatmul.mubr.bf16.gmra.mrb[0].mxu0 %v5571
        %v5890 = vpop.f32.mrb[0].mxu0
        %v5891 = vadd.f32 0.0, %v5890
        %v5892 = vpop.f32.mrb[0].mxu0
        %v5893 = vadd.f32 0.0, %v5892
        %v5894 = vpop.f32.mrb[0].mxu0
        %v5895 = vadd.f32 0.0, %v5894
        %v5896 = vpop.f32.mrb[0].mxu0
        %v5897 = vadd.f32 0.0, %v5896
        %5898 = vmatprep.mubr.bf16.mxu0 %v5791
        %5899 = vmatmul.mubr.bf16.gmra.mrb[0].mxu0 %v5575
        %v5900 = vpop.f32.mrb[0].mxu0
        %v5901 = vadd.f32 0.0, %v5900
        %v5902 = vpop.f32.mrb[0].mxu0
        %v5903 = vadd.f32 0.0, %v5902
        %v5904 = vpop.f32.mrb[0].mxu0
        %v5905 = vadd.f32 0.0, %v5904
        %v5906 = vpop.f32.mrb[0].mxu0
        %v5907 = vadd.f32 0.0, %v5906
        %5908 = vmatprep.mubr.bf16.mxu0 %v5794
        %5909 = vmatmul.mubr.bf16.gmra.mrb[0].mxu0 %v5579
        %v5910 = vpop.f32.mrb[0].mxu0
        %v5911 = vadd.f32 0.0, %v5910
        %v5912 = vpop.f32.mrb[0].mxu0
        %v5913 = vadd.f32 0.0, %v5912
        %v5914 = vpop.f32.mrb[0].mxu0
        %v5915 = vadd.f32 0.0, %v5914
        %v5916 = vpop.f32.mrb[0].mxu0
        %v5917 = vadd.f32 0.0, %v5916
        %5918 = vmatprep.mubr.bf16.mxu0 %v5797
        %5919 = vmatmul.mubr.bf16.gmra.mrb[0].mxu0 %v5583
        %v5920 = vpop.f32.mrb[0].mxu0
        %v5921 = vadd.f32 0.0, %v5920
        %v5922 = vpop.f32.mrb[0].mxu0
        %v5923 = vadd.f32 0.0, %v5922
        %v5924 = vpop.f32.mrb[0].mxu0
        %v5925 = vadd.f32 0.0, %v5924
        %v5926 = vpop.f32.mrb[0].mxu0
        %v5927 = vadd.f32 0.0, %v5926
        %5928 = vmatprep.mubr.bf16.mxu0 %v5800
        %5929 = vmatmul.mubr.bf16.gmra.mrb[0].mxu0 %v5587
        %v5930 = vpop.f32.mrb[0].mxu0
        %v5931 = vadd.f32 0.0, %v5930
        %v5932 = vpop.f32.mrb[0].mxu0
        %v5933 = vadd.f32 0.0, %v5932
        %v5934 = vpop.f32.mrb[0].mxu0
        %v5935 = vadd.f32 0.0, %v5934
        %v5936 = vpop.f32.mrb[0].mxu0
        %v5937 = vadd.f32 0.0, %v5936
        %5938 = vmatprep.mubr.bf16.mxu0 %v5803
        %5939 = vmatmul.mubr.bf16.gmra.mrb[0].mxu0 %v5591
        %v5940 = vpop.f32.mrb[0].mxu0
        %v5941 = vadd.f32 0.0, %v5940
        %v5942 = vpop.f32.mrb[0].mxu0
        %v5943 = vadd.f32 0.0, %v5942
        %v5944 = vpop.f32.mrb[0].mxu0
        %v5945 = vadd.f32 0.0, %v5944
        %v5946 = vpop.f32.mrb[0].mxu0
        %v5947 = vadd.f32 0.0, %v5946
        %5948 = vmatprep.mubr.bf16.mxu0 %v5806
        %5949 = vmatmul.mubr.bf16.gmra.mrb[0].mxu0 %v5595
        %v5950 = vpop.f32.mrb[0].mxu0
        %v5951 = vadd.f32 0.0, %v5950
        %v5952 = vpop.f32.mrb[0].mxu0
        %v5953 = vadd.f32 0.0, %v5952
        %v5954 = vpop.f32.mrb[0].mxu0
        %v5955 = vadd.f32 0.0, %v5954
        %v5956 = vpop.f32.mrb[0].mxu0
        %v5957 = vadd.f32 0.0, %v5956
        %5958 = vmatprep.mubr.bf16.mxu0 %v5809
        %5959 = vmatmul.mubr.bf16.gmra.mrb[0].mxu0 %v5599
        %v5960 = vpop.f32.mrb[0].mxu0
        %v5961 = vadd.f32 0.0, %v5960
        %v5962 = vpop.f32.mrb[0].mxu0
        %v5963 = vadd.f32 0.0, %v5962
        %v5964 = vpop.f32.mrb[0].mxu0
        %v5965 = vadd.f32 0.0, %v5964
        %v5966 = vpop.f32.mrb[0].mxu0
        %v5967 = vadd.f32 0.0, %v5966
        %5968 = vmatprep.mubr.bf16.mxu0 %v5812
        %5969 = vmatmul.mubr.bf16.gmra.mrb[0].mxu0 %v5603
        %v5970 = vpop.f32.mrb[0].mxu0
        %v5971 = vadd.f32 0.0, %v5970
        %v5972 = vpop.f32.mrb[0].mxu0
        %v5973 = vadd.f32 0.0, %v5972
        %v5974 = vpop.f32.mrb[0].mxu0
        %v5975 = vadd.f32 0.0, %v5974
        %v5976 = vpop.f32.mrb[0].mxu0
        %v5977 = vadd.f32 0.0, %v5976
        %5978 = vmatprep.mubr.bf16.mxu0 %v5815
        %5979 = vmatmul.mubr.bf16.gmra.mrb[0].mxu0 %v5607
        %v5980 = vpop.f32.mrb[0].mxu0
        %v5981 = vadd.f32 0.0, %v5980
        %v5982 = vpop.f32.mrb[0].mxu0
        %v5983 = vadd.f32 0.0, %v5982
        %v5984 = vpop.f32.mrb[0].mxu0
        %v5985 = vadd.f32 0.0, %v5984
        %v5986 = vpop.f32.mrb[0].mxu0
        %v5987 = vadd.f32 0.0, %v5986
        %5988 = vmatprep.mubr.bf16.mxu0 %v5818
        %5989 = vmatmul.mubr.bf16.gmra.mrb[0].mxu0 %v5611
        %v5990 = vpop.f32.mrb[0].mxu0
        %v5991 = vadd.f32 0.0, %v5990
        %v5992 = vpop.f32.mrb[0].mxu0
        %v5993 = vadd.f32 0.0, %v5992
        %v5994 = vpop.f32.mrb[0].mxu0
        %v5995 = vadd.f32 0.0, %v5994
        %v5996 = vpop.f32.mrb[0].mxu0
        %v5997 = vadd.f32 0.0, %v5996
        %5998 = vmatprep.mubr.bf16.mxu0 %v5821
        %5999 = vmatmul.mubr.bf16.gmra.mrb[0].mxu0 %v5615
        %v6000 = vpop.f32.mrb[0].mxu0
        %v6001 = vadd.f32 0.0, %v6000
        %v6002 = vpop.f32.mrb[0].mxu0
        %v6003 = vadd.f32 0.0, %v6002
        %v6004 = vpop.f32.mrb[0].mxu0
        %v6005 = vadd.f32 0.0, %v6004
        %v6006 = vpop.f32.mrb[0].mxu0
        %v6007 = vadd.f32 0.0, %v6006
        %6008 = vmatprep.mubr.bf16.mxu0 %v5824
        %6009 = vmatmul.mubr.bf16.gmra.mrb[0].mxu0 %v5619
        %v6010 = vpop.f32.mrb[0].mxu0
        %v6011 = vadd.f32 0.0, %v6010
        %v6012 = vpop.f32.mrb[0].mxu0
        %v6013 = vadd.f32 0.0, %v6012
        %v6014 = vpop.f32.mrb[0].mxu0
        %v6015 = vadd.f32 0.0, %v6014
        %v6016 = vpop.f32.mrb[0].mxu0
        %v6017 = vadd.f32 0.0, %v6016
        %6018 = vdwg.mxu0
        %v6019 = vadd.f32 %v5450, %v5861
        %v6020 = vadd.f32 %v5451, %v5863
        %v6021 = vadd.f32 %v5452, %v5865
        %v6022 = vadd.f32 %v5453, %v5867
        %v6023 = vadd.f32 %v5454, %v5871
        %v6024 = vadd.f32 %v5455, %v5873
        %v6025 = vadd.f32 %v5456, %v5875
        %v6026 = vadd.f32 %v5457, %v5877
        %v6027 = vadd.f32 %v5458, %v5881
        %v6028 = vadd.f32 %v5459, %v5883
        %v6029 = vadd.f32 %v5460, %v5885
        %v6030 = vadd.f32 %v5461, %v5887
        %v6031 = vadd.f32 %v5462, %v5891
        %v6032 = vadd.f32 %v5463, %v5893
        %v6033 = vadd.f32 %v5464, %v5895
        %v6034 = vadd.f32 %v5465, %v5897
        %v6035 = vadd.f32 %v5466, %v5901
        %v6036 = vadd.f32 %v5467, %v5903
        %v6037 = vadd.f32 %v5468, %v5905
        %v6038 = vadd.f32 %v5469, %v5907
        %v6039 = vadd.f32 %v5470, %v5911
        %v6040 = vadd.f32 %v5471, %v5913
        %v6041 = vadd.f32 %v5472, %v5915
        %v6042 = vadd.f32 %v5473, %v5917
        %v6043 = vadd.f32 %v5474, %v5921
        %v6044 = vadd.f32 %v5475, %v5923
        %v6045 = vadd.f32 %v5476, %v5925
        %v6046 = vadd.f32 %v5477, %v5927
        %v6047 = vadd.f32 %v5478, %v5931
        %v6048 = vadd.f32 %v5479, %v5933
        %v6049 = vadd.f32 %v5480, %v5935
        %v6050 = vadd.f32 %v5481, %v5937
        %v6051 = vadd.f32 %v5482, %v5941
        %v6052 = vadd.f32 %v5483, %v5943
        %v6053 = vadd.f32 %v5484, %v5945
        %v6054 = vadd.f32 %v5485, %v5947
        %v6055 = vadd.f32 %v5486, %v5951
        %v6056 = vadd.f32 %v5487, %v5953
        %v6057 = vadd.f32 %v5488, %v5955
        %v6058 = vadd.f32 %v5489, %v5957
        %v6059 = vadd.f32 %v5490, %v5961
        %v6060 = vadd.f32 %v5491, %v5963
        %v6061 = vadd.f32 %v5492, %v5965
        %v6062 = vadd.f32 %v5493, %v5967
        %v6063 = vadd.f32 %v5494, %v5971
        %v6064 = vadd.f32 %v5495, %v5973
        %v6065 = vadd.f32 %v5496, %v5975
        %v6066 = vadd.f32 %v5497, %v5977
        %v6067 = vadd.f32 %v5498, %v5981
        %v6068 = vadd.f32 %v5499, %v5983
        %v6069 = vadd.f32 %v5500, %v5985
        %v6070 = vadd.f32 %v5501, %v5987
        %v6071 = vadd.f32 %v5502, %v5991
        %v6072 = vadd.f32 %v5503, %v5993
        %v6073 = vadd.f32 %v5504, %v5995
        %v6074 = vadd.f32 %v5505, %v5997
        %v6075 = vadd.f32 %v5506, %v6001
        %v6076 = vadd.f32 %v5507, %v6003
        %v6077 = vadd.f32 %v5508, %v6005
        %v6078 = vadd.f32 %v5509, %v6007
        %v6079 = vadd.f32 %v5510, %v6011
        %v6080 = vadd.f32 %v5511, %v6013
        %v6081 = vadd.f32 %v5512, %v6015
        %v6082 = vadd.f32 %v5513, %v6017
        %v6083 = vld [vmem:[#allocation3 + $0x100] sm:$0xff]
        %s6084 = scalar_lea.vmem %s3, 896
        %v6085 = vld [vmem:[%s6084] sm:$0xff]
        %v6086 = vld [vmem:[%s6084 + $0x8] sm:$0xff]
        %v6087 = vld [vmem:[%s6084 + $0x10] sm:$0xff]
        %v6088 = vld [vmem:[%s6084 + $0x18] sm:$0xff]
        %v6089 = vld [vmem:[%s6084 + $0x20] sm:$0xff]
        %v6090 = vld [vmem:[%s6084 + $0x28] sm:$0xff]
        %v6091 = vld [vmem:[%s6084 + $0x30] sm:$0xff]
        %v6092 = vld [vmem:[%s6084 + $0x38] sm:$0xff]
        %v6093 = vld [vmem:[%s6084 + $0x40] sm:$0xff]
        %v6094 = vld [vmem:[%s6084 + $0x48] sm:$0xff]
        %v6095 = vld [vmem:[%s6084 + $0x50] sm:$0xff]
        %v6096 = vld [vmem:[%s6084 + $0x58] sm:$0xff]
        %v6097 = vld [vmem:[%s6084 + $0x60] sm:$0xff]
        %v6098 = vld [vmem:[%s6084 + $0x68] sm:$0xff]
        %v6099 = vld [vmem:[%s6084 + $0x70] sm:$0xff]
        %v6100 = vld [vmem:[%s6084 + $0x78] sm:$0xff]
        %v6101 = vld [vmem:[%s6084 + $0x80] sm:$0xff]
        %v6102 = vld [vmem:[%s6084 + $0x88] sm:$0xff]
        %v6103 = vld [vmem:[%s6084 + $0x90] sm:$0xff]
        %v6104 = vld [vmem:[%s6084 + $0x98] sm:$0xff]
        %v6105 = vld [vmem:[%s6084 + $0xa0] sm:$0xff]
        %v6106 = vld [vmem:[%s6084 + $0xa8] sm:$0xff]
        %v6107 = vld [vmem:[%s6084 + $0xb0] sm:$0xff]
        %v6108 = vld [vmem:[%s6084 + $0xb8] sm:$0xff]
        %v6109 = vld [vmem:[%s6084 + $0xc0] sm:$0xff]
        %v6110 = vld [vmem:[%s6084 + $0xc8] sm:$0xff]
        %v6111 = vld [vmem:[%s6084 + $0xd0] sm:$0xff]
        %v6112 = vld [vmem:[%s6084 + $0xd8] sm:$0xff]
        %v6114 = vunpack.c.l.b16 %v6083
        %v6115 = vunpack.c.h.b16 %v6083
        %v6116 = vpack.c.b16 %v3984, %v3982
        %v6117 = vpack.c.b16 %v3985, %v3983
        %v6118 = vpack.c.b16 %v3988, %v3986
        %v6119 = vpack.c.b16 %v3989, %v3987
        %v6120 = vpack.c.b16 %v3992, %v3990
        %v6121 = vpack.c.b16 %v3993, %v3991
        %v6122 = vpack.c.b16 %v3996, %v3994
        %v6123 = vpack.c.b16 %v3997, %v3995
        %v6124 = vpack.c.b16 %v4000, %v3998
        %v6125 = vpack.c.b16 %v4001, %v3999
        %v6126 = vpack.c.b16 %v4004, %v4002
        %v6127 = vpack.c.b16 %v4005, %v4003
        %v6128 = vpack.c.b16 %v4008, %v4006
        %v6129 = vpack.c.b16 %v4009, %v4007
        %v6130 = vpack.c.b16 %v4012, %v4010
        %v6131 = vpack.c.b16 %v4013, %v4011
        %v6132 = vpack.c.b16 %v4016, %v4014
        %v6133 = vpack.c.b16 %v4017, %v4015
        %v6134 = vpack.c.b16 %v4020, %v4018
        %v6135 = vpack.c.b16 %v4021, %v4019
        %v6136 = vpack.c.b16 %v4024, %v4022
        %v6137 = vpack.c.b16 %v4025, %v4023
        %v6138 = vpack.c.b16 %v4028, %v4026
        %v6139 = vpack.c.b16 %v4029, %v4027
        %v6140 = vpack.c.b16 %v4032, %v4030
        %v6141 = vpack.c.b16 %v4033, %v4031
        %v6142 = vpack.c.b16 %v4036, %v4034
        %v6143 = vpack.c.b16 %v4037, %v4035
        %v6144 = vpack.c.b16 %v4040, %v4038
        %v6145 = vpack.c.b16 %v4041, %v4039
        %v6146 = vpack.c.b16 %v6114, %v4042
        %v6147 = vpack.c.b16 %v6115, %v4043
        %v6192 = vunpack.c.l.b16 %v6085
        %v6193 = vunpack.c.h.b16 %v6085
        %v6194 = vunpack.c.l.b16 %v6086
        %v6195 = vunpack.c.h.b16 %v6086
        %v6196 = vunpack.c.l.b16 %v6087
        %v6197 = vunpack.c.h.b16 %v6087
        %v6198 = vunpack.c.l.b16 %v6088
        %v6199 = vunpack.c.h.b16 %v6088
        %v6200 = vunpack.c.l.b16 %v6089
        %v6201 = vunpack.c.h.b16 %v6089
        %v6202 = vunpack.c.l.b16 %v6090
        %v6203 = vunpack.c.h.b16 %v6090
        %v6204 = vunpack.c.l.b16 %v6091
        %v6205 = vunpack.c.h.b16 %v6091
        %v6206 = vunpack.c.l.b16 %v6092
        %v6207 = vunpack.c.h.b16 %v6092
        %v6208 = vunpack.c.l.b16 %v6093
        %v6209 = vunpack.c.h.b16 %v6093
        %v6210 = vunpack.c.l.b16 %v6094
        %v6211 = vunpack.c.h.b16 %v6094
        %v6212 = vunpack.c.l.b16 %v6095
        %v6213 = vunpack.c.h.b16 %v6095
        %v6214 = vunpack.c.l.b16 %v6096
        %v6215 = vunpack.c.h.b16 %v6096
        %v6216 = vunpack.c.l.b16 %v6097
        %v6217 = vunpack.c.h.b16 %v6097
        %v6218 = vunpack.c.l.b16 %v6098
        %v6219 = vunpack.c.h.b16 %v6098
        %v6220 = vunpack.c.l.b16 %v6099
        %v6221 = vunpack.c.h.b16 %v6099
        %v6222 = vunpack.c.l.b16 %v6100
        %v6223 = vunpack.c.h.b16 %v6100
        %v6224 = vunpack.c.l.b16 %v6101
        %v6225 = vunpack.c.h.b16 %v6101
        %v6226 = vunpack.c.l.b16 %v6102
        %v6227 = vunpack.c.h.b16 %v6102
        %v6228 = vunpack.c.l.b16 %v6103
        %v6229 = vunpack.c.h.b16 %v6103
        %v6230 = vunpack.c.l.b16 %v6104
        %v6231 = vunpack.c.h.b16 %v6104
        %v6232 = vunpack.c.l.b16 %v6105
        %v6233 = vunpack.c.h.b16 %v6105
        %v6234 = vunpack.c.l.b16 %v6106
        %v6235 = vunpack.c.h.b16 %v6106
        %v6236 = vunpack.c.l.b16 %v6107
        %v6237 = vunpack.c.h.b16 %v6107
        %v6238 = vunpack.c.l.b16 %v6108
        %v6239 = vunpack.c.h.b16 %v6108
        %v6240 = vunpack.c.l.b16 %v6109
        %v6241 = vunpack.c.h.b16 %v6109
        %v6242 = vunpack.c.l.b16 %v6110
        %v6243 = vunpack.c.h.b16 %v6110
        %v6244 = vunpack.c.l.b16 %v6111
        %v6245 = vunpack.c.h.b16 %v6111
        %v6246 = vunpack.c.l.b16 %v6112
        %v6247 = vunpack.c.h.b16 %v6112
        %v6248 = vpack.c.b16 %v6194, %v6192
        %v6249 = vpack.c.b16 %v6195, %v6193
        %v6250 = vpack.c.b16 %v6198, %v6196
        %v6251 = vpack.c.b16 %v6199, %v6197
        %v6252 = vpack.c.b16 %v6202, %v6200
        %v6253 = vpack.c.b16 %v6203, %v6201
        %v6254 = vpack.c.b16 %v6206, %v6204
        %v6255 = vpack.c.b16 %v6207, %v6205
        %v6256 = vpack.c.b16 %v6210, %v6208
        %v6257 = vpack.c.b16 %v6211, %v6209
        %v6258 = vpack.c.b16 %v6214, %v6212
        %v6259 = vpack.c.b16 %v6215, %v6213
        %v6260 = vpack.c.b16 %v6218, %v6216
        %v6261 = vpack.c.b16 %v6219, %v6217
        %v6262 = vpack.c.b16 %v6222, %v6220
        %v6263 = vpack.c.b16 %v6223, %v6221
        %v6264 = vpack.c.b16 %v6226, %v6224
        %v6265 = vpack.c.b16 %v6227, %v6225
        %v6266 = vpack.c.b16 %v6230, %v6228
        %v6267 = vpack.c.b16 %v6231, %v6229
        %v6268 = vpack.c.b16 %v6234, %v6232
        %v6269 = vpack.c.b16 %v6235, %v6233
        %v6270 = vpack.c.b16 %v6238, %v6236
        %v6271 = vpack.c.b16 %v6239, %v6237
        %v6272 = vpack.c.b16 %v6242, %v6240
        %v6273 = vpack.c.b16 %v6243, %v6241
        %v6274 = vpack.c.b16 %v6246, %v6244
        %v6275 = vpack.c.b16 %v6247, %v6245
        %v6305 = vsel %vm4302, %v6117, 0
        %v6308 = vsel %vm4302, %v6119, 0
        %v6311 = vsel %vm4302, %v6121, 0
        %v6314 = vsel %vm4302, %v6123, 0
        %v6317 = vsel %vm4302, %v6125, 0
        %v6320 = vsel %vm4302, %v6127, 0
        %v6323 = vsel %vm4302, %v6129, 0
        %v6326 = vsel %vm4302, %v6131, 0
        %v6329 = vsel %vm4302, %v6133, 0
        %v6332 = vsel %vm4302, %v6135, 0
        %v6335 = vsel %vm4302, %v6137, 0
        %v6338 = vsel %vm4302, %v6139, 0
        %v6341 = vsel %vm4302, %v6141, 0
        %v6344 = vsel %vm4302, %v6143, 0
        %v6347 = vsel %vm4302, %v6145, 0
        %v6350 = vsel %vm4302, %v6147, 0
        %6352 = vmatprep.subr.bf16.mxu0 %v6249
        %6353 = vmatpush1.bf16.msra.mxu0 %v6248
        %6354 = vmatprep.subr.bf16.mxu0 %v6251
        %6355 = vmatpush1.bf16.msra.mxu0 %v6250
        %6356 = vmatprep.subr.bf16.mxu0 %v6253
        %6357 = vmatpush1.bf16.msra.mxu0 %v6252
        %6358 = vmatprep.subr.bf16.mxu0 %v6255
        %6359 = vmatpush1.bf16.msra.mxu0 %v6254
        %6360 = vmatprep.subr.bf16.mxu0 %v6257
        %6361 = vmatpush1.bf16.msra.mxu0 %v6256
        %6362 = vmatprep.subr.bf16.mxu0 %v6259
        %6363 = vmatpush1.bf16.msra.mxu0 %v6258
        %6364 = vmatprep.subr.bf16.mxu0 %v6261
        %6365 = vmatpush1.bf16.msra.mxu0 %v6260
        %6366 = vmatprep.subr.bf16.mxu0 %v6263
        %6367 = vmatpush1.bf16.msra.mxu0 %v6262
        %6368 = vmatprep.subr.bf16.mxu0 %v6265
        %6369 = vmatpush1.bf16.msra.mxu0 %v6264
        %6370 = vmatprep.subr.bf16.mxu0 %v6267
        %6371 = vmatpush1.bf16.msra.mxu0 %v6266
        %6372 = vmatprep.subr.bf16.mxu0 %v6269
        %6373 = vmatpush1.bf16.msra.mxu0 %v6268
        %6374 = vmatprep.subr.bf16.mxu0 %v6271
        %6375 = vmatpush1.bf16.msra.mxu0 %v6270
        %6376 = vmatprep.subr.bf16.mxu0 %v6273
        %6377 = vmatpush1.bf16.msra.mxu0 %v6272
        %6378 = vmatprep.subr.bf16.mxu0 %v6275
        %6379 = vmatpush1.bf16.msra.mxu0 %v6274
        %6380 = vmatprep.subr.bf16.mxu0 0
        %6381 = vmatpush1.bf16.msra.mxu0 0
        %6382 = vmatprep.subr.bf16.mxu0 0
        %6383 = vmatpush1.bf16.msra.mxu0 0
        %6384 = vmatprep.mubr.bf16.mxu0 %v6305
        %6385 = vmatmul.mubr.bf16.gmra.mrb[0].mxu0 %v6116
        %v6386 = vpop.f32.mrb[0].mxu0
        %v6387 = vadd.f32 0.0, %v6386
        %v6388 = vpop.f32.mrb[0].mxu0
        %v6389 = vadd.f32 0.0, %v6388
        %v6390 = vpop.f32.mrb[0].mxu0
        %v6391 = vadd.f32 0.0, %v6390
        %v6392 = vpop.f32.mrb[0].mxu0
        %v6393 = vadd.f32 0.0, %v6392
        %6394 = vmatprep.mubr.bf16.mxu0 %v6308
        %6395 = vmatmul.mubr.bf16.gmra.mrb[0].mxu0 %v6118
        %v6396 = vpop.f32.mrb[0].mxu0
        %v6397 = vadd.f32 0.0, %v6396
        %v6398 = vpop.f32.mrb[0].mxu0
        %v6399 = vadd.f32 0.0, %v6398
        %v6400 = vpop.f32.mrb[0].mxu0
        %v6401 = vadd.f32 0.0, %v6400
        %v6402 = vpop.f32.mrb[0].mxu0
        %v6403 = vadd.f32 0.0, %v6402
        %6404 = vmatprep.mubr.bf16.mxu0 %v6311
        %6405 = vmatmul.mubr.bf16.gmra.mrb[0].mxu0 %v6120
        %v6406 = vpop.f32.mrb[0].mxu0
        %v6407 = vadd.f32 0.0, %v6406
        %v6408 = vpop.f32.mrb[0].mxu0
        %v6409 = vadd.f32 0.0, %v6408
        %v6410 = vpop.f32.mrb[0].mxu0
        %v6411 = vadd.f32 0.0, %v6410
        %v6412 = vpop.f32.mrb[0].mxu0
        %v6413 = vadd.f32 0.0, %v6412
        %6414 = vmatprep.mubr.bf16.mxu0 %v6314
        %6415 = vmatmul.mubr.bf16.gmra.mrb[0].mxu0 %v6122
        %v6416 = vpop.f32.mrb[0].mxu0
        %v6417 = vadd.f32 0.0, %v6416
        %v6418 = vpop.f32.mrb[0].mxu0
        %v6419 = vadd.f32 0.0, %v6418
        %v6420 = vpop.f32.mrb[0].mxu0
        %v6421 = vadd.f32 0.0, %v6420
        %v6422 = vpop.f32.mrb[0].mxu0
        %v6423 = vadd.f32 0.0, %v6422
        %6424 = vmatprep.mubr.bf16.mxu0 %v6317
        %6425 = vmatmul.mubr.bf16.gmra.mrb[0].mxu0 %v6124
        %v6426 = vpop.f32.mrb[0].mxu0
        %v6427 = vadd.f32 0.0, %v6426
        %v6428 = vpop.f32.mrb[0].mxu0
        %v6429 = vadd.f32 0.0, %v6428
        %v6430 = vpop.f32.mrb[0].mxu0
        %v6431 = vadd.f32 0.0, %v6430
        %v6432 = vpop.f32.mrb[0].mxu0
        %v6433 = vadd.f32 0.0, %v6432
        %6434 = vmatprep.mubr.bf16.mxu0 %v6320
        %6435 = vmatmul.mubr.bf16.gmra.mrb[0].mxu0 %v6126
        %v6436 = vpop.f32.mrb[0].mxu0
        %v6437 = vadd.f32 0.0, %v6436
        %v6438 = vpop.f32.mrb[0].mxu0
        %v6439 = vadd.f32 0.0, %v6438
        %v6440 = vpop.f32.mrb[0].mxu0
        %v6441 = vadd.f32 0.0, %v6440
        %v6442 = vpop.f32.mrb[0].mxu0
        %v6443 = vadd.f32 0.0, %v6442
        %6444 = vmatprep.mubr.bf16.mxu0 %v6323
        %6445 = vmatmul.mubr.bf16.gmra.mrb[0].mxu0 %v6128
        %v6446 = vpop.f32.mrb[0].mxu0
        %v6447 = vadd.f32 0.0, %v6446
        %v6448 = vpop.f32.mrb[0].mxu0
        %v6449 = vadd.f32 0.0, %v6448
        %v6450 = vpop.f32.mrb[0].mxu0
        %v6451 = vadd.f32 0.0, %v6450
        %v6452 = vpop.f32.mrb[0].mxu0
        %v6453 = vadd.f32 0.0, %v6452
        %6454 = vmatprep.mubr.bf16.mxu0 %v6326
        %6455 = vmatmul.mubr.bf16.gmra.mrb[0].mxu0 %v6130
        %v6456 = vpop.f32.mrb[0].mxu0
        %v6457 = vadd.f32 0.0, %v6456
        %v6458 = vpop.f32.mrb[0].mxu0
        %v6459 = vadd.f32 0.0, %v6458
        %v6460 = vpop.f32.mrb[0].mxu0
        %v6461 = vadd.f32 0.0, %v6460
        %v6462 = vpop.f32.mrb[0].mxu0
        %v6463 = vadd.f32 0.0, %v6462
        %6464 = vmatprep.mubr.bf16.mxu0 %v6329
        %6465 = vmatmul.mubr.bf16.gmra.mrb[0].mxu0 %v6132
        %v6466 = vpop.f32.mrb[0].mxu0
        %v6467 = vadd.f32 0.0, %v6466
        %v6468 = vpop.f32.mrb[0].mxu0
        %v6469 = vadd.f32 0.0, %v6468
        %v6470 = vpop.f32.mrb[0].mxu0
        %v6471 = vadd.f32 0.0, %v6470
        %v6472 = vpop.f32.mrb[0].mxu0
        %v6473 = vadd.f32 0.0, %v6472
        %6474 = vmatprep.mubr.bf16.mxu0 %v6332
        %6475 = vmatmul.mubr.bf16.gmra.mrb[0].mxu0 %v6134
        %v6476 = vpop.f32.mrb[0].mxu0
        %v6477 = vadd.f32 0.0, %v6476
        %v6478 = vpop.f32.mrb[0].mxu0
        %v6479 = vadd.f32 0.0, %v6478
        %v6480 = vpop.f32.mrb[0].mxu0
        %v6481 = vadd.f32 0.0, %v6480
        %v6482 = vpop.f32.mrb[0].mxu0
        %v6483 = vadd.f32 0.0, %v6482
        %6484 = vmatprep.mubr.bf16.mxu0 %v6335
        %6485 = vmatmul.mubr.bf16.gmra.mrb[0].mxu0 %v6136
        %v6486 = vpop.f32.mrb[0].mxu0
        %v6487 = vadd.f32 0.0, %v6486
        %v6488 = vpop.f32.mrb[0].mxu0
        %v6489 = vadd.f32 0.0, %v6488
        %v6490 = vpop.f32.mrb[0].mxu0
        %v6491 = vadd.f32 0.0, %v6490
        %v6492 = vpop.f32.mrb[0].mxu0
        %v6493 = vadd.f32 0.0, %v6492
        %6494 = vmatprep.mubr.bf16.mxu0 %v6338
        %6495 = vmatmul.mubr.bf16.gmra.mrb[0].mxu0 %v6138
        %v6496 = vpop.f32.mrb[0].mxu0
        %v6497 = vadd.f32 0.0, %v6496
        %v6498 = vpop.f32.mrb[0].mxu0
        %v6499 = vadd.f32 0.0, %v6498
        %v6500 = vpop.f32.mrb[0].mxu0
        %v6501 = vadd.f32 0.0, %v6500
        %v6502 = vpop.f32.mrb[0].mxu0
        %v6503 = vadd.f32 0.0, %v6502
        %6504 = vmatprep.mubr.bf16.mxu0 %v6341
        %6505 = vmatmul.mubr.bf16.gmra.mrb[0].mxu0 %v6140
        %v6506 = vpop.f32.mrb[0].mxu0
        %v6507 = vadd.f32 0.0, %v6506
        %v6508 = vpop.f32.mrb[0].mxu0
        %v6509 = vadd.f32 0.0, %v6508
        %v6510 = vpop.f32.mrb[0].mxu0
        %v6511 = vadd.f32 0.0, %v6510
        %v6512 = vpop.f32.mrb[0].mxu0
        %v6513 = vadd.f32 0.0, %v6512
        %6514 = vmatprep.mubr.bf16.mxu0 %v6344
        %6515 = vmatmul.mubr.bf16.gmra.mrb[0].mxu0 %v6142
        %v6516 = vpop.f32.mrb[0].mxu0
        %v6517 = vadd.f32 0.0, %v6516
        %v6518 = vpop.f32.mrb[0].mxu0
        %v6519 = vadd.f32 0.0, %v6518
        %v6520 = vpop.f32.mrb[0].mxu0
        %v6521 = vadd.f32 0.0, %v6520
        %v6522 = vpop.f32.mrb[0].mxu0
        %v6523 = vadd.f32 0.0, %v6522
        %6524 = vmatprep.mubr.bf16.mxu0 %v6347
        %6525 = vmatmul.mubr.bf16.gmra.mrb[0].mxu0 %v6144
        %v6526 = vpop.f32.mrb[0].mxu0
        %v6527 = vadd.f32 0.0, %v6526
        %v6528 = vpop.f32.mrb[0].mxu0
        %v6529 = vadd.f32 0.0, %v6528
        %v6530 = vpop.f32.mrb[0].mxu0
        %v6531 = vadd.f32 0.0, %v6530
        %v6532 = vpop.f32.mrb[0].mxu0
        %v6533 = vadd.f32 0.0, %v6532
        %6534 = vmatprep.mubr.bf16.mxu0 %v6350
        %6535 = vmatmul.mubr.bf16.gmra.mrb[0].mxu0 %v6146
        %v6536 = vpop.f32.mrb[0].mxu0
        %v6537 = vadd.f32 0.0, %v6536
        %v6538 = vpop.f32.mrb[0].mxu0
        %v6539 = vadd.f32 0.0, %v6538
        %v6540 = vpop.f32.mrb[0].mxu0
        %v6541 = vadd.f32 0.0, %v6540
        %v6542 = vpop.f32.mrb[0].mxu0
        %v6543 = vadd.f32 0.0, %v6542
        %6544 = vdwg.mxu0
        %v6545 = vadd.f32 %v6019, %v6387
        %v6546 = vadd.f32 %v6020, %v6389
        %v6547 = vadd.f32 %v6021, %v6391
        %v6548 = vadd.f32 %v6022, %v6393
        %v6549 = vadd.f32 %v6023, %v6397
        %v6550 = vadd.f32 %v6024, %v6399
        %v6551 = vadd.f32 %v6025, %v6401
        %v6552 = vadd.f32 %v6026, %v6403
        %v6553 = vadd.f32 %v6027, %v6407
        %v6554 = vadd.f32 %v6028, %v6409
        %v6555 = vadd.f32 %v6029, %v6411
        %v6556 = vadd.f32 %v6030, %v6413
        %v6557 = vadd.f32 %v6031, %v6417
        %v6558 = vadd.f32 %v6032, %v6419
        %v6559 = vadd.f32 %v6033, %v6421
        %v6560 = vadd.f32 %v6034, %v6423
        %v6561 = vadd.f32 %v6035, %v6427
        %v6562 = vadd.f32 %v6036, %v6429
        %v6563 = vadd.f32 %v6037, %v6431
        %v6564 = vadd.f32 %v6038, %v6433
        %v6565 = vadd.f32 %v6039, %v6437
        %v6566 = vadd.f32 %v6040, %v6439
        %v6567 = vadd.f32 %v6041, %v6441
        %v6568 = vadd.f32 %v6042, %v6443
        %v6569 = vadd.f32 %v6043, %v6447
        %v6570 = vadd.f32 %v6044, %v6449
        %v6571 = vadd.f32 %v6045, %v6451
        %v6572 = vadd.f32 %v6046, %v6453
        %v6573 = vadd.f32 %v6047, %v6457
        %v6574 = vadd.f32 %v6048, %v6459
        %v6575 = vadd.f32 %v6049, %v6461
        %v6576 = vadd.f32 %v6050, %v6463
        %v6577 = vadd.f32 %v6051, %v6467
        %v6578 = vadd.f32 %v6052, %v6469
        %v6579 = vadd.f32 %v6053, %v6471
        %v6580 = vadd.f32 %v6054, %v6473
        %v6581 = vadd.f32 %v6055, %v6477
        %v6582 = vadd.f32 %v6056, %v6479
        %v6583 = vadd.f32 %v6057, %v6481
        %v6584 = vadd.f32 %v6058, %v6483
        %v6585 = vadd.f32 %v6059, %v6487
        %v6586 = vadd.f32 %v6060, %v6489
        %v6587 = vadd.f32 %v6061, %v6491
        %v6588 = vadd.f32 %v6062, %v6493
        %v6589 = vadd.f32 %v6063, %v6497
        %v6590 = vadd.f32 %v6064, %v6499
        %v6591 = vadd.f32 %v6065, %v6501
        %v6592 = vadd.f32 %v6066, %v6503
        %v6593 = vadd.f32 %v6067, %v6507
        %v6594 = vadd.f32 %v6068, %v6509
        %v6595 = vadd.f32 %v6069, %v6511
        %v6596 = vadd.f32 %v6070, %v6513
        %v6597 = vadd.f32 %v6071, %v6517
        %v6598 = vadd.f32 %v6072, %v6519
        %v6599 = vadd.f32 %v6073, %v6521
        %v6600 = vadd.f32 %v6074, %v6523
        %v6601 = vadd.f32 %v6075, %v6527
        %v6602 = vadd.f32 %v6076, %v6529
        %v6603 = vadd.f32 %v6077, %v6531
        %v6604 = vadd.f32 %v6078, %v6533
        %v6605 = vadd.f32 %v6079, %v6537
        %v6606 = vadd.f32 %v6080, %v6539
        %v6607 = vadd.f32 %v6081, %v6541
        %v6608 = vadd.f32 %v6082, %v6543
        %v6609 = vld [vmem:[%s4] sm:$0x3]
        %v6611 = vlaneseq
        %v6612 = vshrl.u32 %v6611, 7
        %v6613 = vsub.s32 0, %v6612
        %v6614 = vrot.slane %v6609, %v6613
        %v6615 = vlaneseq
        %v6616 = vshrl.u32 %v6615, 7
        %v6617 = vsub.s32 1, %v6616
        %v6618 = vrot.slane %v6609, %v6617
        %v6621 = vadd.f32 %v6545, %v6614
        %v6622 = vadd.f32 %v6546, %v6618
        %v6623 = vadd.f32 %v6547, %v6614
        %v6624 = vadd.f32 %v6548, %v6618
        %v6625 = vadd.f32 %v6549, %v6614
        %v6626 = vadd.f32 %v6550, %v6618
        %v6627 = vadd.f32 %v6551, %v6614
        %v6628 = vadd.f32 %v6552, %v6618
        %v6629 = vadd.f32 %v6553, %v6614
        %v6630 = vadd.f32 %v6554, %v6618
        %v6631 = vadd.f32 %v6555, %v6614
        %v6632 = vadd.f32 %v6556, %v6618
        %v6633 = vadd.f32 %v6557, %v6614
        %v6634 = vadd.f32 %v6558, %v6618
        %v6635 = vadd.f32 %v6559, %v6614
        %v6636 = vadd.f32 %v6560, %v6618
        %v6637 = vadd.f32 %v6561, %v6614
        %v6638 = vadd.f32 %v6562, %v6618
        %v6639 = vadd.f32 %v6563, %v6614
        %v6640 = vadd.f32 %v6564, %v6618
        %v6641 = vadd.f32 %v6565, %v6614
        %v6642 = vadd.f32 %v6566, %v6618
        %v6643 = vadd.f32 %v6567, %v6614
        %v6644 = vadd.f32 %v6568, %v6618
        %v6645 = vadd.f32 %v6569, %v6614
        %v6646 = vadd.f32 %v6570, %v6618
        %v6647 = vadd.f32 %v6571, %v6614
        %v6648 = vadd.f32 %v6572, %v6618
        %v6649 = vadd.f32 %v6573, %v6614
        %v6650 = vadd.f32 %v6574, %v6618
        %v6651 = vadd.f32 %v6575, %v6614
        %v6652 = vadd.f32 %v6576, %v6618
        %v6653 = vadd.f32 %v6577, %v6614
        %v6654 = vadd.f32 %v6578, %v6618
        %v6655 = vadd.f32 %v6579, %v6614
        %v6656 = vadd.f32 %v6580, %v6618
        %v6657 = vadd.f32 %v6581, %v6614
        %v6658 = vadd.f32 %v6582, %v6618
        %v6659 = vadd.f32 %v6583, %v6614
        %v6660 = vadd.f32 %v6584, %v6618
        %v6661 = vadd.f32 %v6585, %v6614
        %v6662 = vadd.f32 %v6586, %v6618
        %v6663 = vadd.f32 %v6587, %v6614
        %v6664 = vadd.f32 %v6588, %v6618
        %v6665 = vadd.f32 %v6589, %v6614
        %v6666 = vadd.f32 %v6590, %v6618
        %v6667 = vadd.f32 %v6591, %v6614
        %v6668 = vadd.f32 %v6592, %v6618
        %v6669 = vadd.f32 %v6593, %v6614
        %v6670 = vadd.f32 %v6594, %v6618
        %v6671 = vadd.f32 %v6595, %v6614
        %v6672 = vadd.f32 %v6596, %v6618
        %v6673 = vadd.f32 %v6597, %v6614
        %v6674 = vadd.f32 %v6598, %v6618
        %v6675 = vadd.f32 %v6599, %v6614
        %v6676 = vadd.f32 %v6600, %v6618
        %v6677 = vadd.f32 %v6601, %v6614
        %v6678 = vadd.f32 %v6602, %v6618
        %v6679 = vadd.f32 %v6603, %v6614
        %v6680 = vadd.f32 %v6604, %v6618
        %v6681 = vadd.f32 %v6605, %v6614
        %v6682 = vadd.f32 %v6606, %v6618
        %v6683 = vadd.f32 %v6607, %v6614
        %v6684 = vadd.f32 %v6608, %v6618
        %6685 = vst [vmem:[#allocation4] sm:$0xff] %v6621
        %vm6686 = vcmask 261120
        %6687 = vst.msk [vmem:[#allocation4 + $0x8] sm:$0xff] %vm6686, %v6622
        %6688 = vst [vmem:[#allocation4 + $0x10] sm:$0xff] %v6623
        %6689 = vst.msk [vmem:[#allocation4 + $0x18] sm:$0xff] %vm6686, %v6624
        %6690 = vst [vmem:[#allocation4 + $0x20] sm:$0xff] %v6625
        %6691 = vst.msk [vmem:[#allocation4 + $0x28] sm:$0xff] %vm6686, %v6626
        %6692 = vst [vmem:[#allocation4 + $0x30] sm:$0xff] %v6627
        %6693 = vst.msk [vmem:[#allocation4 + $0x38] sm:$0xff] %vm6686, %v6628
        %6694 = vst [vmem:[#allocation4 + $0x40] sm:$0xff] %v6629
        %6695 = vst.msk [vmem:[#allocation4 + $0x48] sm:$0xff] %vm6686, %v6630
        %6696 = vst [vmem:[#allocation4 + $0x50] sm:$0xff] %v6631
        %6697 = vst.msk [vmem:[#allocation4 + $0x58] sm:$0xff] %vm6686, %v6632
        %6698 = vst [vmem:[#allocation4 + $0x60] sm:$0xff] %v6633
        %6699 = vst.msk [vmem:[#allocation4 + $0x68] sm:$0xff] %vm6686, %v6634
        %6700 = vst [vmem:[#allocation4 + $0x70] sm:$0xff] %v6635
        %6701 = vst.msk [vmem:[#allocation4 + $0x78] sm:$0xff] %vm6686, %v6636
        %6702 = vst [vmem:[#allocation4 + $0x80] sm:$0xff] %v6637
        %6703 = vst.msk [vmem:[#allocation4 + $0x88] sm:$0xff] %vm6686, %v6638
        %6704 = vst [vmem:[#allocation4 + $0x90] sm:$0xff] %v6639
        %6705 = vst.msk [vmem:[#allocation4 + $0x98] sm:$0xff] %vm6686, %v6640
        %6706 = vst [vmem:[#allocation4 + $0xa0] sm:$0xff] %v6641
        %6707 = vst.msk [vmem:[#allocation4 + $0xa8] sm:$0xff] %vm6686, %v6642
        %6708 = vst [vmem:[#allocation4 + $0xb0] sm:$0xff] %v6643
        %6709 = vst.msk [vmem:[#allocation4 + $0xb8] sm:$0xff] %vm6686, %v6644
        %6710 = vst [vmem:[#allocation4 + $0xc0] sm:$0xff] %v6645
        %6711 = vst.msk [vmem:[#allocation4 + $0xc8] sm:$0xff] %vm6686, %v6646
        %6712 = vst [vmem:[#allocation4 + $0xd0] sm:$0xff] %v6647
        %6713 = vst.msk [vmem:[#allocation4 + $0xd8] sm:$0xff] %vm6686, %v6648
        %6714 = vst [vmem:[#allocation4 + $0xe0] sm:$0xff] %v6649
        %6715 = vst.msk [vmem:[#allocation4 + $0xe8] sm:$0xff] %vm6686, %v6650
        %6716 = vst [vmem:[#allocation4 + $0xf0] sm:$0xff] %v6651
        %6717 = vst.msk [vmem:[#allocation4 + $0xf8] sm:$0xff] %vm6686, %v6652
        %6718 = vst [vmem:[#allocation4 + $0x100] sm:$0xff] %v6653
        %6719 = vst.msk [vmem:[#allocation4 + $0x108] sm:$0xff] %vm6686, %v6654
        %6720 = vst [vmem:[#allocation4 + $0x110] sm:$0xff] %v6655
        %6721 = vst.msk [vmem:[#allocation4 + $0x118] sm:$0xff] %vm6686, %v6656
        %6722 = vst [vmem:[#allocation4 + $0x120] sm:$0xff] %v6657
        %6723 = vst.msk [vmem:[#allocation4 + $0x128] sm:$0xff] %vm6686, %v6658
        %6724 = vst [vmem:[#allocation4 + $0x130] sm:$0xff] %v6659
        %6725 = vst.msk [vmem:[#allocation4 + $0x138] sm:$0xff] %vm6686, %v6660
        %6726 = vst [vmem:[#allocation4 + $0x140] sm:$0xff] %v6661
        %6727 = vst.msk [vmem:[#allocation4 + $0x148] sm:$0xff] %vm6686, %v6662
        %6728 = vst [vmem:[#allocation4 + $0x150] sm:$0xff] %v6663
        %6729 = vst.msk [vmem:[#allocation4 + $0x158] sm:$0xff] %vm6686, %v6664
        %6730 = vst [vmem:[#allocation4 + $0x160] sm:$0xff] %v6665
        %6731 = vst.msk [vmem:[#allocation4 + $0x168] sm:$0xff] %vm6686, %v6666
        %6732 = vst [vmem:[#allocation4 + $0x170] sm:$0xff] %v6667
        %6733 = vst.msk [vmem:[#allocation4 + $0x178] sm:$0xff] %vm6686, %v6668
        %6734 = vst [vmem:[#allocation4 + $0x180] sm:$0xff] %v6669
        %6735 = vst.msk [vmem:[#allocation4 + $0x188] sm:$0xff] %vm6686, %v6670
        %6736 = vst [vmem:[#allocation4 + $0x190] sm:$0xff] %v6671
        %6737 = vst.msk [vmem:[#allocation4 + $0x198] sm:$0xff] %vm6686, %v6672
        %6738 = vst [vmem:[#allocation4 + $0x1a0] sm:$0xff] %v6673
        %6739 = vst.msk [vmem:[#allocation4 + $0x1a8] sm:$0xff] %vm6686, %v6674
        %6740 = vst [vmem:[#allocation4 + $0x1b0] sm:$0xff] %v6675
        %6741 = vst.msk [vmem:[#allocation4 + $0x1b8] sm:$0xff] %vm6686, %v6676
        %6742 = vst [vmem:[#allocation4 + $0x1c0] sm:$0xff] %v6677
        %6743 = vst.msk [vmem:[#allocation4 + $0x1c8] sm:$0xff] %vm6686, %v6678
        %6744 = vst [vmem:[#allocation4 + $0x1d0] sm:$0xff] %v6679
        %6745 = vst.msk [vmem:[#allocation4 + $0x1d8] sm:$0xff] %vm6686, %v6680
        %6746 = vst [vmem:[#allocation4 + $0x1e0] sm:$0xff] %v6681
        %6747 = vst.msk [vmem:[#allocation4 + $0x1e8] sm:$0xff] %vm6686, %v6682
        %6748 = vst [vmem:[#allocation4 + $0x1f0] sm:$0xff] %v6683
        %6749 = vst.msk [vmem:[#allocation4 + $0x1f8] sm:$0xff] %vm6686, %v6684
        %6750 = vst [vmem:[#allocation4 + $0x200] sm:$0xff] 0.0
        %6751 = vst.msk [vmem:[#allocation4 + $0x208] sm:$0xff] %vm6686, 0.0
        %v6752 = vld [vmem:[#allocation4] sm:$0xff]
        %v6753 = vld [vmem:[#allocation4 + $0x8] sm:$0xff]
        %v6754 = vld [vmem:[#allocation4 + $0x10] sm:$0xff]
        %v6755 = vld [vmem:[#allocation4 + $0x18] sm:$0xff]
        %v6756 = vld [vmem:[#allocation4 + $0x20] sm:$0xff]
        %v6757 = vld [vmem:[#allocation4 + $0x28] sm:$0xff]
        %v6758 = vld [vmem:[#allocation4 + $0x30] sm:$0xff]
        %v6759 = vld [vmem:[#allocation4 + $0x38] sm:$0xff]
        %v6760 = vld [vmem:[#allocation4 + $0x40] sm:$0xff]
        %v6761 = vld [vmem:[#allocation4 + $0x48] sm:$0xff]
        %v6762 = vld [vmem:[#allocation4 + $0x50] sm:$0xff]
        %v6763 = vld [vmem:[#allocation4 + $0x58] sm:$0xff]
        %v6764 = vld [vmem:[#allocation4 + $0x60] sm:$0xff]
        %v6765 = vld [vmem:[#allocation4 + $0x68] sm:$0xff]
        %v6766 = vld [vmem:[#allocation4 + $0x70] sm:$0xff]
        %v6767 = vld [vmem:[#allocation4 + $0x78] sm:$0xff]
        %v6768 = vld [vmem:[#allocation4 + $0x80] sm:$0xff]
        %v6769 = vld [vmem:[#allocation4 + $0x88] sm:$0xff]
        %v6770 = vld [vmem:[#allocation4 + $0x90] sm:$0xff]
        %v6771 = vld [vmem:[#allocation4 + $0x98] sm:$0xff]
        %v6772 = vld [vmem:[#allocation4 + $0xa0] sm:$0xff]
        %v6773 = vld [vmem:[#allocation4 + $0xa8] sm:$0xff]
        %v6774 = vld [vmem:[#allocation4 + $0xb0] sm:$0xff]
        %v6775 = vld [vmem:[#allocation4 + $0xb8] sm:$0xff]
        %v6776 = vld [vmem:[#allocation4 + $0xc0] sm:$0xff]
        %v6777 = vld [vmem:[#allocation4 + $0xc8] sm:$0xff]
        %v6778 = vld [vmem:[#allocation4 + $0xd0] sm:$0xff]
        %v6779 = vld [vmem:[#allocation4 + $0xd8] sm:$0xff]
        %v6780 = vld [vmem:[#allocation4 + $0xe0] sm:$0xff]
        %v6781 = vld [vmem:[#allocation4 + $0xe8] sm:$0xff]
        %v6782 = vld [vmem:[#allocation4 + $0xf0] sm:$0xff]
        %v6783 = vld [vmem:[#allocation4 + $0xf8] sm:$0xff]
        %v6784 = vld [vmem:[#allocation4 + $0x100] sm:$0xff]
        %v6785 = vld [vmem:[#allocation4 + $0x108] sm:$0xff]
        %v6786 = vld [vmem:[#allocation4 + $0x110] sm:$0xff]
        %v6787 = vld [vmem:[#allocation4 + $0x118] sm:$0xff]
        %v6788 = vld [vmem:[#allocation4 + $0x120] sm:$0xff]
        %v6789 = vld [vmem:[#allocation4 + $0x128] sm:$0xff]
        %v6790 = vld [vmem:[#allocation4 + $0x130] sm:$0xff]
        %v6791 = vld [vmem:[#allocation4 + $0x138] sm:$0xff]
        %v6792 = vld [vmem:[#allocation4 + $0x140] sm:$0xff]
        %v6793 = vld [vmem:[#allocation4 + $0x148] sm:$0xff]
        %v6794 = vld [vmem:[#allocation4 + $0x150] sm:$0xff]
        %v6795 = vld [vmem:[#allocation4 + $0x158] sm:$0xff]
        %v6796 = vld [vmem:[#allocation4 + $0x160] sm:$0xff]
        %v6797 = vld [vmem:[#allocation4 + $0x168] sm:$0xff]
        %v6798 = vld [vmem:[#allocation4 + $0x170] sm:$0xff]
        %v6799 = vld [vmem:[#allocation4 + $0x178] sm:$0xff]
        %v6800 = vld [vmem:[#allocation4 + $0x180] sm:$0xff]
        %v6801 = vld [vmem:[#allocation4 + $0x188] sm:$0xff]
        %v6802 = vld [vmem:[#allocation4 + $0x190] sm:$0xff]
        %v6803 = vld [vmem:[#allocation4 + $0x198] sm:$0xff]
        %v6804 = vld [vmem:[#allocation4 + $0x1a0] sm:$0xff]
        %v6805 = vld [vmem:[#allocation4 + $0x1a8] sm:$0xff]
        %v6806 = vld [vmem:[#allocation4 + $0x1b0] sm:$0xff]
        %v6807 = vld [vmem:[#allocation4 + $0x1b8] sm:$0xff]
        %v6808 = vld [vmem:[#allocation4 + $0x1c0] sm:$0xff]
        %v6809 = vld [vmem:[#allocation4 + $0x1c8] sm:$0xff]
        %v6810 = vld [vmem:[#allocation4 + $0x1d0] sm:$0xff]
        %v6811 = vld [vmem:[#allocation4 + $0x1d8] sm:$0xff]
        %v6812 = vld [vmem:[#allocation4 + $0x1e0] sm:$0xff]
        %v6813 = vld [vmem:[#allocation4 + $0x1e8] sm:$0xff]
        %v6814 = vld [vmem:[#allocation4 + $0x1f0] sm:$0xff]
        %v6815 = vld [vmem:[#allocation4 + $0x1f8] sm:$0xff]
        %6880 = vrot.lane.b32.xlu0 %v6752, 112
        %v6881 = vpop.permute.xlu0 %6880
        %6882 = vrot.lane.b32.xlu0 %v6753, 112
        %v6883 = vpop.permute.xlu0 %6882
        %6884 = vrot.lane.b32.xlu0 %v6754, 112
        %v6885 = vpop.permute.xlu0 %6884
        %6886 = vrot.lane.b32.xlu0 %v6755, 112
        %v6887 = vpop.permute.xlu0 %6886
        %6888 = vrot.lane.b32.xlu0 %v6756, 112
        %v6889 = vpop.permute.xlu0 %6888
        %6890 = vrot.lane.b32.xlu0 %v6757, 112
        %v6891 = vpop.permute.xlu0 %6890
        %6892 = vrot.lane.b32.xlu0 %v6758, 112
        %v6893 = vpop.permute.xlu0 %6892
        %6894 = vrot.lane.b32.xlu0 %v6759, 112
        %v6895 = vpop.permute.xlu0 %6894
        %6896 = vrot.lane.b32.xlu0 %v6760, 112
        %v6897 = vpop.permute.xlu0 %6896
        %6898 = vrot.lane.b32.xlu0 %v6761, 112
        %v6899 = vpop.permute.xlu0 %6898
        %6900 = vrot.lane.b32.xlu0 %v6762, 112
        %v6901 = vpop.permute.xlu0 %6900
        %6902 = vrot.lane.b32.xlu0 %v6763, 112
        %v6903 = vpop.permute.xlu0 %6902
        %6904 = vrot.lane.b32.xlu0 %v6764, 112
        %v6905 = vpop.permute.xlu0 %6904
        %6906 = vrot.lane.b32.xlu0 %v6765, 112
        %v6907 = vpop.permute.xlu0 %6906
        %6908 = vrot.lane.b32.xlu0 %v6766, 112
        %v6909 = vpop.permute.xlu0 %6908
        %6910 = vrot.lane.b32.xlu0 %v6767, 112
        %v6911 = vpop.permute.xlu0 %6910
        %6912 = vrot.lane.b32.xlu0 %v6768, 112
        %v6913 = vpop.permute.xlu0 %6912
        %6914 = vrot.lane.b32.xlu0 %v6769, 112
        %v6915 = vpop.permute.xlu0 %6914
        %6916 = vrot.lane.b32.xlu0 %v6770, 112
        %v6917 = vpop.permute.xlu0 %6916
        %6918 = vrot.lane.b32.xlu0 %v6771, 112
        %v6919 = vpop.permute.xlu0 %6918
        %6920 = vrot.lane.b32.xlu0 %v6772, 112
        %v6921 = vpop.permute.xlu0 %6920
        %6922 = vrot.lane.b32.xlu0 %v6773, 112
        %v6923 = vpop.permute.xlu0 %6922
        %6924 = vrot.lane.b32.xlu0 %v6774, 112
        %v6925 = vpop.permute.xlu0 %6924
        %6926 = vrot.lane.b32.xlu0 %v6775, 112
        %v6927 = vpop.permute.xlu0 %6926
        %6928 = vrot.lane.b32.xlu0 %v6776, 112
        %v6929 = vpop.permute.xlu0 %6928
        %6930 = vrot.lane.b32.xlu0 %v6777, 112
        %v6931 = vpop.permute.xlu0 %6930
        %6932 = vrot.lane.b32.xlu0 %v6778, 112
        %v6933 = vpop.permute.xlu0 %6932
        %6934 = vrot.lane.b32.xlu0 %v6779, 112
        %v6935 = vpop.permute.xlu0 %6934
        %6936 = vrot.lane.b32.xlu0 %v6780, 112
        %v6937 = vpop.permute.xlu0 %6936
        %6938 = vrot.lane.b32.xlu0 %v6781, 112
        %v6939 = vpop.permute.xlu0 %6938
        %6940 = vrot.lane.b32.xlu0 %v6782, 112
        %v6941 = vpop.permute.xlu0 %6940
        %6942 = vrot.lane.b32.xlu0 %v6783, 112
        %v6943 = vpop.permute.xlu0 %6942
        %6944 = vrot.lane.b32.xlu0 %v6784, 112
        %v6945 = vpop.permute.xlu0 %6944
        %6946 = vrot.lane.b32.xlu0 %v6785, 112
        %v6947 = vpop.permute.xlu0 %6946
        %6948 = vrot.lane.b32.xlu0 %v6786, 112
        %v6949 = vpop.permute.xlu0 %6948
        %6950 = vrot.lane.b32.xlu0 %v6787, 112
        %v6951 = vpop.permute.xlu0 %6950
        %6952 = vrot.lane.b32.xlu0 %v6788, 112
        %v6953 = vpop.permute.xlu0 %6952
        %6954 = vrot.lane.b32.xlu0 %v6789, 112
        %v6955 = vpop.permute.xlu0 %6954
        %6956 = vrot.lane.b32.xlu0 %v6790, 112
        %v6957 = vpop.permute.xlu0 %6956
        %6958 = vrot.lane.b32.xlu0 %v6791, 112
        %v6959 = vpop.permute.xlu0 %6958
        %6960 = vrot.lane.b32.xlu0 %v6792, 112
        %v6961 = vpop.permute.xlu0 %6960
        %6962 = vrot.lane.b32.xlu0 %v6793, 112
        %v6963 = vpop.permute.xlu0 %6962
        %6964 = vrot.lane.b32.xlu0 %v6794, 112
        %v6965 = vpop.permute.xlu0 %6964
        %6966 = vrot.lane.b32.xlu0 %v6795, 112
        %v6967 = vpop.permute.xlu0 %6966
        %6968 = vrot.lane.b32.xlu0 %v6796, 112
        %v6969 = vpop.permute.xlu0 %6968
        %6970 = vrot.lane.b32.xlu0 %v6797, 112
        %v6971 = vpop.permute.xlu0 %6970
        %6972 = vrot.lane.b32.xlu0 %v6798, 112
        %v6973 = vpop.permute.xlu0 %6972
        %6974 = vrot.lane.b32.xlu0 %v6799, 112
        %v6975 = vpop.permute.xlu0 %6974
        %6976 = vrot.lane.b32.xlu0 %v6800, 112
        %v6977 = vpop.permute.xlu0 %6976
        %6978 = vrot.lane.b32.xlu0 %v6801, 112
        %v6979 = vpop.permute.xlu0 %6978
        %6980 = vrot.lane.b32.xlu0 %v6802, 112
        %v6981 = vpop.permute.xlu0 %6980
        %6982 = vrot.lane.b32.xlu0 %v6803, 112
        %v6983 = vpop.permute.xlu0 %6982
        %6984 = vrot.lane.b32.xlu0 %v6804, 112
        %v6985 = vpop.permute.xlu0 %6984
        %6986 = vrot.lane.b32.xlu0 %v6805, 112
        %v6987 = vpop.permute.xlu0 %6986
        %6988 = vrot.lane.b32.xlu0 %v6806, 112
        %v6989 = vpop.permute.xlu0 %6988
        %6990 = vrot.lane.b32.xlu0 %v6807, 112
        %v6991 = vpop.permute.xlu0 %6990
        %6992 = vrot.lane.b32.xlu0 %v6808, 112
        %v6993 = vpop.permute.xlu0 %6992
        %6994 = vrot.lane.b32.xlu0 %v6809, 112
        %v6995 = vpop.permute.xlu0 %6994
        %6996 = vrot.lane.b32.xlu0 %v6810, 112
        %v6997 = vpop.permute.xlu0 %6996
        %6998 = vrot.lane.b32.xlu0 %v6811, 112
        %v6999 = vpop.permute.xlu0 %6998
        %7000 = vrot.lane.b32.xlu0 %v6812, 112
        %v7001 = vpop.permute.xlu0 %7000
        %7002 = vrot.lane.b32.xlu0 %v6813, 112
        %v7003 = vpop.permute.xlu0 %7002
        %7004 = vrot.lane.b32.xlu0 %v6814, 112
        %v7005 = vpop.permute.xlu0 %7004
        %7006 = vrot.lane.b32.xlu0 %v6815, 112
        %v7007 = vpop.permute.xlu0 %7006
        %vm7008 = vcmask 916480
        %v7009 = vsel %vm7008, %v6881, %v6883
        %v7010 = vsel %vm7008, %v6885, %v6887
        %v7011 = vsel %vm7008, %v6889, %v6891
        %v7012 = vsel %vm7008, %v6893, %v6895
        %v7013 = vsel %vm7008, %v6897, %v6899
        %v7014 = vsel %vm7008, %v6901, %v6903
        %v7015 = vsel %vm7008, %v6905, %v6907
        %v7016 = vsel %vm7008, %v6909, %v6911
        %v7017 = vsel %vm7008, %v6913, %v6915
        %v7018 = vsel %vm7008, %v6917, %v6919
        %v7019 = vsel %vm7008, %v6921, %v6923
        %v7020 = vsel %vm7008, %v6925, %v6927
        %v7021 = vsel %vm7008, %v6929, %v6931
        %v7022 = vsel %vm7008, %v6933, %v6935
        %v7023 = vsel %vm7008, %v6937, %v6939
        %v7024 = vsel %vm7008, %v6941, %v6943
        %v7025 = vsel %vm7008, %v6945, %v6947
        %v7026 = vsel %vm7008, %v6949, %v6951
        %v7027 = vsel %vm7008, %v6953, %v6955
        %v7028 = vsel %vm7008, %v6957, %v6959
        %v7029 = vsel %vm7008, %v6961, %v6963
        %v7030 = vsel %vm7008, %v6965, %v6967
        %v7031 = vsel %vm7008, %v6969, %v6971
        %v7032 = vsel %vm7008, %v6973, %v6975
        %v7033 = vsel %vm7008, %v6977, %v6979
        %v7034 = vsel %vm7008, %v6981, %v6983
        %v7035 = vsel %vm7008, %v6985, %v6987
        %v7036 = vsel %vm7008, %v6989, %v6991
        %v7037 = vsel %vm7008, %v6993, %v6995
        %v7038 = vsel %vm7008, %v6997, %v6999
        %v7039 = vsel %vm7008, %v7001, %v7003
        %v7040 = vsel %vm7008, %v7005, %v7007
        %v7105 = vmax.f32 %v6752, %v7009
        %v7106 = vmax.f32 %v6753, %v6883
        %v7107 = vmax.f32 %v6754, %v7010
        %v7108 = vmax.f32 %v6755, %v6887
        %v7109 = vmax.f32 %v6756, %v7011
        %v7110 = vmax.f32 %v6757, %v6891
        %v7111 = vmax.f32 %v6758, %v7012
        %v7112 = vmax.f32 %v6759, %v6895
        %v7113 = vmax.f32 %v6760, %v7013
        %v7114 = vmax.f32 %v6761, %v6899
        %v7115 = vmax.f32 %v6762, %v7014
        %v7116 = vmax.f32 %v6763, %v6903
        %v7117 = vmax.f32 %v6764, %v7015
        %v7118 = vmax.f32 %v6765, %v6907
        %v7119 = vmax.f32 %v6766, %v7016
        %v7120 = vmax.f32 %v6767, %v6911
        %v7121 = vmax.f32 %v6768, %v7017
        %v7122 = vmax.f32 %v6769, %v6915
        %v7123 = vmax.f32 %v6770, %v7018
        %v7124 = vmax.f32 %v6771, %v6919
        %v7125 = vmax.f32 %v6772, %v7019
        %v7126 = vmax.f32 %v6773, %v6923
        %v7127 = vmax.f32 %v6774, %v7020
        %v7128 = vmax.f32 %v6775, %v6927
        %v7129 = vmax.f32 %v6776, %v7021
        %v7130 = vmax.f32 %v6777, %v6931
        %v7131 = vmax.f32 %v6778, %v7022
        %v7132 = vmax.f32 %v6779, %v6935
        %v7133 = vmax.f32 %v6780, %v7023
        %v7134 = vmax.f32 %v6781, %v6939
        %v7135 = vmax.f32 %v6782, %v7024
        %v7136 = vmax.f32 %v6783, %v6943
        %v7137 = vmax.f32 %v6784, %v7025
        %v7138 = vmax.f32 %v6785, %v6947
        %v7139 = vmax.f32 %v6786, %v7026
        %v7140 = vmax.f32 %v6787, %v6951
        %v7141 = vmax.f32 %v6788, %v7027
        %v7142 = vmax.f32 %v6789, %v6955
        %v7143 = vmax.f32 %v6790, %v7028
        %v7144 = vmax.f32 %v6791, %v6959
        %v7145 = vmax.f32 %v6792, %v7029
        %v7146 = vmax.f32 %v6793, %v6963
        %v7147 = vmax.f32 %v6794, %v7030
        %v7148 = vmax.f32 %v6795, %v6967
        %v7149 = vmax.f32 %v6796, %v7031
        %v7150 = vmax.f32 %v6797, %v6971
        %v7151 = vmax.f32 %v6798, %v7032
        %v7152 = vmax.f32 %v6799, %v6975
        %v7153 = vmax.f32 %v6800, %v7033
        %v7154 = vmax.f32 %v6801, %v6979
        %v7155 = vmax.f32 %v6802, %v7034
        %v7156 = vmax.f32 %v6803, %v6983
        %v7157 = vmax.f32 %v6804, %v7035
        %v7158 = vmax.f32 %v6805, %v6987
        %v7159 = vmax.f32 %v6806, %v7036
        %v7160 = vmax.f32 %v6807, %v6991
        %v7161 = vmax.f32 %v6808, %v7037
        %v7162 = vmax.f32 %v6809, %v6995
        %v7163 = vmax.f32 %v6810, %v7038
        %v7164 = vmax.f32 %v6811, %v6999
        %v7165 = vmax.f32 %v6812, %v7039
        %v7166 = vmax.f32 %v6813, %v7003
        %v7167 = vmax.f32 %v6814, %v7040
        %v7168 = vmax.f32 %v6815, %v7007
        %v7169 = vld [vmem:[#allocation4] sm:$0xfc]
        %v7170 = vld [vmem:[#allocation4 + $0x8] sm:$0xfc]
        %v7171 = vld [vmem:[#allocation4 + $0x200] sm:$0x3]
        %v7172 = vld [vmem:[#allocation4 + $0x208] sm:$0x3]
        %7177 = vrot.lane.b32.xlu0 %v7169, 112
        %v7178 = vpop.permute.xlu0 %7177
        %7179 = vrot.lane.b32.xlu0 %v7170, 112
        %v7180 = vpop.permute.xlu0 %7179
        %7181 = vrot.lane.b32.xlu0 %v7171, 112
        %v7182 = vpop.permute.xlu0 %7181
        %7183 = vrot.lane.b32.xlu0 %v7172, 112
        %v7184 = vpop.permute.xlu0 %7183
        %v7185 = vsel %vm7008, %v7178, %v7180
        %v7186 = vsel %vm7008, %v7182, %v7184
        %v7191 = vmax.f32 %v7169, %v7185
        %v7192 = vmax.f32 %v7170, %v7180
        %v7193 = vmax.f32 %v7171, %v7186
        %v7194 = vmax.f32 %v7172, %v7184
        %vm7261 = vcmask 1045504
        %v7262 = vrot.slane %v7191, 2
        %v7263 = vrot.slane %v7107, 2
        %v7264 = vsel %vm7261, %v7262, %v7263
        %v7265 = vrot.slane %v7192, 2
        %v7266 = vrot.slane %v7108, 2
        %v7267 = vsel %vm7261, %v7265, %v7266
        %v7268 = vrot.slane %v7109, 2
        %v7269 = vsel %vm7261, %v7263, %v7268
        %v7270 = vrot.slane %v7110, 2
        %v7271 = vsel %vm7261, %v7266, %v7270
        %v7272 = vrot.slane %v7111, 2
        %v7273 = vsel %vm7261, %v7268, %v7272
        %v7274 = vrot.slane %v7112, 2
        %v7275 = vsel %vm7261, %v7270, %v7274
        %v7276 = vrot.slane %v7113, 2
        %v7277 = vsel %vm7261, %v7272, %v7276
        %v7278 = vrot.slane %v7114, 2
        %v7279 = vsel %vm7261, %v7274, %v7278
        %v7280 = vrot.slane %v7115, 2
        %v7281 = vsel %vm7261, %v7276, %v7280
        %v7282 = vrot.slane %v7116, 2
        %v7283 = vsel %vm7261, %v7278, %v7282
        %v7284 = vrot.slane %v7117, 2
        %v7285 = vsel %vm7261, %v7280, %v7284
        %v7286 = vrot.slane %v7118, 2
        %v7287 = vsel %vm7261, %v7282, %v7286
        %v7288 = vrot.slane %v7119, 2
        %v7289 = vsel %vm7261, %v7284, %v7288
        %v7290 = vrot.slane %v7120, 2
        %v7291 = vsel %vm7261, %v7286, %v7290
        %v7292 = vrot.slane %v7121, 2
        %v7293 = vsel %vm7261, %v7288, %v7292
        %v7294 = vrot.slane %v7122, 2
        %v7295 = vsel %vm7261, %v7290, %v7294
        %v7296 = vrot.slane %v7123, 2
        %v7297 = vsel %vm7261, %v7292, %v7296
        %v7298 = vrot.slane %v7124, 2
        %v7299 = vsel %vm7261, %v7294, %v7298
        %v7300 = vrot.slane %v7125, 2
        %v7301 = vsel %vm7261, %v7296, %v7300
        %v7302 = vrot.slane %v7126, 2
        %v7303 = vsel %vm7261, %v7298, %v7302
        %v7304 = vrot.slane %v7127, 2
        %v7305 = vsel %vm7261, %v7300, %v7304
        %v7306 = vrot.slane %v7128, 2
        %v7307 = vsel %vm7261, %v7302, %v7306
        %v7308 = vrot.slane %v7129, 2
        %v7309 = vsel %vm7261, %v7304, %v7308
        %v7310 = vrot.slane %v7130, 2
        %v7311 = vsel %vm7261, %v7306, %v7310
        %v7312 = vrot.slane %v7131, 2
        %v7313 = vsel %vm7261, %v7308, %v7312
        %v7314 = vrot.slane %v7132, 2
        %v7315 = vsel %vm7261, %v7310, %v7314
        %v7316 = vrot.slane %v7133, 2
        %v7317 = vsel %vm7261, %v7312, %v7316
        %v7318 = vrot.slane %v7134, 2
        %v7319 = vsel %vm7261, %v7314, %v7318
        %v7320 = vrot.slane %v7135, 2
        %v7321 = vsel %vm7261, %v7316, %v7320
        %v7322 = vrot.slane %v7136, 2
        %v7323 = vsel %vm7261, %v7318, %v7322
        %v7324 = vrot.slane %v7137, 2
        %v7325 = vsel %vm7261, %v7320, %v7324
        %v7326 = vrot.slane %v7138, 2
        %v7327 = vsel %vm7261, %v7322, %v7326
        %v7328 = vrot.slane %v7139, 2
        %v7329 = vsel %vm7261, %v7324, %v7328
        %v7330 = vrot.slane %v7140, 2
        %v7331 = vsel %vm7261, %v7326, %v7330
        %v7332 = vrot.slane %v7141, 2
        %v7333 = vsel %vm7261, %v7328, %v7332
        %v7334 = vrot.slane %v7142, 2
        %v7335 = vsel %vm7261, %v7330, %v7334
        %v7336 = vrot.slane %v7143, 2
        %v7337 = vsel %vm7261, %v7332, %v7336
        %v7338 = vrot.slane %v7144, 2
        %v7339 = vsel %vm7261, %v7334, %v7338
        %v7340 = vrot.slane %v7145, 2
        %v7341 = vsel %vm7261, %v7336, %v7340
        %v7342 = vrot.slane %v7146, 2
        %v7343 = vsel %vm7261, %v7338, %v7342
        %v7344 = vrot.slane %v7147, 2
        %v7345 = vsel %vm7261, %v7340, %v7344
        %v7346 = vrot.slane %v7148, 2
        %v7347 = vsel %vm7261, %v7342, %v7346
        %v7348 = vrot.slane %v7149, 2
        %v7349 = vsel %vm7261, %v7344, %v7348
        %v7350 = vrot.slane %v7150, 2
        %v7351 = vsel %vm7261, %v7346, %v7350
        %v7352 = vrot.slane %v7151, 2
        %v7353 = vsel %vm7261, %v7348, %v7352
        %v7354 = vrot.slane %v7152, 2
        %v7355 = vsel %vm7261, %v7350, %v7354
        %v7356 = vrot.slane %v7153, 2
        %v7357 = vsel %vm7261, %v7352, %v7356
        %v7358 = vrot.slane %v7154, 2
        %v7359 = vsel %vm7261, %v7354, %v7358
        %v7360 = vrot.slane %v7155, 2
        %v7361 = vsel %vm7261, %v7356, %v7360
        %v7362 = vrot.slane %v7156, 2
        %v7363 = vsel %vm7261, %v7358, %v7362
        %v7364 = vrot.slane %v7157, 2
        %v7365 = vsel %vm7261, %v7360, %v7364
        %v7366 = vrot.slane %v7158, 2
        %v7367 = vsel %vm7261, %v7362, %v7366
        %v7368 = vrot.slane %v7159, 2
        %v7369 = vsel %vm7261, %v7364, %v7368
        %v7370 = vrot.slane %v7160, 2
        %v7371 = vsel %vm7261, %v7366, %v7370
        %v7372 = vrot.slane %v7161, 2
        %v7373 = vsel %vm7261, %v7368, %v7372
        %v7374 = vrot.slane %v7162, 2
        %v7375 = vsel %vm7261, %v7370, %v7374
        %v7376 = vrot.slane %v7163, 2
        %v7377 = vsel %vm7261, %v7372, %v7376
        %v7378 = vrot.slane %v7164, 2
        %v7379 = vsel %vm7261, %v7374, %v7378
        %v7380 = vrot.slane %v7165, 2
        %v7381 = vsel %vm7261, %v7376, %v7380
        %v7382 = vrot.slane %v7166, 2
        %v7383 = vsel %vm7261, %v7378, %v7382
        %v7384 = vrot.slane %v7167, 2
        %v7385 = vsel %vm7261, %v7380, %v7384
        %v7386 = vrot.slane %v7168, 2
        %v7387 = vsel %vm7261, %v7382, %v7386
        %v7388 = vrot.slane %v7193, 2
        %v7389 = vsel %vm7261, %v7384, %v7388
        %v7390 = vrot.slane %v7194, 2
        %v7391 = vsel %vm7261, %v7386, %v7390
        %v7456 = vmax.f32 %v7105, %v7264
        %v7457 = vmax.f32 %v7106, %v7267
        %v7458 = vmax.f32 %v7107, %v7269
        %v7459 = vmax.f32 %v7108, %v7271
        %v7460 = vmax.f32 %v7109, %v7273
        %v7461 = vmax.f32 %v7110, %v7275
        %v7462 = vmax.f32 %v7111, %v7277
        %v7463 = vmax.f32 %v7112, %v7279
        %v7464 = vmax.f32 %v7113, %v7281
        %v7465 = vmax.f32 %v7114, %v7283
        %v7466 = vmax.f32 %v7115, %v7285
        %v7467 = vmax.f32 %v7116, %v7287
        %v7468 = vmax.f32 %v7117, %v7289
        %v7469 = vmax.f32 %v7118, %v7291
        %v7470 = vmax.f32 %v7119, %v7293
        %v7471 = vmax.f32 %v7120, %v7295
        %v7472 = vmax.f32 %v7121, %v7297
        %v7473 = vmax.f32 %v7122, %v7299
        %v7474 = vmax.f32 %v7123, %v7301
        %v7475 = vmax.f32 %v7124, %v7303
        %v7476 = vmax.f32 %v7125, %v7305
        %v7477 = vmax.f32 %v7126, %v7307
        %v7478 = vmax.f32 %v7127, %v7309
        %v7479 = vmax.f32 %v7128, %v7311
        %v7480 = vmax.f32 %v7129, %v7313
        %v7481 = vmax.f32 %v7130, %v7315
        %v7482 = vmax.f32 %v7131, %v7317
        %v7483 = vmax.f32 %v7132, %v7319
        %v7484 = vmax.f32 %v7133, %v7321
        %v7485 = vmax.f32 %v7134, %v7323
        %v7486 = vmax.f32 %v7135, %v7325
        %v7487 = vmax.f32 %v7136, %v7327
        %v7488 = vmax.f32 %v7137, %v7329
        %v7489 = vmax.f32 %v7138, %v7331
        %v7490 = vmax.f32 %v7139, %v7333
        %v7491 = vmax.f32 %v7140, %v7335
        %v7492 = vmax.f32 %v7141, %v7337
        %v7493 = vmax.f32 %v7142, %v7339
        %v7494 = vmax.f32 %v7143, %v7341
        %v7495 = vmax.f32 %v7144, %v7343
        %v7496 = vmax.f32 %v7145, %v7345
        %v7497 = vmax.f32 %v7146, %v7347
        %v7498 = vmax.f32 %v7147, %v7349
        %v7499 = vmax.f32 %v7148, %v7351
        %v7500 = vmax.f32 %v7149, %v7353
        %v7501 = vmax.f32 %v7150, %v7355
        %v7502 = vmax.f32 %v7151, %v7357
        %v7503 = vmax.f32 %v7152, %v7359
        %v7504 = vmax.f32 %v7153, %v7361
        %v7505 = vmax.f32 %v7154, %v7363
        %v7506 = vmax.f32 %v7155, %v7365
        %v7507 = vmax.f32 %v7156, %v7367
        %v7508 = vmax.f32 %v7157, %v7369
        %v7509 = vmax.f32 %v7158, %v7371
        %v7510 = vmax.f32 %v7159, %v7373
        %v7511 = vmax.f32 %v7160, %v7375
        %v7512 = vmax.f32 %v7161, %v7377
        %v7513 = vmax.f32 %v7162, %v7379
        %v7514 = vmax.f32 %v7163, %v7381
        %v7515 = vmax.f32 %v7164, %v7383
        %v7516 = vmax.f32 %v7165, %v7385
        %v7517 = vmax.f32 %v7166, %v7387
        %v7518 = vmax.f32 %v7167, %v7389
        %v7519 = vmax.f32 %v7168, %v7391
        %v7520 = vmax.f32 %v7456, 0.0
        %v7521 = vmax.f32 %v7457, 0.0
        %v7522 = vmax.f32 %v7458, 0.0
        %v7523 = vmax.f32 %v7459, 0.0
        %v7524 = vmax.f32 %v7460, 0.0
        %v7525 = vmax.f32 %v7461, 0.0
        %v7526 = vmax.f32 %v7462, 0.0
        %v7527 = vmax.f32 %v7463, 0.0
        %v7528 = vmax.f32 %v7464, 0.0
        %v7529 = vmax.f32 %v7465, 0.0
        %v7530 = vmax.f32 %v7466, 0.0
        %v7531 = vmax.f32 %v7467, 0.0
        %v7532 = vmax.f32 %v7468, 0.0
        %v7533 = vmax.f32 %v7469, 0.0
        %v7534 = vmax.f32 %v7470, 0.0
        %v7535 = vmax.f32 %v7471, 0.0
        %v7536 = vmax.f32 %v7472, 0.0
        %v7537 = vmax.f32 %v7473, 0.0
        %v7538 = vmax.f32 %v7474, 0.0
        %v7539 = vmax.f32 %v7475, 0.0
        %v7540 = vmax.f32 %v7476, 0.0
        %v7541 = vmax.f32 %v7477, 0.0
        %v7542 = vmax.f32 %v7478, 0.0
        %v7543 = vmax.f32 %v7479, 0.0
        %v7544 = vmax.f32 %v7480, 0.0
        %v7545 = vmax.f32 %v7481, 0.0
        %v7546 = vmax.f32 %v7482, 0.0
        %v7547 = vmax.f32 %v7483, 0.0
        %v7548 = vmax.f32 %v7484, 0.0
        %v7549 = vmax.f32 %v7485, 0.0
        %v7550 = vmax.f32 %v7486, 0.0
        %v7551 = vmax.f32 %v7487, 0.0
        %v7552 = vmax.f32 %v7488, 0.0
        %v7553 = vmax.f32 %v7489, 0.0
        %v7554 = vmax.f32 %v7490, 0.0
        %v7555 = vmax.f32 %v7491, 0.0
        %v7556 = vmax.f32 %v7492, 0.0
        %v7557 = vmax.f32 %v7493, 0.0
        %v7558 = vmax.f32 %v7494, 0.0
        %v7559 = vmax.f32 %v7495, 0.0
        %v7560 = vmax.f32 %v7496, 0.0
        %v7561 = vmax.f32 %v7497, 0.0
        %v7562 = vmax.f32 %v7498, 0.0
        %v7563 = vmax.f32 %v7499, 0.0
        %v7564 = vmax.f32 %v7500, 0.0
        %v7565 = vmax.f32 %v7501, 0.0
        %v7566 = vmax.f32 %v7502, 0.0
        %v7567 = vmax.f32 %v7503, 0.0
        %v7568 = vmax.f32 %v7504, 0.0
        %v7569 = vmax.f32 %v7505, 0.0
        %v7570 = vmax.f32 %v7506, 0.0
        %v7571 = vmax.f32 %v7507, 0.0
        %v7572 = vmax.f32 %v7508, 0.0
        %v7573 = vmax.f32 %v7509, 0.0
        %v7574 = vmax.f32 %v7510, 0.0
        %v7575 = vmax.f32 %v7511, 0.0
        %v7576 = vmax.f32 %v7512, 0.0
        %v7577 = vmax.f32 %v7513, 0.0
        %v7578 = vmax.f32 %v7514, 0.0
        %v7579 = vmax.f32 %v7515, 0.0
        %v7580 = vmax.f32 %v7516, 0.0
        %v7581 = vmax.f32 %v7517, 0.0
        %v7582 = vmax.f32 %v7518, 0.0
        %v7583 = vmax.f32 %v7519, 0.0
        %v7584 = vpack.c.bf16 %v7522, %v7520
        %v7585 = vpack.c.bf16 %v7523, %v7521
        %v7586 = vpack.c.bf16 %v7526, %v7524
        %v7587 = vpack.c.bf16 %v7527, %v7525
        %v7588 = vpack.c.bf16 %v7530, %v7528
        %v7589 = vpack.c.bf16 %v7531, %v7529
        %v7590 = vpack.c.bf16 %v7534, %v7532
        %v7591 = vpack.c.bf16 %v7535, %v7533
        %v7592 = vpack.c.bf16 %v7538, %v7536
        %v7593 = vpack.c.bf16 %v7539, %v7537
        %v7594 = vpack.c.bf16 %v7542, %v7540
        %v7595 = vpack.c.bf16 %v7543, %v7541
        %v7596 = vpack.c.bf16 %v7546, %v7544
        %v7597 = vpack.c.bf16 %v7547, %v7545
        %v7598 = vpack.c.bf16 %v7550, %v7548
        %v7599 = vpack.c.bf16 %v7551, %v7549
        %v7600 = vpack.c.bf16 %v7554, %v7552
        %v7601 = vpack.c.bf16 %v7555, %v7553
        %v7602 = vpack.c.bf16 %v7558, %v7556
        %v7603 = vpack.c.bf16 %v7559, %v7557
        %v7604 = vpack.c.bf16 %v7562, %v7560
        %v7605 = vpack.c.bf16 %v7563, %v7561
        %v7606 = vpack.c.bf16 %v7566, %v7564
        %v7607 = vpack.c.bf16 %v7567, %v7565
        %v7608 = vpack.c.bf16 %v7570, %v7568
        %v7609 = vpack.c.bf16 %v7571, %v7569
        %v7610 = vpack.c.bf16 %v7574, %v7572
        %v7611 = vpack.c.bf16 %v7575, %v7573
        %v7612 = vpack.c.bf16 %v7578, %v7576
        %v7613 = vpack.c.bf16 %v7579, %v7577
        %v7614 = vpack.c.bf16 %v7582, %v7580
        %v7615 = vpack.c.bf16 %v7583, %v7581
        %v7616 = vld [vmem:[%s7] sm:$0x1]
        %v7618 = vlaneseq
        %v7619 = vshrl.u32 %v7618, 7
        %v7620 = vsub.s32 0, %v7619
        %v7621 = vrot.slane %v7616, %v7620
        %v7623 = vadd.f32 %v7621, 0.0
        %v7624 = vld [vmem:[%s5] sm:$0xff]
        %v7626 = vunpack.c.l.b16 %v7624
        %v7627 = vunpack.c.h.b16 %v7624
        %v7628 = vpack.c.b16 %v7626, %v7626
        %v7629 = vpack.c.b16 %v7627, %v7627
        %7632 = vmatprep.subr.bf16.mxu0 %v7585
        %7633 = vmatpush1.bf16.msra.mxu0 %v7584
        %7634 = vmatprep.subr.bf16.mxu0 %v7587
        %7635 = vmatpush1.bf16.msra.mxu0 %v7586
        %7636 = vmatprep.subr.bf16.mxu0 %v7589
        %7637 = vmatpush1.bf16.msra.mxu0 %v7588
        %7638 = vmatprep.subr.bf16.mxu0 %v7591
        %7639 = vmatpush1.bf16.msra.mxu0 %v7590
        %7640 = vmatprep.subr.bf16.mxu0 %v7593
        %7641 = vmatpush1.bf16.msra.mxu0 %v7592
        %7642 = vmatprep.subr.bf16.mxu0 %v7595
        %7643 = vmatpush1.bf16.msra.mxu0 %v7594
        %7644 = vmatprep.subr.bf16.mxu0 %v7597
        %7645 = vmatpush1.bf16.msra.mxu0 %v7596
        %7646 = vmatprep.subr.bf16.mxu0 %v7599
        %7647 = vmatpush1.bf16.msra.mxu0 %v7598
        %7648 = vmatprep.subr.bf16.mxu0 %v7601
        %7649 = vmatpush1.bf16.msra.mxu0 %v7600
        %7650 = vmatprep.subr.bf16.mxu0 %v7603
        %7651 = vmatpush1.bf16.msra.mxu0 %v7602
        %7652 = vmatprep.subr.bf16.mxu0 %v7605
        %7653 = vmatpush1.bf16.msra.mxu0 %v7604
        %7654 = vmatprep.subr.bf16.mxu0 %v7607
        %7655 = vmatpush1.bf16.msra.mxu0 %v7606
        %7656 = vmatprep.subr.bf16.mxu0 %v7609
        %7657 = vmatpush1.bf16.msra.mxu0 %v7608
        %7658 = vmatprep.subr.bf16.mxu0 %v7611
        %7659 = vmatpush1.bf16.msra.mxu0 %v7610
        %7660 = vmatprep.subr.bf16.mxu0 %v7613
        %7661 = vmatpush1.bf16.msra.mxu0 %v7612
        %7662 = vmatprep.subr.bf16.mxu0 %v7615
        %7663 = vmatpush1.bf16.msra.mxu0 %v7614
        %7664 = vmatprep.mubr.bf16.mxu0 %v7629
        %7665 = vmatmul.mubr.bf16.gmra.mrb[0].mxu0 %v7628
        %v7666 = vpop.f32.mrb[0].mxu0
        %v7667 = vadd.f32 0.0, %v7666
        %v7668 = vpop.f32.mrb[0].mxu0
        %v7669 = vadd.f32 0.0, %v7668
        %v7670 = vpop.f32.mrb[0].mxu0
        %v7671 = vpop.f32.mrb[0].mxu0
        %7672 = vdwg.mxu0
        %v7673 = vpack.c.bf16 %v7667, %v7667
        %v7674 = vpack.c.bf16 %v7669, %v7669
        %v7675 = vld [vmem:[%s6] sm:$0xf]
        %v7676 = vld [vmem:[%s6 + $0x4] sm:$0xf]
        %v7677 = vld [vmem:[%s6 + $0x8] sm:$0xf]
        %v7678 = vld [vmem:[%s6 + $0xc] sm:$0xf]
        %v7679 = vld [vmem:[%s6 + $0x10] sm:$0xf]
        %v7680 = vld [vmem:[%s6 + $0x14] sm:$0xf]
        %v7681 = vld [vmem:[%s6 + $0x18] sm:$0xf]
        %v7682 = vld [vmem:[%s6 + $0x1c] sm:$0xf]
        %v7683 = vld [vmem:[%s6 + $0x20] sm:$0xf]
        %v7684 = vld [vmem:[%s6 + $0x24] sm:$0xf]
        %v7685 = vld [vmem:[%s6 + $0x28] sm:$0xf]
        %v7686 = vld [vmem:[%s6 + $0x2c] sm:$0xf]
        %v7687 = vld [vmem:[%s6 + $0x30] sm:$0xf]
        %v7688 = vld [vmem:[%s6 + $0x34] sm:$0xf]
        %v7689 = vld [vmem:[%s6 + $0x38] sm:$0xf]
        %v7690 = vld [vmem:[%s6 + $0x3c] sm:$0xf]
        %v7691 = vld [vmem:[%s6 + $0x40] sm:$0xf]
        %v7692 = vld [vmem:[%s6 + $0x44] sm:$0xf]
        %v7711 = vunpack.c.l.b16 %v7675
        %v7712 = vunpack.c.l.b16 %v7676
        %v7713 = vunpack.c.l.b16 %v7677
        %v7714 = vunpack.c.l.b16 %v7678
        %v7715 = vunpack.c.l.b16 %v7679
        %v7716 = vunpack.c.l.b16 %v7680
        %v7717 = vunpack.c.l.b16 %v7681
        %v7718 = vunpack.c.l.b16 %v7682
        %v7719 = vunpack.c.l.b16 %v7683
        %v7720 = vunpack.c.l.b16 %v7684
        %v7721 = vunpack.c.l.b16 %v7685
        %v7722 = vunpack.c.l.b16 %v7686
        %v7723 = vunpack.c.l.b16 %v7687
        %v7724 = vunpack.c.l.b16 %v7688
        %v7725 = vunpack.c.l.b16 %v7689
        %v7726 = vunpack.c.l.b16 %v7690
        %v7727 = vunpack.c.l.b16 %v7691
        %v7728 = vunpack.c.l.b16 %v7692
        %v7729 = vpack.c.b16 %v7712, %v7711
        %v7730 = vpack.c.b16 %v7714, %v7713
        %v7731 = vpack.c.b16 %v7716, %v7715
        %v7732 = vpack.c.b16 %v7718, %v7717
        %v7733 = vpack.c.b16 %v7720, %v7719
        %v7734 = vpack.c.b16 %v7722, %v7721
        %v7735 = vpack.c.b16 %v7724, %v7723
        %v7736 = vpack.c.b16 %v7726, %v7725
        %v7737 = vpack.c.b16 %v7728, %v7727
        %vm7747 = vcmask 130048
        %v7749 = vsel %vm7747, %v7674, 0
        %7751 = vmatprep.subr.bf16.mxu0 0
        %7752 = vmatpush1.bf16.msra.mxu0 %v7729
        %7753 = vmatprep.subr.bf16.mxu0 0
        %7754 = vmatpush1.bf16.msra.mxu0 %v7730
        %7755 = vmatprep.subr.bf16.mxu0 0
        %7756 = vmatpush1.bf16.msra.mxu0 %v7731
        %7757 = vmatprep.subr.bf16.mxu0 0
        %7758 = vmatpush1.bf16.msra.mxu0 %v7732
        %7759 = vmatprep.subr.bf16.mxu0 0
        %7760 = vmatpush1.bf16.msra.mxu0 %v7733
        %7761 = vmatprep.subr.bf16.mxu0 0
        %7762 = vmatpush1.bf16.msra.mxu0 %v7734
        %7763 = vmatprep.subr.bf16.mxu0 0
        %7764 = vmatpush1.bf16.msra.mxu0 %v7735
        %7765 = vmatprep.subr.bf16.mxu0 0
        %7766 = vmatpush1.bf16.msra.mxu0 %v7736
        %7767 = vmatprep.subr.bf16.mxu0 0
        %7768 = vmatpush1.bf16.msra.mxu0 %v7737
        %7769 = vmatprep.subr.bf16.mxu0 0
        %7770 = vmatpush1.bf16.msra.mxu0 0
        %7771 = vmatprep.subr.bf16.mxu0 0
        %7772 = vmatpush1.bf16.msra.mxu0 0
        %7773 = vmatprep.subr.bf16.mxu0 0
        %7774 = vmatpush1.bf16.msra.mxu0 0
        %7775 = vmatprep.subr.bf16.mxu0 0
        %7776 = vmatpush1.bf16.msra.mxu0 0
        %7777 = vmatprep.subr.bf16.mxu0 0
        %7778 = vmatpush1.bf16.msra.mxu0 0
        %7779 = vmatprep.subr.bf16.mxu0 0
        %7780 = vmatpush1.bf16.msra.mxu0 0
        %7781 = vmatprep.subr.bf16.mxu0 0
        %7782 = vmatpush1.bf16.msra.mxu0 0
        %7783 = vmatprep.mubr.bf16.mxu0 %v7749
        %7784 = vmatmul.mubr.bf16.gmra.mrb[0].mxu0 %v7673
        %v7785 = vpop.f32.mrb[0].mxu0
        %v7786 = vadd.f32 0.0, %v7785
        %v7787 = vpop.f32.mrb[0].mxu0
        %v7788 = vpop.f32.mrb[0].mxu0
        %v7789 = vpop.f32.mrb[0].mxu0
        %7790 = vdwg.mxu0
        %v7791 = vadd.f32 %v7623, %v7786
        %s7792 = scalar_lea.vmem %s5, 8
        %v7793 = vld [vmem:[%s7792] sm:$0xff]
        %v7795 = vunpack.c.l.b16 %v7793
        %v7796 = vunpack.c.h.b16 %v7793
        %v7797 = vpack.c.b16 %v7795, %v7795
        %v7798 = vpack.c.b16 %v7796, %v7796
        %7801 = vmatprep.subr.bf16.mxu0 %v7585
        %7802 = vmatpush1.bf16.msra.mxu0 %v7584
        %7803 = vmatprep.subr.bf16.mxu0 %v7587
        %7804 = vmatpush1.bf16.msra.mxu0 %v7586
        %7805 = vmatprep.subr.bf16.mxu0 %v7589
        %7806 = vmatpush1.bf16.msra.mxu0 %v7588
        %7807 = vmatprep.subr.bf16.mxu0 %v7591
        %7808 = vmatpush1.bf16.msra.mxu0 %v7590
        %7809 = vmatprep.subr.bf16.mxu0 %v7593
        %7810 = vmatpush1.bf16.msra.mxu0 %v7592
        %7811 = vmatprep.subr.bf16.mxu0 %v7595
        %7812 = vmatpush1.bf16.msra.mxu0 %v7594
        %7813 = vmatprep.subr.bf16.mxu0 %v7597
        %7814 = vmatpush1.bf16.msra.mxu0 %v7596
        %7815 = vmatprep.subr.bf16.mxu0 %v7599
        %7816 = vmatpush1.bf16.msra.mxu0 %v7598
        %7817 = vmatprep.subr.bf16.mxu0 %v7601
        %7818 = vmatpush1.bf16.msra.mxu0 %v7600
        %7819 = vmatprep.subr.bf16.mxu0 %v7603
        %7820 = vmatpush1.bf16.msra.mxu0 %v7602
        %7821 = vmatprep.subr.bf16.mxu0 %v7605
        %7822 = vmatpush1.bf16.msra.mxu0 %v7604
        %7823 = vmatprep.subr.bf16.mxu0 %v7607
        %7824 = vmatpush1.bf16.msra.mxu0 %v7606
        %7825 = vmatprep.subr.bf16.mxu0 %v7609
        %7826 = vmatpush1.bf16.msra.mxu0 %v7608
        %7827 = vmatprep.subr.bf16.mxu0 %v7611
        %7828 = vmatpush1.bf16.msra.mxu0 %v7610
        %7829 = vmatprep.subr.bf16.mxu0 %v7613
        %7830 = vmatpush1.bf16.msra.mxu0 %v7612
        %7831 = vmatprep.subr.bf16.mxu0 %v7615
        %7832 = vmatpush1.bf16.msra.mxu0 %v7614
        %7833 = vmatprep.mubr.bf16.mxu0 %v7798
        %7834 = vmatmul.mubr.bf16.gmra.mrb[0].mxu0 %v7797
        %v7835 = vpop.f32.mrb[0].mxu0
        %v7836 = vadd.f32 0.0, %v7835
        %v7837 = vpop.f32.mrb[0].mxu0
        %v7838 = vadd.f32 0.0, %v7837
        %v7839 = vpop.f32.mrb[0].mxu0
        %v7840 = vpop.f32.mrb[0].mxu0
        %7841 = vdwg.mxu0
        %v7842 = vpack.c.bf16 %v7836, %v7836
        %v7843 = vpack.c.bf16 %v7838, %v7838
        %s7844 = scalar_lea.vmem %s6, 72
        %v7845 = vld [vmem:[%s7844] sm:$0xf]
        %v7846 = vld [vmem:[%s7844 + $0x4] sm:$0xf]
        %v7847 = vld [vmem:[%s7844 + $0x8] sm:$0xf]
        %v7848 = vld [vmem:[%s7844 + $0xc] sm:$0xf]
        %v7849 = vld [vmem:[%s7844 + $0x10] sm:$0xf]
        %v7850 = vld [vmem:[%s7844 + $0x14] sm:$0xf]
        %v7851 = vld [vmem:[%s7844 + $0x18] sm:$0xf]
        %v7852 = vld [vmem:[%s7844 + $0x1c] sm:$0xf]
        %v7853 = vld [vmem:[%s7844 + $0x20] sm:$0xf]
        %v7854 = vld [vmem:[%s7844 + $0x24] sm:$0xf]
        %v7855 = vld [vmem:[%s7844 + $0x28] sm:$0xf]
        %v7856 = vld [vmem:[%s7844 + $0x2c] sm:$0xf]
        %v7857 = vld [vmem:[%s7844 + $0x30] sm:$0xf]
        %v7858 = vld [vmem:[%s7844 + $0x34] sm:$0xf]
        %v7859 = vld [vmem:[%s7844 + $0x38] sm:$0xf]
        %v7860 = vld [vmem:[%s7844 + $0x3c] sm:$0xf]
        %v7861 = vld [vmem:[%s7844 + $0x40] sm:$0xf]
        %v7862 = vld [vmem:[%s7844 + $0x44] sm:$0xf]
        %v7881 = vunpack.c.l.b16 %v7845
        %v7882 = vunpack.c.l.b16 %v7846
        %v7883 = vunpack.c.l.b16 %v7847
        %v7884 = vunpack.c.l.b16 %v7848
        %v7885 = vunpack.c.l.b16 %v7849
        %v7886 = vunpack.c.l.b16 %v7850
        %v7887 = vunpack.c.l.b16 %v7851
        %v7888 = vunpack.c.l.b16 %v7852
        %v7889 = vunpack.c.l.b16 %v7853
        %v7890 = vunpack.c.l.b16 %v7854
        %v7891 = vunpack.c.l.b16 %v7855
        %v7892 = vunpack.c.l.b16 %v7856
        %v7893 = vunpack.c.l.b16 %v7857
        %v7894 = vunpack.c.l.b16 %v7858
        %v7895 = vunpack.c.l.b16 %v7859
        %v7896 = vunpack.c.l.b16 %v7860
        %v7897 = vunpack.c.l.b16 %v7861
        %v7898 = vunpack.c.l.b16 %v7862
        %v7899 = vpack.c.b16 %v7882, %v7881
        %v7900 = vpack.c.b16 %v7884, %v7883
        %v7901 = vpack.c.b16 %v7886, %v7885
        %v7902 = vpack.c.b16 %v7888, %v7887
        %v7903 = vpack.c.b16 %v7890, %v7889
        %v7904 = vpack.c.b16 %v7892, %v7891
        %v7905 = vpack.c.b16 %v7894, %v7893
        %v7906 = vpack.c.b16 %v7896, %v7895
        %v7907 = vpack.c.b16 %v7898, %v7897
        %v7918 = vsel %vm7747, %v7843, 0
        %7920 = vmatprep.subr.bf16.mxu0 0
        %7921 = vmatpush1.bf16.msra.mxu0 %v7899
        %7922 = vmatprep.subr.bf16.mxu0 0
        %7923 = vmatpush1.bf16.msra.mxu0 %v7900
        %7924 = vmatprep.subr.bf16.mxu0 0
        %7925 = vmatpush1.bf16.msra.mxu0 %v7901
        %7926 = vmatprep.subr.bf16.mxu0 0
        %7927 = vmatpush1.bf16.msra.mxu0 %v7902
        %7928 = vmatprep.subr.bf16.mxu0 0
        %7929 = vmatpush1.bf16.msra.mxu0 %v7903
        %7930 = vmatprep.subr.bf16.mxu0 0
        %7931 = vmatpush1.bf16.msra.mxu0 %v7904
        %7932 = vmatprep.subr.bf16.mxu0 0
        %7933 = vmatpush1.bf16.msra.mxu0 %v7905
        %7934 = vmatprep.subr.bf16.mxu0 0
        %7935 = vmatpush1.bf16.msra.mxu0 %v7906
        %7936 = vmatprep.subr.bf16.mxu0 0
        %7937 = vmatpush1.bf16.msra.mxu0 %v7907
        %7938 = vmatprep.subr.bf16.mxu0 0
        %7939 = vmatpush1.bf16.msra.mxu0 0
        %7940 = vmatprep.subr.bf16.mxu0 0
        %7941 = vmatpush1.bf16.msra.mxu0 0
        %7942 = vmatprep.subr.bf16.mxu0 0
        %7943 = vmatpush1.bf16.msra.mxu0 0
        %7944 = vmatprep.subr.bf16.mxu0 0
        %7945 = vmatpush1.bf16.msra.mxu0 0
        %7946 = vmatprep.subr.bf16.mxu0 0
        %7947 = vmatpush1.bf16.msra.mxu0 0
        %7948 = vmatprep.subr.bf16.mxu0 0
        %7949 = vmatpush1.bf16.msra.mxu0 0
        %7950 = vmatprep.subr.bf16.mxu0 0
        %7951 = vmatpush1.bf16.msra.mxu0 0
        %7952 = vmatprep.mubr.bf16.mxu0 %v7918
        %7953 = vmatmul.mubr.bf16.gmra.mrb[0].mxu0 %v7842
        %v7954 = vpop.f32.mrb[0].mxu0
        %v7955 = vadd.f32 0.0, %v7954
        %v7956 = vpop.f32.mrb[0].mxu0
        %v7957 = vpop.f32.mrb[0].mxu0
        %v7958 = vpop.f32.mrb[0].mxu0
        %7959 = vdwg.mxu0
        %v7960 = vadd.f32 %v7791, %v7955
        %s7961 = scalar_lea.vmem %s5, 16
        %v7962 = vld [vmem:[%s7961] sm:$0xff]
        %v7964 = vunpack.c.l.b16 %v7962
        %v7965 = vunpack.c.h.b16 %v7962
        %v7966 = vpack.c.b16 %v7964, %v7964
        %v7967 = vpack.c.b16 %v7965, %v7965
        %7970 = vmatprep.subr.bf16.mxu0 %v7585
        %7971 = vmatpush1.bf16.msra.mxu0 %v7584
        %7972 = vmatprep.subr.bf16.mxu0 %v7587
        %7973 = vmatpush1.bf16.msra.mxu0 %v7586
        %7974 = vmatprep.subr.bf16.mxu0 %v7589
        %7975 = vmatpush1.bf16.msra.mxu0 %v7588
        %7976 = vmatprep.subr.bf16.mxu0 %v7591
        %7977 = vmatpush1.bf16.msra.mxu0 %v7590
        %7978 = vmatprep.subr.bf16.mxu0 %v7593
        %7979 = vmatpush1.bf16.msra.mxu0 %v7592
        %7980 = vmatprep.subr.bf16.mxu0 %v7595
        %7981 = vmatpush1.bf16.msra.mxu0 %v7594
        %7982 = vmatprep.subr.bf16.mxu0 %v7597
        %7983 = vmatpush1.bf16.msra.mxu0 %v7596
        %7984 = vmatprep.subr.bf16.mxu0 %v7599
        %7985 = vmatpush1.bf16.msra.mxu0 %v7598
        %7986 = vmatprep.subr.bf16.mxu0 %v7601
        %7987 = vmatpush1.bf16.msra.mxu0 %v7600
        %7988 = vmatprep.subr.bf16.mxu0 %v7603
        %7989 = vmatpush1.bf16.msra.mxu0 %v7602
        %7990 = vmatprep.subr.bf16.mxu0 %v7605
        %7991 = vmatpush1.bf16.msra.mxu0 %v7604
        %7992 = vmatprep.subr.bf16.mxu0 %v7607
        %7993 = vmatpush1.bf16.msra.mxu0 %v7606
        %7994 = vmatprep.subr.bf16.mxu0 %v7609
        %7995 = vmatpush1.bf16.msra.mxu0 %v7608
        %7996 = vmatprep.subr.bf16.mxu0 %v7611
        %7997 = vmatpush1.bf16.msra.mxu0 %v7610
        %7998 = vmatprep.subr.bf16.mxu0 %v7613
        %7999 = vmatpush1.bf16.msra.mxu0 %v7612
        %8000 = vmatprep.subr.bf16.mxu0 %v7615
        %8001 = vmatpush1.bf16.msra.mxu0 %v7614
        %8002 = vmatprep.mubr.bf16.mxu0 %v7967
        %8003 = vmatmul.mubr.bf16.gmra.mrb[0].mxu0 %v7966
        %v8004 = vpop.f32.mrb[0].mxu0
        %v8005 = vadd.f32 0.0, %v8004
        %v8006 = vpop.f32.mrb[0].mxu0
        %v8007 = vadd.f32 0.0, %v8006
        %v8008 = vpop.f32.mrb[0].mxu0
        %v8009 = vpop.f32.mrb[0].mxu0
        %8010 = vdwg.mxu0
        %v8011 = vpack.c.bf16 %v8005, %v8005
        %v8012 = vpack.c.bf16 %v8007, %v8007
        %s8013 = scalar_lea.vmem %s6, 144
        %v8014 = vld [vmem:[%s8013] sm:$0xf]
        %v8015 = vld [vmem:[%s8013 + $0x4] sm:$0xf]
        %v8016 = vld [vmem:[%s8013 + $0x8] sm:$0xf]
        %v8017 = vld [vmem:[%s8013 + $0xc] sm:$0xf]
        %v8018 = vld [vmem:[%s8013 + $0x10] sm:$0xf]
        %v8019 = vld [vmem:[%s8013 + $0x14] sm:$0xf]
        %v8020 = vld [vmem:[%s8013 + $0x18] sm:$0xf]
        %v8021 = vld [vmem:[%s8013 + $0x1c] sm:$0xf]
        %v8022 = vld [vmem:[%s8013 + $0x20] sm:$0xf]
        %v8023 = vld [vmem:[%s8013 + $0x24] sm:$0xf]
        %v8024 = vld [vmem:[%s8013 + $0x28] sm:$0xf]
        %v8025 = vld [vmem:[%s8013 + $0x2c] sm:$0xf]
        %v8026 = vld [vmem:[%s8013 + $0x30] sm:$0xf]
        %v8027 = vld [vmem:[%s8013 + $0x34] sm:$0xf]
        %v8028 = vld [vmem:[%s8013 + $0x38] sm:$0xf]
        %v8029 = vld [vmem:[%s8013 + $0x3c] sm:$0xf]
        %v8030 = vld [vmem:[%s8013 + $0x40] sm:$0xf]
        %v8031 = vld [vmem:[%s8013 + $0x44] sm:$0xf]
        %v8050 = vunpack.c.l.b16 %v8014
        %v8051 = vunpack.c.l.b16 %v8015
        %v8052 = vunpack.c.l.b16 %v8016
        %v8053 = vunpack.c.l.b16 %v8017
        %v8054 = vunpack.c.l.b16 %v8018
        %v8055 = vunpack.c.l.b16 %v8019
        %v8056 = vunpack.c.l.b16 %v8020
        %v8057 = vunpack.c.l.b16 %v8021
        %v8058 = vunpack.c.l.b16 %v8022
        %v8059 = vunpack.c.l.b16 %v8023
        %v8060 = vunpack.c.l.b16 %v8024
        %v8061 = vunpack.c.l.b16 %v8025
        %v8062 = vunpack.c.l.b16 %v8026
        %v8063 = vunpack.c.l.b16 %v8027
        %v8064 = vunpack.c.l.b16 %v8028
        %v8065 = vunpack.c.l.b16 %v8029
        %v8066 = vunpack.c.l.b16 %v8030
        %v8067 = vunpack.c.l.b16 %v8031
        %v8068 = vpack.c.b16 %v8051, %v8050
        %v8069 = vpack.c.b16 %v8053, %v8052
        %v8070 = vpack.c.b16 %v8055, %v8054
        %v8071 = vpack.c.b16 %v8057, %v8056
        %v8072 = vpack.c.b16 %v8059, %v8058
        %v8073 = vpack.c.b16 %v8061, %v8060
        %v8074 = vpack.c.b16 %v8063, %v8062
        %v8075 = vpack.c.b16 %v8065, %v8064
        %v8076 = vpack.c.b16 %v8067, %v8066
        %v8087 = vsel %vm7747, %v8012, 0
        %8089 = vmatprep.subr.bf16.mxu0 0
        %8090 = vmatpush1.bf16.msra.mxu0 %v8068
        %8091 = vmatprep.subr.bf16.mxu0 0
        %8092 = vmatpush1.bf16.msra.mxu0 %v8069
        %8093 = vmatprep.subr.bf16.mxu0 0
        %8094 = vmatpush1.bf16.msra.mxu0 %v8070
        %8095 = vmatprep.subr.bf16.mxu0 0
        %8096 = vmatpush1.bf16.msra.mxu0 %v8071
        %8097 = vmatprep.subr.bf16.mxu0 0
        %8098 = vmatpush1.bf16.msra.mxu0 %v8072
        %8099 = vmatprep.subr.bf16.mxu0 0
        %8100 = vmatpush1.bf16.msra.mxu0 %v8073
        %8101 = vmatprep.subr.bf16.mxu0 0
        %8102 = vmatpush1.bf16.msra.mxu0 %v8074
        %8103 = vmatprep.subr.bf16.mxu0 0
        %8104 = vmatpush1.bf16.msra.mxu0 %v8075
        %8105 = vmatprep.subr.bf16.mxu0 0
        %8106 = vmatpush1.bf16.msra.mxu0 %v8076
        %8107 = vmatprep.subr.bf16.mxu0 0
        %8108 = vmatpush1.bf16.msra.mxu0 0
        %8109 = vmatprep.subr.bf16.mxu0 0
        %8110 = vmatpush1.bf16.msra.mxu0 0
        %8111 = vmatprep.subr.bf16.mxu0 0
        %8112 = vmatpush1.bf16.msra.mxu0 0
        %8113 = vmatprep.subr.bf16.mxu0 0
        %8114 = vmatpush1.bf16.msra.mxu0 0
        %8115 = vmatprep.subr.bf16.mxu0 0
        %8116 = vmatpush1.bf16.msra.mxu0 0
        %8117 = vmatprep.subr.bf16.mxu0 0
        %8118 = vmatpush1.bf16.msra.mxu0 0
        %8119 = vmatprep.subr.bf16.mxu0 0
        %8120 = vmatpush1.bf16.msra.mxu0 0
        %8121 = vmatprep.mubr.bf16.mxu0 %v8087
        %8122 = vmatmul.mubr.bf16.gmra.mrb[0].mxu0 %v8011
        %v8123 = vpop.f32.mrb[0].mxu0
        %v8124 = vadd.f32 0.0, %v8123
        %v8125 = vpop.f32.mrb[0].mxu0
        %v8126 = vpop.f32.mrb[0].mxu0
        %v8127 = vpop.f32.mrb[0].mxu0
        %8128 = vdwg.mxu0
        %v8129 = vadd.f32 %v7960, %v8124
        %s8130 = scalar_lea.vmem %s5, 24
        %v8131 = vld [vmem:[%s8130] sm:$0xff]
        %v8133 = vunpack.c.l.b16 %v8131
        %v8134 = vunpack.c.h.b16 %v8131
        %v8135 = vpack.c.b16 %v8133, %v8133
        %v8136 = vpack.c.b16 %v8134, %v8134
        %8139 = vmatprep.subr.bf16.mxu0 %v7585
        %8140 = vmatpush1.bf16.msra.mxu0 %v7584
        %8141 = vmatprep.subr.bf16.mxu0 %v7587
        %8142 = vmatpush1.bf16.msra.mxu0 %v7586
        %8143 = vmatprep.subr.bf16.mxu0 %v7589
        %8144 = vmatpush1.bf16.msra.mxu0 %v7588
        %8145 = vmatprep.subr.bf16.mxu0 %v7591
        %8146 = vmatpush1.bf16.msra.mxu0 %v7590
        %8147 = vmatprep.subr.bf16.mxu0 %v7593
        %8148 = vmatpush1.bf16.msra.mxu0 %v7592
        %8149 = vmatprep.subr.bf16.mxu0 %v7595
        %8150 = vmatpush1.bf16.msra.mxu0 %v7594
        %8151 = vmatprep.subr.bf16.mxu0 %v7597
        %8152 = vmatpush1.bf16.msra.mxu0 %v7596
        %8153 = vmatprep.subr.bf16.mxu0 %v7599
        %8154 = vmatpush1.bf16.msra.mxu0 %v7598
        %8155 = vmatprep.subr.bf16.mxu0 %v7601
        %8156 = vmatpush1.bf16.msra.mxu0 %v7600
        %8157 = vmatprep.subr.bf16.mxu0 %v7603
        %8158 = vmatpush1.bf16.msra.mxu0 %v7602
        %8159 = vmatprep.subr.bf16.mxu0 %v7605
        %8160 = vmatpush1.bf16.msra.mxu0 %v7604
        %8161 = vmatprep.subr.bf16.mxu0 %v7607
        %8162 = vmatpush1.bf16.msra.mxu0 %v7606
        %8163 = vmatprep.subr.bf16.mxu0 %v7609
        %8164 = vmatpush1.bf16.msra.mxu0 %v7608
        %8165 = vmatprep.subr.bf16.mxu0 %v7611
        %8166 = vmatpush1.bf16.msra.mxu0 %v7610
        %8167 = vmatprep.subr.bf16.mxu0 %v7613
        %8168 = vmatpush1.bf16.msra.mxu0 %v7612
        %8169 = vmatprep.subr.bf16.mxu0 %v7615
        %8170 = vmatpush1.bf16.msra.mxu0 %v7614
        %8171 = vmatprep.mubr.bf16.mxu0 %v8136
        %8172 = vmatmul.mubr.bf16.gmra.mrb[0].mxu0 %v8135
        %v8173 = vpop.f32.mrb[0].mxu0
        %v8174 = vadd.f32 0.0, %v8173
        %v8175 = vpop.f32.mrb[0].mxu0
        %v8176 = vadd.f32 0.0, %v8175
        %v8177 = vpop.f32.mrb[0].mxu0
        %v8178 = vpop.f32.mrb[0].mxu0
        %8179 = vdwg.mxu0
        %v8180 = vpack.c.bf16 %v8174, %v8174
        %v8181 = vpack.c.bf16 %v8176, %v8176
        %s8182 = scalar_lea.vmem %s6, 216
        %v8183 = vld [vmem:[%s8182] sm:$0xf]
        %v8184 = vld [vmem:[%s8182 + $0x4] sm:$0xf]
        %v8185 = vld [vmem:[%s8182 + $0x8] sm:$0xf]
        %v8186 = vld [vmem:[%s8182 + $0xc] sm:$0xf]
        %v8187 = vld [vmem:[%s8182 + $0x10] sm:$0xf]
        %v8188 = vld [vmem:[%s8182 + $0x14] sm:$0xf]
        %v8189 = vld [vmem:[%s8182 + $0x18] sm:$0xf]
        %v8190 = vld [vmem:[%s8182 + $0x1c] sm:$0xf]
        %v8191 = vld [vmem:[%s8182 + $0x20] sm:$0xf]
        %v8192 = vld [vmem:[%s8182 + $0x24] sm:$0xf]
        %v8193 = vld [vmem:[%s8182 + $0x28] sm:$0xf]
        %v8194 = vld [vmem:[%s8182 + $0x2c] sm:$0xf]
        %v8195 = vld [vmem:[%s8182 + $0x30] sm:$0xf]
        %v8196 = vld [vmem:[%s8182 + $0x34] sm:$0xf]
        %v8197 = vld [vmem:[%s8182 + $0x38] sm:$0xf]
        %v8198 = vld [vmem:[%s8182 + $0x3c] sm:$0xf]
        %v8199 = vld [vmem:[%s8182 + $0x40] sm:$0xf]
        %v8200 = vld [vmem:[%s8182 + $0x44] sm:$0xf]
        %v8219 = vunpack.c.l.b16 %v8183
        %v8220 = vunpack.c.l.b16 %v8184
        %v8221 = vunpack.c.l.b16 %v8185
        %v8222 = vunpack.c.l.b16 %v8186
        %v8223 = vunpack.c.l.b16 %v8187
        %v8224 = vunpack.c.l.b16 %v8188
        %v8225 = vunpack.c.l.b16 %v8189
        %v8226 = vunpack.c.l.b16 %v8190
        %v8227 = vunpack.c.l.b16 %v8191
        %v8228 = vunpack.c.l.b16 %v8192
        %v8229 = vunpack.c.l.b16 %v8193
        %v8230 = vunpack.c.l.b16 %v8194
        %v8231 = vunpack.c.l.b16 %v8195
        %v8232 = vunpack.c.l.b16 %v8196
        %v8233 = vunpack.c.l.b16 %v8197
        %v8234 = vunpack.c.l.b16 %v8198
        %v8235 = vunpack.c.l.b16 %v8199
        %v8236 = vunpack.c.l.b16 %v8200
        %v8237 = vpack.c.b16 %v8220, %v8219
        %v8238 = vpack.c.b16 %v8222, %v8221
        %v8239 = vpack.c.b16 %v8224, %v8223
        %v8240 = vpack.c.b16 %v8226, %v8225
        %v8241 = vpack.c.b16 %v8228, %v8227
        %v8242 = vpack.c.b16 %v8230, %v8229
        %v8243 = vpack.c.b16 %v8232, %v8231
        %v8244 = vpack.c.b16 %v8234, %v8233
        %v8245 = vpack.c.b16 %v8236, %v8235
        %v8256 = vsel %vm7747, %v8181, 0
        %8258 = vmatprep.subr.bf16.mxu0 0
        %8259 = vmatpush1.bf16.msra.mxu0 %v8237
        %8260 = vmatprep.subr.bf16.mxu0 0
        %8261 = vmatpush1.bf16.msra.mxu0 %v8238
        %8262 = vmatprep.subr.bf16.mxu0 0
        %8263 = vmatpush1.bf16.msra.mxu0 %v8239
        %8264 = vmatprep.subr.bf16.mxu0 0
        %8265 = vmatpush1.bf16.msra.mxu0 %v8240
        %8266 = vmatprep.subr.bf16.mxu0 0
        %8267 = vmatpush1.bf16.msra.mxu0 %v8241
        %8268 = vmatprep.subr.bf16.mxu0 0
        %8269 = vmatpush1.bf16.msra.mxu0 %v8242
        %8270 = vmatprep.subr.bf16.mxu0 0
        %8271 = vmatpush1.bf16.msra.mxu0 %v8243
        %8272 = vmatprep.subr.bf16.mxu0 0
        %8273 = vmatpush1.bf16.msra.mxu0 %v8244
        %8274 = vmatprep.subr.bf16.mxu0 0
        %8275 = vmatpush1.bf16.msra.mxu0 %v8245
        %8276 = vmatprep.subr.bf16.mxu0 0
        %8277 = vmatpush1.bf16.msra.mxu0 0
        %8278 = vmatprep.subr.bf16.mxu0 0
        %8279 = vmatpush1.bf16.msra.mxu0 0
        %8280 = vmatprep.subr.bf16.mxu0 0
        %8281 = vmatpush1.bf16.msra.mxu0 0
        %8282 = vmatprep.subr.bf16.mxu0 0
        %8283 = vmatpush1.bf16.msra.mxu0 0
        %8284 = vmatprep.subr.bf16.mxu0 0
        %8285 = vmatpush1.bf16.msra.mxu0 0
        %8286 = vmatprep.subr.bf16.mxu0 0
        %8287 = vmatpush1.bf16.msra.mxu0 0
        %8288 = vmatprep.subr.bf16.mxu0 0
        %8289 = vmatpush1.bf16.msra.mxu0 0
        %8290 = vmatprep.mubr.bf16.mxu0 %v8256
        %8291 = vmatmul.mubr.bf16.gmra.mrb[0].mxu0 %v8180
        %v8292 = vpop.f32.mrb[0].mxu0
        %v8293 = vadd.f32 0.0, %v8292
        %v8294 = vpop.f32.mrb[0].mxu0
        %v8295 = vpop.f32.mrb[0].mxu0
        %v8296 = vpop.f32.mrb[0].mxu0
        %8297 = vdwg.mxu0
        %v8298 = vadd.f32 %v8129, %v8293
        %s8299 = scalar_lea.vmem %s5, 32
        %v8300 = vld [vmem:[%s8299] sm:$0xff]
        %v8302 = vunpack.c.l.b16 %v8300
        %v8303 = vunpack.c.h.b16 %v8300
        %v8304 = vpack.c.b16 %v8302, %v8302
        %v8305 = vpack.c.b16 %v8303, %v8303
        %8308 = vmatprep.subr.bf16.mxu0 %v7585
        %8309 = vmatpush1.bf16.msra.mxu0 %v7584
        %8310 = vmatprep.subr.bf16.mxu0 %v7587
        %8311 = vmatpush1.bf16.msra.mxu0 %v7586
        %8312 = vmatprep.subr.bf16.mxu0 %v7589
        %8313 = vmatpush1.bf16.msra.mxu0 %v7588
        %8314 = vmatprep.subr.bf16.mxu0 %v7591
        %8315 = vmatpush1.bf16.msra.mxu0 %v7590
        %8316 = vmatprep.subr.bf16.mxu0 %v7593
        %8317 = vmatpush1.bf16.msra.mxu0 %v7592
        %8318 = vmatprep.subr.bf16.mxu0 %v7595
        %8319 = vmatpush1.bf16.msra.mxu0 %v7594
        %8320 = vmatprep.subr.bf16.mxu0 %v7597
        %8321 = vmatpush1.bf16.msra.mxu0 %v7596
        %8322 = vmatprep.subr.bf16.mxu0 %v7599
        %8323 = vmatpush1.bf16.msra.mxu0 %v7598
        %8324 = vmatprep.subr.bf16.mxu0 %v7601
        %8325 = vmatpush1.bf16.msra.mxu0 %v7600
        %8326 = vmatprep.subr.bf16.mxu0 %v7603
        %8327 = vmatpush1.bf16.msra.mxu0 %v7602
        %8328 = vmatprep.subr.bf16.mxu0 %v7605
        %8329 = vmatpush1.bf16.msra.mxu0 %v7604
        %8330 = vmatprep.subr.bf16.mxu0 %v7607
        %8331 = vmatpush1.bf16.msra.mxu0 %v7606
        %8332 = vmatprep.subr.bf16.mxu0 %v7609
        %8333 = vmatpush1.bf16.msra.mxu0 %v7608
        %8334 = vmatprep.subr.bf16.mxu0 %v7611
        %8335 = vmatpush1.bf16.msra.mxu0 %v7610
        %8336 = vmatprep.subr.bf16.mxu0 %v7613
        %8337 = vmatpush1.bf16.msra.mxu0 %v7612
        %8338 = vmatprep.subr.bf16.mxu0 %v7615
        %8339 = vmatpush1.bf16.msra.mxu0 %v7614
        %8340 = vmatprep.mubr.bf16.mxu0 %v8305
        %8341 = vmatmul.mubr.bf16.gmra.mrb[0].mxu0 %v8304
        %v8342 = vpop.f32.mrb[0].mxu0
        %v8343 = vadd.f32 0.0, %v8342
        %v8344 = vpop.f32.mrb[0].mxu0
        %v8345 = vadd.f32 0.0, %v8344
        %v8346 = vpop.f32.mrb[0].mxu0
        %v8347 = vpop.f32.mrb[0].mxu0
        %8348 = vdwg.mxu0
        %v8349 = vpack.c.bf16 %v8343, %v8343
        %v8350 = vpack.c.bf16 %v8345, %v8345
        %s8351 = scalar_lea.vmem %s6, 288
        %v8352 = vld [vmem:[%s8351] sm:$0xf]
        %v8353 = vld [vmem:[%s8351 + $0x4] sm:$0xf]
        %v8354 = vld [vmem:[%s8351 + $0x8] sm:$0xf]
        %v8355 = vld [vmem:[%s8351 + $0xc] sm:$0xf]
        %v8356 = vld [vmem:[%s8351 + $0x10] sm:$0xf]
        %v8357 = vld [vmem:[%s8351 + $0x14] sm:$0xf]
        %v8358 = vld [vmem:[%s8351 + $0x18] sm:$0xf]
        %v8359 = vld [vmem:[%s8351 + $0x1c] sm:$0xf]
        %v8360 = vld [vmem:[%s8351 + $0x20] sm:$0xf]
        %v8361 = vld [vmem:[%s8351 + $0x24] sm:$0xf]
        %v8362 = vld [vmem:[%s8351 + $0x28] sm:$0xf]
        %v8363 = vld [vmem:[%s8351 + $0x2c] sm:$0xf]
        %v8364 = vld [vmem:[%s8351 + $0x30] sm:$0xf]
        %v8365 = vld [vmem:[%s8351 + $0x34] sm:$0xf]
        %v8366 = vld [vmem:[%s8351 + $0x38] sm:$0xf]
        %v8367 = vld [vmem:[%s8351 + $0x3c] sm:$0xf]
        %v8368 = vld [vmem:[%s8351 + $0x40] sm:$0xf]
        %v8369 = vld [vmem:[%s8351 + $0x44] sm:$0xf]
        %v8388 = vunpack.c.l.b16 %v8352
        %v8389 = vunpack.c.l.b16 %v8353
        %v8390 = vunpack.c.l.b16 %v8354
        %v8391 = vunpack.c.l.b16 %v8355
        %v8392 = vunpack.c.l.b16 %v8356
        %v8393 = vunpack.c.l.b16 %v8357
        %v8394 = vunpack.c.l.b16 %v8358
        %v8395 = vunpack.c.l.b16 %v8359
        %v8396 = vunpack.c.l.b16 %v8360
        %v8397 = vunpack.c.l.b16 %v8361
        %v8398 = vunpack.c.l.b16 %v8362
        %v8399 = vunpack.c.l.b16 %v8363
        %v8400 = vunpack.c.l.b16 %v8364
        %v8401 = vunpack.c.l.b16 %v8365
        %v8402 = vunpack.c.l.b16 %v8366
        %v8403 = vunpack.c.l.b16 %v8367
        %v8404 = vunpack.c.l.b16 %v8368
        %v8405 = vunpack.c.l.b16 %v8369
        %v8406 = vpack.c.b16 %v8389, %v8388
        %v8407 = vpack.c.b16 %v8391, %v8390
        %v8408 = vpack.c.b16 %v8393, %v8392
        %v8409 = vpack.c.b16 %v8395, %v8394
        %v8410 = vpack.c.b16 %v8397, %v8396
        %v8411 = vpack.c.b16 %v8399, %v8398
        %v8412 = vpack.c.b16 %v8401, %v8400
        %v8413 = vpack.c.b16 %v8403, %v8402
        %v8414 = vpack.c.b16 %v8405, %v8404
        %v8425 = vsel %vm7747, %v8350, 0
        %8427 = vmatprep.subr.bf16.mxu0 0
        %8428 = vmatpush1.bf16.msra.mxu0 %v8406
        %8429 = vmatprep.subr.bf16.mxu0 0
        %8430 = vmatpush1.bf16.msra.mxu0 %v8407
        %8431 = vmatprep.subr.bf16.mxu0 0
        %8432 = vmatpush1.bf16.msra.mxu0 %v8408
        %8433 = vmatprep.subr.bf16.mxu0 0
        %8434 = vmatpush1.bf16.msra.mxu0 %v8409
        %8435 = vmatprep.subr.bf16.mxu0 0
        %8436 = vmatpush1.bf16.msra.mxu0 %v8410
        %8437 = vmatprep.subr.bf16.mxu0 0
        %8438 = vmatpush1.bf16.msra.mxu0 %v8411
        %8439 = vmatprep.subr.bf16.mxu0 0
        %8440 = vmatpush1.bf16.msra.mxu0 %v8412
        %8441 = vmatprep.subr.bf16.mxu0 0
        %8442 = vmatpush1.bf16.msra.mxu0 %v8413
        %8443 = vmatprep.subr.bf16.mxu0 0
        %8444 = vmatpush1.bf16.msra.mxu0 %v8414
        %8445 = vmatprep.subr.bf16.mxu0 0
        %8446 = vmatpush1.bf16.msra.mxu0 0
        %8447 = vmatprep.subr.bf16.mxu0 0
        %8448 = vmatpush1.bf16.msra.mxu0 0
        %8449 = vmatprep.subr.bf16.mxu0 0
        %8450 = vmatpush1.bf16.msra.mxu0 0
        %8451 = vmatprep.subr.bf16.mxu0 0
        %8452 = vmatpush1.bf16.msra.mxu0 0
        %8453 = vmatprep.subr.bf16.mxu0 0
        %8454 = vmatpush1.bf16.msra.mxu0 0
        %8455 = vmatprep.subr.bf16.mxu0 0
        %8456 = vmatpush1.bf16.msra.mxu0 0
        %8457 = vmatprep.subr.bf16.mxu0 0
        %8458 = vmatpush1.bf16.msra.mxu0 0
        %8459 = vmatprep.mubr.bf16.mxu0 %v8425
        %8460 = vmatmul.mubr.bf16.gmra.mrb[0].mxu0 %v8349
        %v8461 = vpop.f32.mrb[0].mxu0
        %v8462 = vadd.f32 0.0, %v8461
        %v8463 = vpop.f32.mrb[0].mxu0
        %v8464 = vpop.f32.mrb[0].mxu0
        %v8465 = vpop.f32.mrb[0].mxu0
        %8466 = vdwg.mxu0
        %v8467 = vadd.f32 %v8298, %v8462
        %v8468 = vmax.f32 %v8467, 0.0
        %v8469 = vpack.c.bf16 %v8468, %v8468
        %v8470 = vld [vmem:[%s8] sm:$0xf]
        %v8471 = vld [vmem:[%s8 + $0x4] sm:$0xf]
        %v8472 = vld [vmem:[%s8 + $0x8] sm:$0xf]
        %v8473 = vld [vmem:[%s8 + $0xc] sm:$0xf]
        %v8474 = vld [vmem:[%s8 + $0x10] sm:$0xf]
        %v8475 = vld [vmem:[%s8 + $0x14] sm:$0xf]
        %v8476 = vld [vmem:[%s8 + $0x18] sm:$0xf]
        %v8477 = vld [vmem:[%s8 + $0x1c] sm:$0xf]
        %v8478 = vld [vmem:[%s8 + $0x20] sm:$0xf]
        %v8479 = vld [vmem:[%s8 + $0x24] sm:$0xf]
        %v8480 = vld [vmem:[%s8 + $0x28] sm:$0xf]
        %v8481 = vld [vmem:[%s8 + $0x2c] sm:$0xf]
        %v8482 = vld [vmem:[%s8 + $0x30] sm:$0xf]
        %v8483 = vld [vmem:[%s8 + $0x34] sm:$0xf]
        %v8484 = vld [vmem:[%s8 + $0x38] sm:$0xf]
        %v8485 = vld [vmem:[%s8 + $0x3c] sm:$0xf]
        %v8486 = vld [vmem:[%s9] sm:$0x1]
        %v8488 = vlaneseq
        %v8489 = vshrl.u32 %v8488, 7
        %v8490 = vsub.s32 0, %v8489
        %v8491 = vrot.slane %v8486, %v8490
        %v8509 = vunpack.c.l.b16 %v8470
        %v8510 = vunpack.c.l.b16 %v8471
        %v8511 = vunpack.c.l.b16 %v8472
        %v8512 = vunpack.c.l.b16 %v8473
        %v8513 = vunpack.c.l.b16 %v8474
        %v8514 = vunpack.c.l.b16 %v8475
        %v8515 = vunpack.c.l.b16 %v8476
        %v8516 = vunpack.c.l.b16 %v8477
        %v8517 = vunpack.c.l.b16 %v8478
        %v8518 = vunpack.c.l.b16 %v8479
        %v8519 = vunpack.c.l.b16 %v8480
        %v8520 = vunpack.c.l.b16 %v8481
        %v8521 = vunpack.c.l.b16 %v8482
        %v8522 = vunpack.c.l.b16 %v8483
        %v8523 = vunpack.c.l.b16 %v8484
        %v8524 = vunpack.c.l.b16 %v8485
        %v8525 = vpack.c.b16 %v8510, %v8509
        %v8526 = vpack.c.b16 %v8512, %v8511
        %v8527 = vpack.c.b16 %v8514, %v8513
        %v8528 = vpack.c.b16 %v8516, %v8515
        %v8529 = vpack.c.b16 %v8518, %v8517
        %v8530 = vpack.c.b16 %v8520, %v8519
        %v8531 = vpack.c.b16 %v8522, %v8521
        %v8532 = vpack.c.b16 %v8524, %v8523
        %8541 = vmatprep.subr.bf16.mxu0 0
        %8542 = vmatpush1.bf16.msra.mxu0 %v8525
        %8543 = vmatprep.subr.bf16.mxu0 0
        %8544 = vmatpush1.bf16.msra.mxu0 %v8526
        %8545 = vmatprep.subr.bf16.mxu0 0
        %8546 = vmatpush1.bf16.msra.mxu0 %v8527
        %8547 = vmatprep.subr.bf16.mxu0 0
        %8548 = vmatpush1.bf16.msra.mxu0 %v8528
        %8549 = vmatprep.subr.bf16.mxu0 0
        %8550 = vmatpush1.bf16.msra.mxu0 %v8529
        %8551 = vmatprep.subr.bf16.mxu0 0
        %8552 = vmatpush1.bf16.msra.mxu0 %v8530
        %8553 = vmatprep.subr.bf16.mxu0 0
        %8554 = vmatpush1.bf16.msra.mxu0 %v8531
        %8555 = vmatprep.subr.bf16.mxu0 0
        %8556 = vmatpush1.bf16.msra.mxu0 %v8532
        %8557 = vmatprep.subr.bf16.mxu0 0
        %8558 = vmatpush1.bf16.msra.mxu0 0
        %8559 = vmatprep.subr.bf16.mxu0 0
        %8560 = vmatpush1.bf16.msra.mxu0 0
        %8561 = vmatprep.subr.bf16.mxu0 0
        %8562 = vmatpush1.bf16.msra.mxu0 0
        %8563 = vmatprep.subr.bf16.mxu0 0
        %8564 = vmatpush1.bf16.msra.mxu0 0
        %8565 = vmatprep.subr.bf16.mxu0 0
        %8566 = vmatpush1.bf16.msra.mxu0 0
        %8567 = vmatprep.subr.bf16.mxu0 0
        %8568 = vmatpush1.bf16.msra.mxu0 0
        %8569 = vmatprep.subr.bf16.mxu0 0
        %8570 = vmatpush1.bf16.msra.mxu0 0
        %8571 = vmatprep.subr.bf16.mxu0 0
        %8572 = vmatpush1.bf16.msra.mxu0 0
        %8573 = vmatprep.mubr.bf16.mxu0 0
        %8574 = vmatmul.mubr.bf16.gmra.mrb[0].mxu0 %v8469
        %v8575 = vpop.f32.mrb[0].mxu0
        %v8576 = vadd.f32 %v8491, %v8575
        %v8577 = vpop.f32.mrb[0].mxu0
        %v8578 = vpop.f32.mrb[0].mxu0
        %v8579 = vpop.f32.mrb[0].mxu0
        %8580 = vdwg.mxu0
        %v8581 = vmax.f32 %v8576, 0.0
        %v8582 = vpack.c.bf16 %v8581, %v8581
        %v8583 = vld [vmem:[%s10] sm:$0xf]
        %v8584 = vld [vmem:[%s10 + $0x4] sm:$0xf]
        %v8585 = vld [vmem:[%s10 + $0x8] sm:$0xf]
        %v8586 = vld [vmem:[%s10 + $0xc] sm:$0xf]
        %v8587 = vld [vmem:[%s10 + $0x10] sm:$0xf]
        %v8588 = vld [vmem:[%s10 + $0x14] sm:$0xf]
        %v8589 = vld [vmem:[%s10 + $0x18] sm:$0xf]
        %v8590 = vld [vmem:[%s10 + $0x1c] sm:$0xf]
        %v8591 = vld [vmem:[%s10 + $0x20] sm:$0xf]
        %v8592 = vld [vmem:[%s10 + $0x24] sm:$0xf]
        %v8593 = vld [vmem:[%s10 + $0x28] sm:$0xf]
        %v8594 = vld [vmem:[%s10 + $0x2c] sm:$0xf]
        %v8595 = vld [vmem:[%s10 + $0x30] sm:$0xf]
        %v8596 = vld [vmem:[%s10 + $0x34] sm:$0xf]
        %v8597 = vld [vmem:[%s10 + $0x38] sm:$0xf]
        %v8598 = vld [vmem:[%s10 + $0x3c] sm:$0xf]
        %v8599 = vld [vmem:[%s11] sm:$0x1]
        %v8601 = vlaneseq
        %v8602 = vshrl.u32 %v8601, 7
        %v8603 = vsub.s32 0, %v8602
        %v8604 = vrot.slane %v8599, %v8603
        %v8622 = vunpack.c.l.b16 %v8583
        %v8623 = vunpack.c.l.b16 %v8584
        %v8624 = vunpack.c.l.b16 %v8585
        %v8625 = vunpack.c.l.b16 %v8586
        %v8626 = vunpack.c.l.b16 %v8587
        %v8627 = vunpack.c.l.b16 %v8588
        %v8628 = vunpack.c.l.b16 %v8589
        %v8629 = vunpack.c.l.b16 %v8590
        %v8630 = vunpack.c.l.b16 %v8591
        %v8631 = vunpack.c.l.b16 %v8592
        %v8632 = vunpack.c.l.b16 %v8593
        %v8633 = vunpack.c.l.b16 %v8594
        %v8634 = vunpack.c.l.b16 %v8595
        %v8635 = vunpack.c.l.b16 %v8596
        %v8636 = vunpack.c.l.b16 %v8597
        %v8637 = vunpack.c.l.b16 %v8598
        %v8638 = vpack.c.b16 %v8623, %v8622
        %v8639 = vpack.c.b16 %v8625, %v8624
        %v8640 = vpack.c.b16 %v8627, %v8626
        %v8641 = vpack.c.b16 %v8629, %v8628
        %v8642 = vpack.c.b16 %v8631, %v8630
        %v8643 = vpack.c.b16 %v8633, %v8632
        %v8644 = vpack.c.b16 %v8635, %v8634
        %v8645 = vpack.c.b16 %v8637, %v8636
        %8654 = vmatprep.subr.bf16.mxu0 0
        %8655 = vmatpush1.bf16.msra.mxu0 %v8638
        %8656 = vmatprep.subr.bf16.mxu0 0
        %8657 = vmatpush1.bf16.msra.mxu0 %v8639
        %8658 = vmatprep.subr.bf16.mxu0 0
        %8659 = vmatpush1.bf16.msra.mxu0 %v8640
        %8660 = vmatprep.subr.bf16.mxu0 0
        %8661 = vmatpush1.bf16.msra.mxu0 %v8641
        %8662 = vmatprep.subr.bf16.mxu0 0
        %8663 = vmatpush1.bf16.msra.mxu0 %v8642
        %8664 = vmatprep.subr.bf16.mxu0 0
        %8665 = vmatpush1.bf16.msra.mxu0 %v8643
        %8666 = vmatprep.subr.bf16.mxu0 0
        %8667 = vmatpush1.bf16.msra.mxu0 %v8644
        %8668 = vmatprep.subr.bf16.mxu0 0
        %8669 = vmatpush1.bf16.msra.mxu0 %v8645
        %8670 = vmatprep.subr.bf16.mxu0 0
        %8671 = vmatpush1.bf16.msra.mxu0 0
        %8672 = vmatprep.subr.bf16.mxu0 0
        %8673 = vmatpush1.bf16.msra.mxu0 0
        %8674 = vmatprep.subr.bf16.mxu0 0
        %8675 = vmatpush1.bf16.msra.mxu0 0
        %8676 = vmatprep.subr.bf16.mxu0 0
        %8677 = vmatpush1.bf16.msra.mxu0 0
        %8678 = vmatprep.subr.bf16.mxu0 0
        %8679 = vmatpush1.bf16.msra.mxu0 0
        %8680 = vmatprep.subr.bf16.mxu0 0
        %8681 = vmatpush1.bf16.msra.mxu0 0
        %8682 = vmatprep.subr.bf16.mxu0 0
        %8683 = vmatpush1.bf16.msra.mxu0 0
        %8684 = vmatprep.subr.bf16.mxu0 0
        %8685 = vmatpush1.bf16.msra.mxu0 0
        %8686 = vmatprep.mubr.bf16.mxu0 0
        %8687 = vmatmul.mubr.bf16.gmra.mrb[0].mxu0 %v8582
        %v8688 = vpop.f32.mrb[0].mxu0
        %v8689 = vadd.f32 %v8604, %v8688
        %v8690 = vpop.f32.mrb[0].mxu0
        %v8691 = vpop.f32.mrb[0].mxu0
        %v8692 = vpop.f32.mrb[0].mxu0
        %8693 = vdwg.mxu0
        %8694 = vst [vmem:[%s406] sm:$0xff] %v8689
        %s8695 = sand.u32 %s291, 1
        %s8696 = scalar_lea.sflag [#allocation6], %s8695
        %s8697 = sand.u32 %s291, 1
        %s8698 = smul.addr %s8697, 8
        %s8699 = scalar_lea.vmem [#allocation5], %s8698
        // Predicated region
        $region69: #{lenet_forward.1} parent=67 // pred_check
          %p8700 = pneg %p301
        $region70: #{lenet_forward.1} parent=67 // pred_check_branch
          %8702 = sbr.rel (%p8700) target = $region72
        $region71: #{lenet_forward.1} parent=67 // pred_region
          %s8704 = ssub.s32 128, 128
          %8705 = vsyncadd %s8696, %s8704
          %s8706 = smul.addr %s26, 128
          %s8707 = scalar_lea.hbm %s12, %s8706
          %s8709 = sshll.u32 %s8699, 4
          %s8710 = int_to_ptr.vmem [resolvable:$true] %s8709
          %8712 = dma.vmem_to_hbm [thread:$0]  %s8710, 128, %s8707, %s8696
        $region72: #{lenet_forward.1} parent=67 // pred_fallthru
          _
      $region68: #{lenet_forward.1} parent=5 // pred_fallthru
        _
      %p8713 = scmp.le.s32.totalorder 2, %s21
      // Predicated region
      $region73: #{lenet_forward.1} parent=5 // pred_check
        %p8714 = pneg %p8713
      $region74: #{lenet_forward.1} parent=5 // pred_check_branch
        %8716 = sbr.rel (%p8714) target = $region76
      $region75: #{lenet_forward.1} parent=5 // pred_region
        %s8717 = ssub.s32 %s21, 2
        // Predicated region
        $region77: #{lenet_forward.1} parent=75 // pred_check
          %p8718 = pneg %p307
        $region78: #{lenet_forward.1} parent=75 // pred_check_branch
          %8720 = sbr.rel (%p8718) target = $region80
        $region79: #{lenet_forward.1} parent=75 // pred_region
          %s8721 = sand.u32 %s292, 1
          %s8722 = scalar_lea.sflag [#allocation6], %s8721
          %s8723 = sand.u32 %s292, 1
          %s8724 = smul.addr %s8723, 8
          %s8725 = scalar_lea.vmem [#allocation5], %s8724
          %8726 = dma.done %s8722, 128
        $region80: #{lenet_forward.1} parent=75 // pred_fallthru
          _
      $region76: #{lenet_forward.1} parent=5 // pred_fallthru
        _
    $region6: #{lenet_forward.1} parent=1 // loop_footer
      %s25 = sadd.s32 1, %s21
    $region7: #{lenet_forward.1} parent=1 // loop_footer_branch
      %20 = sbr.rel target = $region3
    $region8: #{lenet_forward.1} parent=1 // loop_exit
      _
    %8727 = vsyncpa [#allocation6], 1
    %s8728 = scalar_lea.sflag [#allocation6], 1
    %8729 = vsyncpa %s8728, 1

</llo_original>
